<compile_context>
chip_gen: v5e
topology: v5e:2x2
jax: 0.10.0
libtpu: 0.0.40
codegen_flags: <defaults>
</compile_context>

<pallas_src>
import functools

import jax
import jax.numpy as jnp
from jax.experimental import pallas as pl
from jax.experimental.pallas import tpu as pltpu


# ----------------------------------------------------------------------------
# Generation-aware VMEM budget
# ----------------------------------------------------------------------------
def _compute_vmem_limit():
    cap = 64 * 1024 * 1024          # conservative fallback (assume smallest: v7x)
    try:
        info = pltpu.get_tpu_info()
        cap = int(info.vmem_capacity_bytes)
    except Exception:
        pass
    # half of physical, clamped: 32 MiB on v7x (64 MiB VMEM), 64 MiB on v5e/v6e (128 MiB)
    return int(min(max(cap // 2, 16 * 1024 * 1024), 64 * 1024 * 1024))


_VMEM_LIMIT = _compute_vmem_limit()


# ----------------------------------------------------------------------------
# Small helpers
# ----------------------------------------------------------------------------
def _round_up(x, m):
    return (x + m - 1) // m * m


def _pick_row_tile(m, max_tile=1024):
    """Row tile (power of two, multiple of 8, <= max_tile) and padded row extent."""
    mp8 = _round_up(m, 8)
    t = max_tile
    while t > mp8:
        t //= 2
    t = max(t, 8)
    return t, _round_up(mp8, t)


def _pick_k_tile(kp, max_tile=512):
    """Largest multiple of 128 (<= max_tile) that divides kp (kp is a multiple of 128)."""
    best = 128
    t = 128
    while t <= max_tile:
        if kp % t == 0:
            best = t
        t += 128
    return best


def _largest_divisor_tile(mp, max_tile=2048):
    """Largest power-of-two tile (>=8) dividing mp (mp is always a multiple of 8)."""
    t = max_tile
    while t > 8 and mp % t != 0:
        t //= 2
    return t


def _pad_2d(x, rows, cols, dtype=None):
    """Zero-pad a 2-D array up to (rows, cols); no extra copy when already aligned."""
    if dtype is not None and x.dtype != dtype:
        x = x.astype(dtype)
    r, c = x.shape
    if r == rows and c == cols:
        return x
    return jnp.pad(x, ((0, rows - r), (0, cols - c)))


# ----------------------------------------------------------------------------
# Pallas kernel 1: tiled GEMM (bf16 in, f32 accumulate) + fused BN-stats epilogue
#   Outputs:
#     o    : (Mp, Np) bf16 activation (padded rows/cols exactly zero: no bias)
#     psum : (gm*8, Np) f32 per-M-tile partial column sums (row 0 of each 8-group)
#     psq  : (gm*8, Np) f32 per-M-tile partial column sums of squares
#   Partials are written exactly once per (i, j) tile -> no output revisits, so the
#   M and N grid axes stay "parallel" (megacore safe); K is the "arbitrary" reduction.
# ----------------------------------------------------------------------------
def _matmul_stats_kernel(a_ref, b_ref, o_ref, psum_ref, psq_ref, acc_ref):
    @pl.when(pl.program_id(2) == 0)
    def _():
        acc_ref[...] = jnp.zeros_like(acc_ref)

    acc_ref[...] += jnp.dot(a_ref[...], b_ref[...],
                            preferred_element_type=jnp.float32)

    @pl.when(pl.program_id(2) == pl.num_programs(2) - 1)
    def _():
        acc = acc_ref[...]
        o_ref[...] = acc.astype(o_ref.dtype)
        s = jnp.sum(acc, axis=0, keepdims=True)          # (1, tn)
        q = jnp.sum(acc * acc, axis=0, keepdims=True)    # (1, tn)
        psum_ref[...] = jnp.broadcast_to(s, psum_ref.shape)
        psq_ref[...] = jnp.broadcast_to(q, psq_ref.shape)


def matmul_stats_padded(a, b, *, out_dtype=jnp.bfloat16):
    """a: (M, K), b: (K, N), no bias.  Returns (padded (Mp, Np) out_dtype result,
    per-M-tile partial column sums, partial column sums of squares)."""
    M, K = a.shape
    Kb, N = b.shape
    assert K == Kb

    tm, Mp = _pick_row_tile(M, 1024)
    Kp = _round_up(K, 128)
    tk = _pick_k_tile(Kp, 512)
    Np = _round_up(N, 128)
    tn = min(256, Np)

    a_p = _pad_2d(a, Mp, Kp, jnp.bfloat16)               # bf16 MXU inputs
    b_p = _pad_2d(b, Kp, Np, jnp.bfloat16)

    gm, gn, gk = Mp // tm, Np // tn, Kp // tk
    out, psum, psq = pl.pallas_call(
        _matmul_stats_kernel,
        out_shape=(jax.ShapeDtypeStruct((Mp, Np), out_dtype),
                   jax.ShapeDtypeStruct((gm * 8, Np), jnp.float32),
                   jax.ShapeDtypeStruct((gm * 8, Np), jnp.float32)),
        grid_spec=pltpu.PrefetchScalarGridSpec(
            num_scalar_prefetch=0,
            grid=(gm, gn, gk),                            # K (reduction) last
            in_specs=[
                pl.BlockSpec((tm, tk), lambda i, j, k: (i, k)),
                pl.BlockSpec((tk, tn), lambda i, j, k: (k, j)),
            ],
            out_specs=[
                pl.BlockSpec((tm, tn), lambda i, j, k: (i, j)),
                pl.BlockSpec((8, tn), lambda i, j, k: (i, j)),
                pl.BlockSpec((8, tn), lambda i, j, k: (i, j)),
            ],
            scratch_shapes=[pltpu.VMEM((tm, tn), jnp.float32)],
        ),
        compiler_params=pltpu.CompilerParams(
            dimension_semantics=("parallel", "parallel", "arbitrary"),
            vmem_limit_bytes=_VMEM_LIMIT,
        ),
    )(a_p, b_p)
    return out, psum, psq


# ----------------------------------------------------------------------------
# Pallas kernel 2: tiled GEMM with bias epilogue (final conv only, f32 output)
# ----------------------------------------------------------------------------
def _matmul_bias_kernel(a_ref, b_ref, bias_ref, o_ref, acc_ref):
    @pl.when(pl.program_id(2) == 0)
    def _():
        acc_ref[...] = jnp.zeros_like(acc_ref)

    acc_ref[...] += jnp.dot(a_ref[...], b_ref[...],
                            preferred_element_type=jnp.float32)

    @pl.when(pl.program_id(2) == pl.num_programs(2) - 1)
    def _():
        o_ref[...] = acc_ref[...] + bias_ref[...]


def matmul_bias_padded(a, b, bias):
    M, K = a.shape
    Kb, N = b.shape
    assert K == Kb

    tm, Mp = _pick_row_tile(M, 1024)
    Kp = _round_up(K, 128)
    tk = _pick_k_tile(Kp, 512)
    Np = _round_up(N, 128)
    tn = min(256, Np)

    a_p = _pad_2d(a, Mp, Kp, jnp.bfloat16)
    b_p = _pad_2d(b, Kp, Np, jnp.bfloat16)
    bias_p = _pad_2d(bias.reshape(1, N).astype(jnp.float32), 1, Np)

    grid = (Mp // tm, Np // tn, Kp // tk)
    return pl.pallas_call(
        _matmul_bias_kernel,
        out_shape=jax.ShapeDtypeStruct((Mp, Np), jnp.float32),
        grid_spec=pltpu.PrefetchScalarGridSpec(
            num_scalar_prefetch=0,
            grid=grid,
            in_specs=[
                pl.BlockSpec((tm, tk), lambda i, j, k: (i, k)),
                pl.BlockSpec((tk, tn), lambda i, j, k: (k, j)),
                pl.BlockSpec((1, tn), lambda i, j, k: (0, j)),
            ],
            out_specs=pl.BlockSpec((tm, tn), lambda i, j, k: (i, j)),
            scratch_shapes=[pltpu.VMEM((tm, tn), jnp.float32)],
        ),
        compiler_params=pltpu.CompilerParams(
            dimension_semantics=("parallel", "parallel", "arbitrary"),
            vmem_limit_bytes=_VMEM_LIMIT,
        ),
    )(a_p, b_p, bias_p)


# ----------------------------------------------------------------------------
# Pallas kernel 3: tiled BN apply (+ ReLU / + residual), bf16 in/out, f32 math
# ----------------------------------------------------------------------------
def _bn_apply_kernel(x_ref, sc_ref, sh_ref, o_ref, *, relu):
    y = x_ref[...].astype(jnp.float32) * sc_ref[...] + sh_ref[...]
    if relu:
        y = jnp.maximum(y, 0.0)
    o_ref[...] = y.astype(o_ref.dtype)


def _bn_apply_res_kernel(x_ref, sc_ref, sh_ref, r_ref, o_ref, *, relu):
    y = (x_ref[...].astype(jnp.float32) * sc_ref[...] + sh_ref[...]
         + r_ref[...].astype(jnp.float32))
    if relu:
        y = jnp.maximum(y, 0.0)
    o_ref[...] = y.astype(o_ref.dtype)


def bn_apply_padded(x_pad, scale_p, shift_p, *, relu, residual_pad=None):
    """Elementwise y = x*scale + shift [+ residual] [relu], bf16 output, lane-dense."""
    Mp, Cp = x_pad.shape
    tm = _largest_divisor_tile(Mp, 2048)                 # large tiles: amortize per-step cost
    n_tiles = Mp // tm

    x_spec = pl.BlockSpec((tm, Cp), lambda i: (i, 0))
    v_spec = pl.BlockSpec((1, Cp), lambda i: (0, 0))
    common = dict(
        out_shape=jax.ShapeDtypeStruct((Mp, Cp), jnp.bfloat16),
        compiler_params=pltpu.CompilerParams(
            dimension_semantics=("parallel",),
            vmem_limit_bytes=_VMEM_LIMIT,
        ),
    )
    if residual_pad is None:
        return pl.pallas_call(
            functools.partial(_bn_apply_kernel, relu=relu),
            grid_spec=pltpu.PrefetchScalarGridSpec(
                num_scalar_prefetch=0, grid=(n_tiles,),
                in_specs=[x_spec, v_spec, v_spec],
                out_specs=x_spec),
            **common,
        )(x_pad, scale_p, shift_p)
    return pl.pallas_call(
        functools.partial(_bn_apply_res_kernel, relu=relu),
        grid_spec=pltpu.PrefetchScalarGridSpec(
            num_scalar_prefetch=0, grid=(n_tiles,),
            in_specs=[x_spec, v_spec, v_spec, x_spec],
            out_specs=x_spec),
        **common,
    )(x_pad, scale_p, shift_p, residual_pad)


# ----------------------------------------------------------------------------
# Stats finalization (tiny, plain JAX)
# ----------------------------------------------------------------------------
def _finalize_partials(psum, psq):
    """(gm*8, Np) partials -> (Np,) column totals (row 0 of each 8-row group)."""
    gm = psum.shape[0] // 8
    s = psum.reshape(gm, 8, -1)[:, 0, :].sum(axis=0)
    q = psq.reshape(gm, 8, -1)[:, 0, :].sum(axis=0)
    return s, q


def _bn_coeffs(s, q, count, gamma, beta, eps=1e-5):
    """Per-channel scale/shift from per-channel sum / sumsq (training-mode batch stats)."""
    mean = s / count
    var = jnp.maximum(q / count - mean * mean, 0.0)       # biased variance (training BN)
    rstd = jax.lax.rsqrt(var + eps)
    scale = gamma.astype(jnp.float32) * rstd
    shift = beta.astype(jnp.float32) - mean * scale
    return scale, shift


# ----------------------------------------------------------------------------
# Conv wrappers (im2col glue in plain JAX, GEMM + BN in Pallas)
# ----------------------------------------------------------------------------
def _im2col(x, ksize, stride):
    """x: (N, Hp, Wp, C) already padded -> (N*OH*OW, K*K*C), OH, OW."""
    N, Hp, Wp, C = x.shape
    OH = (Hp - ksize) // stride + 1
    OW = (Wp - ksize) // stride + 1
    cols = []
    for dh in range(ksize):
        for dw in range(ksize):
            cols.append(x[:, dh:dh + stride * OH:stride, dw:dw + stride * OW:stride, :])
    patches = jnp.stack(cols, axis=3)                     # (N, OH, OW, K*K, C)
    return patches.reshape(N * OH * OW, ksize * ksize * C), OH, OW


def _conv_gemm_stats(x, w, *, stride, pad, pad_mode):
    """conv (no bias) via im2col + stats GEMM. Returns padded bf16 out + partials."""
    Cout, Cin, K, _ = w.shape
    x = x.astype(jnp.bfloat16)                            # no-op for bf16 inter-layer acts
    if pad > 0:
        mode = "reflect" if pad_mode == "reflect" else "constant"
        x = jnp.pad(x, ((0, 0), (pad, pad), (pad, pad), (0, 0)), mode=mode)
    a, OH, OW = _im2col(x, K, stride)
    wm = jnp.transpose(w, (2, 3, 1, 0)).reshape(K * K * Cin, Cout)
    out_pad, psum, psq = matmul_stats_padded(a, wm)
    return out_pad, psum, psq, (x.shape[0], OH, OW, Cout)


def conv_bn(x, w, gamma, beta, *, stride, pad, pad_mode, relu, residual_pad=None):
    """conv (no bias) -> BatchNorm (batch stats, fused into GEMM) [+ residual] [+ ReLU].

    Stats rely on the invariant that padded rows/cols of the GEMM output are exactly
    zero (true because the conv has no bias and A/B paddings are zero).
    Returns (NHWC bf16 view, padded (Mp, Cp) bf16 output) so resnet blocks can carry
    the residual in the padded layout.
    """
    out_pad, psum, psq, (N, OH, OW, C) = _conv_gemm_stats(
        x, w, stride=stride, pad=pad, pad_mode=pad_mode)
    M = N * OH * OW
    Mp, Cp = out_pad.shape

    s, q = _finalize_partials(psum, psq)
    scale, shift = _bn_coeffs(s[:C], q[:C], float(M), gamma, beta)
    scale_p = _pad_2d(scale.reshape(1, C), 1, Cp)
    shift_p = _pad_2d(shift.reshape(1, C), 1, Cp)

    if residual_pad is not None:
        assert residual_pad.shape == out_pad.shape, (residual_pad.shape, out_pad.shape)
    y_pad = bn_apply_padded(out_pad, scale_p, shift_p, relu=relu,
                            residual_pad=residual_pad)
    y = y_pad[:M, :C].reshape(N, OH, OW, C)
    return y, y_pad


def conv2d(x, w, bias, *, stride=1, pad=0, pad_mode="zero"):
    """Plain conv with bias (final layer; no norm follows). f32 output."""
    Cout, Cin, K, _ = w.shape
    x = x.astype(jnp.bfloat16)
    if pad > 0:
        mode = "reflect" if pad_mode == "reflect" else "constant"
        x = jnp.pad(x, ((0, 0), (pad, pad), (pad, pad), (0, 0)), mode=mode)
    a, OH, OW = _im2col(x, K, stride)
    wm = jnp.transpose(w, (2, 3, 1, 0)).reshape(K * K * Cin, Cout)
    out = matmul_bias_padded(a, wm, bias)
    N = x.shape[0]
    M = N * OH * OW
    return out[:M, :Cout].reshape(N, OH, OW, Cout)


def conv_transpose_bn_relu(x, w, gamma, beta):
    """ConvTranspose2d(k=3, s=2, p=1, op=1, bias=False) + BatchNorm + ReLU.

    Polyphase (subpixel) decomposition as ONE GEMM with block-structured weights:
    A = [x(a,b) | x(a,b+1) | x(a+1,b) | x(a+1,b+1)]  (M, 4*Cin),
    columns grouped by output phase (ph, pw) -> (M, 4*Cout).  BN stats are combined
    across the 4 phases; BN+ReLU is applied on the padded GEMM output; the subpixel
    interleave happens once, after BN, in bf16.
    """
    N, H, W, Cin = x.shape
    Cout = w.shape[1]                                     # PyTorch layout: (Cin, Cout, 3, 3)
    x = x.astype(jnp.bfloat16)
    xe = jnp.pad(x, ((0, 0), (0, 1), (0, 1), (0, 0)))
    M = N * H * W
    x00 = x.reshape(M, Cin)                               # x[a,   b  ]
    x01 = xe[:, :H, 1:W + 1, :].reshape(M, Cin)           # x[a,   b+1]
    x10 = xe[:, 1:H + 1, :W, :].reshape(M, Cin)           # x[a+1, b  ]
    x11 = xe[:, 1:H + 1, 1:W + 1, :].reshape(M, Cin)      # x[a+1, b+1]
    a_mat = jnp.concatenate([x00, x01, x10, x11], axis=1)  # (M, 4*Cin)

    def tap(kh, kw):                                      # (Cin, Cout)
        return w[:, :, kh, kw].astype(jnp.float32)

    Z = jnp.zeros((Cin, Cout), jnp.float32)
    # y[2a+0,2b+0] = x00@w11
    # y[2a+0,2b+1] = x00@w12 + x01@w10
    # y[2a+1,2b+0] = x00@w21 + x10@w01
    # y[2a+1,2b+1] = x00@w22 + x01@w20 + x10@w02 + x11@w00
    col00 = jnp.concatenate([tap(1, 1), Z, Z, Z], axis=0)
    col01 = jnp.concatenate([tap(1, 2), tap(1, 0), Z, Z], axis=0)
    col10 = jnp.concatenate([tap(2, 1), Z, tap(0, 1), Z], axis=0)
    col11 = jnp.concatenate([tap(2, 2), tap(2, 0), tap(0, 2), tap(0, 0)], axis=0)
    b_mat = jnp.concatenate([col00, col01, col10, col11], axis=1)  # (4*Cin, 4*Cout)

    out_pad, psum, psq = matmul_stats_padded(a_mat, b_mat)
    Mp, Np = out_pad.shape
    NCOL = 4 * Cout

    s_col, q_col = _finalize_partials(psum, psq)          # (Np,)
    s_c = s_col[:NCOL].reshape(4, Cout).sum(axis=0)       # combine the 4 phases
    q_c = q_col[:NCOL].reshape(4, Cout).sum(axis=0)
    scale_c, shift_c = _bn_coeffs(s_c, q_c, float(4 * M), gamma, beta)
    scale_col = jnp.tile(scale_c, 4)                      # per output column
    shift_col = jnp.tile(shift_c, 4)
    scale_p = _pad_2d(scale_col.reshape(1, NCOL), 1, Np)
    shift_p = _pad_2d(shift_col.reshape(1, NCOL), 1, Np)

    y_pad = bn_apply_padded(out_pad, scale_p, shift_p, relu=True)  # bf16
    y = y_pad[:M, :NCOL].reshape(N, H, W, 2, 2, Cout)
    y = jnp.transpose(y, (0, 1, 3, 2, 4, 5)).reshape(N, 2 * H, 2 * W, Cout)
    return y


# ----------------------------------------------------------------------------
# ResnetGenerator parameters + forward
# ----------------------------------------------------------------------------
def init_params(key, input_nc, output_nc, ngf, n_blocks):
    params = {}
    keys = iter(jax.random.split(key, 8 + 6 * (4 + 2 * n_blocks)))

    def conv_w(k, cout, cin, ksz):
        return 0.02 * jax.random.normal(k, (cout, cin, ksz, ksz), jnp.float32)

    def bn_gb(kg, kb, c):
        return (1.0 + 0.02 * jax.random.normal(kg, (c,), jnp.float32),
                0.02 * jax.random.normal(kb, (c,), jnp.float32))

    # initial 7x7 conv (reflect pad 3) + BN
    params["c0_w"] = conv_w(next(keys), ngf, input_nc, 7)
    params["c0_g"], params["c0_b"] = bn_gb(next(keys), next(keys), ngf)
    # 2 downsampling convs
    for i in range(2):
        mult = 2 ** i
        cin, cout = ngf * mult, ngf * mult * 2
        params[f"d{i}_w"] = conv_w(next(keys), cout, cin, 3)
        params[f"d{i}_g"], params[f"d{i}_b"] = bn_gb(next(keys), next(keys), cout)
    # n_blocks ResnetBlocks at dim = ngf * 4
    dim = ngf * 4
    for b in range(n_blocks):
        for j in range(2):
            params[f"r{b}_{j}_w"] = conv_w(next(keys), dim, dim, 3)
            params[f"r{b}_{j}_g"], params[f"r{b}_{j}_b"] = bn_gb(next(keys), next(keys), dim)
    # 2 upsampling transposed convs (PyTorch layout: (Cin, Cout, K, K)), no bias (BN follows)
    for i in range(2):
        mult = 2 ** (2 - i)
        cin, cout = ngf * mult, (ngf * mult) // 2
        params[f"u{i}_w"] = 0.02 * jax.random.normal(next(keys), (cin, cout, 3, 3), jnp.float32)
        params[f"u{i}_g"], params[f"u{i}_b"] = bn_gb(next(keys), next(keys), cout)
    # final 7x7 conv (reflect pad 3), has bias (no norm layer follows)
    params["cf_w"] = conv_w(next(keys), output_nc, ngf, 7)
    params["cf_bias"] = 0.02 * jax.random.normal(next(keys), (output_nc,), jnp.float32)
    return params


def resnet_generator_forward(params, x_nchw, *, n_blocks):
    # NCHW in -> NHWC internal (bf16 between layers) -> NCHW f32 out
    x = jnp.transpose(x_nchw.astype(jnp.float32), (0, 2, 3, 1))

    # initial ReflectionPad(3) + 7x7 conv + BN + ReLU
    x, x_pad = conv_bn(x, params["c0_w"], params["c0_g"], params["c0_b"],
                       stride=1, pad=3, pad_mode="reflect", relu=True)
    # downsampling
    for i in range(2):
        x, x_pad = conv_bn(x, params[f"d{i}_w"], params[f"d{i}_g"], params[f"d{i}_b"],
                           stride=2, pad=1, pad_mode="zero", relu=True)
    # resnet blocks (padding_type='reflect', no dropout); residual carried padded
    for b in range(n_blocks):
        h, _ = conv_bn(x, params[f"r{b}_0_w"], params[f"r{b}_0_g"], params[f"r{b}_0_b"],
                       stride=1, pad=1, pad_mode="reflect", relu=True)
        x, x_pad = conv_bn(h, params[f"r{b}_1_w"], params[f"r{b}_1_g"], params[f"r{b}_1_b"],
                           stride=1, pad=1, pad_mode="reflect", relu=False,
                           residual_pad=x_pad)
    # upsampling (ConvTranspose2d k=3, s=2, p=1, output_padding=1) + BN + ReLU
    for i in range(2):
        x = conv_transpose_bn_relu(x, params[f"u{i}_w"], params[f"u{i}_g"], params[f"u{i}_b"])
    # final ReflectionPad(3) + 7x7 conv (with bias; spec has no norm / activation after)
    y = conv2d(x, params["cf_w"], params["cf_bias"], stride=1, pad=3, pad_mode="reflect")
    return jnp.transpose(y, (0, 3, 1, 2)).astype(jnp.float32)


if __name__ == "__main__":
    # small config consistent with the module: input_nc=3, output_nc=3, ngf=8, n_blocks=2
    input_nc, output_nc, ngf, n_blocks = 3, 3, 8, 2
    batch, H, W = 2, 16, 16

    key = jax.random.PRNGKey(0)
    k_param, k_x = jax.random.split(key)
    params = init_params(k_param, input_nc, output_nc, ngf, n_blocks)
    x = jax.random.normal(k_x, (batch, input_nc, H, W), jnp.float32)

    fwd = jax.jit(functools.partial(resnet_generator_forward, n_blocks=n_blocks))
    out = jax.block_until_ready(fwd(params, x))

    assert out.shape == (batch, output_nc, H, W), out.shape
    assert bool(jnp.all(jnp.isfinite(out)))
    print("KERNEL_OK")
</pallas_src>

<mosaic_0001>
module attributes {stable_mosaic.version = 11 : i64} {
  func.func @_matmul_stats_kernel(%arg0: i32, %arg1: i32, %arg2: i32, %arg3: memref<512x256xbf16, #tpu.memory_space<vmem>>, %arg4: memref<256x128xbf16, #tpu.memory_space<vmem>>, %arg5: memref<512x128xbf16, #tpu.memory_space<vmem>>, %arg6: memref<8x128xf32, #tpu.memory_space<vmem>>, %arg7: memref<8x128xf32, #tpu.memory_space<vmem>>, %arg8: memref<512x128xf32, #tpu.memory_space<vmem>>) attributes {dimension_semantics = [#tpu.dimension_semantics<parallel>, #tpu.dimension_semantics<parallel>, #tpu.dimension_semantics<arbitrary>], iteration_bounds = array<i64: 1, 1, 1>, scalar_prefetch = 0 : i64, scratch_operands = 1 : i64, tpu.core_type = #tpu.core_type<tc>, window_params = [{transform_indices = @transform_0, window_bounds = array<i64: 512, 256>}, {transform_indices = @transform_1, window_bounds = array<i64: 256, 128>}, {transform_indices = @transform_2, window_bounds = array<i64: 512, 128>}, {transform_indices = @transform_3, window_bounds = array<i64: 8, 128>}, {transform_indices = @transform_4, window_bounds = array<i64: 8, 128>}]} {
    %c0_i32 = arith.constant 0 : i32
    %0 = arith.cmpi eq, %arg2, %c0_i32 : i32
    %1 = arith.extui %0 : i1 to i32
    %c0_i32_0 = arith.constant 0 : i32
    %2 = arith.cmpi ne, %1, %c0_i32_0 : i32
    scf.if %2 {
      %cst_10 = arith.constant 0.000000e+00 : f32
      %12 = vector.broadcast %cst_10 : f32 to vector<512x128xf32>
      %c0_11 = arith.constant 0 : index
      %c0_12 = arith.constant 0 : index
      %13 = vector.load %arg8[%c0_11, %c0_12] : memref<512x128xf32, #tpu.memory_space<vmem>>, vector<512x128xf32>
      tpu.vector_store %arg8[%c0_11, %c0_12], %12 {strides = array<i32>} : memref<512x128xf32, #tpu.memory_space<vmem>>, vector<512x128xf32>,
    } else {
    }
    %c0 = arith.constant 0 : index
    %c0_1 = arith.constant 0 : index
    %3 = vector.load %arg8[%c0, %c0_1] : memref<512x128xf32, #tpu.memory_space<vmem>>, vector<512x128xf32>
    %c0_2 = arith.constant 0 : index
    %c0_3 = arith.constant 0 : index
    %4 = vector.load %arg3[%c0_2, %c0_3] : memref<512x256xbf16, #tpu.memory_space<vmem>>, vector<512x256xbf16>
    %c0_4 = arith.constant 0 : index
    %c0_5 = arith.constant 0 : index
    %5 = vector.load %arg4[%c0_4, %c0_5] : memref<256x128xbf16, #tpu.memory_space<vmem>>, vector<256x128xbf16>
    %cst = arith.constant dense<0.000000e+00> : vector<512x128xf32>
    %6 = tpu.matmul %4, %5, %cst {dimension_numbers = #tpu.dot_dimension_numbers<[1], [0], [0], [1], [0, 0, 1, 1], [], []>} : vector<512x256xbf16>, vector<256x128xbf16>, vector<512x128xf32> -> vector<512x128xf32>
    %7 = arith.addf %3, %6 : vector<512x128xf32>
    %c0_6 = arith.constant 0 : index
    %c0_7 = arith.constant 0 : index
    %8 = vector.load %arg8[%c0_6, %c0_7] : memref<512x128xf32, #tpu.memory_space<vmem>>, vector<512x128xf32>
    tpu.vector_store %arg8[%c0_6, %c0_7], %7 {strides = array<i32>} : memref<512x128xf32, #tpu.memory_space<vmem>>, vector<512x128xf32>,
    %c0_i32_8 = arith.constant 0 : i32
    %9 = arith.cmpi eq, %arg2, %c0_i32_8 : i32
    %10 = arith.extui %9 : i1 to i32
    %c0_i32_9 = arith.constant 0 : i32
    %11 = arith.cmpi ne, %10, %c0_i32_9 : i32
    scf.if %11 {
      %c0_10 = arith.constant 0 : index
      %c0_11 = arith.constant 0 : index
      %12 = vector.load %arg8[%c0_10, %c0_11] : memref<512x128xf32, #tpu.memory_space<vmem>>, vector<512x128xf32>
      %13 = arith.truncf %12 : vector<512x128xf32> to vector<512x128xbf16>
      %c0_12 = arith.constant 0 : index
      %c0_13 = arith.constant 0 : index
      %14 = vector.load %arg5[%c0_12, %c0_13] : memref<512x128xbf16, #tpu.memory_space<vmem>>, vector<512x128xbf16>
      tpu.vector_store %arg5[%c0_12, %c0_13], %13 {strides = array<i32>} : memref<512x128xbf16, #tpu.memory_space<vmem>>, vector<512x128xbf16>,
      %cst_14 = arith.constant dense<0.000000e+00> : vector<128xf32>
      %15 = vector.multi_reduction <add>, %12, %cst_14 [0] : vector<512x128xf32> to vector<128xf32>
      %16 = vector.shape_cast %15 : vector<128xf32> to vector<1x128xf32>
      %17 = arith.mulf %12, %12 : vector<512x128xf32>
      %cst_15 = arith.constant dense<0.000000e+00> : vector<128xf32>
      %18 = vector.multi_reduction <add>, %17, %cst_15 [0] : vector<512x128xf32> to vector<128xf32>
      %19 = vector.shape_cast %18 : vector<128xf32> to vector<1x128xf32>
      %20 = vector.shape_cast %16 : vector<1x128xf32> to vector<1x128xf32>
      %21 = vector.broadcast %20 : vector<1x128xf32> to vector<8x128xf32>
      %c0_16 = arith.constant 0 : index
      %c0_17 = arith.constant 0 : index
      %22 = vector.load %arg6[%c0_16, %c0_17] : memref<8x128xf32, #tpu.memory_space<vmem>>, vector<8x128xf32>
      tpu.vector_store %arg6[%c0_16, %c0_17], %21 {strides = array<i32>} : memref<8x128xf32, #tpu.memory_space<vmem>>, vector<8x128xf32>,
      %23 = vector.shape_cast %19 : vector<1x128xf32> to vector<1x128xf32>
      %24 = vector.broadcast %23 : vector<1x128xf32> to vector<8x128xf32>
      %c0_18 = arith.constant 0 : index
      %c0_19 = arith.constant 0 : index
      %25 = vector.load %arg7[%c0_18, %c0_19] : memref<8x128xf32, #tpu.memory_space<vmem>>, vector<8x128xf32>
      tpu.vector_store %arg7[%c0_18, %c0_19], %24 {strides = array<i32>} : memref<8x128xf32, #tpu.memory_space<vmem>>, vector<8x128xf32>,
    } else {
    }
    return
  }
  func.func @transform_0(%arg0: i32, %arg1: i32, %arg2: i32) -> (i32, i32) {
    %c0_i32 = arith.constant 0 : i32
    return %arg0, %arg2 : i32, i32
  }
  func.func @transform_1(%arg0: i32, %arg1: i32, %arg2: i32) -> (i32, i32) {
    %c0_i32 = arith.constant 0 : i32
    return %arg2, %arg1 : i32, i32
  }
  func.func @transform_2(%arg0: i32, %arg1: i32, %arg2: i32) -> (i32, i32) {
    %c0_i32 = arith.constant 0 : i32
    return %arg0, %arg1 : i32, i32
  }
  func.func @transform_3(%arg0: i32, %arg1: i32, %arg2: i32) -> (i32, i32) {
    %c0_i32 = arith.constant 0 : i32
    return %arg0, %arg1 : i32, i32
  }
  func.func @transform_4(%arg0: i32, %arg1: i32, %arg2: i32) -> (i32, i32) {
    %c0_i32 = arith.constant 0 : i32
    return %arg0, %arg1 : i32, i32
  }
}

module attributes {stable_mosaic.version = 11 : i64} {
  func.func @_bn_apply_kernel(%arg0: i32, %arg1: memref<512x128xbf16, #tpu.memory_space<vmem>>, %arg2: memref<1x128xf32, #tpu.memory_space<vmem>>, %arg3: memref<1x128xf32, #tpu.memory_space<vmem>>, %arg4: memref<512x128xbf16, #tpu.memory_space<vmem>>) attributes {dimension_semantics = [#tpu.dimension_semantics<parallel>], iteration_bounds = array<i64: 1>, scalar_prefetch = 0 : i64, scratch_operands = 0 : i64, tpu.core_type = #tpu.core_type<tc>, window_params = [{transform_indices = @transform_0, window_bounds = array<i64: 512, 128>}, {pipeline_mode = #tpu.pipeline_mode<synchronous>, transform_indices = @transform_1, window_bounds = array<i64: 1, 128>}, {pipeline_mode = #tpu.pipeline_mode<synchronous>, transform_indices = @transform_2, window_bounds = array<i64: 1, 128>}, {transform_indices = @transform_3, window_bounds = array<i64: 512, 128>}]} {
    %c0 = arith.constant 0 : index
    %c0_0 = arith.constant 0 : index
    %0 = vector.load %arg1[%c0, %c0_0] : memref<512x128xbf16, #tpu.memory_space<vmem>>, vector<512x128xbf16>
    %1 = arith.extf %0 : vector<512x128xbf16> to vector<512x128xf32>
    %c0_1 = arith.constant 0 : index
    %c0_2 = arith.constant 0 : index
    %2 = vector.load %arg2[%c0_1, %c0_2] : memref<1x128xf32, #tpu.memory_space<vmem>>, vector<1x128xf32>
    %3 = vector.broadcast %2 : vector<1x128xf32> to vector<512x128xf32>
    %4 = arith.mulf %1, %3 : vector<512x128xf32>
    %c0_3 = arith.constant 0 : index
    %c0_4 = arith.constant 0 : index
    %5 = vector.load %arg3[%c0_3, %c0_4] : memref<1x128xf32, #tpu.memory_space<vmem>>, vector<1x128xf32>
    %6 = vector.broadcast %5 : vector<1x128xf32> to vector<512x128xf32>
    %7 = arith.addf %4, %6 : vector<512x128xf32>
    %cst = arith.constant 0.000000e+00 : f32
    %8 = vector.broadcast %cst : f32 to vector<512x128xf32>
    %9 = arith.maximumf %7, %8 : vector<512x128xf32>
    %10 = arith.truncf %9 : vector<512x128xf32> to vector<512x128xbf16>
    %c0_5 = arith.constant 0 : index
    %c0_6 = arith.constant 0 : index
    %11 = vector.load %arg4[%c0_5, %c0_6] : memref<512x128xbf16, #tpu.memory_space<vmem>>, vector<512x128xbf16>
    tpu.vector_store %arg4[%c0_5, %c0_6], %10 {strides = array<i32>} : memref<512x128xbf16, #tpu.memory_space<vmem>>, vector<512x128xbf16>,
    return
  }
  func.func @transform_0(%arg0: i32) -> (i32, i32) {
    %c0_i32 = arith.constant 0 : i32
    %c0_i32_0 = arith.constant 0 : i32
    return %arg0, %c0_i32 : i32, i32
  }
  func.func @transform_1(%arg0: i32) -> (i32, i32) {
    %c0_i32 = arith.constant 0 : i32
    %c0_i32_0 = arith.constant 0 : i32
    %c0_i32_1 = arith.constant 0 : i32
    return %c0_i32, %c0_i32_0 : i32, i32
  }
  func.func @transform_2(%arg0: i32) -> (i32, i32) {
    %c0_i32 = arith.constant 0 : i32
    %c0_i32_0 = arith.constant 0 : i32
    %c0_i32_1 = arith.constant 0 : i32
    return %c0_i32, %c0_i32_0 : i32, i32
  }
  func.func @transform_3(%arg0: i32) -> (i32, i32) {
    %c0_i32 = arith.constant 0 : i32
    %c0_i32_0 = arith.constant 0 : i32
    return %arg0, %c0_i32 : i32, i32
  }
}

module attributes {stable_mosaic.version = 11 : i64} {
  func.func @_matmul_stats_kernel(%arg0: i32, %arg1: i32, %arg2: i32, %arg3: memref<128x128xbf16, #tpu.memory_space<vmem>>, %arg4: memref<128x128xbf16, #tpu.memory_space<vmem>>, %arg5: memref<128x128xbf16, #tpu.memory_space<vmem>>, %arg6: memref<8x128xf32, #tpu.memory_space<vmem>>, %arg7: memref<8x128xf32, #tpu.memory_space<vmem>>, %arg8: memref<128x128xf32, #tpu.memory_space<vmem>>) attributes {dimension_semantics = [#tpu.dimension_semantics<parallel>, #tpu.dimension_semantics<parallel>, #tpu.dimension_semantics<arbitrary>], iteration_bounds = array<i64: 1, 1, 1>, scalar_prefetch = 0 : i64, scratch_operands = 1 : i64, tpu.core_type = #tpu.core_type<tc>, window_params = [{transform_indices = @transform_0, window_bounds = array<i64: 128, 128>}, {transform_indices = @transform_1, window_bounds = array<i64: 128, 128>}, {transform_indices = @transform_2, window_bounds = array<i64: 128, 128>}, {transform_indices = @transform_3, window_bounds = array<i64: 8, 128>}, {transform_indices = @transform_4, window_bounds = array<i64: 8, 128>}]} {
    %c0_i32 = arith.constant 0 : i32
    %0 = arith.cmpi eq, %arg2, %c0_i32 : i32
    %1 = arith.extui %0 : i1 to i32
    %c0_i32_0 = arith.constant 0 : i32
    %2 = arith.cmpi ne, %1, %c0_i32_0 : i32
    scf.if %2 {
      %cst_10 = arith.constant 0.000000e+00 : f32
      %12 = vector.broadcast %cst_10 : f32 to vector<128x128xf32>
      %c0_11 = arith.constant 0 : index
      %c0_12 = arith.constant 0 : index
      %13 = vector.load %arg8[%c0_11, %c0_12] : memref<128x128xf32, #tpu.memory_space<vmem>>, vector<128x128xf32>
      tpu.vector_store %arg8[%c0_11, %c0_12], %12 {strides = array<i32>} : memref<128x128xf32, #tpu.memory_space<vmem>>, vector<128x128xf32>,
    } else {
    }
    %c0 = arith.constant 0 : index
    %c0_1 = arith.constant 0 : index
    %3 = vector.load %arg8[%c0, %c0_1] : memref<128x128xf32, #tpu.memory_space<vmem>>, vector<128x128xf32>
    %c0_2 = arith.constant 0 : index
    %c0_3 = arith.constant 0 : index
    %4 = vector.load %arg3[%c0_2, %c0_3] : memref<128x128xbf16, #tpu.memory_space<vmem>>, vector<128x128xbf16>
    %c0_4 = arith.constant 0 : index
    %c0_5 = arith.constant 0 : index
    %5 = vector.load %arg4[%c0_4, %c0_5] : memref<128x128xbf16, #tpu.memory_space<vmem>>, vector<128x128xbf16>
    %cst = arith.constant dense<0.000000e+00> : vector<128x128xf32>
    %6 = tpu.matmul %4, %5, %cst {dimension_numbers = #tpu.dot_dimension_numbers<[1], [0], [0], [1], [0, 0, 1, 1], [], []>} : vector<128x128xbf16>, vector<128x128xbf16>, vector<128x128xf32> -> vector<128x128xf32>
    %7 = arith.addf %3, %6 : vector<128x128xf32>
    %c0_6 = arith.constant 0 : index
    %c0_7 = arith.constant 0 : index
    %8 = vector.load %arg8[%c0_6, %c0_7] : memref<128x128xf32, #tpu.memory_space<vmem>>, vector<128x128xf32>
    tpu.vector_store %arg8[%c0_6, %c0_7], %7 {strides = array<i32>} : memref<128x128xf32, #tpu.memory_space<vmem>>, vector<128x128xf32>,
    %c0_i32_8 = arith.constant 0 : i32
    %9 = arith.cmpi eq, %arg2, %c0_i32_8 : i32
    %10 = arith.extui %9 : i1 to i32
    %c0_i32_9 = arith.constant 0 : i32
    %11 = arith.cmpi ne, %10, %c0_i32_9 : i32
    scf.if %11 {
      %c0_10 = arith.constant 0 : index
      %c0_11 = arith.constant 0 : index
      %12 = vector.load %arg8[%c0_10, %c0_11] : memref<128x128xf32, #tpu.memory_space<vmem>>, vector<128x128xf32>
      %13 = arith.truncf %12 : vector<128x128xf32> to vector<128x128xbf16>
      %c0_12 = arith.constant 0 : index
      %c0_13 = arith.constant 0 : index
      %14 = vector.load %arg5[%c0_12, %c0_13] : memref<128x128xbf16, #tpu.memory_space<vmem>>, vector<128x128xbf16>
      tpu.vector_store %arg5[%c0_12, %c0_13], %13 {strides = array<i32>} : memref<128x128xbf16, #tpu.memory_space<vmem>>, vector<128x128xbf16>,
      %cst_14 = arith.constant dense<0.000000e+00> : vector<128xf32>
      %15 = vector.multi_reduction <add>, %12, %cst_14 [0] : vector<128x128xf32> to vector<128xf32>
      %16 = vector.shape_cast %15 : vector<128xf32> to vector<1x128xf32>
      %17 = arith.mulf %12, %12 : vector<128x128xf32>
      %cst_15 = arith.constant dense<0.000000e+00> : vector<128xf32>
      %18 = vector.multi_reduction <add>, %17, %cst_15 [0] : vector<128x128xf32> to vector<128xf32>
      %19 = vector.shape_cast %18 : vector<128xf32> to vector<1x128xf32>
      %20 = vector.shape_cast %16 : vector<1x128xf32> to vector<1x128xf32>
      %21 = vector.broadcast %20 : vector<1x128xf32> to vector<8x128xf32>
      %c0_16 = arith.constant 0 : index
      %c0_17 = arith.constant 0 : index
      %22 = vector.load %arg6[%c0_16, %c0_17] : memref<8x128xf32, #tpu.memory_space<vmem>>, vector<8x128xf32>
      tpu.vector_store %arg6[%c0_16, %c0_17], %21 {strides = array<i32>} : memref<8x128xf32, #tpu.memory_space<vmem>>, vector<8x128xf32>,
      %23 = vector.shape_cast %19 : vector<1x128xf32> to vector<1x128xf32>
      %24 = vector.broadcast %23 : vector<1x128xf32> to vector<8x128xf32>
      %c0_18 = arith.constant 0 : index
      %c0_19 = arith.constant 0 : index
      %25 = vector.load %arg7[%c0_18, %c0_19] : memref<8x128xf32, #tpu.memory_space<vmem>>, vector<8x128xf32>
      tpu.vector_store %arg7[%c0_18, %c0_19], %24 {strides = array<i32>} : memref<8x128xf32, #tpu.memory_space<vmem>>, vector<8x128xf32>,
    } else {
    }
    return
  }
  func.func @transform_0(%arg0: i32, %arg1: i32, %arg2: i32) -> (i32, i32) {
    %c0_i32 = arith.constant 0 : i32
    return %arg0, %arg2 : i32, i32
  }
  func.func @transform_1(%arg0: i32, %arg1: i32, %arg2: i32) -> (i32, i32) {
    %c0_i32 = arith.constant 0 : i32
    return %arg2, %arg1 : i32, i32
  }
  func.func @transform_2(%arg0: i32, %arg1: i32, %arg2: i32) -> (i32, i32) {
    %c0_i32 = arith.constant 0 : i32
    return %arg0, %arg1 : i32, i32
  }
  func.func @transform_3(%arg0: i32, %arg1: i32, %arg2: i32) -> (i32, i32) {
    %c0_i32 = arith.constant 0 : i32
    return %arg0, %arg1 : i32, i32
  }
  func.func @transform_4(%arg0: i32, %arg1: i32, %arg2: i32) -> (i32, i32) {
    %c0_i32 = arith.constant 0 : i32
    return %arg0, %arg1 : i32, i32
  }
}

module attributes {stable_mosaic.version = 11 : i64} {
  func.func @_bn_apply_kernel(%arg0: i32, %arg1: memref<128x128xbf16, #tpu.memory_space<vmem>>, %arg2: memref<1x128xf32, #tpu.memory_space<vmem>>, %arg3: memref<1x128xf32, #tpu.memory_space<vmem>>, %arg4: memref<128x128xbf16, #tpu.memory_space<vmem>>) attributes {dimension_semantics = [#tpu.dimension_semantics<parallel>], iteration_bounds = array<i64: 1>, scalar_prefetch = 0 : i64, scratch_operands = 0 : i64, tpu.core_type = #tpu.core_type<tc>, window_params = [{transform_indices = @transform_0, window_bounds = array<i64: 128, 128>}, {pipeline_mode = #tpu.pipeline_mode<synchronous>, transform_indices = @transform_1, window_bounds = array<i64: 1, 128>}, {pipeline_mode = #tpu.pipeline_mode<synchronous>, transform_indices = @transform_2, window_bounds = array<i64: 1, 128>}, {transform_indices = @transform_3, window_bounds = array<i64: 128, 128>}]} {
    %c0 = arith.constant 0 : index
    %c0_0 = arith.constant 0 : index
    %0 = vector.load %arg1[%c0, %c0_0] : memref<128x128xbf16, #tpu.memory_space<vmem>>, vector<128x128xbf16>
    %1 = arith.extf %0 : vector<128x128xbf16> to vector<128x128xf32>
    %c0_1 = arith.constant 0 : index
    %c0_2 = arith.constant 0 : index
    %2 = vector.load %arg2[%c0_1, %c0_2] : memref<1x128xf32, #tpu.memory_space<vmem>>, vector<1x128xf32>
    %3 = vector.broadcast %2 : vector<1x128xf32> to vector<128x128xf32>
    %4 = arith.mulf %1, %3 : vector<128x128xf32>
    %c0_3 = arith.constant 0 : index
    %c0_4 = arith.constant 0 : index
    %5 = vector.load %arg3[%c0_3, %c0_4] : memref<1x128xf32, #tpu.memory_space<vmem>>, vector<1x128xf32>
    %6 = vector.broadcast %5 : vector<1x128xf32> to vector<128x128xf32>
    %7 = arith.addf %4, %6 : vector<128x128xf32>
    %cst = arith.constant 0.000000e+00 : f32
    %8 = vector.broadcast %cst : f32 to vector<128x128xf32>
    %9 = arith.maximumf %7, %8 : vector<128x128xf32>
    %10 = arith.truncf %9 : vector<128x128xf32> to vector<128x128xbf16>
    %c0_5 = arith.constant 0 : index
    %c0_6 = arith.constant 0 : index
    %11 = vector.load %arg4[%c0_5, %c0_6] : memref<128x128xbf16, #tpu.memory_space<vmem>>, vector<128x128xbf16>
    tpu.vector_store %arg4[%c0_5, %c0_6], %10 {strides = array<i32>} : memref<128x128xbf16, #tpu.memory_space<vmem>>, vector<128x128xbf16>,
    return
  }
  func.func @transform_0(%arg0: i32) -> (i32, i32) {
    %c0_i32 = arith.constant 0 : i32
    %c0_i32_0 = arith.constant 0 : i32
    return %arg0, %c0_i32 : i32, i32
  }
  func.func @transform_1(%arg0: i32) -> (i32, i32) {
    %c0_i32 = arith.constant 0 : i32
    %c0_i32_0 = arith.constant 0 : i32
    %c0_i32_1 = arith.constant 0 : i32
    return %c0_i32, %c0_i32_0 : i32, i32
  }
  func.func @transform_2(%arg0: i32) -> (i32, i32) {
    %c0_i32 = arith.constant 0 : i32
    %c0_i32_0 = arith.constant 0 : i32
    %c0_i32_1 = arith.constant 0 : i32
    return %c0_i32, %c0_i32_0 : i32, i32
  }
  func.func @transform_3(%arg0: i32) -> (i32, i32) {
    %c0_i32 = arith.constant 0 : i32
    %c0_i32_0 = arith.constant 0 : i32
    return %arg0, %c0_i32 : i32, i32
  }
}

module attributes {stable_mosaic.version = 11 : i64} {
  func.func @_bn_apply_kernel(%arg0: i32, %arg1: memref<32x128xbf16, #tpu.memory_space<vmem>>, %arg2: memref<1x128xf32, #tpu.memory_space<vmem>>, %arg3: memref<1x128xf32, #tpu.memory_space<vmem>>, %arg4: memref<32x128xbf16, #tpu.memory_space<vmem>>) attributes {dimension_semantics = [#tpu.dimension_semantics<parallel>], iteration_bounds = array<i64: 1>, scalar_prefetch = 0 : i64, scratch_operands = 0 : i64, tpu.core_type = #tpu.core_type<tc>, window_params = [{transform_indices = @transform_0, window_bounds = array<i64: 32, 128>}, {pipeline_mode = #tpu.pipeline_mode<synchronous>, transform_indices = @transform_1, window_bounds = array<i64: 1, 128>}, {pipeline_mode = #tpu.pipeline_mode<synchronous>, transform_indices = @transform_2, window_bounds = array<i64: 1, 128>}, {transform_indices = @transform_3, window_bounds = array<i64: 32, 128>}]} {
    %c0 = arith.constant 0 : index
    %c0_0 = arith.constant 0 : index
    %0 = vector.load %arg1[%c0, %c0_0] : memref<32x128xbf16, #tpu.memory_space<vmem>>, vector<32x128xbf16>
    %1 = arith.extf %0 : vector<32x128xbf16> to vector<32x128xf32>
    %c0_1 = arith.constant 0 : index
    %c0_2 = arith.constant 0 : index
    %2 = vector.load %arg2[%c0_1, %c0_2] : memref<1x128xf32, #tpu.memory_space<vmem>>, vector<1x128xf32>
    %3 = vector.broadcast %2 : vector<1x128xf32> to vector<32x128xf32>
    %4 = arith.mulf %1, %3 : vector<32x128xf32>
    %c0_3 = arith.constant 0 : index
    %c0_4 = arith.constant 0 : index
    %5 = vector.load %arg3[%c0_3, %c0_4] : memref<1x128xf32, #tpu.memory_space<vmem>>, vector<1x128xf32>
    %6 = vector.broadcast %5 : vector<1x128xf32> to vector<32x128xf32>
    %7 = arith.addf %4, %6 : vector<32x128xf32>
    %cst = arith.constant 0.000000e+00 : f32
    %8 = vector.broadcast %cst : f32 to vector<32x128xf32>
    %9 = arith.maximumf %7, %8 : vector<32x128xf32>
    %10 = arith.truncf %9 : vector<32x128xf32> to vector<32x128xbf16>
    %c0_5 = arith.constant 0 : index
    %c0_6 = arith.constant 0 : index
    %11 = vector.load %arg4[%c0_5, %c0_6] : memref<32x128xbf16, #tpu.memory_space<vmem>>, vector<32x128xbf16>
    tpu.vector_store %arg4[%c0_5, %c0_6], %10 {strides = array<i32>} : memref<32x128xbf16, #tpu.memory_space<vmem>>, vector<32x128xbf16>,
    return
  }
  func.func @transform_0(%arg0: i32) -> (i32, i32) {
    %c0_i32 = arith.constant 0 : i32
    %c0_i32_0 = arith.constant 0 : i32
    return %arg0, %c0_i32 : i32, i32
  }
  func.func @transform_1(%arg0: i32) -> (i32, i32) {
    %c0_i32 = arith.constant 0 : i32
    %c0_i32_0 = arith.constant 0 : i32
    %c0_i32_1 = arith.constant 0 : i32
    return %c0_i32, %c0_i32_0 : i32, i32
  }
  func.func @transform_2(%arg0: i32) -> (i32, i32) {
    %c0_i32 = arith.constant 0 : i32
    %c0_i32_0 = arith.constant 0 : i32
    %c0_i32_1 = arith.constant 0 : i32
    return %c0_i32, %c0_i32_0 : i32, i32
  }
  func.func @transform_3(%arg0: i32) -> (i32, i32) {
    %c0_i32 = arith.constant 0 : i32
    %c0_i32_0 = arith.constant 0 : i32
    return %arg0, %c0_i32 : i32, i32
  }
}

module attributes {stable_mosaic.version = 11 : i64} {
  func.func @_matmul_stats_kernel(%arg0: i32, %arg1: i32, %arg2: i32, %arg3: memref<32x256xbf16, #tpu.memory_space<vmem>>, %arg4: memref<256x128xbf16, #tpu.memory_space<vmem>>, %arg5: memref<32x128xbf16, #tpu.memory_space<vmem>>, %arg6: memref<8x128xf32, #tpu.memory_space<vmem>>, %arg7: memref<8x128xf32, #tpu.memory_space<vmem>>, %arg8: memref<32x128xf32, #tpu.memory_space<vmem>>) attributes {dimension_semantics = [#tpu.dimension_semantics<parallel>, #tpu.dimension_semantics<parallel>, #tpu.dimension_semantics<arbitrary>], iteration_bounds = array<i64: 1, 1, 1>, scalar_prefetch = 0 : i64, scratch_operands = 1 : i64, tpu.core_type = #tpu.core_type<tc>, window_params = [{transform_indices = @transform_0, window_bounds = array<i64: 32, 256>}, {transform_indices = @transform_1, window_bounds = array<i64: 256, 128>}, {transform_indices = @transform_2, window_bounds = array<i64: 32, 128>}, {transform_indices = @transform_3, window_bounds = array<i64: 8, 128>}, {transform_indices = @transform_4, window_bounds = array<i64: 8, 128>}]} {
    %c0_i32 = arith.constant 0 : i32
    %0 = arith.cmpi eq, %arg2, %c0_i32 : i32
    %1 = arith.extui %0 : i1 to i32
    %c0_i32_0 = arith.constant 0 : i32
    %2 = arith.cmpi ne, %1, %c0_i32_0 : i32
    scf.if %2 {
      %cst_10 = arith.constant 0.000000e+00 : f32
      %12 = vector.broadcast %cst_10 : f32 to vector<32x128xf32>
      %c0_11 = arith.constant 0 : index
      %c0_12 = arith.constant 0 : index
      %13 = vector.load %arg8[%c0_11, %c0_12] : memref<32x128xf32, #tpu.memory_space<vmem>>, vector<32x128xf32>
      tpu.vector_store %arg8[%c0_11, %c0_12], %12 {strides = array<i32>} : memref<32x128xf32, #tpu.memory_space<vmem>>, vector<32x128xf32>,
    } else {
    }
    %c0 = arith.constant 0 : index
    %c0_1 = arith.constant 0 : index
    %3 = vector.load %arg8[%c0, %c0_1] : memref<32x128xf32, #tpu.memory_space<vmem>>, vector<32x128xf32>
    %c0_2 = arith.constant 0 : index
    %c0_3 = arith.constant 0 : index
    %4 = vector.load %arg3[%c0_2, %c0_3] : memref<32x256xbf16, #tpu.memory_space<vmem>>, vector<32x256xbf16>
    %c0_4 = arith.constant 0 : index
    %c0_5 = arith.constant 0 : index
    %5 = vector.load %arg4[%c0_4, %c0_5] : memref<256x128xbf16, #tpu.memory_space<vmem>>, vector<256x128xbf16>
    %cst = arith.constant dense<0.000000e+00> : vector<32x128xf32>
    %6 = tpu.matmul %4, %5, %cst {dimension_numbers = #tpu.dot_dimension_numbers<[1], [0], [0], [1], [0, 0, 1, 1], [], []>} : vector<32x256xbf16>, vector<256x128xbf16>, vector<32x128xf32> -> vector<32x128xf32>
    %7 = arith.addf %3, %6 : vector<32x128xf32>
    %c0_6 = arith.constant 0 : index
    %c0_7 = arith.constant 0 : index
    %8 = vector.load %arg8[%c0_6, %c0_7] : memref<32x128xf32, #tpu.memory_space<vmem>>, vector<32x128xf32>
    tpu.vector_store %arg8[%c0_6, %c0_7], %7 {strides = array<i32>} : memref<32x128xf32, #tpu.memory_space<vmem>>, vector<32x128xf32>,
    %c0_i32_8 = arith.constant 0 : i32
    %9 = arith.cmpi eq, %arg2, %c0_i32_8 : i32
    %10 = arith.extui %9 : i1 to i32
    %c0_i32_9 = arith.constant 0 : i32
    %11 = arith.cmpi ne, %10, %c0_i32_9 : i32
    scf.if %11 {
      %c0_10 = arith.constant 0 : index
      %c0_11 = arith.constant 0 : index
      %12 = vector.load %arg8[%c0_10, %c0_11] : memref<32x128xf32, #tpu.memory_space<vmem>>, vector<32x128xf32>
      %13 = arith.truncf %12 : vector<32x128xf32> to vector<32x128xbf16>
      %c0_12 = arith.constant 0 : index
      %c0_13 = arith.constant 0 : index
      %14 = vector.load %arg5[%c0_12, %c0_13] : memref<32x128xbf16, #tpu.memory_space<vmem>>, vector<32x128xbf16>
      tpu.vector_store %arg5[%c0_12, %c0_13], %13 {strides = array<i32>} : memref<32x128xbf16, #tpu.memory_space<vmem>>, vector<32x128xbf16>,
      %cst_14 = arith.constant dense<0.000000e+00> : vector<128xf32>
      %15 = vector.multi_reduction <add>, %12, %cst_14 [0] : vector<32x128xf32> to vector<128xf32>
      %16 = vector.shape_cast %15 : vector<128xf32> to vector<1x128xf32>
      %17 = arith.mulf %12, %12 : vector<32x128xf32>
      %cst_15 = arith.constant dense<0.000000e+00> : vector<128xf32>
      %18 = vector.multi_reduction <add>, %17, %cst_15 [0] : vector<32x128xf32> to vector<128xf32>
      %19 = vector.shape_cast %18 : vector<128xf32> to vector<1x128xf32>
      %20 = vector.shape_cast %16 : vector<1x128xf32> to vector<1x128xf32>
      %21 = vector.broadcast %20 : vector<1x128xf32> to vector<8x128xf32>
      %c0_16 = arith.constant 0 : index
      %c0_17 = arith.constant 0 : index
      %22 = vector.load %arg6[%c0_16, %c0_17] : memref<8x128xf32, #tpu.memory_space<vmem>>, vector<8x128xf32>
      tpu.vector_store %arg6[%c0_16, %c0_17], %21 {strides = array<i32>} : memref<8x128xf32, #tpu.memory_space<vmem>>, vector<8x128xf32>,
      %23 = vector.shape_cast %19 : vector<1x128xf32> to vector<1x128xf32>
      %24 = vector.broadcast %23 : vector<1x128xf32> to vector<8x128xf32>
      %c0_18 = arith.constant 0 : index
      %c0_19 = arith.constant 0 : index
      %25 = vector.load %arg7[%c0_18, %c0_19] : memref<8x128xf32, #tpu.memory_space<vmem>>, vector<8x128xf32>
      tpu.vector_store %arg7[%c0_18, %c0_19], %24 {strides = array<i32>} : memref<8x128xf32, #tpu.memory_space<vmem>>, vector<8x128xf32>,
    } else {
    }
    return
  }
  func.func @transform_0(%arg0: i32, %arg1: i32, %arg2: i32) -> (i32, i32) {
    %c0_i32 = arith.constant 0 : i32
    return %arg0, %arg2 : i32, i32
  }
  func.func @transform_1(%arg0: i32, %arg1: i32, %arg2: i32) -> (i32, i32) {
    %c0_i32 = arith.constant 0 : i32
    return %arg2, %arg1 : i32, i32
  }
  func.func @transform_2(%arg0: i32, %arg1: i32, %arg2: i32) -> (i32, i32) {
    %c0_i32 = arith.constant 0 : i32
    return %arg0, %arg1 : i32, i32
  }
  func.func @transform_3(%arg0: i32, %arg1: i32, %arg2: i32) -> (i32, i32) {
    %c0_i32 = arith.constant 0 : i32
    return %arg0, %arg1 : i32, i32
  }
  func.func @transform_4(%arg0: i32, %arg1: i32, %arg2: i32) -> (i32, i32) {
    %c0_i32 = arith.constant 0 : i32
    return %arg0, %arg1 : i32, i32
  }
}

module attributes {stable_mosaic.version = 11 : i64} {
  func.func @_matmul_stats_kernel(%arg0: i32, %arg1: i32, %arg2: i32, %arg3: memref<32x384xbf16, #tpu.memory_space<vmem>>, %arg4: memref<384x128xbf16, #tpu.memory_space<vmem>>, %arg5: memref<32x128xbf16, #tpu.memory_space<vmem>>, %arg6: memref<8x128xf32, #tpu.memory_space<vmem>>, %arg7: memref<8x128xf32, #tpu.memory_space<vmem>>, %arg8: memref<32x128xf32, #tpu.memory_space<vmem>>) attributes {dimension_semantics = [#tpu.dimension_semantics<parallel>, #tpu.dimension_semantics<parallel>, #tpu.dimension_semantics<arbitrary>], iteration_bounds = array<i64: 1, 1, 1>, scalar_prefetch = 0 : i64, scratch_operands = 1 : i64, tpu.core_type = #tpu.core_type<tc>, window_params = [{transform_indices = @transform_0, window_bounds = array<i64: 32, 384>}, {transform_indices = @transform_1, window_bounds = array<i64: 384, 128>}, {transform_indices = @transform_2, window_bounds = array<i64: 32, 128>}, {transform_indices = @transform_3, window_bounds = array<i64: 8, 128>}, {transform_indices = @transform_4, window_bounds = array<i64: 8, 128>}]} {
    %c0_i32 = arith.constant 0 : i32
    %0 = arith.cmpi eq, %arg2, %c0_i32 : i32
    %1 = arith.extui %0 : i1 to i32
    %c0_i32_0 = arith.constant 0 : i32
    %2 = arith.cmpi ne, %1, %c0_i32_0 : i32
    scf.if %2 {
      %cst_10 = arith.constant 0.000000e+00 : f32
      %12 = vector.broadcast %cst_10 : f32 to vector<32x128xf32>
      %c0_11 = arith.constant 0 : index
      %c0_12 = arith.constant 0 : index
      %13 = vector.load %arg8[%c0_11, %c0_12] : memref<32x128xf32, #tpu.memory_space<vmem>>, vector<32x128xf32>
      tpu.vector_store %arg8[%c0_11, %c0_12], %12 {strides = array<i32>} : memref<32x128xf32, #tpu.memory_space<vmem>>, vector<32x128xf32>,
    } else {
    }
    %c0 = arith.constant 0 : index
    %c0_1 = arith.constant 0 : index
    %3 = vector.load %arg8[%c0, %c0_1] : memref<32x128xf32, #tpu.memory_space<vmem>>, vector<32x128xf32>
    %c0_2 = arith.constant 0 : index
    %c0_3 = arith.constant 0 : index
    %4 = vector.load %arg3[%c0_2, %c0_3] : memref<32x384xbf16, #tpu.memory_space<vmem>>, vector<32x384xbf16>
    %c0_4 = arith.constant 0 : index
    %c0_5 = arith.constant 0 : index
    %5 = vector.load %arg4[%c0_4, %c0_5] : memref<384x128xbf16, #tpu.memory_space<vmem>>, vector<384x128xbf16>
    %cst = arith.constant dense<0.000000e+00> : vector<32x128xf32>
    %6 = tpu.matmul %4, %5, %cst {dimension_numbers = #tpu.dot_dimension_numbers<[1], [0], [0], [1], [0, 0, 1, 1], [], []>} : vector<32x384xbf16>, vector<384x128xbf16>, vector<32x128xf32> -> vector<32x128xf32>
    %7 = arith.addf %3, %6 : vector<32x128xf32>
    %c0_6 = arith.constant 0 : index
    %c0_7 = arith.constant 0 : index
    %8 = vector.load %arg8[%c0_6, %c0_7] : memref<32x128xf32, #tpu.memory_space<vmem>>, vector<32x128xf32>
    tpu.vector_store %arg8[%c0_6, %c0_7], %7 {strides = array<i32>} : memref<32x128xf32, #tpu.memory_space<vmem>>, vector<32x128xf32>,
    %c0_i32_8 = arith.constant 0 : i32
    %9 = arith.cmpi eq, %arg2, %c0_i32_8 : i32
    %10 = arith.extui %9 : i1 to i32
    %c0_i32_9 = arith.constant 0 : i32
    %11 = arith.cmpi ne, %10, %c0_i32_9 : i32
    scf.if %11 {
      %c0_10 = arith.constant 0 : index
      %c0_11 = arith.constant 0 : index
      %12 = vector.load %arg8[%c0_10, %c0_11] : memref<32x128xf32, #tpu.memory_space<vmem>>, vector<32x128xf32>
      %13 = arith.truncf %12 : vector<32x128xf32> to vector<32x128xbf16>
      %c0_12 = arith.constant 0 : index
      %c0_13 = arith.constant 0 : index
      %14 = vector.load %arg5[%c0_12, %c0_13] : memref<32x128xbf16, #tpu.memory_space<vmem>>, vector<32x128xbf16>
      tpu.vector_store %arg5[%c0_12, %c0_13], %13 {strides = array<i32>} : memref<32x128xbf16, #tpu.memory_space<vmem>>, vector<32x128xbf16>,
      %cst_14 = arith.constant dense<0.000000e+00> : vector<128xf32>
      %15 = vector.multi_reduction <add>, %12, %cst_14 [0] : vector<32x128xf32> to vector<128xf32>
      %16 = vector.shape_cast %15 : vector<128xf32> to vector<1x128xf32>
      %17 = arith.mulf %12, %12 : vector<32x128xf32>
      %cst_15 = arith.constant dense<0.000000e+00> : vector<128xf32>
      %18 = vector.multi_reduction <add>, %17, %cst_15 [0] : vector<32x128xf32> to vector<128xf32>
      %19 = vector.shape_cast %18 : vector<128xf32> to vector<1x128xf32>
      %20 = vector.shape_cast %16 : vector<1x128xf32> to vector<1x128xf32>
      %21 = vector.broadcast %20 : vector<1x128xf32> to vector<8x128xf32>
      %c0_16 = arith.constant 0 : index
      %c0_17 = arith.constant 0 : index
      %22 = vector.load %arg6[%c0_16, %c0_17] : memref<8x128xf32, #tpu.memory_space<vmem>>, vector<8x128xf32>
      tpu.vector_store %arg6[%c0_16, %c0_17], %21 {strides = array<i32>} : memref<8x128xf32, #tpu.memory_space<vmem>>, vector<8x128xf32>,
      %23 = vector.shape_cast %19 : vector<1x128xf32> to vector<1x128xf32>
      %24 = vector.broadcast %23 : vector<1x128xf32> to vector<8x128xf32>
      %c0_18 = arith.constant 0 : index
      %c0_19 = arith.constant 0 : index
      %25 = vector.load %arg7[%c0_18, %c0_19] : memref<8x128xf32, #tpu.memory_space<vmem>>, vector<8x128xf32>
      tpu.vector_store %arg7[%c0_18, %c0_19], %24 {strides = array<i32>} : memref<8x128xf32, #tpu.memory_space<vmem>>, vector<8x128xf32>,
    } else {
    }
    return
  }
  func.func @transform_0(%arg0: i32, %arg1: i32, %arg2: i32) -> (i32, i32) {
    %c0_i32 = arith.constant 0 : i32
    return %arg0, %arg2 : i32, i32
  }
  func.func @transform_1(%arg0: i32, %arg1: i32, %arg2: i32) -> (i32, i32) {
    %c0_i32 = arith.constant 0 : i32
    return %arg2, %arg1 : i32, i32
  }
  func.func @transform_2(%arg0: i32, %arg1: i32, %arg2: i32) -> (i32, i32) {
    %c0_i32 = arith.constant 0 : i32
    return %arg0, %arg1 : i32, i32
  }
  func.func @transform_3(%arg0: i32, %arg1: i32, %arg2: i32) -> (i32, i32) {
    %c0_i32 = arith.constant 0 : i32
    return %arg0, %arg1 : i32, i32
  }
  func.func @transform_4(%arg0: i32, %arg1: i32, %arg2: i32) -> (i32, i32) {
    %c0_i32 = arith.constant 0 : i32
    return %arg0, %arg1 : i32, i32
  }
}

module attributes {stable_mosaic.version = 11 : i64} {
  func.func @_bn_apply_res_kernel(%arg0: i32, %arg1: memref<32x128xbf16, #tpu.memory_space<vmem>>, %arg2: memref<1x128xf32, #tpu.memory_space<vmem>>, %arg3: memref<1x128xf32, #tpu.memory_space<vmem>>, %arg4: memref<32x128xbf16, #tpu.memory_space<vmem>>, %arg5: memref<32x128xbf16, #tpu.memory_space<vmem>>) attributes {dimension_semantics = [#tpu.dimension_semantics<parallel>], iteration_bounds = array<i64: 1>, scalar_prefetch = 0 : i64, scratch_operands = 0 : i64, tpu.core_type = #tpu.core_type<tc>, window_params = [{transform_indices = @transform_0, window_bounds = array<i64: 32, 128>}, {pipeline_mode = #tpu.pipeline_mode<synchronous>, transform_indices = @transform_1, window_bounds = array<i64: 1, 128>}, {pipeline_mode = #tpu.pipeline_mode<synchronous>, transform_indices = @transform_2, window_bounds = array<i64: 1, 128>}, {transform_indices = @transform_3, window_bounds = array<i64: 32, 128>}, {transform_indices = @transform_4, window_bounds = array<i64: 32, 128>}]} {
    %c0 = arith.constant 0 : index
    %c0_0 = arith.constant 0 : index
    %0 = vector.load %arg1[%c0, %c0_0] : memref<32x128xbf16, #tpu.memory_space<vmem>>, vector<32x128xbf16>
    %1 = arith.extf %0 : vector<32x128xbf16> to vector<32x128xf32>
    %c0_1 = arith.constant 0 : index
    %c0_2 = arith.constant 0 : index
    %2 = vector.load %arg2[%c0_1, %c0_2] : memref<1x128xf32, #tpu.memory_space<vmem>>, vector<1x128xf32>
    %3 = vector.broadcast %2 : vector<1x128xf32> to vector<32x128xf32>
    %4 = arith.mulf %1, %3 : vector<32x128xf32>
    %c0_3 = arith.constant 0 : index
    %c0_4 = arith.constant 0 : index
    %5 = vector.load %arg3[%c0_3, %c0_4] : memref<1x128xf32, #tpu.memory_space<vmem>>, vector<1x128xf32>
    %6 = vector.broadcast %5 : vector<1x128xf32> to vector<32x128xf32>
    %7 = arith.addf %4, %6 : vector<32x128xf32>
    %c0_5 = arith.constant 0 : index
    %c0_6 = arith.constant 0 : index
    %8 = vector.load %arg4[%c0_5, %c0_6] : memref<32x128xbf16, #tpu.memory_space<vmem>>, vector<32x128xbf16>
    %9 = arith.extf %8 : vector<32x128xbf16> to vector<32x128xf32>
    %10 = arith.addf %7, %9 : vector<32x128xf32>
    %11 = arith.truncf %10 : vector<32x128xf32> to vector<32x128xbf16>
    %c0_7 = arith.constant 0 : index
    %c0_8 = arith.constant 0 : index
    %12 = vector.load %arg5[%c0_7, %c0_8] : memref<32x128xbf16, #tpu.memory_space<vmem>>, vector<32x128xbf16>
    tpu.vector_store %arg5[%c0_7, %c0_8], %11 {strides = array<i32>} : memref<32x128xbf16, #tpu.memory_space<vmem>>, vector<32x128xbf16>,
    return
  }
  func.func @transform_0(%arg0: i32) -> (i32, i32) {
    %c0_i32 = arith.constant 0 : i32
    %c0_i32_0 = arith.constant 0 : i32
    return %arg0, %c0_i32 : i32, i32
  }
  func.func @transform_1(%arg0: i32) -> (i32, i32) {
    %c0_i32 = arith.constant 0 : i32
    %c0_i32_0 = arith.constant 0 : i32
    %c0_i32_1 = arith.constant 0 : i32
    return %c0_i32, %c0_i32_0 : i32, i32
  }
  func.func @transform_2(%arg0: i32) -> (i32, i32) {
    %c0_i32 = arith.constant 0 : i32
    %c0_i32_0 = arith.constant 0 : i32
    %c0_i32_1 = arith.constant 0 : i32
    return %c0_i32, %c0_i32_0 : i32, i32
  }
  func.func @transform_3(%arg0: i32) -> (i32, i32) {
    %c0_i32 = arith.constant 0 : i32
    %c0_i32_0 = arith.constant 0 : i32
    return %arg0, %c0_i32 : i32, i32
  }
  func.func @transform_4(%arg0: i32) -> (i32, i32) {
    %c0_i32 = arith.constant 0 : i32
    %c0_i32_0 = arith.constant 0 : i32
    return %arg0, %c0_i32 : i32, i32
  }
}

module attributes {stable_mosaic.version = 11 : i64} {
  func.func @_matmul_stats_kernel(%arg0: i32, %arg1: i32, %arg2: i32, %arg3: memref<32x128xbf16, #tpu.memory_space<vmem>>, %arg4: memref<128x128xbf16, #tpu.memory_space<vmem>>, %arg5: memref<32x128xbf16, #tpu.memory_space<vmem>>, %arg6: memref<8x128xf32, #tpu.memory_space<vmem>>, %arg7: memref<8x128xf32, #tpu.memory_space<vmem>>, %arg8: memref<32x128xf32, #tpu.memory_space<vmem>>) attributes {dimension_semantics = [#tpu.dimension_semantics<parallel>, #tpu.dimension_semantics<parallel>, #tpu.dimension_semantics<arbitrary>], iteration_bounds = array<i64: 1, 1, 1>, scalar_prefetch = 0 : i64, scratch_operands = 1 : i64, tpu.core_type = #tpu.core_type<tc>, window_params = [{transform_indices = @transform_0, window_bounds = array<i64: 32, 128>}, {transform_indices = @transform_1, window_bounds = array<i64: 128, 128>}, {transform_indices = @transform_2, window_bounds = array<i64: 32, 128>}, {transform_indices = @transform_3, window_bounds = array<i64: 8, 128>}, {transform_indices = @transform_4, window_bounds = array<i64: 8, 128>}]} {
    %c0_i32 = arith.constant 0 : i32
    %0 = arith.cmpi eq, %arg2, %c0_i32 : i32
    %1 = arith.extui %0 : i1 to i32
    %c0_i32_0 = arith.constant 0 : i32
    %2 = arith.cmpi ne, %1, %c0_i32_0 : i32
    scf.if %2 {
      %cst_10 = arith.constant 0.000000e+00 : f32
      %12 = vector.broadcast %cst_10 : f32 to vector<32x128xf32>
      %c0_11 = arith.constant 0 : index
      %c0_12 = arith.constant 0 : index
      %13 = vector.load %arg8[%c0_11, %c0_12] : memref<32x128xf32, #tpu.memory_space<vmem>>, vector<32x128xf32>
      tpu.vector_store %arg8[%c0_11, %c0_12], %12 {strides = array<i32>} : memref<32x128xf32, #tpu.memory_space<vmem>>, vector<32x128xf32>,
    } else {
    }
    %c0 = arith.constant 0 : index
    %c0_1 = arith.constant 0 : index
    %3 = vector.load %arg8[%c0, %c0_1] : memref<32x128xf32, #tpu.memory_space<vmem>>, vector<32x128xf32>
    %c0_2 = arith.constant 0 : index
    %c0_3 = arith.constant 0 : index
    %4 = vector.load %arg3[%c0_2, %c0_3] : memref<32x128xbf16, #tpu.memory_space<vmem>>, vector<32x128xbf16>
    %c0_4 = arith.constant 0 : index
    %c0_5 = arith.constant 0 : index
    %5 = vector.load %arg4[%c0_4, %c0_5] : memref<128x128xbf16, #tpu.memory_space<vmem>>, vector<128x128xbf16>
    %cst = arith.constant dense<0.000000e+00> : vector<32x128xf32>
    %6 = tpu.matmul %4, %5, %cst {dimension_numbers = #tpu.dot_dimension_numbers<[1], [0], [0], [1], [0, 0, 1, 1], [], []>} : vector<32x128xbf16>, vector<128x128xbf16>, vector<32x128xf32> -> vector<32x128xf32>
    %7 = arith.addf %3, %6 : vector<32x128xf32>
    %c0_6 = arith.constant 0 : index
    %c0_7 = arith.constant 0 : index
    %8 = vector.load %arg8[%c0_6, %c0_7] : memref<32x128xf32, #tpu.memory_space<vmem>>, vector<32x128xf32>
    tpu.vector_store %arg8[%c0_6, %c0_7], %7 {strides = array<i32>} : memref<32x128xf32, #tpu.memory_space<vmem>>, vector<32x128xf32>,
    %c0_i32_8 = arith.constant 0 : i32
    %9 = arith.cmpi eq, %arg2, %c0_i32_8 : i32
    %10 = arith.extui %9 : i1 to i32
    %c0_i32_9 = arith.constant 0 : i32
    %11 = arith.cmpi ne, %10, %c0_i32_9 : i32
    scf.if %11 {
      %c0_10 = arith.constant 0 : index
      %c0_11 = arith.constant 0 : index
      %12 = vector.load %arg8[%c0_10, %c0_11] : memref<32x128xf32, #tpu.memory_space<vmem>>, vector<32x128xf32>
      %13 = arith.truncf %12 : vector<32x128xf32> to vector<32x128xbf16>
      %c0_12 = arith.constant 0 : index
      %c0_13 = arith.constant 0 : index
      %14 = vector.load %arg5[%c0_12, %c0_13] : memref<32x128xbf16, #tpu.memory_space<vmem>>, vector<32x128xbf16>
      tpu.vector_store %arg5[%c0_12, %c0_13], %13 {strides = array<i32>} : memref<32x128xbf16, #tpu.memory_space<vmem>>, vector<32x128xbf16>,
      %cst_14 = arith.constant dense<0.000000e+00> : vector<128xf32>
      %15 = vector.multi_reduction <add>, %12, %cst_14 [0] : vector<32x128xf32> to vector<128xf32>
      %16 = vector.shape_cast %15 : vector<128xf32> to vector<1x128xf32>
      %17 = arith.mulf %12, %12 : vector<32x128xf32>
      %cst_15 = arith.constant dense<0.000000e+00> : vector<128xf32>
      %18 = vector.multi_reduction <add>, %17, %cst_15 [0] : vector<32x128xf32> to vector<128xf32>
      %19 = vector.shape_cast %18 : vector<128xf32> to vector<1x128xf32>
      %20 = vector.shape_cast %16 : vector<1x128xf32> to vector<1x128xf32>
      %21 = vector.broadcast %20 : vector<1x128xf32> to vector<8x128xf32>
      %c0_16 = arith.constant 0 : index
      %c0_17 = arith.constant 0 : index
      %22 = vector.load %arg6[%c0_16, %c0_17] : memref<8x128xf32, #tpu.memory_space<vmem>>, vector<8x128xf32>
      tpu.vector_store %arg6[%c0_16, %c0_17], %21 {strides = array<i32>} : memref<8x128xf32, #tpu.memory_space<vmem>>, vector<8x128xf32>,
      %23 = vector.shape_cast %19 : vector<1x128xf32> to vector<1x128xf32>
      %24 = vector.broadcast %23 : vector<1x128xf32> to vector<8x128xf32>
      %c0_18 = arith.constant 0 : index
      %c0_19 = arith.constant 0 : index
      %25 = vector.load %arg7[%c0_18, %c0_19] : memref<8x128xf32, #tpu.memory_space<vmem>>, vector<8x128xf32>
      tpu.vector_store %arg7[%c0_18, %c0_19], %24 {strides = array<i32>} : memref<8x128xf32, #tpu.memory_space<vmem>>, vector<8x128xf32>,
    } else {
    }
    return
  }
  func.func @transform_0(%arg0: i32, %arg1: i32, %arg2: i32) -> (i32, i32) {
    %c0_i32 = arith.constant 0 : i32
    return %arg0, %arg2 : i32, i32
  }
  func.func @transform_1(%arg0: i32, %arg1: i32, %arg2: i32) -> (i32, i32) {
    %c0_i32 = arith.constant 0 : i32
    return %arg2, %arg1 : i32, i32
  }
  func.func @transform_2(%arg0: i32, %arg1: i32, %arg2: i32) -> (i32, i32) {
    %c0_i32 = arith.constant 0 : i32
    return %arg0, %arg1 : i32, i32
  }
  func.func @transform_3(%arg0: i32, %arg1: i32, %arg2: i32) -> (i32, i32) {
    %c0_i32 = arith.constant 0 : i32
    return %arg0, %arg1 : i32, i32
  }
  func.func @transform_4(%arg0: i32, %arg1: i32, %arg2: i32) -> (i32, i32) {
    %c0_i32 = arith.constant 0 : i32
    return %arg0, %arg1 : i32, i32
  }
}

module attributes {stable_mosaic.version = 11 : i64} {
  func.func @_matmul_bias_kernel(%arg0: i32, %arg1: i32, %arg2: i32, %arg3: memref<512x512xbf16, #tpu.memory_space<vmem>>, %arg4: memref<512x128xbf16, #tpu.memory_space<vmem>>, %arg5: memref<1x128xf32, #tpu.memory_space<vmem>>, %arg6: memref<512x128xf32, #tpu.memory_space<vmem>>, %arg7: memref<512x128xf32, #tpu.memory_space<vmem>>) attributes {dimension_semantics = [#tpu.dimension_semantics<parallel>, #tpu.dimension_semantics<parallel>, #tpu.dimension_semantics<arbitrary>], iteration_bounds = array<i64: 1, 1, 1>, scalar_prefetch = 0 : i64, scratch_operands = 1 : i64, tpu.core_type = #tpu.core_type<tc>, window_params = [{transform_indices = @transform_0, window_bounds = array<i64: 512, 512>}, {transform_indices = @transform_1, window_bounds = array<i64: 512, 128>}, {transform_indices = @transform_2, window_bounds = array<i64: 1, 128>}, {transform_indices = @transform_3, window_bounds = array<i64: 512, 128>}]} {
    %c0_i32 = arith.constant 0 : i32
    %0 = arith.cmpi eq, %arg2, %c0_i32 : i32
    %1 = arith.extui %0 : i1 to i32
    %c0_i32_0 = arith.constant 0 : i32
    %2 = arith.cmpi ne, %1, %c0_i32_0 : i32
    scf.if %2 {
      %cst_10 = arith.constant 0.000000e+00 : f32
      %12 = vector.broadcast %cst_10 : f32 to vector<512x128xf32>
      %c0_11 = arith.constant 0 : index
      %c0_12 = arith.constant 0 : index
      %13 = vector.load %arg7[%c0_11, %c0_12] : memref<512x128xf32, #tpu.memory_space<vmem>>, vector<512x128xf32>
      tpu.vector_store %arg7[%c0_11, %c0_12], %12 {strides = array<i32>} : memref<512x128xf32, #tpu.memory_space<vmem>>, vector<512x128xf32>,
    } else {
    }
    %c0 = arith.constant 0 : index
    %c0_1 = arith.constant 0 : index
    %3 = vector.load %arg7[%c0, %c0_1] : memref<512x128xf32, #tpu.memory_space<vmem>>, vector<512x128xf32>
    %c0_2 = arith.constant 0 : index
    %c0_3 = arith.constant 0 : index
    %4 = vector.load %arg3[%c0_2, %c0_3] : memref<512x512xbf16, #tpu.memory_space<vmem>>, vector<512x512xbf16>
    %c0_4 = arith.constant 0 : index
    %c0_5 = arith.constant 0 : index
    %5 = vector.load %arg4[%c0_4, %c0_5] : memref<512x128xbf16, #tpu.memory_space<vmem>>, vector<512x128xbf16>
    %cst = arith.constant dense<0.000000e+00> : vector<512x128xf32>
    %6 = tpu.matmul %4, %5, %cst {dimension_numbers = #tpu.dot_dimension_numbers<[1], [0], [0], [1], [0, 0, 1, 1], [], []>} : vector<512x512xbf16>, vector<512x128xbf16>, vector<512x128xf32> -> vector<512x128xf32>
    %7 = arith.addf %3, %6 : vector<512x128xf32>
    %c0_6 = arith.constant 0 : index
    %c0_7 = arith.constant 0 : index
    %8 = vector.load %arg7[%c0_6, %c0_7] : memref<512x128xf32, #tpu.memory_space<vmem>>, vector<512x128xf32>
    tpu.vector_store %arg7[%c0_6, %c0_7], %7 {strides = array<i32>} : memref<512x128xf32, #tpu.memory_space<vmem>>, vector<512x128xf32>,
    %c0_i32_8 = arith.constant 0 : i32
    %9 = arith.cmpi eq, %arg2, %c0_i32_8 : i32
    %10 = arith.extui %9 : i1 to i32
    %c0_i32_9 = arith.constant 0 : i32
    %11 = arith.cmpi ne, %10, %c0_i32_9 : i32
    scf.if %11 {
      %c0_10 = arith.constant 0 : index
      %c0_11 = arith.constant 0 : index
      %12 = vector.load %arg7[%c0_10, %c0_11] : memref<512x128xf32, #tpu.memory_space<vmem>>, vector<512x128xf32>
      %c0_12 = arith.constant 0 : index
      %c0_13 = arith.constant 0 : index
      %13 = vector.load %arg5[%c0_12, %c0_13] : memref<1x128xf32, #tpu.memory_space<vmem>>, vector<1x128xf32>
      %14 = vector.broadcast %13 : vector<1x128xf32> to vector<512x128xf32>
      %15 = arith.addf %12, %14 : vector<512x128xf32>
      %c0_14 = arith.constant 0 : index
      %c0_15 = arith.constant 0 : index
      %16 = vector.load %arg6[%c0_14, %c0_15] : memref<512x128xf32, #tpu.memory_space<vmem>>, vector<512x128xf32>
      tpu.vector_store %arg6[%c0_14, %c0_15], %15 {strides = array<i32>} : memref<512x128xf32, #tpu.memory_space<vmem>>, vector<512x128xf32>,
    } else {
    }
    return
  }
  func.func @transform_0(%arg0: i32, %arg1: i32, %arg2: i32) -> (i32, i32) {
    %c0_i32 = arith.constant 0 : i32
    return %arg0, %arg2 : i32, i32
  }
  func.func @transform_1(%arg0: i32, %arg1: i32, %arg2: i32) -> (i32, i32) {
    %c0_i32 = arith.constant 0 : i32
    return %arg2, %arg1 : i32, i32
  }
  func.func @transform_2(%arg0: i32, %arg1: i32, %arg2: i32) -> (i32, i32) {
    %c0_i32 = arith.constant 0 : i32
    %c0_i32_0 = arith.constant 0 : i32
    return %c0_i32, %arg1 : i32, i32
  }
  func.func @transform_3(%arg0: i32, %arg1: i32, %arg2: i32) -> (i32, i32) {
    %c0_i32 = arith.constant 0 : i32
    return %arg0, %arg1 : i32, i32
  }
}

</mosaic_0001>

<llo_original>
// kernel: resnet_generator_forward.20
$region0: #{resnet_generator_forward.20}
  #allocation0 [shape = 'u32[]', space=smem, size = 0x4, offset = 0x4, fixed_abs, tag = 'smem constant byte address 0x4 - core index']
  #allocation1 [shape = 'u32[72,128]{1,0:T(1,128)}', space=vmem, size = 0x9000, scoped, tag = 'internal scratch']
  %s0 = inlined_call_operand.vmem [shape: bf16[512,128], index: 0, kind: input, shape index: {}]
  %s1 = inlined_call_operand.vmem [shape: f32[1,128], index: 1, kind: input, shape index: {}]
  %s2 = inlined_call_operand.vmem [shape: f32[1,128], index: 2, kind: input, shape index: {}]
  %s3 = inlined_call_operand.vmem [shape: bf16[512,128], index: 3, kind: output, shape index: {}]
  %s4 = sld [smem:[#allocation0]]
  $region22: #{resnet_generator_forward.20} parent=0
    _
  %s6 = ssub.s32 1, %s4
  %s7 = scalar_select 0, %s6, %s4
  // Predicated region
  $region2: #{resnet_generator_forward.20} parent=0 // pred_check
    _
  $region3: #{resnet_generator_forward.20} parent=0 // pred_check_branch
    %9 = sbr.rel (0) target = $region5
  $region4: #{resnet_generator_forward.20} parent=0 // pred_region
    _
  $region5: #{resnet_generator_forward.20} parent=0 // pred_fallthru
    _
  // Predicated region
  $region6: #{resnet_generator_forward.20} parent=0 // pred_check
    _
  $region7: #{resnet_generator_forward.20} parent=0 // pred_check_branch
    %11 = sbr.rel (0) target = $region9
  $region8: #{resnet_generator_forward.20} parent=0 // pred_region
    _
  $region9: #{resnet_generator_forward.20} parent=0 // pred_fallthru
    _
  // Predicated region
  $region10: #{resnet_generator_forward.20} parent=0 // pred_check
    _
  $region11: #{resnet_generator_forward.20} parent=0 // pred_check_branch
    %13 = sbr.rel (0) target = $region13
  $region12: #{resnet_generator_forward.20} parent=0 // pred_region
    _
  $region13: #{resnet_generator_forward.20} parent=0 // pred_fallthru
    _
  %v14 = vld [vmem:[%s0] sm:$0xf]
  %v15 = vld [vmem:[%s0 + $0x4] sm:$0xf]
  %v16 = vld [vmem:[%s0 + $0x8] sm:$0xf]
  %v17 = vld [vmem:[%s0 + $0xc] sm:$0xf]
  %v18 = vld [vmem:[%s0 + $0x10] sm:$0xf]
  %v19 = vld [vmem:[%s0 + $0x14] sm:$0xf]
  %v20 = vld [vmem:[%s0 + $0x18] sm:$0xf]
  %v21 = vld [vmem:[%s0 + $0x1c] sm:$0xf]
  %v22 = vld [vmem:[%s0 + $0x20] sm:$0xf]
  %v23 = vld [vmem:[%s0 + $0x24] sm:$0xf]
  %v24 = vld [vmem:[%s0 + $0x28] sm:$0xf]
  %v25 = vld [vmem:[%s0 + $0x2c] sm:$0xf]
  %v26 = vld [vmem:[%s0 + $0x30] sm:$0xf]
  %v27 = vld [vmem:[%s0 + $0x34] sm:$0xf]
  %v28 = vld [vmem:[%s0 + $0x38] sm:$0xf]
  %v29 = vld [vmem:[%s0 + $0x3c] sm:$0xf]
  %v30 = vld [vmem:[%s0 + $0x40] sm:$0xf]
  %v31 = vld [vmem:[%s0 + $0x44] sm:$0xf]
  %v32 = vld [vmem:[%s0 + $0x48] sm:$0xf]
  %v33 = vld [vmem:[%s0 + $0x4c] sm:$0xf]
  %v34 = vld [vmem:[%s0 + $0x50] sm:$0xf]
  %v35 = vld [vmem:[%s0 + $0x54] sm:$0xf]
  %v36 = vld [vmem:[%s0 + $0x58] sm:$0xf]
  %v37 = vld [vmem:[%s0 + $0x5c] sm:$0xf]
  %v38 = vld [vmem:[%s0 + $0x60] sm:$0xf]
  %v39 = vld [vmem:[%s0 + $0x64] sm:$0xf]
  %v40 = vld [vmem:[%s0 + $0x68] sm:$0xf]
  %v41 = vld [vmem:[%s0 + $0x6c] sm:$0xf]
  %v42 = vld [vmem:[%s0 + $0x70] sm:$0xf]
  %v43 = vld [vmem:[%s0 + $0x74] sm:$0xf]
  %v44 = vld [vmem:[%s0 + $0x78] sm:$0xf]
  %v45 = vld [vmem:[%s0 + $0x7c] sm:$0xf]
  %v46 = vld [vmem:[%s0 + $0x80] sm:$0xf]
  %v47 = vld [vmem:[%s0 + $0x84] sm:$0xf]
  %v48 = vld [vmem:[%s0 + $0x88] sm:$0xf]
  %v49 = vld [vmem:[%s0 + $0x8c] sm:$0xf]
  %v50 = vld [vmem:[%s0 + $0x90] sm:$0xf]
  %v51 = vld [vmem:[%s0 + $0x94] sm:$0xf]
  %v52 = vld [vmem:[%s0 + $0x98] sm:$0xf]
  %v53 = vld [vmem:[%s0 + $0x9c] sm:$0xf]
  %v54 = vld [vmem:[%s0 + $0xa0] sm:$0xf]
  %v55 = vld [vmem:[%s0 + $0xa4] sm:$0xf]
  %v56 = vld [vmem:[%s0 + $0xa8] sm:$0xf]
  %v57 = vld [vmem:[%s0 + $0xac] sm:$0xf]
  %v58 = vld [vmem:[%s0 + $0xb0] sm:$0xf]
  %v59 = vld [vmem:[%s0 + $0xb4] sm:$0xf]
  %v60 = vld [vmem:[%s0 + $0xb8] sm:$0xf]
  %v61 = vld [vmem:[%s0 + $0xbc] sm:$0xf]
  %v62 = vld [vmem:[%s0 + $0xc0] sm:$0xf]
  %v63 = vld [vmem:[%s0 + $0xc4] sm:$0xf]
  %v64 = vld [vmem:[%s0 + $0xc8] sm:$0xf]
  %v65 = vld [vmem:[%s0 + $0xcc] sm:$0xf]
  %v66 = vld [vmem:[%s0 + $0xd0] sm:$0xf]
  %v67 = vld [vmem:[%s0 + $0xd4] sm:$0xf]
  %v68 = vld [vmem:[%s0 + $0xd8] sm:$0xf]
  %v69 = vld [vmem:[%s0 + $0xdc] sm:$0xf]
  %v70 = vld [vmem:[%s0 + $0xe0] sm:$0xf]
  %v71 = vld [vmem:[%s0 + $0xe4] sm:$0xf]
  %v72 = vld [vmem:[%s0 + $0xe8] sm:$0xf]
  %v73 = vld [vmem:[%s0 + $0xec] sm:$0xf]
  %v74 = vld [vmem:[%s0 + $0xf0] sm:$0xf]
  %v75 = vld [vmem:[%s0 + $0xf4] sm:$0xf]
  %v76 = vld [vmem:[%s0 + $0xf8] sm:$0xf]
  %v77 = vld [vmem:[%s0 + $0xfc] sm:$0xf]
  %v78 = vunpack.c.l.bf16 %v14
  %v79 = vunpack.c.l.bf16 %v15
  %v80 = vunpack.c.l.bf16 %v16
  %v81 = vunpack.c.l.bf16 %v17
  %v82 = vunpack.c.l.bf16 %v18
  %v83 = vunpack.c.l.bf16 %v19
  %v84 = vunpack.c.l.bf16 %v20
  %v85 = vunpack.c.l.bf16 %v21
  %v86 = vunpack.c.l.bf16 %v22
  %v87 = vunpack.c.l.bf16 %v23
  %v88 = vunpack.c.l.bf16 %v24
  %v89 = vunpack.c.l.bf16 %v25
  %v90 = vunpack.c.l.bf16 %v26
  %v91 = vunpack.c.l.bf16 %v27
  %v92 = vunpack.c.l.bf16 %v28
  %v93 = vunpack.c.l.bf16 %v29
  %v94 = vunpack.c.l.bf16 %v30
  %v95 = vunpack.c.l.bf16 %v31
  %v96 = vunpack.c.l.bf16 %v32
  %v97 = vunpack.c.l.bf16 %v33
  %v98 = vunpack.c.l.bf16 %v34
  %v99 = vunpack.c.l.bf16 %v35
  %v100 = vunpack.c.l.bf16 %v36
  %v101 = vunpack.c.l.bf16 %v37
  %v102 = vunpack.c.l.bf16 %v38
  %v103 = vunpack.c.l.bf16 %v39
  %v104 = vunpack.c.l.bf16 %v40
  %v105 = vunpack.c.l.bf16 %v41
  %v106 = vunpack.c.l.bf16 %v42
  %v107 = vunpack.c.l.bf16 %v43
  %v108 = vunpack.c.l.bf16 %v44
  %v109 = vunpack.c.l.bf16 %v45
  %v110 = vunpack.c.l.bf16 %v46
  %v111 = vunpack.c.l.bf16 %v47
  %v112 = vunpack.c.l.bf16 %v48
  %v113 = vunpack.c.l.bf16 %v49
  %v114 = vunpack.c.l.bf16 %v50
  %v115 = vunpack.c.l.bf16 %v51
  %v116 = vunpack.c.l.bf16 %v52
  %v117 = vunpack.c.l.bf16 %v53
  %v118 = vunpack.c.l.bf16 %v54
  %v119 = vunpack.c.l.bf16 %v55
  %v120 = vunpack.c.l.bf16 %v56
  %v121 = vunpack.c.l.bf16 %v57
  %v122 = vunpack.c.l.bf16 %v58
  %v123 = vunpack.c.l.bf16 %v59
  %v124 = vunpack.c.l.bf16 %v60
  %v125 = vunpack.c.l.bf16 %v61
  %v126 = vunpack.c.l.bf16 %v62
  %v127 = vunpack.c.l.bf16 %v63
  %v128 = vunpack.c.l.bf16 %v64
  %v129 = vunpack.c.l.bf16 %v65
  %v130 = vunpack.c.l.bf16 %v66
  %v131 = vunpack.c.l.bf16 %v67
  %v132 = vunpack.c.l.bf16 %v68
  %v133 = vunpack.c.l.bf16 %v69
  %v134 = vunpack.c.l.bf16 %v70
  %v135 = vunpack.c.l.bf16 %v71
  %v136 = vunpack.c.l.bf16 %v72
  %v137 = vunpack.c.l.bf16 %v73
  %v138 = vunpack.c.l.bf16 %v74
  %v139 = vunpack.c.l.bf16 %v75
  %v140 = vunpack.c.l.bf16 %v76
  %v141 = vunpack.c.l.bf16 %v77
  %v142 = vld [vmem:[%s1] sm:$0x1]
  %v144 = vperm.slane %v142, 0
  %v146 = vmul.f32 %v78, %v144
  %v147 = vmul.f32 %v79, %v144
  %v148 = vmul.f32 %v80, %v144
  %v149 = vmul.f32 %v81, %v144
  %v150 = vmul.f32 %v82, %v144
  %v151 = vmul.f32 %v83, %v144
  %v152 = vmul.f32 %v84, %v144
  %v153 = vmul.f32 %v85, %v144
  %v154 = vmul.f32 %v86, %v144
  %v155 = vmul.f32 %v87, %v144
  %v156 = vmul.f32 %v88, %v144
  %v157 = vmul.f32 %v89, %v144
  %v158 = vmul.f32 %v90, %v144
  %v159 = vmul.f32 %v91, %v144
  %v160 = vmul.f32 %v92, %v144
  %v161 = vmul.f32 %v93, %v144
  %v162 = vmul.f32 %v94, %v144
  %v163 = vmul.f32 %v95, %v144
  %v164 = vmul.f32 %v96, %v144
  %v165 = vmul.f32 %v97, %v144
  %v166 = vmul.f32 %v98, %v144
  %v167 = vmul.f32 %v99, %v144
  %v168 = vmul.f32 %v100, %v144
  %v169 = vmul.f32 %v101, %v144
  %v170 = vmul.f32 %v102, %v144
  %v171 = vmul.f32 %v103, %v144
  %v172 = vmul.f32 %v104, %v144
  %v173 = vmul.f32 %v105, %v144
  %v174 = vmul.f32 %v106, %v144
  %v175 = vmul.f32 %v107, %v144
  %v176 = vmul.f32 %v108, %v144
  %v177 = vmul.f32 %v109, %v144
  %v178 = vmul.f32 %v110, %v144
  %v179 = vmul.f32 %v111, %v144
  %v180 = vmul.f32 %v112, %v144
  %v181 = vmul.f32 %v113, %v144
  %v182 = vmul.f32 %v114, %v144
  %v183 = vmul.f32 %v115, %v144
  %v184 = vmul.f32 %v116, %v144
  %v185 = vmul.f32 %v117, %v144
  %v186 = vmul.f32 %v118, %v144
  %v187 = vmul.f32 %v119, %v144
  %v188 = vmul.f32 %v120, %v144
  %v189 = vmul.f32 %v121, %v144
  %v190 = vmul.f32 %v122, %v144
  %v191 = vmul.f32 %v123, %v144
  %v192 = vmul.f32 %v124, %v144
  %v193 = vmul.f32 %v125, %v144
  %v194 = vmul.f32 %v126, %v144
  %v195 = vmul.f32 %v127, %v144
  %v196 = vmul.f32 %v128, %v144
  %v197 = vmul.f32 %v129, %v144
  %v198 = vmul.f32 %v130, %v144
  %v199 = vmul.f32 %v131, %v144
  %v200 = vmul.f32 %v132, %v144
  %v201 = vmul.f32 %v133, %v144
  %v202 = vmul.f32 %v134, %v144
  %v203 = vmul.f32 %v135, %v144
  %v204 = vmul.f32 %v136, %v144
  %v205 = vmul.f32 %v137, %v144
  %v206 = vmul.f32 %v138, %v144
  %v207 = vmul.f32 %v139, %v144
  %v208 = vmul.f32 %v140, %v144
  %v209 = vmul.f32 %v141, %v144
  %v210 = vld [vmem:[%s2] sm:$0x1]
  %v212 = vperm.slane %v210, 0
  %v214 = vadd.f32 %v146, %v212
  %v215 = vadd.f32 %v147, %v212
  %v216 = vadd.f32 %v148, %v212
  %v217 = vadd.f32 %v149, %v212
  %v218 = vadd.f32 %v150, %v212
  %v219 = vadd.f32 %v151, %v212
  %v220 = vadd.f32 %v152, %v212
  %v221 = vadd.f32 %v153, %v212
  %v222 = vadd.f32 %v154, %v212
  %v223 = vadd.f32 %v155, %v212
  %v224 = vadd.f32 %v156, %v212
  %v225 = vadd.f32 %v157, %v212
  %v226 = vadd.f32 %v158, %v212
  %v227 = vadd.f32 %v159, %v212
  %v228 = vadd.f32 %v160, %v212
  %v229 = vadd.f32 %v161, %v212
  %v230 = vadd.f32 %v162, %v212
  %v231 = vadd.f32 %v163, %v212
  %v232 = vadd.f32 %v164, %v212
  %v233 = vadd.f32 %v165, %v212
  %v234 = vadd.f32 %v166, %v212
  %v235 = vadd.f32 %v167, %v212
  %v236 = vadd.f32 %v168, %v212
  %v237 = vadd.f32 %v169, %v212
  %v238 = vadd.f32 %v170, %v212
  %v239 = vadd.f32 %v171, %v212
  %v240 = vadd.f32 %v172, %v212
  %v241 = vadd.f32 %v173, %v212
  %v242 = vadd.f32 %v174, %v212
  %v243 = vadd.f32 %v175, %v212
  %v244 = vadd.f32 %v176, %v212
  %v245 = vadd.f32 %v177, %v212
  %v246 = vadd.f32 %v178, %v212
  %v247 = vadd.f32 %v179, %v212
  %v248 = vadd.f32 %v180, %v212
  %v249 = vadd.f32 %v181, %v212
  %v250 = vadd.f32 %v182, %v212
  %v251 = vadd.f32 %v183, %v212
  %v252 = vadd.f32 %v184, %v212
  %v253 = vadd.f32 %v185, %v212
  %v254 = vadd.f32 %v186, %v212
  %v255 = vadd.f32 %v187, %v212
  %v256 = vadd.f32 %v188, %v212
  %v257 = vadd.f32 %v189, %v212
  %v258 = vadd.f32 %v190, %v212
  %v259 = vadd.f32 %v191, %v212
  %v260 = vadd.f32 %v192, %v212
  %v261 = vadd.f32 %v193, %v212
  %v262 = vadd.f32 %v194, %v212
  %v263 = vadd.f32 %v195, %v212
  %v264 = vadd.f32 %v196, %v212
  %v265 = vadd.f32 %v197, %v212
  %v266 = vadd.f32 %v198, %v212
  %v267 = vadd.f32 %v199, %v212
  %v268 = vadd.f32 %v200, %v212
  %v269 = vadd.f32 %v201, %v212
  %v270 = vadd.f32 %v202, %v212
  %v271 = vadd.f32 %v203, %v212
  %v272 = vadd.f32 %v204, %v212
  %v273 = vadd.f32 %v205, %v212
  %v274 = vadd.f32 %v206, %v212
  %v275 = vadd.f32 %v207, %v212
  %v276 = vadd.f32 %v208, %v212
  %v277 = vadd.f32 %v209, %v212
  %v278 = vmax.f32 %v214, 0.0
  %v279 = vmax.f32 %v215, 0.0
  %v280 = vmax.f32 %v216, 0.0
  %v281 = vmax.f32 %v217, 0.0
  %v282 = vmax.f32 %v218, 0.0
  %v283 = vmax.f32 %v219, 0.0
  %v284 = vmax.f32 %v220, 0.0
  %v285 = vmax.f32 %v221, 0.0
  %v286 = vmax.f32 %v222, 0.0
  %v287 = vmax.f32 %v223, 0.0
  %v288 = vmax.f32 %v224, 0.0
  %v289 = vmax.f32 %v225, 0.0
  %v290 = vmax.f32 %v226, 0.0
  %v291 = vmax.f32 %v227, 0.0
  %v292 = vmax.f32 %v228, 0.0
  %v293 = vmax.f32 %v229, 0.0
  %v294 = vmax.f32 %v230, 0.0
  %v295 = vmax.f32 %v231, 0.0
  %v296 = vmax.f32 %v232, 0.0
  %v297 = vmax.f32 %v233, 0.0
  %v298 = vmax.f32 %v234, 0.0
  %v299 = vmax.f32 %v235, 0.0
  %v300 = vmax.f32 %v236, 0.0
  %v301 = vmax.f32 %v237, 0.0
  %v302 = vmax.f32 %v238, 0.0
  %v303 = vmax.f32 %v239, 0.0
  %v304 = vmax.f32 %v240, 0.0
  %v305 = vmax.f32 %v241, 0.0
  %v306 = vmax.f32 %v242, 0.0
  %v307 = vmax.f32 %v243, 0.0
  %v308 = vmax.f32 %v244, 0.0
  %v309 = vmax.f32 %v245, 0.0
  %v310 = vmax.f32 %v246, 0.0
  %v311 = vmax.f32 %v247, 0.0
  %v312 = vmax.f32 %v248, 0.0
  %v313 = vmax.f32 %v249, 0.0
  %v314 = vmax.f32 %v250, 0.0
  %v315 = vmax.f32 %v251, 0.0
  %v316 = vmax.f32 %v252, 0.0
  %v317 = vmax.f32 %v253, 0.0
  %v318 = vmax.f32 %v254, 0.0
  %v319 = vmax.f32 %v255, 0.0
  %v320 = vmax.f32 %v256, 0.0
  %v321 = vmax.f32 %v257, 0.0
  %v322 = vmax.f32 %v258, 0.0
  %v323 = vmax.f32 %v259, 0.0
  %v324 = vmax.f32 %v260, 0.0
  %v325 = vmax.f32 %v261, 0.0
  %v326 = vmax.f32 %v262, 0.0
  %v327 = vmax.f32 %v263, 0.0
  %v328 = vmax.f32 %v264, 0.0
  %v329 = vmax.f32 %v265, 0.0
  %v330 = vmax.f32 %v266, 0.0
  %v331 = vmax.f32 %v267, 0.0
  %v332 = vmax.f32 %v268, 0.0
  %v333 = vmax.f32 %v269, 0.0
  %v334 = vmax.f32 %v270, 0.0
  %v335 = vmax.f32 %v271, 0.0
  %v336 = vmax.f32 %v272, 0.0
  %v337 = vmax.f32 %v273, 0.0
  %v338 = vmax.f32 %v274, 0.0
  %v339 = vmax.f32 %v275, 0.0
  %v340 = vmax.f32 %v276, 0.0
  %v341 = vmax.f32 %v277, 0.0
  %v342 = vpack.c.bf16 %v278, %v278
  %v343 = vpack.c.bf16 %v279, %v279
  %v344 = vpack.c.bf16 %v280, %v280
  %v345 = vpack.c.bf16 %v281, %v281
  %v346 = vpack.c.bf16 %v282, %v282
  %v347 = vpack.c.bf16 %v283, %v283
  %v348 = vpack.c.bf16 %v284, %v284
  %v349 = vpack.c.bf16 %v285, %v285
  %v350 = vpack.c.bf16 %v286, %v286
  %v351 = vpack.c.bf16 %v287, %v287
  %v352 = vpack.c.bf16 %v288, %v288
  %v353 = vpack.c.bf16 %v289, %v289
  %v354 = vpack.c.bf16 %v290, %v290
  %v355 = vpack.c.bf16 %v291, %v291
  %v356 = vpack.c.bf16 %v292, %v292
  %v357 = vpack.c.bf16 %v293, %v293
  %v358 = vpack.c.bf16 %v294, %v294
  %v359 = vpack.c.bf16 %v295, %v295
  %v360 = vpack.c.bf16 %v296, %v296
  %v361 = vpack.c.bf16 %v297, %v297
  %v362 = vpack.c.bf16 %v298, %v298
  %v363 = vpack.c.bf16 %v299, %v299
  %v364 = vpack.c.bf16 %v300, %v300
  %v365 = vpack.c.bf16 %v301, %v301
  %v366 = vpack.c.bf16 %v302, %v302
  %v367 = vpack.c.bf16 %v303, %v303
  %v368 = vpack.c.bf16 %v304, %v304
  %v369 = vpack.c.bf16 %v305, %v305
  %v370 = vpack.c.bf16 %v306, %v306
  %v371 = vpack.c.bf16 %v307, %v307
  %v372 = vpack.c.bf16 %v308, %v308
  %v373 = vpack.c.bf16 %v309, %v309
  %v374 = vpack.c.bf16 %v310, %v310
  %v375 = vpack.c.bf16 %v311, %v311
  %v376 = vpack.c.bf16 %v312, %v312
  %v377 = vpack.c.bf16 %v313, %v313
  %v378 = vpack.c.bf16 %v314, %v314
  %v379 = vpack.c.bf16 %v315, %v315
  %v380 = vpack.c.bf16 %v316, %v316
  %v381 = vpack.c.bf16 %v317, %v317
  %v382 = vpack.c.bf16 %v318, %v318
  %v383 = vpack.c.bf16 %v319, %v319
  %v384 = vpack.c.bf16 %v320, %v320
  %v385 = vpack.c.bf16 %v321, %v321
  %v386 = vpack.c.bf16 %v322, %v322
  %v387 = vpack.c.bf16 %v323, %v323
  %v388 = vpack.c.bf16 %v324, %v324
  %v389 = vpack.c.bf16 %v325, %v325
  %v390 = vpack.c.bf16 %v326, %v326
  %v391 = vpack.c.bf16 %v327, %v327
  %v392 = vpack.c.bf16 %v328, %v328
  %v393 = vpack.c.bf16 %v329, %v329
  %v394 = vpack.c.bf16 %v330, %v330
  %v395 = vpack.c.bf16 %v331, %v331
  %v396 = vpack.c.bf16 %v332, %v332
  %v397 = vpack.c.bf16 %v333, %v333
  %v398 = vpack.c.bf16 %v334, %v334
  %v399 = vpack.c.bf16 %v335, %v335
  %v400 = vpack.c.bf16 %v336, %v336
  %v401 = vpack.c.bf16 %v337, %v337
  %v402 = vpack.c.bf16 %v338, %v338
  %v403 = vpack.c.bf16 %v339, %v339
  %v404 = vpack.c.bf16 %v340, %v340
  %v405 = vpack.c.bf16 %v341, %v341
  %406 = vst [vmem:[%s3] sm:$0xf] %v342
  %407 = vst [vmem:[%s3 + $0x4] sm:$0xf] %v343
  %408 = vst [vmem:[%s3 + $0x8] sm:$0xf] %v344
  %409 = vst [vmem:[%s3 + $0xc] sm:$0xf] %v345
  %410 = vst [vmem:[%s3 + $0x10] sm:$0xf] %v346
  %411 = vst [vmem:[%s3 + $0x14] sm:$0xf] %v347
  %412 = vst [vmem:[%s3 + $0x18] sm:$0xf] %v348
  %413 = vst [vmem:[%s3 + $0x1c] sm:$0xf] %v349
  %414 = vst [vmem:[%s3 + $0x20] sm:$0xf] %v350
  %415 = vst [vmem:[%s3 + $0x24] sm:$0xf] %v351
  %416 = vst [vmem:[%s3 + $0x28] sm:$0xf] %v352
  %417 = vst [vmem:[%s3 + $0x2c] sm:$0xf] %v353
  %418 = vst [vmem:[%s3 + $0x30] sm:$0xf] %v354
  %419 = vst [vmem:[%s3 + $0x34] sm:$0xf] %v355
  %420 = vst [vmem:[%s3 + $0x38] sm:$0xf] %v356
  %421 = vst [vmem:[%s3 + $0x3c] sm:$0xf] %v357
  %422 = vst [vmem:[%s3 + $0x40] sm:$0xf] %v358
  %423 = vst [vmem:[%s3 + $0x44] sm:$0xf] %v359
  %424 = vst [vmem:[%s3 + $0x48] sm:$0xf] %v360
  %425 = vst [vmem:[%s3 + $0x4c] sm:$0xf] %v361
  %426 = vst [vmem:[%s3 + $0x50] sm:$0xf] %v362
  %427 = vst [vmem:[%s3 + $0x54] sm:$0xf] %v363
  %428 = vst [vmem:[%s3 + $0x58] sm:$0xf] %v364
  %429 = vst [vmem:[%s3 + $0x5c] sm:$0xf] %v365
  %430 = vst [vmem:[%s3 + $0x60] sm:$0xf] %v366
  %431 = vst [vmem:[%s3 + $0x64] sm:$0xf] %v367
  %432 = vst [vmem:[%s3 + $0x68] sm:$0xf] %v368
  %433 = vst [vmem:[%s3 + $0x6c] sm:$0xf] %v369
  %434 = vst [vmem:[%s3 + $0x70] sm:$0xf] %v370
  %435 = vst [vmem:[%s3 + $0x74] sm:$0xf] %v371
  %436 = vst [vmem:[%s3 + $0x78] sm:$0xf] %v372
  %437 = vst [vmem:[%s3 + $0x7c] sm:$0xf] %v373
  %438 = vst [vmem:[%s3 + $0x80] sm:$0xf] %v374
  %439 = vst [vmem:[%s3 + $0x84] sm:$0xf] %v375
  %440 = vst [vmem:[%s3 + $0x88] sm:$0xf] %v376
  %441 = vst [vmem:[%s3 + $0x8c] sm:$0xf] %v377
  %442 = vst [vmem:[%s3 + $0x90] sm:$0xf] %v378
  %443 = vst [vmem:[%s3 + $0x94] sm:$0xf] %v379
  %444 = vst [vmem:[%s3 + $0x98] sm:$0xf] %v380
  %445 = vst [vmem:[%s3 + $0x9c] sm:$0xf] %v381
  %446 = vst [vmem:[%s3 + $0xa0] sm:$0xf] %v382
  %447 = vst [vmem:[%s3 + $0xa4] sm:$0xf] %v383
  %448 = vst [vmem:[%s3 + $0xa8] sm:$0xf] %v384
  %449 = vst [vmem:[%s3 + $0xac] sm:$0xf] %v385
  %450 = vst [vmem:[%s3 + $0xb0] sm:$0xf] %v386
  %451 = vst [vmem:[%s3 + $0xb4] sm:$0xf] %v387
  %452 = vst [vmem:[%s3 + $0xb8] sm:$0xf] %v388
  %453 = vst [vmem:[%s3 + $0xbc] sm:$0xf] %v389
  %454 = vst [vmem:[%s3 + $0xc0] sm:$0xf] %v390
  %455 = vst [vmem:[%s3 + $0xc4] sm:$0xf] %v391
  %456 = vst [vmem:[%s3 + $0xc8] sm:$0xf] %v392
  %457 = vst [vmem:[%s3 + $0xcc] sm:$0xf] %v393
  %458 = vst [vmem:[%s3 + $0xd0] sm:$0xf] %v394
  %459 = vst [vmem:[%s3 + $0xd4] sm:$0xf] %v395
  %460 = vst [vmem:[%s3 + $0xd8] sm:$0xf] %v396
  %461 = vst [vmem:[%s3 + $0xdc] sm:$0xf] %v397
  %462 = vst [vmem:[%s3 + $0xe0] sm:$0xf] %v398
  %463 = vst [vmem:[%s3 + $0xe4] sm:$0xf] %v399
  %464 = vst [vmem:[%s3 + $0xe8] sm:$0xf] %v400
  %465 = vst [vmem:[%s3 + $0xec] sm:$0xf] %v401
  %466 = vst [vmem:[%s3 + $0xf0] sm:$0xf] %v402
  %467 = vst [vmem:[%s3 + $0xf4] sm:$0xf] %v403
  %468 = vst [vmem:[%s3 + $0xf8] sm:$0xf] %v404
  %469 = vst [vmem:[%s3 + $0xfc] sm:$0xf] %v405
  // Predicated region
  $region14: #{resnet_generator_forward.20} parent=0 // pred_check
    _
  $region15: #{resnet_generator_forward.20} parent=0 // pred_check_branch
    %471 = sbr.rel (0) target = $region17
  $region16: #{resnet_generator_forward.20} parent=0 // pred_region
    _
  $region17: #{resnet_generator_forward.20} parent=0 // pred_fallthru
    _
  // Predicated region
  $region18: #{resnet_generator_forward.20} parent=0 // pred_check
    _
  $region19: #{resnet_generator_forward.20} parent=0 // pred_check_branch
    %473 = sbr.rel (0) target = $region21
  $region20: #{resnet_generator_forward.20} parent=0 // pred_region
    _
  $region21: #{resnet_generator_forward.20} parent=0 // pred_fallthru
    _

// kernel: resnet_generator_forward.19
$region0: #{resnet_generator_forward.19}
  #allocation0 [shape = 'u32[]', space=smem, size = 0x4, offset = 0x4, fixed_abs, tag = 'smem constant byte address 0x4 - core index']
  #allocation1 [shape = 'u32[72,128]{1,0:T(1,128)}', space=vmem, size = 0x9000, scoped, tag = 'internal scratch']
  #allocation2 [shape = 'f32[512,128]{1,0:T(8,128)}', space=vmem, size = 0x40000, scoped, tag = 'scratch operand']
  %s0 = inlined_call_operand.vmem [shape: bf16[512,256], index: 0, kind: input, shape index: {}]
  %s1 = inlined_call_operand.vmem [shape: bf16[256,128], index: 1, kind: input, shape index: {}]
  %s2 = inlined_call_operand.vmem [shape: bf16[512,128], index: 2, kind: output, shape index: {0}]
  %s3 = inlined_call_operand.vmem [shape: f32[8,128], index: 3, kind: output, shape index: {1}]
  %s4 = inlined_call_operand.vmem [shape: f32[8,128], index: 4, kind: output, shape index: {2}]
  %5 = xla_tuple %s2, %s3, %s4
  %s6 = sld [smem:[#allocation0]]
  $region42: #{resnet_generator_forward.19} parent=0
    _
  %s8 = ssub.s32 1, %s6
  %s9 = scalar_select 0, %s8, %s6
  // Predicated region
  $region2: #{resnet_generator_forward.19} parent=0 // pred_check
    _
  $region3: #{resnet_generator_forward.19} parent=0 // pred_check_branch
    %11 = sbr.rel (0) target = $region5
  $region4: #{resnet_generator_forward.19} parent=0 // pred_region
    _
  $region5: #{resnet_generator_forward.19} parent=0 // pred_fallthru
    _
  // Predicated region
  $region6: #{resnet_generator_forward.19} parent=0 // pred_check
    _
  $region7: #{resnet_generator_forward.19} parent=0 // pred_check_branch
    %13 = sbr.rel (0) target = $region9
  $region8: #{resnet_generator_forward.19} parent=0 // pred_region
    _
  $region9: #{resnet_generator_forward.19} parent=0 // pred_fallthru
    _
  %p14 = scmp.eq.s32.totalorder 0, 0
  // Predicated region
  $region10: #{resnet_generator_forward.19} parent=0 // pred_check
    %p15 = pneg %p14
  $region11: #{resnet_generator_forward.19} parent=0 // pred_check_branch
    %17 = sbr.rel (%p15) target = $region13
  $region12: #{resnet_generator_forward.19} parent=0 // pred_region
    %18 = vst [vmem:[#allocation2] sm:$0xff] 0.0
    %19 = vst [vmem:[#allocation2 + $0x8] sm:$0xff] 0.0
    %20 = vst [vmem:[#allocation2 + $0x10] sm:$0xff] 0.0
    %21 = vst [vmem:[#allocation2 + $0x18] sm:$0xff] 0.0
    %22 = vst [vmem:[#allocation2 + $0x20] sm:$0xff] 0.0
    %23 = vst [vmem:[#allocation2 + $0x28] sm:$0xff] 0.0
    %24 = vst [vmem:[#allocation2 + $0x30] sm:$0xff] 0.0
    %25 = vst [vmem:[#allocation2 + $0x38] sm:$0xff] 0.0
    %26 = vst [vmem:[#allocation2 + $0x40] sm:$0xff] 0.0
    %27 = vst [vmem:[#allocation2 + $0x48] sm:$0xff] 0.0
    %28 = vst [vmem:[#allocation2 + $0x50] sm:$0xff] 0.0
    %29 = vst [vmem:[#allocation2 + $0x58] sm:$0xff] 0.0
    %30 = vst [vmem:[#allocation2 + $0x60] sm:$0xff] 0.0
    %31 = vst [vmem:[#allocation2 + $0x68] sm:$0xff] 0.0
    %32 = vst [vmem:[#allocation2 + $0x70] sm:$0xff] 0.0
    %33 = vst [vmem:[#allocation2 + $0x78] sm:$0xff] 0.0
    %34 = vst [vmem:[#allocation2 + $0x80] sm:$0xff] 0.0
    %35 = vst [vmem:[#allocation2 + $0x88] sm:$0xff] 0.0
    %36 = vst [vmem:[#allocation2 + $0x90] sm:$0xff] 0.0
    %37 = vst [vmem:[#allocation2 + $0x98] sm:$0xff] 0.0
    %38 = vst [vmem:[#allocation2 + $0xa0] sm:$0xff] 0.0
    %39 = vst [vmem:[#allocation2 + $0xa8] sm:$0xff] 0.0
    %40 = vst [vmem:[#allocation2 + $0xb0] sm:$0xff] 0.0
    %41 = vst [vmem:[#allocation2 + $0xb8] sm:$0xff] 0.0
    %42 = vst [vmem:[#allocation2 + $0xc0] sm:$0xff] 0.0
    %43 = vst [vmem:[#allocation2 + $0xc8] sm:$0xff] 0.0
    %44 = vst [vmem:[#allocation2 + $0xd0] sm:$0xff] 0.0
    %45 = vst [vmem:[#allocation2 + $0xd8] sm:$0xff] 0.0
    %46 = vst [vmem:[#allocation2 + $0xe0] sm:$0xff] 0.0
    %47 = vst [vmem:[#allocation2 + $0xe8] sm:$0xff] 0.0
    %48 = vst [vmem:[#allocation2 + $0xf0] sm:$0xff] 0.0
    %49 = vst [vmem:[#allocation2 + $0xf8] sm:$0xff] 0.0
    %50 = vst [vmem:[#allocation2 + $0x100] sm:$0xff] 0.0
    %51 = vst [vmem:[#allocation2 + $0x108] sm:$0xff] 0.0
    %52 = vst [vmem:[#allocation2 + $0x110] sm:$0xff] 0.0
    %53 = vst [vmem:[#allocation2 + $0x118] sm:$0xff] 0.0
    %54 = vst [vmem:[#allocation2 + $0x120] sm:$0xff] 0.0
    %55 = vst [vmem:[#allocation2 + $0x128] sm:$0xff] 0.0
    %56 = vst [vmem:[#allocation2 + $0x130] sm:$0xff] 0.0
    %57 = vst [vmem:[#allocation2 + $0x138] sm:$0xff] 0.0
    %58 = vst [vmem:[#allocation2 + $0x140] sm:$0xff] 0.0
    %59 = vst [vmem:[#allocation2 + $0x148] sm:$0xff] 0.0
    %60 = vst [vmem:[#allocation2 + $0x150] sm:$0xff] 0.0
    %61 = vst [vmem:[#allocation2 + $0x158] sm:$0xff] 0.0
    %62 = vst [vmem:[#allocation2 + $0x160] sm:$0xff] 0.0
    %63 = vst [vmem:[#allocation2 + $0x168] sm:$0xff] 0.0
    %64 = vst [vmem:[#allocation2 + $0x170] sm:$0xff] 0.0
    %65 = vst [vmem:[#allocation2 + $0x178] sm:$0xff] 0.0
    %66 = vst [vmem:[#allocation2 + $0x180] sm:$0xff] 0.0
    %67 = vst [vmem:[#allocation2 + $0x188] sm:$0xff] 0.0
    %68 = vst [vmem:[#allocation2 + $0x190] sm:$0xff] 0.0
    %69 = vst [vmem:[#allocation2 + $0x198] sm:$0xff] 0.0
    %70 = vst [vmem:[#allocation2 + $0x1a0] sm:$0xff] 0.0
    %71 = vst [vmem:[#allocation2 + $0x1a8] sm:$0xff] 0.0
    %72 = vst [vmem:[#allocation2 + $0x1b0] sm:$0xff] 0.0
    %73 = vst [vmem:[#allocation2 + $0x1b8] sm:$0xff] 0.0
    %74 = vst [vmem:[#allocation2 + $0x1c0] sm:$0xff] 0.0
    %75 = vst [vmem:[#allocation2 + $0x1c8] sm:$0xff] 0.0
    %76 = vst [vmem:[#allocation2 + $0x1d0] sm:$0xff] 0.0
    %77 = vst [vmem:[#allocation2 + $0x1d8] sm:$0xff] 0.0
    %78 = vst [vmem:[#allocation2 + $0x1e0] sm:$0xff] 0.0
    %79 = vst [vmem:[#allocation2 + $0x1e8] sm:$0xff] 0.0
    %80 = vst [vmem:[#allocation2 + $0x1f0] sm:$0xff] 0.0
    %81 = vst [vmem:[#allocation2 + $0x1f8] sm:$0xff] 0.0
  $region13: #{resnet_generator_forward.19} parent=0 // pred_fallthru
    _
  %v82 = vld [vmem:[#allocation2] sm:$0xff]
  %v83 = vld [vmem:[#allocation2 + $0x8] sm:$0xff]
  %v84 = vld [vmem:[#allocation2 + $0x10] sm:$0xff]
  %v85 = vld [vmem:[#allocation2 + $0x18] sm:$0xff]
  %v86 = vld [vmem:[#allocation2 + $0x20] sm:$0xff]
  %v87 = vld [vmem:[#allocation2 + $0x28] sm:$0xff]
  %v88 = vld [vmem:[#allocation2 + $0x30] sm:$0xff]
  %v89 = vld [vmem:[#allocation2 + $0x38] sm:$0xff]
  %v90 = vld [vmem:[#allocation2 + $0x40] sm:$0xff]
  %v91 = vld [vmem:[#allocation2 + $0x48] sm:$0xff]
  %v92 = vld [vmem:[#allocation2 + $0x50] sm:$0xff]
  %v93 = vld [vmem:[#allocation2 + $0x58] sm:$0xff]
  %v94 = vld [vmem:[#allocation2 + $0x60] sm:$0xff]
  %v95 = vld [vmem:[#allocation2 + $0x68] sm:$0xff]
  %v96 = vld [vmem:[#allocation2 + $0x70] sm:$0xff]
  %v97 = vld [vmem:[#allocation2 + $0x78] sm:$0xff]
  %v98 = vld [vmem:[#allocation2 + $0x80] sm:$0xff]
  %v99 = vld [vmem:[#allocation2 + $0x88] sm:$0xff]
  %v100 = vld [vmem:[#allocation2 + $0x90] sm:$0xff]
  %v101 = vld [vmem:[#allocation2 + $0x98] sm:$0xff]
  %v102 = vld [vmem:[#allocation2 + $0xa0] sm:$0xff]
  %v103 = vld [vmem:[#allocation2 + $0xa8] sm:$0xff]
  %v104 = vld [vmem:[#allocation2 + $0xb0] sm:$0xff]
  %v105 = vld [vmem:[#allocation2 + $0xb8] sm:$0xff]
  %v106 = vld [vmem:[#allocation2 + $0xc0] sm:$0xff]
  %v107 = vld [vmem:[#allocation2 + $0xc8] sm:$0xff]
  %v108 = vld [vmem:[#allocation2 + $0xd0] sm:$0xff]
  %v109 = vld [vmem:[#allocation2 + $0xd8] sm:$0xff]
  %v110 = vld [vmem:[#allocation2 + $0xe0] sm:$0xff]
  %v111 = vld [vmem:[#allocation2 + $0xe8] sm:$0xff]
  %v112 = vld [vmem:[#allocation2 + $0xf0] sm:$0xff]
  %v113 = vld [vmem:[#allocation2 + $0xf8] sm:$0xff]
  %v114 = vld [vmem:[#allocation2 + $0x100] sm:$0xff]
  %v115 = vld [vmem:[#allocation2 + $0x108] sm:$0xff]
  %v116 = vld [vmem:[#allocation2 + $0x110] sm:$0xff]
  %v117 = vld [vmem:[#allocation2 + $0x118] sm:$0xff]
  %v118 = vld [vmem:[#allocation2 + $0x120] sm:$0xff]
  %v119 = vld [vmem:[#allocation2 + $0x128] sm:$0xff]
  %v120 = vld [vmem:[#allocation2 + $0x130] sm:$0xff]
  %v121 = vld [vmem:[#allocation2 + $0x138] sm:$0xff]
  %v122 = vld [vmem:[#allocation2 + $0x140] sm:$0xff]
  %v123 = vld [vmem:[#allocation2 + $0x148] sm:$0xff]
  %v124 = vld [vmem:[#allocation2 + $0x150] sm:$0xff]
  %v125 = vld [vmem:[#allocation2 + $0x158] sm:$0xff]
  %v126 = vld [vmem:[#allocation2 + $0x160] sm:$0xff]
  %v127 = vld [vmem:[#allocation2 + $0x168] sm:$0xff]
  %v128 = vld [vmem:[#allocation2 + $0x170] sm:$0xff]
  %v129 = vld [vmem:[#allocation2 + $0x178] sm:$0xff]
  %v130 = vld [vmem:[#allocation2 + $0x180] sm:$0xff]
  %v131 = vld [vmem:[#allocation2 + $0x188] sm:$0xff]
  %v132 = vld [vmem:[#allocation2 + $0x190] sm:$0xff]
  %v133 = vld [vmem:[#allocation2 + $0x198] sm:$0xff]
  %v134 = vld [vmem:[#allocation2 + $0x1a0] sm:$0xff]
  %v135 = vld [vmem:[#allocation2 + $0x1a8] sm:$0xff]
  %v136 = vld [vmem:[#allocation2 + $0x1b0] sm:$0xff]
  %v137 = vld [vmem:[#allocation2 + $0x1b8] sm:$0xff]
  %v138 = vld [vmem:[#allocation2 + $0x1c0] sm:$0xff]
  %v139 = vld [vmem:[#allocation2 + $0x1c8] sm:$0xff]
  %v140 = vld [vmem:[#allocation2 + $0x1d0] sm:$0xff]
  %v141 = vld [vmem:[#allocation2 + $0x1d8] sm:$0xff]
  %v142 = vld [vmem:[#allocation2 + $0x1e0] sm:$0xff]
  %v143 = vld [vmem:[#allocation2 + $0x1e8] sm:$0xff]
  %v144 = vld [vmem:[#allocation2 + $0x1f0] sm:$0xff]
  %v145 = vld [vmem:[#allocation2 + $0x1f8] sm:$0xff]
  %v146 = vld [vmem:[%s0] sm:$0xff]
  %v147 = vld [vmem:[%s0 + $0x8] sm:$0xff]
  %v148 = vld [vmem:[%s0 + $0x10] sm:$0xff]
  %v149 = vld [vmem:[%s0 + $0x18] sm:$0xff]
  %v150 = vld [vmem:[%s0 + $0x20] sm:$0xff]
  %v151 = vld [vmem:[%s0 + $0x28] sm:$0xff]
  %v152 = vld [vmem:[%s0 + $0x30] sm:$0xff]
  %v153 = vld [vmem:[%s0 + $0x38] sm:$0xff]
  %v154 = vld [vmem:[%s0 + $0x40] sm:$0xff]
  %v155 = vld [vmem:[%s0 + $0x48] sm:$0xff]
  %v156 = vld [vmem:[%s0 + $0x50] sm:$0xff]
  %v157 = vld [vmem:[%s0 + $0x58] sm:$0xff]
  %v158 = vld [vmem:[%s0 + $0x60] sm:$0xff]
  %v159 = vld [vmem:[%s0 + $0x68] sm:$0xff]
  %v160 = vld [vmem:[%s0 + $0x70] sm:$0xff]
  %v161 = vld [vmem:[%s0 + $0x78] sm:$0xff]
  %v162 = vld [vmem:[%s0 + $0x80] sm:$0xff]
  %v163 = vld [vmem:[%s0 + $0x88] sm:$0xff]
  %v164 = vld [vmem:[%s0 + $0x90] sm:$0xff]
  %v165 = vld [vmem:[%s0 + $0x98] sm:$0xff]
  %v166 = vld [vmem:[%s0 + $0xa0] sm:$0xff]
  %v167 = vld [vmem:[%s0 + $0xa8] sm:$0xff]
  %v168 = vld [vmem:[%s0 + $0xb0] sm:$0xff]
  %v169 = vld [vmem:[%s0 + $0xb8] sm:$0xff]
  %v170 = vld [vmem:[%s0 + $0xc0] sm:$0xff]
  %v171 = vld [vmem:[%s0 + $0xc8] sm:$0xff]
  %v172 = vld [vmem:[%s0 + $0xd0] sm:$0xff]
  %v173 = vld [vmem:[%s0 + $0xd8] sm:$0xff]
  %v174 = vld [vmem:[%s0 + $0xe0] sm:$0xff]
  %v175 = vld [vmem:[%s0 + $0xe8] sm:$0xff]
  %v176 = vld [vmem:[%s0 + $0xf0] sm:$0xff]
  %v177 = vld [vmem:[%s0 + $0xf8] sm:$0xff]
  %v178 = vld [vmem:[%s0 + $0x100] sm:$0xff]
  %v179 = vld [vmem:[%s0 + $0x108] sm:$0xff]
  %v180 = vld [vmem:[%s0 + $0x110] sm:$0xff]
  %v181 = vld [vmem:[%s0 + $0x118] sm:$0xff]
  %v182 = vld [vmem:[%s0 + $0x120] sm:$0xff]
  %v183 = vld [vmem:[%s0 + $0x128] sm:$0xff]
  %v184 = vld [vmem:[%s0 + $0x130] sm:$0xff]
  %v185 = vld [vmem:[%s0 + $0x138] sm:$0xff]
  %v186 = vld [vmem:[%s0 + $0x140] sm:$0xff]
  %v187 = vld [vmem:[%s0 + $0x148] sm:$0xff]
  %v188 = vld [vmem:[%s0 + $0x150] sm:$0xff]
  %v189 = vld [vmem:[%s0 + $0x158] sm:$0xff]
  %v190 = vld [vmem:[%s0 + $0x160] sm:$0xff]
  %v191 = vld [vmem:[%s0 + $0x168] sm:$0xff]
  %v192 = vld [vmem:[%s0 + $0x170] sm:$0xff]
  %v193 = vld [vmem:[%s0 + $0x178] sm:$0xff]
  %v194 = vld [vmem:[%s0 + $0x180] sm:$0xff]
  %v195 = vld [vmem:[%s0 + $0x188] sm:$0xff]
  %v196 = vld [vmem:[%s0 + $0x190] sm:$0xff]
  %v197 = vld [vmem:[%s0 + $0x198] sm:$0xff]
  %v198 = vld [vmem:[%s0 + $0x1a0] sm:$0xff]
  %v199 = vld [vmem:[%s0 + $0x1a8] sm:$0xff]
  %v200 = vld [vmem:[%s0 + $0x1b0] sm:$0xff]
  %v201 = vld [vmem:[%s0 + $0x1b8] sm:$0xff]
  %v202 = vld [vmem:[%s0 + $0x1c0] sm:$0xff]
  %v203 = vld [vmem:[%s0 + $0x1c8] sm:$0xff]
  %v204 = vld [vmem:[%s0 + $0x1d0] sm:$0xff]
  %v205 = vld [vmem:[%s0 + $0x1d8] sm:$0xff]
  %v206 = vld [vmem:[%s0 + $0x1e0] sm:$0xff]
  %v207 = vld [vmem:[%s0 + $0x1e8] sm:$0xff]
  %v208 = vld [vmem:[%s0 + $0x1f0] sm:$0xff]
  %v209 = vld [vmem:[%s0 + $0x1f8] sm:$0xff]
  %v210 = vld [vmem:[%s1] sm:$0xf]
  %v211 = vld [vmem:[%s1 + $0x4] sm:$0xf]
  %v212 = vld [vmem:[%s1 + $0x8] sm:$0xf]
  %v213 = vld [vmem:[%s1 + $0xc] sm:$0xf]
  %v214 = vld [vmem:[%s1 + $0x10] sm:$0xf]
  %v215 = vld [vmem:[%s1 + $0x14] sm:$0xf]
  %v216 = vld [vmem:[%s1 + $0x18] sm:$0xf]
  %v217 = vld [vmem:[%s1 + $0x1c] sm:$0xf]
  %v218 = vld [vmem:[%s1 + $0x20] sm:$0xf]
  %v219 = vld [vmem:[%s1 + $0x24] sm:$0xf]
  %v220 = vld [vmem:[%s1 + $0x28] sm:$0xf]
  %v221 = vld [vmem:[%s1 + $0x2c] sm:$0xf]
  %v222 = vld [vmem:[%s1 + $0x30] sm:$0xf]
  %v223 = vld [vmem:[%s1 + $0x34] sm:$0xf]
  %v224 = vld [vmem:[%s1 + $0x38] sm:$0xf]
  %v225 = vld [vmem:[%s1 + $0x3c] sm:$0xf]
  %v226 = vld [vmem:[%s1 + $0x40] sm:$0xf]
  %v227 = vld [vmem:[%s1 + $0x44] sm:$0xf]
  %v228 = vld [vmem:[%s1 + $0x48] sm:$0xf]
  %v229 = vld [vmem:[%s1 + $0x4c] sm:$0xf]
  %v230 = vld [vmem:[%s1 + $0x50] sm:$0xf]
  %v231 = vld [vmem:[%s1 + $0x54] sm:$0xf]
  %v232 = vld [vmem:[%s1 + $0x58] sm:$0xf]
  %v233 = vld [vmem:[%s1 + $0x5c] sm:$0xf]
  %v234 = vld [vmem:[%s1 + $0x60] sm:$0xf]
  %v235 = vld [vmem:[%s1 + $0x64] sm:$0xf]
  %v236 = vld [vmem:[%s1 + $0x68] sm:$0xf]
  %v237 = vld [vmem:[%s1 + $0x6c] sm:$0xf]
  %v238 = vld [vmem:[%s1 + $0x70] sm:$0xf]
  %v239 = vld [vmem:[%s1 + $0x74] sm:$0xf]
  %v240 = vld [vmem:[%s1 + $0x78] sm:$0xf]
  %v241 = vld [vmem:[%s1 + $0x7c] sm:$0xf]
  %v306 = vunpack.c.l.b16 %v146
  %v307 = vunpack.c.h.b16 %v146
  %v308 = vunpack.c.l.b16 %v147
  %v309 = vunpack.c.h.b16 %v147
  %v310 = vunpack.c.l.b16 %v148
  %v311 = vunpack.c.h.b16 %v148
  %v312 = vunpack.c.l.b16 %v149
  %v313 = vunpack.c.h.b16 %v149
  %v314 = vunpack.c.l.b16 %v150
  %v315 = vunpack.c.h.b16 %v150
  %v316 = vunpack.c.l.b16 %v151
  %v317 = vunpack.c.h.b16 %v151
  %v318 = vunpack.c.l.b16 %v152
  %v319 = vunpack.c.h.b16 %v152
  %v320 = vunpack.c.l.b16 %v153
  %v321 = vunpack.c.h.b16 %v153
  %v322 = vunpack.c.l.b16 %v154
  %v323 = vunpack.c.h.b16 %v154
  %v324 = vunpack.c.l.b16 %v155
  %v325 = vunpack.c.h.b16 %v155
  %v326 = vunpack.c.l.b16 %v156
  %v327 = vunpack.c.h.b16 %v156
  %v328 = vunpack.c.l.b16 %v157
  %v329 = vunpack.c.h.b16 %v157
  %v330 = vunpack.c.l.b16 %v158
  %v331 = vunpack.c.h.b16 %v158
  %v332 = vunpack.c.l.b16 %v159
  %v333 = vunpack.c.h.b16 %v159
  %v334 = vunpack.c.l.b16 %v160
  %v335 = vunpack.c.h.b16 %v160
  %v336 = vunpack.c.l.b16 %v161
  %v337 = vunpack.c.h.b16 %v161
  %v338 = vunpack.c.l.b16 %v162
  %v339 = vunpack.c.h.b16 %v162
  %v340 = vunpack.c.l.b16 %v163
  %v341 = vunpack.c.h.b16 %v163
  %v342 = vunpack.c.l.b16 %v164
  %v343 = vunpack.c.h.b16 %v164
  %v344 = vunpack.c.l.b16 %v165
  %v345 = vunpack.c.h.b16 %v165
  %v346 = vunpack.c.l.b16 %v166
  %v347 = vunpack.c.h.b16 %v166
  %v348 = vunpack.c.l.b16 %v167
  %v349 = vunpack.c.h.b16 %v167
  %v350 = vunpack.c.l.b16 %v168
  %v351 = vunpack.c.h.b16 %v168
  %v352 = vunpack.c.l.b16 %v169
  %v353 = vunpack.c.h.b16 %v169
  %v354 = vunpack.c.l.b16 %v170
  %v355 = vunpack.c.h.b16 %v170
  %v356 = vunpack.c.l.b16 %v171
  %v357 = vunpack.c.h.b16 %v171
  %v358 = vunpack.c.l.b16 %v172
  %v359 = vunpack.c.h.b16 %v172
  %v360 = vunpack.c.l.b16 %v173
  %v361 = vunpack.c.h.b16 %v173
  %v362 = vunpack.c.l.b16 %v174
  %v363 = vunpack.c.h.b16 %v174
  %v364 = vunpack.c.l.b16 %v175
  %v365 = vunpack.c.h.b16 %v175
  %v366 = vunpack.c.l.b16 %v176
  %v367 = vunpack.c.h.b16 %v176
  %v368 = vunpack.c.l.b16 %v177
  %v369 = vunpack.c.h.b16 %v177
  %v370 = vunpack.c.l.b16 %v178
  %v371 = vunpack.c.h.b16 %v178
  %v372 = vunpack.c.l.b16 %v179
  %v373 = vunpack.c.h.b16 %v179
  %v374 = vunpack.c.l.b16 %v180
  %v375 = vunpack.c.h.b16 %v180
  %v376 = vunpack.c.l.b16 %v181
  %v377 = vunpack.c.h.b16 %v181
  %v378 = vunpack.c.l.b16 %v182
  %v379 = vunpack.c.h.b16 %v182
  %v380 = vunpack.c.l.b16 %v183
  %v381 = vunpack.c.h.b16 %v183
  %v382 = vunpack.c.l.b16 %v184
  %v383 = vunpack.c.h.b16 %v184
  %v384 = vunpack.c.l.b16 %v185
  %v385 = vunpack.c.h.b16 %v185
  %v386 = vunpack.c.l.b16 %v186
  %v387 = vunpack.c.h.b16 %v186
  %v388 = vunpack.c.l.b16 %v187
  %v389 = vunpack.c.h.b16 %v187
  %v390 = vunpack.c.l.b16 %v188
  %v391 = vunpack.c.h.b16 %v188
  %v392 = vunpack.c.l.b16 %v189
  %v393 = vunpack.c.h.b16 %v189
  %v394 = vunpack.c.l.b16 %v190
  %v395 = vunpack.c.h.b16 %v190
  %v396 = vunpack.c.l.b16 %v191
  %v397 = vunpack.c.h.b16 %v191
  %v398 = vunpack.c.l.b16 %v192
  %v399 = vunpack.c.h.b16 %v192
  %v400 = vunpack.c.l.b16 %v193
  %v401 = vunpack.c.h.b16 %v193
  %v402 = vunpack.c.l.b16 %v194
  %v403 = vunpack.c.h.b16 %v194
  %v404 = vunpack.c.l.b16 %v195
  %v405 = vunpack.c.h.b16 %v195
  %v406 = vunpack.c.l.b16 %v196
  %v407 = vunpack.c.h.b16 %v196
  %v408 = vunpack.c.l.b16 %v197
  %v409 = vunpack.c.h.b16 %v197
  %v410 = vunpack.c.l.b16 %v198
  %v411 = vunpack.c.h.b16 %v198
  %v412 = vunpack.c.l.b16 %v199
  %v413 = vunpack.c.h.b16 %v199
  %v414 = vunpack.c.l.b16 %v200
  %v415 = vunpack.c.h.b16 %v200
  %v416 = vunpack.c.l.b16 %v201
  %v417 = vunpack.c.h.b16 %v201
  %v418 = vunpack.c.l.b16 %v202
  %v419 = vunpack.c.h.b16 %v202
  %v420 = vunpack.c.l.b16 %v203
  %v421 = vunpack.c.h.b16 %v203
  %v422 = vunpack.c.l.b16 %v204
  %v423 = vunpack.c.h.b16 %v204
  %v424 = vunpack.c.l.b16 %v205
  %v425 = vunpack.c.h.b16 %v205
  %v426 = vunpack.c.l.b16 %v206
  %v427 = vunpack.c.h.b16 %v206
  %v428 = vunpack.c.l.b16 %v207
  %v429 = vunpack.c.h.b16 %v207
  %v430 = vunpack.c.l.b16 %v208
  %v431 = vunpack.c.h.b16 %v208
  %v432 = vunpack.c.l.b16 %v209
  %v433 = vunpack.c.h.b16 %v209
  %v434 = vpack.c.b16 %v308, %v306
  %v435 = vpack.c.b16 %v309, %v307
  %v436 = vpack.c.b16 %v312, %v310
  %v437 = vpack.c.b16 %v313, %v311
  %v438 = vpack.c.b16 %v316, %v314
  %v439 = vpack.c.b16 %v317, %v315
  %v440 = vpack.c.b16 %v320, %v318
  %v441 = vpack.c.b16 %v321, %v319
  %v442 = vpack.c.b16 %v324, %v322
  %v443 = vpack.c.b16 %v325, %v323
  %v444 = vpack.c.b16 %v328, %v326
  %v445 = vpack.c.b16 %v329, %v327
  %v446 = vpack.c.b16 %v332, %v330
  %v447 = vpack.c.b16 %v333, %v331
  %v448 = vpack.c.b16 %v336, %v334
  %v449 = vpack.c.b16 %v337, %v335
  %v450 = vpack.c.b16 %v340, %v338
  %v451 = vpack.c.b16 %v341, %v339
  %v452 = vpack.c.b16 %v344, %v342
  %v453 = vpack.c.b16 %v345, %v343
  %v454 = vpack.c.b16 %v348, %v346
  %v455 = vpack.c.b16 %v349, %v347
  %v456 = vpack.c.b16 %v352, %v350
  %v457 = vpack.c.b16 %v353, %v351
  %v458 = vpack.c.b16 %v356, %v354
  %v459 = vpack.c.b16 %v357, %v355
  %v460 = vpack.c.b16 %v360, %v358
  %v461 = vpack.c.b16 %v361, %v359
  %v462 = vpack.c.b16 %v364, %v362
  %v463 = vpack.c.b16 %v365, %v363
  %v464 = vpack.c.b16 %v368, %v366
  %v465 = vpack.c.b16 %v369, %v367
  %v466 = vpack.c.b16 %v372, %v370
  %v467 = vpack.c.b16 %v373, %v371
  %v468 = vpack.c.b16 %v376, %v374
  %v469 = vpack.c.b16 %v377, %v375
  %v470 = vpack.c.b16 %v380, %v378
  %v471 = vpack.c.b16 %v381, %v379
  %v472 = vpack.c.b16 %v384, %v382
  %v473 = vpack.c.b16 %v385, %v383
  %v474 = vpack.c.b16 %v388, %v386
  %v475 = vpack.c.b16 %v389, %v387
  %v476 = vpack.c.b16 %v392, %v390
  %v477 = vpack.c.b16 %v393, %v391
  %v478 = vpack.c.b16 %v396, %v394
  %v479 = vpack.c.b16 %v397, %v395
  %v480 = vpack.c.b16 %v400, %v398
  %v481 = vpack.c.b16 %v401, %v399
  %v482 = vpack.c.b16 %v404, %v402
  %v483 = vpack.c.b16 %v405, %v403
  %v484 = vpack.c.b16 %v408, %v406
  %v485 = vpack.c.b16 %v409, %v407
  %v486 = vpack.c.b16 %v412, %v410
  %v487 = vpack.c.b16 %v413, %v411
  %v488 = vpack.c.b16 %v416, %v414
  %v489 = vpack.c.b16 %v417, %v415
  %v490 = vpack.c.b16 %v420, %v418
  %v491 = vpack.c.b16 %v421, %v419
  %v492 = vpack.c.b16 %v424, %v422
  %v493 = vpack.c.b16 %v425, %v423
  %v494 = vpack.c.b16 %v428, %v426
  %v495 = vpack.c.b16 %v429, %v427
  %v496 = vpack.c.b16 %v432, %v430
  %v497 = vpack.c.b16 %v433, %v431
  %v594 = vunpack.c.l.b16 %v210
  %v595 = vunpack.c.l.b16 %v211
  %v596 = vunpack.c.l.b16 %v212
  %v597 = vunpack.c.l.b16 %v213
  %v598 = vunpack.c.l.b16 %v214
  %v599 = vunpack.c.l.b16 %v215
  %v600 = vunpack.c.l.b16 %v216
  %v601 = vunpack.c.l.b16 %v217
  %v602 = vunpack.c.l.b16 %v218
  %v603 = vunpack.c.l.b16 %v219
  %v604 = vunpack.c.l.b16 %v220
  %v605 = vunpack.c.l.b16 %v221
  %v606 = vunpack.c.l.b16 %v222
  %v607 = vunpack.c.l.b16 %v223
  %v608 = vunpack.c.l.b16 %v224
  %v609 = vunpack.c.l.b16 %v225
  %v610 = vunpack.c.l.b16 %v226
  %v611 = vunpack.c.l.b16 %v227
  %v612 = vunpack.c.l.b16 %v228
  %v613 = vunpack.c.l.b16 %v229
  %v614 = vunpack.c.l.b16 %v230
  %v615 = vunpack.c.l.b16 %v231
  %v616 = vunpack.c.l.b16 %v232
  %v617 = vunpack.c.l.b16 %v233
  %v618 = vunpack.c.l.b16 %v234
  %v619 = vunpack.c.l.b16 %v235
  %v620 = vunpack.c.l.b16 %v236
  %v621 = vunpack.c.l.b16 %v237
  %v622 = vunpack.c.l.b16 %v238
  %v623 = vunpack.c.l.b16 %v239
  %v624 = vunpack.c.l.b16 %v240
  %v625 = vunpack.c.l.b16 %v241
  %v626 = vpack.c.b16 %v595, %v594
  %v627 = vpack.c.b16 %v597, %v596
  %v628 = vpack.c.b16 %v599, %v598
  %v629 = vpack.c.b16 %v601, %v600
  %v630 = vpack.c.b16 %v603, %v602
  %v631 = vpack.c.b16 %v605, %v604
  %v632 = vpack.c.b16 %v607, %v606
  %v633 = vpack.c.b16 %v609, %v608
  %v634 = vpack.c.b16 %v611, %v610
  %v635 = vpack.c.b16 %v613, %v612
  %v636 = vpack.c.b16 %v615, %v614
  %v637 = vpack.c.b16 %v617, %v616
  %v638 = vpack.c.b16 %v619, %v618
  %v639 = vpack.c.b16 %v621, %v620
  %v640 = vpack.c.b16 %v623, %v622
  %v641 = vpack.c.b16 %v625, %v624
  %658 = vmatpush.bf16.msra.mxu0 %v633
  %659 = vmatpush.bf16.msra.mxu0 %v632
  %660 = vmatpush.bf16.msra.mxu0 %v631
  %661 = vmatpush.bf16.msra.mxu0 %v630
  %662 = vmatpush.bf16.msra.mxu0 %v629
  %663 = vmatpush.bf16.msra.mxu0 %v628
  %664 = vmatpush.bf16.msra.mxu0 %v627
  %665 = vmatpush.bf16.msra.mxu0 %v626
  %666 = vmatmul.bf16.gmra.mxu0 %v434
  %v667 = vpop.f32.mrf.mxu0
  %v668 = vadd.f32 0.0, %v667
  %v669 = vpop.f32.mrf.mxu0
  %v670 = vadd.f32 0.0, %v669
  %671 = vmatmul.bf16.gmra.mxu0 %v436
  %v672 = vpop.f32.mrf.mxu0
  %v673 = vadd.f32 0.0, %v672
  %v674 = vpop.f32.mrf.mxu0
  %v675 = vadd.f32 0.0, %v674
  %676 = vmatmul.bf16.gmra.mxu0 %v438
  %v677 = vpop.f32.mrf.mxu0
  %v678 = vadd.f32 0.0, %v677
  %v679 = vpop.f32.mrf.mxu0
  %v680 = vadd.f32 0.0, %v679
  %681 = vmatmul.bf16.gmra.mxu0 %v440
  %v682 = vpop.f32.mrf.mxu0
  %v683 = vadd.f32 0.0, %v682
  %v684 = vpop.f32.mrf.mxu0
  %v685 = vadd.f32 0.0, %v684
  %686 = vmatmul.bf16.gmra.mxu0 %v442
  %v687 = vpop.f32.mrf.mxu0
  %v688 = vadd.f32 0.0, %v687
  %v689 = vpop.f32.mrf.mxu0
  %v690 = vadd.f32 0.0, %v689
  %691 = vmatmul.bf16.gmra.mxu0 %v444
  %v692 = vpop.f32.mrf.mxu0
  %v693 = vadd.f32 0.0, %v692
  %v694 = vpop.f32.mrf.mxu0
  %v695 = vadd.f32 0.0, %v694
  %696 = vmatmul.bf16.gmra.mxu0 %v446
  %v697 = vpop.f32.mrf.mxu0
  %v698 = vadd.f32 0.0, %v697
  %v699 = vpop.f32.mrf.mxu0
  %v700 = vadd.f32 0.0, %v699
  %701 = vmatmul.bf16.gmra.mxu0 %v448
  %v702 = vpop.f32.mrf.mxu0
  %v703 = vadd.f32 0.0, %v702
  %v704 = vpop.f32.mrf.mxu0
  %v705 = vadd.f32 0.0, %v704
  %706 = vmatmul.bf16.gmra.mxu0 %v450
  %v707 = vpop.f32.mrf.mxu0
  %v708 = vadd.f32 0.0, %v707
  %v709 = vpop.f32.mrf.mxu0
  %v710 = vadd.f32 0.0, %v709
  %711 = vmatmul.bf16.gmra.mxu0 %v452
  %v712 = vpop.f32.mrf.mxu0
  %v713 = vadd.f32 0.0, %v712
  %v714 = vpop.f32.mrf.mxu0
  %v715 = vadd.f32 0.0, %v714
  %716 = vmatmul.bf16.gmra.mxu0 %v454
  %v717 = vpop.f32.mrf.mxu0
  %v718 = vadd.f32 0.0, %v717
  %v719 = vpop.f32.mrf.mxu0
  %v720 = vadd.f32 0.0, %v719
  %721 = vmatmul.bf16.gmra.mxu0 %v456
  %v722 = vpop.f32.mrf.mxu0
  %v723 = vadd.f32 0.0, %v722
  %v724 = vpop.f32.mrf.mxu0
  %v725 = vadd.f32 0.0, %v724
  %726 = vmatmul.bf16.gmra.mxu0 %v458
  %v727 = vpop.f32.mrf.mxu0
  %v728 = vadd.f32 0.0, %v727
  %v729 = vpop.f32.mrf.mxu0
  %v730 = vadd.f32 0.0, %v729
  %731 = vmatmul.bf16.gmra.mxu0 %v460
  %v732 = vpop.f32.mrf.mxu0
  %v733 = vadd.f32 0.0, %v732
  %v734 = vpop.f32.mrf.mxu0
  %v735 = vadd.f32 0.0, %v734
  %736 = vmatmul.bf16.gmra.mxu0 %v462
  %v737 = vpop.f32.mrf.mxu0
  %v738 = vadd.f32 0.0, %v737
  %v739 = vpop.f32.mrf.mxu0
  %v740 = vadd.f32 0.0, %v739
  %741 = vmatmul.bf16.gmra.mxu0 %v464
  %v742 = vpop.f32.mrf.mxu0
  %v743 = vadd.f32 0.0, %v742
  %v744 = vpop.f32.mrf.mxu0
  %v745 = vadd.f32 0.0, %v744
  %746 = vmatmul.bf16.gmra.mxu0 %v466
  %v747 = vpop.f32.mrf.mxu0
  %v748 = vadd.f32 0.0, %v747
  %v749 = vpop.f32.mrf.mxu0
  %v750 = vadd.f32 0.0, %v749
  %751 = vmatmul.bf16.gmra.mxu0 %v468
  %v752 = vpop.f32.mrf.mxu0
  %v753 = vadd.f32 0.0, %v752
  %v754 = vpop.f32.mrf.mxu0
  %v755 = vadd.f32 0.0, %v754
  %756 = vmatmul.bf16.gmra.mxu0 %v470
  %v757 = vpop.f32.mrf.mxu0
  %v758 = vadd.f32 0.0, %v757
  %v759 = vpop.f32.mrf.mxu0
  %v760 = vadd.f32 0.0, %v759
  %761 = vmatmul.bf16.gmra.mxu0 %v472
  %v762 = vpop.f32.mrf.mxu0
  %v763 = vadd.f32 0.0, %v762
  %v764 = vpop.f32.mrf.mxu0
  %v765 = vadd.f32 0.0, %v764
  %766 = vmatmul.bf16.gmra.mxu0 %v474
  %v767 = vpop.f32.mrf.mxu0
  %v768 = vadd.f32 0.0, %v767
  %v769 = vpop.f32.mrf.mxu0
  %v770 = vadd.f32 0.0, %v769
  %771 = vmatmul.bf16.gmra.mxu0 %v476
  %v772 = vpop.f32.mrf.mxu0
  %v773 = vadd.f32 0.0, %v772
  %v774 = vpop.f32.mrf.mxu0
  %v775 = vadd.f32 0.0, %v774
  %776 = vmatmul.bf16.gmra.mxu0 %v478
  %v777 = vpop.f32.mrf.mxu0
  %v778 = vadd.f32 0.0, %v777
  %v779 = vpop.f32.mrf.mxu0
  %v780 = vadd.f32 0.0, %v779
  %781 = vmatmul.bf16.gmra.mxu0 %v480
  %v782 = vpop.f32.mrf.mxu0
  %v783 = vadd.f32 0.0, %v782
  %v784 = vpop.f32.mrf.mxu0
  %v785 = vadd.f32 0.0, %v784
  %786 = vmatmul.bf16.gmra.mxu0 %v482
  %v787 = vpop.f32.mrf.mxu0
  %v788 = vadd.f32 0.0, %v787
  %v789 = vpop.f32.mrf.mxu0
  %v790 = vadd.f32 0.0, %v789
  %791 = vmatmul.bf16.gmra.mxu0 %v484
  %v792 = vpop.f32.mrf.mxu0
  %v793 = vadd.f32 0.0, %v792
  %v794 = vpop.f32.mrf.mxu0
  %v795 = vadd.f32 0.0, %v794
  %796 = vmatmul.bf16.gmra.mxu0 %v486
  %v797 = vpop.f32.mrf.mxu0
  %v798 = vadd.f32 0.0, %v797
  %v799 = vpop.f32.mrf.mxu0
  %v800 = vadd.f32 0.0, %v799
  %801 = vmatmul.bf16.gmra.mxu0 %v488
  %v802 = vpop.f32.mrf.mxu0
  %v803 = vadd.f32 0.0, %v802
  %v804 = vpop.f32.mrf.mxu0
  %v805 = vadd.f32 0.0, %v804
  %806 = vmatmul.bf16.gmra.mxu0 %v490
  %v807 = vpop.f32.mrf.mxu0
  %v808 = vadd.f32 0.0, %v807
  %v809 = vpop.f32.mrf.mxu0
  %v810 = vadd.f32 0.0, %v809
  %811 = vmatmul.bf16.gmra.mxu0 %v492
  %v812 = vpop.f32.mrf.mxu0
  %v813 = vadd.f32 0.0, %v812
  %v814 = vpop.f32.mrf.mxu0
  %v815 = vadd.f32 0.0, %v814
  %816 = vmatmul.bf16.gmra.mxu0 %v494
  %v817 = vpop.f32.mrf.mxu0
  %v818 = vadd.f32 0.0, %v817
  %v819 = vpop.f32.mrf.mxu0
  %v820 = vadd.f32 0.0, %v819
  %821 = vmatmul.bf16.gmra.mxu0 %v496
  %v822 = vpop.f32.mrf.mxu0
  %v823 = vadd.f32 0.0, %v822
  %v824 = vpop.f32.mrf.mxu0
  %v825 = vadd.f32 0.0, %v824
  %826 = vdwg.mxu0
  %827 = vmatpush.bf16.msra.mxu0 %v641
  %828 = vmatpush.bf16.msra.mxu0 %v640
  %829 = vmatpush.bf16.msra.mxu0 %v639
  %830 = vmatpush.bf16.msra.mxu0 %v638
  %831 = vmatpush.bf16.msra.mxu0 %v637
  %832 = vmatpush.bf16.msra.mxu0 %v636
  %833 = vmatpush.bf16.msra.mxu0 %v635
  %834 = vmatpush.bf16.msra.mxu0 %v634
  %835 = vmatmul.bf16.gmra.mxu0 %v435
  %v836 = vpop.f32.mrf.mxu0
  %v837 = vadd.f32 %v668, %v836
  %v838 = vpop.f32.mrf.mxu0
  %v839 = vadd.f32 %v670, %v838
  %840 = vmatmul.bf16.gmra.mxu0 %v437
  %v841 = vpop.f32.mrf.mxu0
  %v842 = vadd.f32 %v673, %v841
  %v843 = vpop.f32.mrf.mxu0
  %v844 = vadd.f32 %v675, %v843
  %845 = vmatmul.bf16.gmra.mxu0 %v439
  %v846 = vpop.f32.mrf.mxu0
  %v847 = vadd.f32 %v678, %v846
  %v848 = vpop.f32.mrf.mxu0
  %v849 = vadd.f32 %v680, %v848
  %850 = vmatmul.bf16.gmra.mxu0 %v441
  %v851 = vpop.f32.mrf.mxu0
  %v852 = vadd.f32 %v683, %v851
  %v853 = vpop.f32.mrf.mxu0
  %v854 = vadd.f32 %v685, %v853
  %855 = vmatmul.bf16.gmra.mxu0 %v443
  %v856 = vpop.f32.mrf.mxu0
  %v857 = vadd.f32 %v688, %v856
  %v858 = vpop.f32.mrf.mxu0
  %v859 = vadd.f32 %v690, %v858
  %860 = vmatmul.bf16.gmra.mxu0 %v445
  %v861 = vpop.f32.mrf.mxu0
  %v862 = vadd.f32 %v693, %v861
  %v863 = vpop.f32.mrf.mxu0
  %v864 = vadd.f32 %v695, %v863
  %865 = vmatmul.bf16.gmra.mxu0 %v447
  %v866 = vpop.f32.mrf.mxu0
  %v867 = vadd.f32 %v698, %v866
  %v868 = vpop.f32.mrf.mxu0
  %v869 = vadd.f32 %v700, %v868
  %870 = vmatmul.bf16.gmra.mxu0 %v449
  %v871 = vpop.f32.mrf.mxu0
  %v872 = vadd.f32 %v703, %v871
  %v873 = vpop.f32.mrf.mxu0
  %v874 = vadd.f32 %v705, %v873
  %875 = vmatmul.bf16.gmra.mxu0 %v451
  %v876 = vpop.f32.mrf.mxu0
  %v877 = vadd.f32 %v708, %v876
  %v878 = vpop.f32.mrf.mxu0
  %v879 = vadd.f32 %v710, %v878
  %880 = vmatmul.bf16.gmra.mxu0 %v453
  %v881 = vpop.f32.mrf.mxu0
  %v882 = vadd.f32 %v713, %v881
  %v883 = vpop.f32.mrf.mxu0
  %v884 = vadd.f32 %v715, %v883
  %885 = vmatmul.bf16.gmra.mxu0 %v455
  %v886 = vpop.f32.mrf.mxu0
  %v887 = vadd.f32 %v718, %v886
  %v888 = vpop.f32.mrf.mxu0
  %v889 = vadd.f32 %v720, %v888
  %890 = vmatmul.bf16.gmra.mxu0 %v457
  %v891 = vpop.f32.mrf.mxu0
  %v892 = vadd.f32 %v723, %v891
  %v893 = vpop.f32.mrf.mxu0
  %v894 = vadd.f32 %v725, %v893
  %895 = vmatmul.bf16.gmra.mxu0 %v459
  %v896 = vpop.f32.mrf.mxu0
  %v897 = vadd.f32 %v728, %v896
  %v898 = vpop.f32.mrf.mxu0
  %v899 = vadd.f32 %v730, %v898
  %900 = vmatmul.bf16.gmra.mxu0 %v461
  %v901 = vpop.f32.mrf.mxu0
  %v902 = vadd.f32 %v733, %v901
  %v903 = vpop.f32.mrf.mxu0
  %v904 = vadd.f32 %v735, %v903
  %905 = vmatmul.bf16.gmra.mxu0 %v463
  %v906 = vpop.f32.mrf.mxu0
  %v907 = vadd.f32 %v738, %v906
  %v908 = vpop.f32.mrf.mxu0
  %v909 = vadd.f32 %v740, %v908
  %910 = vmatmul.bf16.gmra.mxu0 %v465
  %v911 = vpop.f32.mrf.mxu0
  %v912 = vadd.f32 %v743, %v911
  %v913 = vpop.f32.mrf.mxu0
  %v914 = vadd.f32 %v745, %v913
  %915 = vmatmul.bf16.gmra.mxu0 %v467
  %v916 = vpop.f32.mrf.mxu0
  %v917 = vadd.f32 %v748, %v916
  %v918 = vpop.f32.mrf.mxu0
  %v919 = vadd.f32 %v750, %v918
  %920 = vmatmul.bf16.gmra.mxu0 %v469
  %v921 = vpop.f32.mrf.mxu0
  %v922 = vadd.f32 %v753, %v921
  %v923 = vpop.f32.mrf.mxu0
  %v924 = vadd.f32 %v755, %v923
  %925 = vmatmul.bf16.gmra.mxu0 %v471
  %v926 = vpop.f32.mrf.mxu0
  %v927 = vadd.f32 %v758, %v926
  %v928 = vpop.f32.mrf.mxu0
  %v929 = vadd.f32 %v760, %v928
  %930 = vmatmul.bf16.gmra.mxu0 %v473
  %v931 = vpop.f32.mrf.mxu0
  %v932 = vadd.f32 %v763, %v931
  %v933 = vpop.f32.mrf.mxu0
  %v934 = vadd.f32 %v765, %v933
  %935 = vmatmul.bf16.gmra.mxu0 %v475
  %v936 = vpop.f32.mrf.mxu0
  %v937 = vadd.f32 %v768, %v936
  %v938 = vpop.f32.mrf.mxu0
  %v939 = vadd.f32 %v770, %v938
  %940 = vmatmul.bf16.gmra.mxu0 %v477
  %v941 = vpop.f32.mrf.mxu0
  %v942 = vadd.f32 %v773, %v941
  %v943 = vpop.f32.mrf.mxu0
  %v944 = vadd.f32 %v775, %v943
  %945 = vmatmul.bf16.gmra.mxu0 %v479
  %v946 = vpop.f32.mrf.mxu0
  %v947 = vadd.f32 %v778, %v946
  %v948 = vpop.f32.mrf.mxu0
  %v949 = vadd.f32 %v780, %v948
  %950 = vmatmul.bf16.gmra.mxu0 %v481
  %v951 = vpop.f32.mrf.mxu0
  %v952 = vadd.f32 %v783, %v951
  %v953 = vpop.f32.mrf.mxu0
  %v954 = vadd.f32 %v785, %v953
  %955 = vmatmul.bf16.gmra.mxu0 %v483
  %v956 = vpop.f32.mrf.mxu0
  %v957 = vadd.f32 %v788, %v956
  %v958 = vpop.f32.mrf.mxu0
  %v959 = vadd.f32 %v790, %v958
  %960 = vmatmul.bf16.gmra.mxu0 %v485
  %v961 = vpop.f32.mrf.mxu0
  %v962 = vadd.f32 %v793, %v961
  %v963 = vpop.f32.mrf.mxu0
  %v964 = vadd.f32 %v795, %v963
  %965 = vmatmul.bf16.gmra.mxu0 %v487
  %v966 = vpop.f32.mrf.mxu0
  %v967 = vadd.f32 %v798, %v966
  %v968 = vpop.f32.mrf.mxu0
  %v969 = vadd.f32 %v800, %v968
  %970 = vmatmul.bf16.gmra.mxu0 %v489
  %v971 = vpop.f32.mrf.mxu0
  %v972 = vadd.f32 %v803, %v971
  %v973 = vpop.f32.mrf.mxu0
  %v974 = vadd.f32 %v805, %v973
  %975 = vmatmul.bf16.gmra.mxu0 %v491
  %v976 = vpop.f32.mrf.mxu0
  %v977 = vadd.f32 %v808, %v976
  %v978 = vpop.f32.mrf.mxu0
  %v979 = vadd.f32 %v810, %v978
  %980 = vmatmul.bf16.gmra.mxu0 %v493
  %v981 = vpop.f32.mrf.mxu0
  %v982 = vadd.f32 %v813, %v981
  %v983 = vpop.f32.mrf.mxu0
  %v984 = vadd.f32 %v815, %v983
  %985 = vmatmul.bf16.gmra.mxu0 %v495
  %v986 = vpop.f32.mrf.mxu0
  %v987 = vadd.f32 %v818, %v986
  %v988 = vpop.f32.mrf.mxu0
  %v989 = vadd.f32 %v820, %v988
  %990 = vmatmul.bf16.gmra.mxu0 %v497
  %v991 = vpop.f32.mrf.mxu0
  %v992 = vadd.f32 %v823, %v991
  %v993 = vpop.f32.mrf.mxu0
  %v994 = vadd.f32 %v825, %v993
  %995 = vdwg.mxu0
  %v996 = vadd.f32 %v82, %v837
  %v997 = vadd.f32 %v83, %v839
  %v998 = vadd.f32 %v84, %v842
  %v999 = vadd.f32 %v85, %v844
  %v1000 = vadd.f32 %v86, %v847
  %v1001 = vadd.f32 %v87, %v849
  %v1002 = vadd.f32 %v88, %v852
  %v1003 = vadd.f32 %v89, %v854
  %v1004 = vadd.f32 %v90, %v857
  %v1005 = vadd.f32 %v91, %v859
  %v1006 = vadd.f32 %v92, %v862
  %v1007 = vadd.f32 %v93, %v864
  %v1008 = vadd.f32 %v94, %v867
  %v1009 = vadd.f32 %v95, %v869
  %v1010 = vadd.f32 %v96, %v872
  %v1011 = vadd.f32 %v97, %v874
  %v1012 = vadd.f32 %v98, %v877
  %v1013 = vadd.f32 %v99, %v879
  %v1014 = vadd.f32 %v100, %v882
  %v1015 = vadd.f32 %v101, %v884
  %v1016 = vadd.f32 %v102, %v887
  %v1017 = vadd.f32 %v103, %v889
  %v1018 = vadd.f32 %v104, %v892
  %v1019 = vadd.f32 %v105, %v894
  %v1020 = vadd.f32 %v106, %v897
  %v1021 = vadd.f32 %v107, %v899
  %v1022 = vadd.f32 %v108, %v902
  %v1023 = vadd.f32 %v109, %v904
  %v1024 = vadd.f32 %v110, %v907
  %v1025 = vadd.f32 %v111, %v909
  %v1026 = vadd.f32 %v112, %v912
  %v1027 = vadd.f32 %v113, %v914
  %v1028 = vadd.f32 %v114, %v917
  %v1029 = vadd.f32 %v115, %v919
  %v1030 = vadd.f32 %v116, %v922
  %v1031 = vadd.f32 %v117, %v924
  %v1032 = vadd.f32 %v118, %v927
  %v1033 = vadd.f32 %v119, %v929
  %v1034 = vadd.f32 %v120, %v932
  %v1035 = vadd.f32 %v121, %v934
  %v1036 = vadd.f32 %v122, %v937
  %v1037 = vadd.f32 %v123, %v939
  %v1038 = vadd.f32 %v124, %v942
  %v1039 = vadd.f32 %v125, %v944
  %v1040 = vadd.f32 %v126, %v947
  %v1041 = vadd.f32 %v127, %v949
  %v1042 = vadd.f32 %v128, %v952
  %v1043 = vadd.f32 %v129, %v954
  %v1044 = vadd.f32 %v130, %v957
  %v1045 = vadd.f32 %v131, %v959
  %v1046 = vadd.f32 %v132, %v962
  %v1047 = vadd.f32 %v133, %v964
  %v1048 = vadd.f32 %v134, %v967
  %v1049 = vadd.f32 %v135, %v969
  %v1050 = vadd.f32 %v136, %v972
  %v1051 = vadd.f32 %v137, %v974
  %v1052 = vadd.f32 %v138, %v977
  %v1053 = vadd.f32 %v139, %v979
  %v1054 = vadd.f32 %v140, %v982
  %v1055 = vadd.f32 %v141, %v984
  %v1056 = vadd.f32 %v142, %v987
  %v1057 = vadd.f32 %v143, %v989
  %v1058 = vadd.f32 %v144, %v992
  %v1059 = vadd.f32 %v145, %v994
  %1060 = vst [vmem:[#allocation2] sm:$0xff] %v996
  %1061 = vst [vmem:[#allocation2 + $0x8] sm:$0xff] %v997
  %1062 = vst [vmem:[#allocation2 + $0x10] sm:$0xff] %v998
  %1063 = vst [vmem:[#allocation2 + $0x18] sm:$0xff] %v999
  %1064 = vst [vmem:[#allocation2 + $0x20] sm:$0xff] %v1000
  %1065 = vst [vmem:[#allocation2 + $0x28] sm:$0xff] %v1001
  %1066 = vst [vmem:[#allocation2 + $0x30] sm:$0xff] %v1002
  %1067 = vst [vmem:[#allocation2 + $0x38] sm:$0xff] %v1003
  %1068 = vst [vmem:[#allocation2 + $0x40] sm:$0xff] %v1004
  %1069 = vst [vmem:[#allocation2 + $0x48] sm:$0xff] %v1005
  %1070 = vst [vmem:[#allocation2 + $0x50] sm:$0xff] %v1006
  %1071 = vst [vmem:[#allocation2 + $0x58] sm:$0xff] %v1007
  %1072 = vst [vmem:[#allocation2 + $0x60] sm:$0xff] %v1008
  %1073 = vst [vmem:[#allocation2 + $0x68] sm:$0xff] %v1009
  %1074 = vst [vmem:[#allocation2 + $0x70] sm:$0xff] %v1010
  %1075 = vst [vmem:[#allocation2 + $0x78] sm:$0xff] %v1011
  %1076 = vst [vmem:[#allocation2 + $0x80] sm:$0xff] %v1012
  %1077 = vst [vmem:[#allocation2 + $0x88] sm:$0xff] %v1013
  %1078 = vst [vmem:[#allocation2 + $0x90] sm:$0xff] %v1014
  %1079 = vst [vmem:[#allocation2 + $0x98] sm:$0xff] %v1015
  %1080 = vst [vmem:[#allocation2 + $0xa0] sm:$0xff] %v1016
  %1081 = vst [vmem:[#allocation2 + $0xa8] sm:$0xff] %v1017
  %1082 = vst [vmem:[#allocation2 + $0xb0] sm:$0xff] %v1018
  %1083 = vst [vmem:[#allocation2 + $0xb8] sm:$0xff] %v1019
  %1084 = vst [vmem:[#allocation2 + $0xc0] sm:$0xff] %v1020
  %1085 = vst [vmem:[#allocation2 + $0xc8] sm:$0xff] %v1021
  %1086 = vst [vmem:[#allocation2 + $0xd0] sm:$0xff] %v1022
  %1087 = vst [vmem:[#allocation2 + $0xd8] sm:$0xff] %v1023
  %1088 = vst [vmem:[#allocation2 + $0xe0] sm:$0xff] %v1024
  %1089 = vst [vmem:[#allocation2 + $0xe8] sm:$0xff] %v1025
  %1090 = vst [vmem:[#allocation2 + $0xf0] sm:$0xff] %v1026
  %1091 = vst [vmem:[#allocation2 + $0xf8] sm:$0xff] %v1027
  %1092 = vst [vmem:[#allocation2 + $0x100] sm:$0xff] %v1028
  %1093 = vst [vmem:[#allocation2 + $0x108] sm:$0xff] %v1029
  %1094 = vst [vmem:[#allocation2 + $0x110] sm:$0xff] %v1030
  %1095 = vst [vmem:[#allocation2 + $0x118] sm:$0xff] %v1031
  %1096 = vst [vmem:[#allocation2 + $0x120] sm:$0xff] %v1032
  %1097 = vst [vmem:[#allocation2 + $0x128] sm:$0xff] %v1033
  %1098 = vst [vmem:[#allocation2 + $0x130] sm:$0xff] %v1034
  %1099 = vst [vmem:[#allocation2 + $0x138] sm:$0xff] %v1035
  %1100 = vst [vmem:[#allocation2 + $0x140] sm:$0xff] %v1036
  %1101 = vst [vmem:[#allocation2 + $0x148] sm:$0xff] %v1037
  %1102 = vst [vmem:[#allocation2 + $0x150] sm:$0xff] %v1038
  %1103 = vst [vmem:[#allocation2 + $0x158] sm:$0xff] %v1039
  %1104 = vst [vmem:[#allocation2 + $0x160] sm:$0xff] %v1040
  %1105 = vst [vmem:[#allocation2 + $0x168] sm:$0xff] %v1041
  %1106 = vst [vmem:[#allocation2 + $0x170] sm:$0xff] %v1042
  %1107 = vst [vmem:[#allocation2 + $0x178] sm:$0xff] %v1043
  %1108 = vst [vmem:[#allocation2 + $0x180] sm:$0xff] %v1044
  %1109 = vst [vmem:[#allocation2 + $0x188] sm:$0xff] %v1045
  %1110 = vst [vmem:[#allocation2 + $0x190] sm:$0xff] %v1046
  %1111 = vst [vmem:[#allocation2 + $0x198] sm:$0xff] %v1047
  %1112 = vst [vmem:[#allocation2 + $0x1a0] sm:$0xff] %v1048
  %1113 = vst [vmem:[#allocation2 + $0x1a8] sm:$0xff] %v1049
  %1114 = vst [vmem:[#allocation2 + $0x1b0] sm:$0xff] %v1050
  %1115 = vst [vmem:[#allocation2 + $0x1b8] sm:$0xff] %v1051
  %1116 = vst [vmem:[#allocation2 + $0x1c0] sm:$0xff] %v1052
  %1117 = vst [vmem:[#allocation2 + $0x1c8] sm:$0xff] %v1053
  %1118 = vst [vmem:[#allocation2 + $0x1d0] sm:$0xff] %v1054
  %1119 = vst [vmem:[#allocation2 + $0x1d8] sm:$0xff] %v1055
  %1120 = vst [vmem:[#allocation2 + $0x1e0] sm:$0xff] %v1056
  %1121 = vst [vmem:[#allocation2 + $0x1e8] sm:$0xff] %v1057
  %1122 = vst [vmem:[#allocation2 + $0x1f0] sm:$0xff] %v1058
  %1123 = vst [vmem:[#allocation2 + $0x1f8] sm:$0xff] %v1059
  // Predicated region
  $region14: #{resnet_generator_forward.19} parent=0 // pred_check
    %p1124 = pneg %p14
  $region15: #{resnet_generator_forward.19} parent=0 // pred_check_branch
    %1126 = sbr.rel (%p1124) target = $region17
  $region16: #{resnet_generator_forward.19} parent=0 // pred_region
    %v1127 = vld [vmem:[#allocation2] sm:$0xff]
    %v1128 = vld [vmem:[#allocation2 + $0x8] sm:$0xff]
    %v1129 = vld [vmem:[#allocation2 + $0x10] sm:$0xff]
    %v1130 = vld [vmem:[#allocation2 + $0x18] sm:$0xff]
    %v1131 = vld [vmem:[#allocation2 + $0x20] sm:$0xff]
    %v1132 = vld [vmem:[#allocation2 + $0x28] sm:$0xff]
    %v1133 = vld [vmem:[#allocation2 + $0x30] sm:$0xff]
    %v1134 = vld [vmem:[#allocation2 + $0x38] sm:$0xff]
    %v1135 = vld [vmem:[#allocation2 + $0x40] sm:$0xff]
    %v1136 = vld [vmem:[#allocation2 + $0x48] sm:$0xff]
    %v1137 = vld [vmem:[#allocation2 + $0x50] sm:$0xff]
    %v1138 = vld [vmem:[#allocation2 + $0x58] sm:$0xff]
    %v1139 = vld [vmem:[#allocation2 + $0x60] sm:$0xff]
    %v1140 = vld [vmem:[#allocation2 + $0x68] sm:$0xff]
    %v1141 = vld [vmem:[#allocation2 + $0x70] sm:$0xff]
    %v1142 = vld [vmem:[#allocation2 + $0x78] sm:$0xff]
    %v1143 = vld [vmem:[#allocation2 + $0x80] sm:$0xff]
    %v1144 = vld [vmem:[#allocation2 + $0x88] sm:$0xff]
    %v1145 = vld [vmem:[#allocation2 + $0x90] sm:$0xff]
    %v1146 = vld [vmem:[#allocation2 + $0x98] sm:$0xff]
    %v1147 = vld [vmem:[#allocation2 + $0xa0] sm:$0xff]
    %v1148 = vld [vmem:[#allocation2 + $0xa8] sm:$0xff]
    %v1149 = vld [vmem:[#allocation2 + $0xb0] sm:$0xff]
    %v1150 = vld [vmem:[#allocation2 + $0xb8] sm:$0xff]
    %v1151 = vld [vmem:[#allocation2 + $0xc0] sm:$0xff]
    %v1152 = vld [vmem:[#allocation2 + $0xc8] sm:$0xff]
    %v1153 = vld [vmem:[#allocation2 + $0xd0] sm:$0xff]
    %v1154 = vld [vmem:[#allocation2 + $0xd8] sm:$0xff]
    %v1155 = vld [vmem:[#allocation2 + $0xe0] sm:$0xff]
    %v1156 = vld [vmem:[#allocation2 + $0xe8] sm:$0xff]
    %v1157 = vld [vmem:[#allocation2 + $0xf0] sm:$0xff]
    %v1158 = vld [vmem:[#allocation2 + $0xf8] sm:$0xff]
    %v1159 = vld [vmem:[#allocation2 + $0x100] sm:$0xff]
    %v1160 = vld [vmem:[#allocation2 + $0x108] sm:$0xff]
    %v1161 = vld [vmem:[#allocation2 + $0x110] sm:$0xff]
    %v1162 = vld [vmem:[#allocation2 + $0x118] sm:$0xff]
    %v1163 = vld [vmem:[#allocation2 + $0x120] sm:$0xff]
    %v1164 = vld [vmem:[#allocation2 + $0x128] sm:$0xff]
    %v1165 = vld [vmem:[#allocation2 + $0x130] sm:$0xff]
    %v1166 = vld [vmem:[#allocation2 + $0x138] sm:$0xff]
    %v1167 = vld [vmem:[#allocation2 + $0x140] sm:$0xff]
    %v1168 = vld [vmem:[#allocation2 + $0x148] sm:$0xff]
    %v1169 = vld [vmem:[#allocation2 + $0x150] sm:$0xff]
    %v1170 = vld [vmem:[#allocation2 + $0x158] sm:$0xff]
    %v1171 = vld [vmem:[#allocation2 + $0x160] sm:$0xff]
    %v1172 = vld [vmem:[#allocation2 + $0x168] sm:$0xff]
    %v1173 = vld [vmem:[#allocation2 + $0x170] sm:$0xff]
    %v1174 = vld [vmem:[#allocation2 + $0x178] sm:$0xff]
    %v1175 = vld [vmem:[#allocation2 + $0x180] sm:$0xff]
    %v1176 = vld [vmem:[#allocation2 + $0x188] sm:$0xff]
    %v1177 = vld [vmem:[#allocation2 + $0x190] sm:$0xff]
    %v1178 = vld [vmem:[#allocation2 + $0x198] sm:$0xff]
    %v1179 = vld [vmem:[#allocation2 + $0x1a0] sm:$0xff]
    %v1180 = vld [vmem:[#allocation2 + $0x1a8] sm:$0xff]
    %v1181 = vld [vmem:[#allocation2 + $0x1b0] sm:$0xff]
    %v1182 = vld [vmem:[#allocation2 + $0x1b8] sm:$0xff]
    %v1183 = vld [vmem:[#allocation2 + $0x1c0] sm:$0xff]
    %v1184 = vld [vmem:[#allocation2 + $0x1c8] sm:$0xff]
    %v1185 = vld [vmem:[#allocation2 + $0x1d0] sm:$0xff]
    %v1186 = vld [vmem:[#allocation2 + $0x1d8] sm:$0xff]
    %v1187 = vld [vmem:[#allocation2 + $0x1e0] sm:$0xff]
    %v1188 = vld [vmem:[#allocation2 + $0x1e8] sm:$0xff]
    %v1189 = vld [vmem:[#allocation2 + $0x1f0] sm:$0xff]
    %v1190 = vld [vmem:[#allocation2 + $0x1f8] sm:$0xff]
    %v1191 = vpack.c.bf16 %v1127, %v1127
    %v1192 = vpack.c.bf16 %v1128, %v1128
    %v1193 = vpack.c.bf16 %v1129, %v1129
    %v1194 = vpack.c.bf16 %v1130, %v1130
    %v1195 = vpack.c.bf16 %v1131, %v1131
    %v1196 = vpack.c.bf16 %v1132, %v1132
    %v1197 = vpack.c.bf16 %v1133, %v1133
    %v1198 = vpack.c.bf16 %v1134, %v1134
    %v1199 = vpack.c.bf16 %v1135, %v1135
    %v1200 = vpack.c.bf16 %v1136, %v1136
    %v1201 = vpack.c.bf16 %v1137, %v1137
    %v1202 = vpack.c.bf16 %v1138, %v1138
    %v1203 = vpack.c.bf16 %v1139, %v1139
    %v1204 = vpack.c.bf16 %v1140, %v1140
    %v1205 = vpack.c.bf16 %v1141, %v1141
    %v1206 = vpack.c.bf16 %v1142, %v1142
    %v1207 = vpack.c.bf16 %v1143, %v1143
    %v1208 = vpack.c.bf16 %v1144, %v1144
    %v1209 = vpack.c.bf16 %v1145, %v1145
    %v1210 = vpack.c.bf16 %v1146, %v1146
    %v1211 = vpack.c.bf16 %v1147, %v1147
    %v1212 = vpack.c.bf16 %v1148, %v1148
    %v1213 = vpack.c.bf16 %v1149, %v1149
    %v1214 = vpack.c.bf16 %v1150, %v1150
    %v1215 = vpack.c.bf16 %v1151, %v1151
    %v1216 = vpack.c.bf16 %v1152, %v1152
    %v1217 = vpack.c.bf16 %v1153, %v1153
    %v1218 = vpack.c.bf16 %v1154, %v1154
    %v1219 = vpack.c.bf16 %v1155, %v1155
    %v1220 = vpack.c.bf16 %v1156, %v1156
    %v1221 = vpack.c.bf16 %v1157, %v1157
    %v1222 = vpack.c.bf16 %v1158, %v1158
    %v1223 = vpack.c.bf16 %v1159, %v1159
    %v1224 = vpack.c.bf16 %v1160, %v1160
    %v1225 = vpack.c.bf16 %v1161, %v1161
    %v1226 = vpack.c.bf16 %v1162, %v1162
    %v1227 = vpack.c.bf16 %v1163, %v1163
    %v1228 = vpack.c.bf16 %v1164, %v1164
    %v1229 = vpack.c.bf16 %v1165, %v1165
    %v1230 = vpack.c.bf16 %v1166, %v1166
    %v1231 = vpack.c.bf16 %v1167, %v1167
    %v1232 = vpack.c.bf16 %v1168, %v1168
    %v1233 = vpack.c.bf16 %v1169, %v1169
    %v1234 = vpack.c.bf16 %v1170, %v1170
    %v1235 = vpack.c.bf16 %v1171, %v1171
    %v1236 = vpack.c.bf16 %v1172, %v1172
    %v1237 = vpack.c.bf16 %v1173, %v1173
    %v1238 = vpack.c.bf16 %v1174, %v1174
    %v1239 = vpack.c.bf16 %v1175, %v1175
    %v1240 = vpack.c.bf16 %v1176, %v1176
    %v1241 = vpack.c.bf16 %v1177, %v1177
    %v1242 = vpack.c.bf16 %v1178, %v1178
    %v1243 = vpack.c.bf16 %v1179, %v1179
    %v1244 = vpack.c.bf16 %v1180, %v1180
    %v1245 = vpack.c.bf16 %v1181, %v1181
    %v1246 = vpack.c.bf16 %v1182, %v1182
    %v1247 = vpack.c.bf16 %v1183, %v1183
    %v1248 = vpack.c.bf16 %v1184, %v1184
    %v1249 = vpack.c.bf16 %v1185, %v1185
    %v1250 = vpack.c.bf16 %v1186, %v1186
    %v1251 = vpack.c.bf16 %v1187, %v1187
    %v1252 = vpack.c.bf16 %v1188, %v1188
    %v1253 = vpack.c.bf16 %v1189, %v1189
    %v1254 = vpack.c.bf16 %v1190, %v1190
    %1255 = vst [vmem:[%s2] sm:$0xf] %v1191
    %1256 = vst [vmem:[%s2 + $0x4] sm:$0xf] %v1192
    %1257 = vst [vmem:[%s2 + $0x8] sm:$0xf] %v1193
    %1258 = vst [vmem:[%s2 + $0xc] sm:$0xf] %v1194
    %1259 = vst [vmem:[%s2 + $0x10] sm:$0xf] %v1195
    %1260 = vst [vmem:[%s2 + $0x14] sm:$0xf] %v1196
    %1261 = vst [vmem:[%s2 + $0x18] sm:$0xf] %v1197
    %1262 = vst [vmem:[%s2 + $0x1c] sm:$0xf] %v1198
    %1263 = vst [vmem:[%s2 + $0x20] sm:$0xf] %v1199
    %1264 = vst [vmem:[%s2 + $0x24] sm:$0xf] %v1200
    %1265 = vst [vmem:[%s2 + $0x28] sm:$0xf] %v1201
    %1266 = vst [vmem:[%s2 + $0x2c] sm:$0xf] %v1202
    %1267 = vst [vmem:[%s2 + $0x30] sm:$0xf] %v1203
    %1268 = vst [vmem:[%s2 + $0x34] sm:$0xf] %v1204
    %1269 = vst [vmem:[%s2 + $0x38] sm:$0xf] %v1205
    %1270 = vst [vmem:[%s2 + $0x3c] sm:$0xf] %v1206
    %1271 = vst [vmem:[%s2 + $0x40] sm:$0xf] %v1207
    %1272 = vst [vmem:[%s2 + $0x44] sm:$0xf] %v1208
    %1273 = vst [vmem:[%s2 + $0x48] sm:$0xf] %v1209
    %1274 = vst [vmem:[%s2 + $0x4c] sm:$0xf] %v1210
    %1275 = vst [vmem:[%s2 + $0x50] sm:$0xf] %v1211
    %1276 = vst [vmem:[%s2 + $0x54] sm:$0xf] %v1212
    %1277 = vst [vmem:[%s2 + $0x58] sm:$0xf] %v1213
    %1278 = vst [vmem:[%s2 + $0x5c] sm:$0xf] %v1214
    %1279 = vst [vmem:[%s2 + $0x60] sm:$0xf] %v1215
    %1280 = vst [vmem:[%s2 + $0x64] sm:$0xf] %v1216
    %1281 = vst [vmem:[%s2 + $0x68] sm:$0xf] %v1217
    %1282 = vst [vmem:[%s2 + $0x6c] sm:$0xf] %v1218
    %1283 = vst [vmem:[%s2 + $0x70] sm:$0xf] %v1219
    %1284 = vst [vmem:[%s2 + $0x74] sm:$0xf] %v1220
    %1285 = vst [vmem:[%s2 + $0x78] sm:$0xf] %v1221
    %1286 = vst [vmem:[%s2 + $0x7c] sm:$0xf] %v1222
    %1287 = vst [vmem:[%s2 + $0x80] sm:$0xf] %v1223
    %1288 = vst [vmem:[%s2 + $0x84] sm:$0xf] %v1224
    %1289 = vst [vmem:[%s2 + $0x88] sm:$0xf] %v1225
    %1290 = vst [vmem:[%s2 + $0x8c] sm:$0xf] %v1226
    %1291 = vst [vmem:[%s2 + $0x90] sm:$0xf] %v1227
    %1292 = vst [vmem:[%s2 + $0x94] sm:$0xf] %v1228
    %1293 = vst [vmem:[%s2 + $0x98] sm:$0xf] %v1229
    %1294 = vst [vmem:[%s2 + $0x9c] sm:$0xf] %v1230
    %1295 = vst [vmem:[%s2 + $0xa0] sm:$0xf] %v1231
    %1296 = vst [vmem:[%s2 + $0xa4] sm:$0xf] %v1232
    %1297 = vst [vmem:[%s2 + $0xa8] sm:$0xf] %v1233
    %1298 = vst [vmem:[%s2 + $0xac] sm:$0xf] %v1234
    %1299 = vst [vmem:[%s2 + $0xb0] sm:$0xf] %v1235
    %1300 = vst [vmem:[%s2 + $0xb4] sm:$0xf] %v1236
    %1301 = vst [vmem:[%s2 + $0xb8] sm:$0xf] %v1237
    %1302 = vst [vmem:[%s2 + $0xbc] sm:$0xf] %v1238
    %1303 = vst [vmem:[%s2 + $0xc0] sm:$0xf] %v1239
    %1304 = vst [vmem:[%s2 + $0xc4] sm:$0xf] %v1240
    %1305 = vst [vmem:[%s2 + $0xc8] sm:$0xf] %v1241
    %1306 = vst [vmem:[%s2 + $0xcc] sm:$0xf] %v1242
    %1307 = vst [vmem:[%s2 + $0xd0] sm:$0xf] %v1243
    %1308 = vst [vmem:[%s2 + $0xd4] sm:$0xf] %v1244
    %1309 = vst [vmem:[%s2 + $0xd8] sm:$0xf] %v1245
    %1310 = vst [vmem:[%s2 + $0xdc] sm:$0xf] %v1246
    %1311 = vst [vmem:[%s2 + $0xe0] sm:$0xf] %v1247
    %1312 = vst [vmem:[%s2 + $0xe4] sm:$0xf] %v1248
    %1313 = vst [vmem:[%s2 + $0xe8] sm:$0xf] %v1249
    %1314 = vst [vmem:[%s2 + $0xec] sm:$0xf] %v1250
    %1315 = vst [vmem:[%s2 + $0xf0] sm:$0xf] %v1251
    %1316 = vst [vmem:[%s2 + $0xf4] sm:$0xf] %v1252
    %1317 = vst [vmem:[%s2 + $0xf8] sm:$0xf] %v1253
    %1318 = vst [vmem:[%s2 + $0xfc] sm:$0xf] %v1254
    %v1319 = vadd.f32 %v1127, %v1128
    %v1320 = vadd.f32 %v1319, %v1129
    %v1321 = vadd.f32 %v1320, %v1130
    %v1322 = vadd.f32 %v1321, %v1131
    %v1323 = vadd.f32 %v1322, %v1132
    %v1324 = vadd.f32 %v1323, %v1133
    %v1325 = vadd.f32 %v1324, %v1134
    %v1326 = vadd.f32 %v1325, %v1135
    %v1327 = vadd.f32 %v1326, %v1136
    %v1328 = vadd.f32 %v1327, %v1137
    %v1329 = vadd.f32 %v1328, %v1138
    %v1330 = vadd.f32 %v1329, %v1139
    %v1331 = vadd.f32 %v1330, %v1140
    %v1332 = vadd.f32 %v1331, %v1141
    %v1333 = vadd.f32 %v1332, %v1142
    %v1334 = vadd.f32 %v1333, %v1143
    %v1335 = vadd.f32 %v1334, %v1144
    %v1336 = vadd.f32 %v1335, %v1145
    %v1337 = vadd.f32 %v1336, %v1146
    %v1338 = vadd.f32 %v1337, %v1147
    %v1339 = vadd.f32 %v1338, %v1148
    %v1340 = vadd.f32 %v1339, %v1149
    %v1341 = vadd.f32 %v1340, %v1150
    %v1342 = vadd.f32 %v1341, %v1151
    %v1343 = vadd.f32 %v1342, %v1152
    %v1344 = vadd.f32 %v1343, %v1153
    %v1345 = vadd.f32 %v1344, %v1154
    %v1346 = vadd.f32 %v1345, %v1155
    %v1347 = vadd.f32 %v1346, %v1156
    %v1348 = vadd.f32 %v1347, %v1157
    %v1349 = vadd.f32 %v1348, %v1158
    %v1350 = vadd.f32 %v1349, %v1159
    %v1351 = vadd.f32 %v1350, %v1160
    %v1352 = vadd.f32 %v1351, %v1161
    %v1353 = vadd.f32 %v1352, %v1162
    %v1354 = vadd.f32 %v1353, %v1163
    %v1355 = vadd.f32 %v1354, %v1164
    %v1356 = vadd.f32 %v1355, %v1165
    %v1357 = vadd.f32 %v1356, %v1166
    %v1358 = vadd.f32 %v1357, %v1167
    %v1359 = vadd.f32 %v1358, %v1168
    %v1360 = vadd.f32 %v1359, %v1169
    %v1361 = vadd.f32 %v1360, %v1170
    %v1362 = vadd.f32 %v1361, %v1171
    %v1363 = vadd.f32 %v1362, %v1172
    %v1364 = vadd.f32 %v1363, %v1173
    %v1365 = vadd.f32 %v1364, %v1174
    %v1366 = vadd.f32 %v1365, %v1175
    %v1367 = vadd.f32 %v1366, %v1176
    %v1368 = vadd.f32 %v1367, %v1177
    %v1369 = vadd.f32 %v1368, %v1178
    %v1370 = vadd.f32 %v1369, %v1179
    %v1371 = vadd.f32 %v1370, %v1180
    %v1372 = vadd.f32 %v1371, %v1181
    %v1373 = vadd.f32 %v1372, %v1182
    %v1374 = vadd.f32 %v1373, %v1183
    %v1375 = vadd.f32 %v1374, %v1184
    %v1376 = vadd.f32 %v1375, %v1185
    %v1377 = vadd.f32 %v1376, %v1186
    %v1378 = vadd.f32 %v1377, %v1187
    %v1379 = vadd.f32 %v1378, %v1188
    %v1380 = vadd.f32 %v1379, %v1189
    %v1381 = vadd.f32 %v1380, %v1190
    %v1382 = vrot.slane %v1381, 4
    %v1383 = vadd.f32 %v1381, %v1382
    %v1384 = vrot.slane %v1383, 2
    %v1385 = vadd.f32 %v1383, %v1384
    %v1386 = vrot.slane %v1385, 1
    %v1387 = vadd.f32 %v1385, %v1386
    %v1388 = vmul.f32 %v1127, %v1127
    %v1389 = vmul.f32 %v1128, %v1128
    %v1390 = vmul.f32 %v1129, %v1129
    %v1391 = vmul.f32 %v1130, %v1130
    %v1392 = vmul.f32 %v1131, %v1131
    %v1393 = vmul.f32 %v1132, %v1132
    %v1394 = vmul.f32 %v1133, %v1133
    %v1395 = vmul.f32 %v1134, %v1134
    %v1396 = vmul.f32 %v1135, %v1135
    %v1397 = vmul.f32 %v1136, %v1136
    %v1398 = vmul.f32 %v1137, %v1137
    %v1399 = vmul.f32 %v1138, %v1138
    %v1400 = vmul.f32 %v1139, %v1139
    %v1401 = vmul.f32 %v1140, %v1140
    %v1402 = vmul.f32 %v1141, %v1141
    %v1403 = vmul.f32 %v1142, %v1142
    %v1404 = vmul.f32 %v1143, %v1143
    %v1405 = vmul.f32 %v1144, %v1144
    %v1406 = vmul.f32 %v1145, %v1145
    %v1407 = vmul.f32 %v1146, %v1146
    %v1408 = vmul.f32 %v1147, %v1147
    %v1409 = vmul.f32 %v1148, %v1148
    %v1410 = vmul.f32 %v1149, %v1149
    %v1411 = vmul.f32 %v1150, %v1150
    %v1412 = vmul.f32 %v1151, %v1151
    %v1413 = vmul.f32 %v1152, %v1152
    %v1414 = vmul.f32 %v1153, %v1153
    %v1415 = vmul.f32 %v1154, %v1154
    %v1416 = vmul.f32 %v1155, %v1155
    %v1417 = vmul.f32 %v1156, %v1156
    %v1418 = vmul.f32 %v1157, %v1157
    %v1419 = vmul.f32 %v1158, %v1158
    %v1420 = vmul.f32 %v1159, %v1159
    %v1421 = vmul.f32 %v1160, %v1160
    %v1422 = vmul.f32 %v1161, %v1161
    %v1423 = vmul.f32 %v1162, %v1162
    %v1424 = vmul.f32 %v1163, %v1163
    %v1425 = vmul.f32 %v1164, %v1164
    %v1426 = vmul.f32 %v1165, %v1165
    %v1427 = vmul.f32 %v1166, %v1166
    %v1428 = vmul.f32 %v1167, %v1167
    %v1429 = vmul.f32 %v1168, %v1168
    %v1430 = vmul.f32 %v1169, %v1169
    %v1431 = vmul.f32 %v1170, %v1170
    %v1432 = vmul.f32 %v1171, %v1171
    %v1433 = vmul.f32 %v1172, %v1172
    %v1434 = vmul.f32 %v1173, %v1173
    %v1435 = vmul.f32 %v1174, %v1174
    %v1436 = vmul.f32 %v1175, %v1175
    %v1437 = vmul.f32 %v1176, %v1176
    %v1438 = vmul.f32 %v1177, %v1177
    %v1439 = vmul.f32 %v1178, %v1178
    %v1440 = vmul.f32 %v1179, %v1179
    %v1441 = vmul.f32 %v1180, %v1180
    %v1442 = vmul.f32 %v1181, %v1181
    %v1443 = vmul.f32 %v1182, %v1182
    %v1444 = vmul.f32 %v1183, %v1183
    %v1445 = vmul.f32 %v1184, %v1184
    %v1446 = vmul.f32 %v1185, %v1185
    %v1447 = vmul.f32 %v1186, %v1186
    %v1448 = vmul.f32 %v1187, %v1187
    %v1449 = vmul.f32 %v1188, %v1188
    %v1450 = vmul.f32 %v1189, %v1189
    %v1451 = vmul.f32 %v1190, %v1190
    %v1452 = vadd.f32 %v1388, %v1389
    %v1453 = vadd.f32 %v1452, %v1390
    %v1454 = vadd.f32 %v1453, %v1391
    %v1455 = vadd.f32 %v1454, %v1392
    %v1456 = vadd.f32 %v1455, %v1393
    %v1457 = vadd.f32 %v1456, %v1394
    %v1458 = vadd.f32 %v1457, %v1395
    %v1459 = vadd.f32 %v1458, %v1396
    %v1460 = vadd.f32 %v1459, %v1397
    %v1461 = vadd.f32 %v1460, %v1398
    %v1462 = vadd.f32 %v1461, %v1399
    %v1463 = vadd.f32 %v1462, %v1400
    %v1464 = vadd.f32 %v1463, %v1401
    %v1465 = vadd.f32 %v1464, %v1402
    %v1466 = vadd.f32 %v1465, %v1403
    %v1467 = vadd.f32 %v1466, %v1404
    %v1468 = vadd.f32 %v1467, %v1405
    %v1469 = vadd.f32 %v1468, %v1406
    %v1470 = vadd.f32 %v1469, %v1407
    %v1471 = vadd.f32 %v1470, %v1408
    %v1472 = vadd.f32 %v1471, %v1409
    %v1473 = vadd.f32 %v1472, %v1410
    %v1474 = vadd.f32 %v1473, %v1411
    %v1475 = vadd.f32 %v1474, %v1412
    %v1476 = vadd.f32 %v1475, %v1413
    %v1477 = vadd.f32 %v1476, %v1414
    %v1478 = vadd.f32 %v1477, %v1415
    %v1479 = vadd.f32 %v1478, %v1416
    %v1480 = vadd.f32 %v1479, %v1417
    %v1481 = vadd.f32 %v1480, %v1418
    %v1482 = vadd.f32 %v1481, %v1419
    %v1483 = vadd.f32 %v1482, %v1420
    %v1484 = vadd.f32 %v1483, %v1421
    %v1485 = vadd.f32 %v1484, %v1422
    %v1486 = vadd.f32 %v1485, %v1423
    %v1487 = vadd.f32 %v1486, %v1424
    %v1488 = vadd.f32 %v1487, %v1425
    %v1489 = vadd.f32 %v1488, %v1426
    %v1490 = vadd.f32 %v1489, %v1427
    %v1491 = vadd.f32 %v1490, %v1428
    %v1492 = vadd.f32 %v1491, %v1429
    %v1493 = vadd.f32 %v1492, %v1430
    %v1494 = vadd.f32 %v1493, %v1431
    %v1495 = vadd.f32 %v1494, %v1432
    %v1496 = vadd.f32 %v1495, %v1433
    %v1497 = vadd.f32 %v1496, %v1434
    %v1498 = vadd.f32 %v1497, %v1435
    %v1499 = vadd.f32 %v1498, %v1436
    %v1500 = vadd.f32 %v1499, %v1437
    %v1501 = vadd.f32 %v1500, %v1438
    %v1502 = vadd.f32 %v1501, %v1439
    %v1503 = vadd.f32 %v1502, %v1440
    %v1504 = vadd.f32 %v1503, %v1441
    %v1505 = vadd.f32 %v1504, %v1442
    %v1506 = vadd.f32 %v1505, %v1443
    %v1507 = vadd.f32 %v1506, %v1444
    %v1508 = vadd.f32 %v1507, %v1445
    %v1509 = vadd.f32 %v1508, %v1446
    %v1510 = vadd.f32 %v1509, %v1447
    %v1511 = vadd.f32 %v1510, %v1448
    %v1512 = vadd.f32 %v1511, %v1449
    %v1513 = vadd.f32 %v1512, %v1450
    %v1514 = vadd.f32 %v1513, %v1451
    %v1515 = vrot.slane %v1514, 4
    %v1516 = vadd.f32 %v1514, %v1515
    %v1517 = vrot.slane %v1516, 2
    %v1518 = vadd.f32 %v1516, %v1517
    %v1519 = vrot.slane %v1518, 1
    %v1520 = vadd.f32 %v1518, %v1519
    %1521 = vst [vmem:[%s3] sm:$0xff] %v1387
    %1522 = vst [vmem:[%s4] sm:$0xff] %v1520
  $region17: #{resnet_generator_forward.19} parent=0 // pred_fallthru
    _
  // Predicated region
  $region18: #{resnet_generator_forward.19} parent=0 // pred_check
    _
  $region19: #{resnet_generator_forward.19} parent=0 // pred_check_branch
    %1524 = sbr.rel (0) target = $region21
  $region20: #{resnet_generator_forward.19} parent=0 // pred_region
    _
  $region21: #{resnet_generator_forward.19} parent=0 // pred_fallthru
    _
  // Predicated region
  $region22: #{resnet_generator_forward.19} parent=0 // pred_check
    _
  $region23: #{resnet_generator_forward.19} parent=0 // pred_check_branch
    %1526 = sbr.rel (0) target = $region25
  $region24: #{resnet_generator_forward.19} parent=0 // pred_region
    _
  $region25: #{resnet_generator_forward.19} parent=0 // pred_fallthru
    _
  // Predicated region
  $region26: #{resnet_generator_forward.19} parent=0 // pred_check
    _
  $region27: #{resnet_generator_forward.19} parent=0 // pred_check_branch
    %1528 = sbr.rel (0) target = $region29
  $region28: #{resnet_generator_forward.19} parent=0 // pred_region
    _
  $region29: #{resnet_generator_forward.19} parent=0 // pred_fallthru
    _
  // Predicated region
  $region30: #{resnet_generator_forward.19} parent=0 // pred_check
    _
  $region31: #{resnet_generator_forward.19} parent=0 // pred_check_branch
    %1530 = sbr.rel (0) target = $region33
  $region32: #{resnet_generator_forward.19} parent=0 // pred_region
    _
  $region33: #{resnet_generator_forward.19} parent=0 // pred_fallthru
    _
  // Predicated region
  $region34: #{resnet_generator_forward.19} parent=0 // pred_check
    _
  $region35: #{resnet_generator_forward.19} parent=0 // pred_check_branch
    %1532 = sbr.rel (0) target = $region37
  $region36: #{resnet_generator_forward.19} parent=0 // pred_region
    _
  $region37: #{resnet_generator_forward.19} parent=0 // pred_fallthru
    _
  // Predicated region
  $region38: #{resnet_generator_forward.19} parent=0 // pred_check
    _
  $region39: #{resnet_generator_forward.19} parent=0 // pred_check_branch
    %1534 = sbr.rel (0) target = $region41
  $region40: #{resnet_generator_forward.19} parent=0 // pred_region
    _
  $region41: #{resnet_generator_forward.19} parent=0 // pred_fallthru
    _

// kernel: resnet_generator_forward.21
$region0: #{resnet_generator_forward.21}
  #allocation0 [shape = 'u32[]', space=smem, size = 0x4, offset = 0x4, fixed_abs, tag = 'smem constant byte address 0x4 - core index']
  #allocation1 [shape = 'u32[72,128]{1,0:T(1,128)}', space=vmem, size = 0x9000, scoped, tag = 'internal scratch']
  #allocation2 [shape = 'f32[128,128]{1,0:T(8,128)}', space=vmem, size = 0x10000, scoped, tag = 'scratch operand']
  %s0 = inlined_call_operand.vmem [shape: bf16[128,128], index: 0, kind: input, shape index: {}]
  %s1 = inlined_call_operand.vmem [shape: bf16[128,128], index: 1, kind: input, shape index: {}]
  %s2 = inlined_call_operand.vmem [shape: bf16[128,128], index: 2, kind: output, shape index: {0}]
  %s3 = inlined_call_operand.vmem [shape: f32[8,128], index: 3, kind: output, shape index: {1}]
  %s4 = inlined_call_operand.vmem [shape: f32[8,128], index: 4, kind: output, shape index: {2}]
  %5 = xla_tuple %s2, %s3, %s4
  %s6 = sld [smem:[#allocation0]]
  $region42: #{resnet_generator_forward.21} parent=0
    _
  %s8 = ssub.s32 1, %s6
  %s9 = scalar_select 0, %s8, %s6
  // Predicated region
  $region2: #{resnet_generator_forward.21} parent=0 // pred_check
    _
  $region3: #{resnet_generator_forward.21} parent=0 // pred_check_branch
    %11 = sbr.rel (0) target = $region5
  $region4: #{resnet_generator_forward.21} parent=0 // pred_region
    _
  $region5: #{resnet_generator_forward.21} parent=0 // pred_fallthru
    _
  // Predicated region
  $region6: #{resnet_generator_forward.21} parent=0 // pred_check
    _
  $region7: #{resnet_generator_forward.21} parent=0 // pred_check_branch
    %13 = sbr.rel (0) target = $region9
  $region8: #{resnet_generator_forward.21} parent=0 // pred_region
    _
  $region9: #{resnet_generator_forward.21} parent=0 // pred_fallthru
    _
  %p14 = scmp.eq.s32.totalorder 0, 0
  // Predicated region
  $region10: #{resnet_generator_forward.21} parent=0 // pred_check
    %p15 = pneg %p14
  $region11: #{resnet_generator_forward.21} parent=0 // pred_check_branch
    %17 = sbr.rel (%p15) target = $region13
  $region12: #{resnet_generator_forward.21} parent=0 // pred_region
    %18 = vst [vmem:[#allocation2] sm:$0xff] 0.0
    %19 = vst [vmem:[#allocation2 + $0x8] sm:$0xff] 0.0
    %20 = vst [vmem:[#allocation2 + $0x10] sm:$0xff] 0.0
    %21 = vst [vmem:[#allocation2 + $0x18] sm:$0xff] 0.0
    %22 = vst [vmem:[#allocation2 + $0x20] sm:$0xff] 0.0
    %23 = vst [vmem:[#allocation2 + $0x28] sm:$0xff] 0.0
    %24 = vst [vmem:[#allocation2 + $0x30] sm:$0xff] 0.0
    %25 = vst [vmem:[#allocation2 + $0x38] sm:$0xff] 0.0
    %26 = vst [vmem:[#allocation2 + $0x40] sm:$0xff] 0.0
    %27 = vst [vmem:[#allocation2 + $0x48] sm:$0xff] 0.0
    %28 = vst [vmem:[#allocation2 + $0x50] sm:$0xff] 0.0
    %29 = vst [vmem:[#allocation2 + $0x58] sm:$0xff] 0.0
    %30 = vst [vmem:[#allocation2 + $0x60] sm:$0xff] 0.0
    %31 = vst [vmem:[#allocation2 + $0x68] sm:$0xff] 0.0
    %32 = vst [vmem:[#allocation2 + $0x70] sm:$0xff] 0.0
    %33 = vst [vmem:[#allocation2 + $0x78] sm:$0xff] 0.0
  $region13: #{resnet_generator_forward.21} parent=0 // pred_fallthru
    _
  %v34 = vld [vmem:[#allocation2] sm:$0xff]
  %v35 = vld [vmem:[#allocation2 + $0x8] sm:$0xff]
  %v36 = vld [vmem:[#allocation2 + $0x10] sm:$0xff]
  %v37 = vld [vmem:[#allocation2 + $0x18] sm:$0xff]
  %v38 = vld [vmem:[#allocation2 + $0x20] sm:$0xff]
  %v39 = vld [vmem:[#allocation2 + $0x28] sm:$0xff]
  %v40 = vld [vmem:[#allocation2 + $0x30] sm:$0xff]
  %v41 = vld [vmem:[#allocation2 + $0x38] sm:$0xff]
  %v42 = vld [vmem:[#allocation2 + $0x40] sm:$0xff]
  %v43 = vld [vmem:[#allocation2 + $0x48] sm:$0xff]
  %v44 = vld [vmem:[#allocation2 + $0x50] sm:$0xff]
  %v45 = vld [vmem:[#allocation2 + $0x58] sm:$0xff]
  %v46 = vld [vmem:[#allocation2 + $0x60] sm:$0xff]
  %v47 = vld [vmem:[#allocation2 + $0x68] sm:$0xff]
  %v48 = vld [vmem:[#allocation2 + $0x70] sm:$0xff]
  %v49 = vld [vmem:[#allocation2 + $0x78] sm:$0xff]
  %v50 = vld [vmem:[%s0] sm:$0xf]
  %v51 = vld [vmem:[%s0 + $0x4] sm:$0xf]
  %v52 = vld [vmem:[%s0 + $0x8] sm:$0xf]
  %v53 = vld [vmem:[%s0 + $0xc] sm:$0xf]
  %v54 = vld [vmem:[%s0 + $0x10] sm:$0xf]
  %v55 = vld [vmem:[%s0 + $0x14] sm:$0xf]
  %v56 = vld [vmem:[%s0 + $0x18] sm:$0xf]
  %v57 = vld [vmem:[%s0 + $0x1c] sm:$0xf]
  %v58 = vld [vmem:[%s0 + $0x20] sm:$0xf]
  %v59 = vld [vmem:[%s0 + $0x24] sm:$0xf]
  %v60 = vld [vmem:[%s0 + $0x28] sm:$0xf]
  %v61 = vld [vmem:[%s0 + $0x2c] sm:$0xf]
  %v62 = vld [vmem:[%s0 + $0x30] sm:$0xf]
  %v63 = vld [vmem:[%s0 + $0x34] sm:$0xf]
  %v64 = vld [vmem:[%s0 + $0x38] sm:$0xf]
  %v65 = vld [vmem:[%s0 + $0x3c] sm:$0xf]
  %v66 = vld [vmem:[%s1] sm:$0xf]
  %v67 = vld [vmem:[%s1 + $0x4] sm:$0xf]
  %v68 = vld [vmem:[%s1 + $0x8] sm:$0xf]
  %v69 = vld [vmem:[%s1 + $0xc] sm:$0xf]
  %v70 = vld [vmem:[%s1 + $0x10] sm:$0xf]
  %v71 = vld [vmem:[%s1 + $0x14] sm:$0xf]
  %v72 = vld [vmem:[%s1 + $0x18] sm:$0xf]
  %v73 = vld [vmem:[%s1 + $0x1c] sm:$0xf]
  %v74 = vld [vmem:[%s1 + $0x20] sm:$0xf]
  %v75 = vld [vmem:[%s1 + $0x24] sm:$0xf]
  %v76 = vld [vmem:[%s1 + $0x28] sm:$0xf]
  %v77 = vld [vmem:[%s1 + $0x2c] sm:$0xf]
  %v78 = vld [vmem:[%s1 + $0x30] sm:$0xf]
  %v79 = vld [vmem:[%s1 + $0x34] sm:$0xf]
  %v80 = vld [vmem:[%s1 + $0x38] sm:$0xf]
  %v81 = vld [vmem:[%s1 + $0x3c] sm:$0xf]
  %v98 = vunpack.c.l.b16 %v50
  %v99 = vunpack.c.l.b16 %v51
  %v100 = vunpack.c.l.b16 %v52
  %v101 = vunpack.c.l.b16 %v53
  %v102 = vunpack.c.l.b16 %v54
  %v103 = vunpack.c.l.b16 %v55
  %v104 = vunpack.c.l.b16 %v56
  %v105 = vunpack.c.l.b16 %v57
  %v106 = vunpack.c.l.b16 %v58
  %v107 = vunpack.c.l.b16 %v59
  %v108 = vunpack.c.l.b16 %v60
  %v109 = vunpack.c.l.b16 %v61
  %v110 = vunpack.c.l.b16 %v62
  %v111 = vunpack.c.l.b16 %v63
  %v112 = vunpack.c.l.b16 %v64
  %v113 = vunpack.c.l.b16 %v65
  %v114 = vpack.c.b16 %v99, %v98
  %v115 = vpack.c.b16 %v101, %v100
  %v116 = vpack.c.b16 %v103, %v102
  %v117 = vpack.c.b16 %v105, %v104
  %v118 = vpack.c.b16 %v107, %v106
  %v119 = vpack.c.b16 %v109, %v108
  %v120 = vpack.c.b16 %v111, %v110
  %v121 = vpack.c.b16 %v113, %v112
  %v146 = vunpack.c.l.b16 %v66
  %v147 = vunpack.c.l.b16 %v67
  %v148 = vunpack.c.l.b16 %v68
  %v149 = vunpack.c.l.b16 %v69
  %v150 = vunpack.c.l.b16 %v70
  %v151 = vunpack.c.l.b16 %v71
  %v152 = vunpack.c.l.b16 %v72
  %v153 = vunpack.c.l.b16 %v73
  %v154 = vunpack.c.l.b16 %v74
  %v155 = vunpack.c.l.b16 %v75
  %v156 = vunpack.c.l.b16 %v76
  %v157 = vunpack.c.l.b16 %v77
  %v158 = vunpack.c.l.b16 %v78
  %v159 = vunpack.c.l.b16 %v79
  %v160 = vunpack.c.l.b16 %v80
  %v161 = vunpack.c.l.b16 %v81
  %v162 = vpack.c.b16 %v147, %v146
  %v163 = vpack.c.b16 %v149, %v148
  %v164 = vpack.c.b16 %v151, %v150
  %v165 = vpack.c.b16 %v153, %v152
  %v166 = vpack.c.b16 %v155, %v154
  %v167 = vpack.c.b16 %v157, %v156
  %v168 = vpack.c.b16 %v159, %v158
  %v169 = vpack.c.b16 %v161, %v160
  %178 = vmatpush.bf16.msra.mxu0 %v169
  %179 = vmatpush.bf16.msra.mxu0 %v168
  %180 = vmatpush.bf16.msra.mxu0 %v167
  %181 = vmatpush.bf16.msra.mxu0 %v166
  %182 = vmatpush.bf16.msra.mxu0 %v165
  %183 = vmatpush.bf16.msra.mxu0 %v164
  %184 = vmatpush.bf16.msra.mxu0 %v163
  %185 = vmatpush.bf16.msra.mxu0 %v162
  %186 = vmatmul.bf16.gmra.mxu0 %v114
  %v187 = vpop.f32.mrf.mxu0
  %v188 = vadd.f32 0.0, %v187
  %v189 = vpop.f32.mrf.mxu0
  %v190 = vadd.f32 0.0, %v189
  %191 = vmatmul.bf16.gmra.mxu0 %v115
  %v192 = vpop.f32.mrf.mxu0
  %v193 = vadd.f32 0.0, %v192
  %v194 = vpop.f32.mrf.mxu0
  %v195 = vadd.f32 0.0, %v194
  %196 = vmatmul.bf16.gmra.mxu0 %v116
  %v197 = vpop.f32.mrf.mxu0
  %v198 = vadd.f32 0.0, %v197
  %v199 = vpop.f32.mrf.mxu0
  %v200 = vadd.f32 0.0, %v199
  %201 = vmatmul.bf16.gmra.mxu0 %v117
  %v202 = vpop.f32.mrf.mxu0
  %v203 = vadd.f32 0.0, %v202
  %v204 = vpop.f32.mrf.mxu0
  %v205 = vadd.f32 0.0, %v204
  %206 = vmatmul.bf16.gmra.mxu0 %v118
  %v207 = vpop.f32.mrf.mxu0
  %v208 = vadd.f32 0.0, %v207
  %v209 = vpop.f32.mrf.mxu0
  %v210 = vadd.f32 0.0, %v209
  %211 = vmatmul.bf16.gmra.mxu0 %v119
  %v212 = vpop.f32.mrf.mxu0
  %v213 = vadd.f32 0.0, %v212
  %v214 = vpop.f32.mrf.mxu0
  %v215 = vadd.f32 0.0, %v214
  %216 = vmatmul.bf16.gmra.mxu0 %v120
  %v217 = vpop.f32.mrf.mxu0
  %v218 = vadd.f32 0.0, %v217
  %v219 = vpop.f32.mrf.mxu0
  %v220 = vadd.f32 0.0, %v219
  %221 = vmatmul.bf16.gmra.mxu0 %v121
  %v222 = vpop.f32.mrf.mxu0
  %v223 = vadd.f32 0.0, %v222
  %v224 = vpop.f32.mrf.mxu0
  %v225 = vadd.f32 0.0, %v224
  %226 = vdwg.mxu0
  %v227 = vadd.f32 %v34, %v188
  %v228 = vadd.f32 %v35, %v190
  %v229 = vadd.f32 %v36, %v193
  %v230 = vadd.f32 %v37, %v195
  %v231 = vadd.f32 %v38, %v198
  %v232 = vadd.f32 %v39, %v200
  %v233 = vadd.f32 %v40, %v203
  %v234 = vadd.f32 %v41, %v205
  %v235 = vadd.f32 %v42, %v208
  %v236 = vadd.f32 %v43, %v210
  %v237 = vadd.f32 %v44, %v213
  %v238 = vadd.f32 %v45, %v215
  %v239 = vadd.f32 %v46, %v218
  %v240 = vadd.f32 %v47, %v220
  %v241 = vadd.f32 %v48, %v223
  %v242 = vadd.f32 %v49, %v225
  %243 = vst [vmem:[#allocation2] sm:$0xff] %v227
  %244 = vst [vmem:[#allocation2 + $0x8] sm:$0xff] %v228
  %245 = vst [vmem:[#allocation2 + $0x10] sm:$0xff] %v229
  %246 = vst [vmem:[#allocation2 + $0x18] sm:$0xff] %v230
  %247 = vst [vmem:[#allocation2 + $0x20] sm:$0xff] %v231
  %248 = vst [vmem:[#allocation2 + $0x28] sm:$0xff] %v232
  %249 = vst [vmem:[#allocation2 + $0x30] sm:$0xff] %v233
  %250 = vst [vmem:[#allocation2 + $0x38] sm:$0xff] %v234
  %251 = vst [vmem:[#allocation2 + $0x40] sm:$0xff] %v235
  %252 = vst [vmem:[#allocation2 + $0x48] sm:$0xff] %v236
  %253 = vst [vmem:[#allocation2 + $0x50] sm:$0xff] %v237
  %254 = vst [vmem:[#allocation2 + $0x58] sm:$0xff] %v238
  %255 = vst [vmem:[#allocation2 + $0x60] sm:$0xff] %v239
  %256 = vst [vmem:[#allocation2 + $0x68] sm:$0xff] %v240
  %257 = vst [vmem:[#allocation2 + $0x70] sm:$0xff] %v241
  %258 = vst [vmem:[#allocation2 + $0x78] sm:$0xff] %v242
  // Predicated region
  $region14: #{resnet_generator_forward.21} parent=0 // pred_check
    %p259 = pneg %p14
  $region15: #{resnet_generator_forward.21} parent=0 // pred_check_branch
    %261 = sbr.rel (%p259) target = $region17
  $region16: #{resnet_generator_forward.21} parent=0 // pred_region
    %v262 = vld [vmem:[#allocation2] sm:$0xff]
    %v263 = vld [vmem:[#allocation2 + $0x8] sm:$0xff]
    %v264 = vld [vmem:[#allocation2 + $0x10] sm:$0xff]
    %v265 = vld [vmem:[#allocation2 + $0x18] sm:$0xff]
    %v266 = vld [vmem:[#allocation2 + $0x20] sm:$0xff]
    %v267 = vld [vmem:[#allocation2 + $0x28] sm:$0xff]
    %v268 = vld [vmem:[#allocation2 + $0x30] sm:$0xff]
    %v269 = vld [vmem:[#allocation2 + $0x38] sm:$0xff]
    %v270 = vld [vmem:[#allocation2 + $0x40] sm:$0xff]
    %v271 = vld [vmem:[#allocation2 + $0x48] sm:$0xff]
    %v272 = vld [vmem:[#allocation2 + $0x50] sm:$0xff]
    %v273 = vld [vmem:[#allocation2 + $0x58] sm:$0xff]
    %v274 = vld [vmem:[#allocation2 + $0x60] sm:$0xff]
    %v275 = vld [vmem:[#allocation2 + $0x68] sm:$0xff]
    %v276 = vld [vmem:[#allocation2 + $0x70] sm:$0xff]
    %v277 = vld [vmem:[#allocation2 + $0x78] sm:$0xff]
    %v278 = vpack.c.bf16 %v262, %v262
    %v279 = vpack.c.bf16 %v263, %v263
    %v280 = vpack.c.bf16 %v264, %v264
    %v281 = vpack.c.bf16 %v265, %v265
    %v282 = vpack.c.bf16 %v266, %v266
    %v283 = vpack.c.bf16 %v267, %v267
    %v284 = vpack.c.bf16 %v268, %v268
    %v285 = vpack.c.bf16 %v269, %v269
    %v286 = vpack.c.bf16 %v270, %v270
    %v287 = vpack.c.bf16 %v271, %v271
    %v288 = vpack.c.bf16 %v272, %v272
    %v289 = vpack.c.bf16 %v273, %v273
    %v290 = vpack.c.bf16 %v274, %v274
    %v291 = vpack.c.bf16 %v275, %v275
    %v292 = vpack.c.bf16 %v276, %v276
    %v293 = vpack.c.bf16 %v277, %v277
    %294 = vst [vmem:[%s2] sm:$0xf] %v278
    %295 = vst [vmem:[%s2 + $0x4] sm:$0xf] %v279
    %296 = vst [vmem:[%s2 + $0x8] sm:$0xf] %v280
    %297 = vst [vmem:[%s2 + $0xc] sm:$0xf] %v281
    %298 = vst [vmem:[%s2 + $0x10] sm:$0xf] %v282
    %299 = vst [vmem:[%s2 + $0x14] sm:$0xf] %v283
    %300 = vst [vmem:[%s2 + $0x18] sm:$0xf] %v284
    %301 = vst [vmem:[%s2 + $0x1c] sm:$0xf] %v285
    %302 = vst [vmem:[%s2 + $0x20] sm:$0xf] %v286
    %303 = vst [vmem:[%s2 + $0x24] sm:$0xf] %v287
    %304 = vst [vmem:[%s2 + $0x28] sm:$0xf] %v288
    %305 = vst [vmem:[%s2 + $0x2c] sm:$0xf] %v289
    %306 = vst [vmem:[%s2 + $0x30] sm:$0xf] %v290
    %307 = vst [vmem:[%s2 + $0x34] sm:$0xf] %v291
    %308 = vst [vmem:[%s2 + $0x38] sm:$0xf] %v292
    %309 = vst [vmem:[%s2 + $0x3c] sm:$0xf] %v293
    %v310 = vadd.f32 %v262, %v263
    %v311 = vadd.f32 %v310, %v264
    %v312 = vadd.f32 %v311, %v265
    %v313 = vadd.f32 %v312, %v266
    %v314 = vadd.f32 %v313, %v267
    %v315 = vadd.f32 %v314, %v268
    %v316 = vadd.f32 %v315, %v269
    %v317 = vadd.f32 %v316, %v270
    %v318 = vadd.f32 %v317, %v271
    %v319 = vadd.f32 %v318, %v272
    %v320 = vadd.f32 %v319, %v273
    %v321 = vadd.f32 %v320, %v274
    %v322 = vadd.f32 %v321, %v275
    %v323 = vadd.f32 %v322, %v276
    %v324 = vadd.f32 %v323, %v277
    %v325 = vrot.slane %v324, 4
    %v326 = vadd.f32 %v324, %v325
    %v327 = vrot.slane %v326, 2
    %v328 = vadd.f32 %v326, %v327
    %v329 = vrot.slane %v328, 1
    %v330 = vadd.f32 %v328, %v329
    %v331 = vmul.f32 %v262, %v262
    %v332 = vmul.f32 %v263, %v263
    %v333 = vmul.f32 %v264, %v264
    %v334 = vmul.f32 %v265, %v265
    %v335 = vmul.f32 %v266, %v266
    %v336 = vmul.f32 %v267, %v267
    %v337 = vmul.f32 %v268, %v268
    %v338 = vmul.f32 %v269, %v269
    %v339 = vmul.f32 %v270, %v270
    %v340 = vmul.f32 %v271, %v271
    %v341 = vmul.f32 %v272, %v272
    %v342 = vmul.f32 %v273, %v273
    %v343 = vmul.f32 %v274, %v274
    %v344 = vmul.f32 %v275, %v275
    %v345 = vmul.f32 %v276, %v276
    %v346 = vmul.f32 %v277, %v277
    %v347 = vadd.f32 %v331, %v332
    %v348 = vadd.f32 %v347, %v333
    %v349 = vadd.f32 %v348, %v334
    %v350 = vadd.f32 %v349, %v335
    %v351 = vadd.f32 %v350, %v336
    %v352 = vadd.f32 %v351, %v337
    %v353 = vadd.f32 %v352, %v338
    %v354 = vadd.f32 %v353, %v339
    %v355 = vadd.f32 %v354, %v340
    %v356 = vadd.f32 %v355, %v341
    %v357 = vadd.f32 %v356, %v342
    %v358 = vadd.f32 %v357, %v343
    %v359 = vadd.f32 %v358, %v344
    %v360 = vadd.f32 %v359, %v345
    %v361 = vadd.f32 %v360, %v346
    %v362 = vrot.slane %v361, 4
    %v363 = vadd.f32 %v361, %v362
    %v364 = vrot.slane %v363, 2
    %v365 = vadd.f32 %v363, %v364
    %v366 = vrot.slane %v365, 1
    %v367 = vadd.f32 %v365, %v366
    %368 = vst [vmem:[%s3] sm:$0xff] %v330
    %369 = vst [vmem:[%s4] sm:$0xff] %v367
  $region17: #{resnet_generator_forward.21} parent=0 // pred_fallthru
    _
  // Predicated region
  $region18: #{resnet_generator_forward.21} parent=0 // pred_check
    _
  $region19: #{resnet_generator_forward.21} parent=0 // pred_check_branch
    %371 = sbr.rel (0) target = $region21
  $region20: #{resnet_generator_forward.21} parent=0 // pred_region
    _
  $region21: #{resnet_generator_forward.21} parent=0 // pred_fallthru
    _
  // Predicated region
  $region22: #{resnet_generator_forward.21} parent=0 // pred_check
    _
  $region23: #{resnet_generator_forward.21} parent=0 // pred_check_branch
    %373 = sbr.rel (0) target = $region25
  $region24: #{resnet_generator_forward.21} parent=0 // pred_region
    _
  $region25: #{resnet_generator_forward.21} parent=0 // pred_fallthru
    _
  // Predicated region
  $region26: #{resnet_generator_forward.21} parent=0 // pred_check
    _
  $region27: #{resnet_generator_forward.21} parent=0 // pred_check_branch
    %375 = sbr.rel (0) target = $region29
  $region28: #{resnet_generator_forward.21} parent=0 // pred_region
    _
  $region29: #{resnet_generator_forward.21} parent=0 // pred_fallthru
    _
  // Predicated region
  $region30: #{resnet_generator_forward.21} parent=0 // pred_check
    _
  $region31: #{resnet_generator_forward.21} parent=0 // pred_check_branch
    %377 = sbr.rel (0) target = $region33
  $region32: #{resnet_generator_forward.21} parent=0 // pred_region
    _
  $region33: #{resnet_generator_forward.21} parent=0 // pred_fallthru
    _
  // Predicated region
  $region34: #{resnet_generator_forward.21} parent=0 // pred_check
    _
  $region35: #{resnet_generator_forward.21} parent=0 // pred_check_branch
    %379 = sbr.rel (0) target = $region37
  $region36: #{resnet_generator_forward.21} parent=0 // pred_region
    _
  $region37: #{resnet_generator_forward.21} parent=0 // pred_fallthru
    _
  // Predicated region
  $region38: #{resnet_generator_forward.21} parent=0 // pred_check
    _
  $region39: #{resnet_generator_forward.21} parent=0 // pred_check_branch
    %381 = sbr.rel (0) target = $region41
  $region40: #{resnet_generator_forward.21} parent=0 // pred_region
    _
  $region41: #{resnet_generator_forward.21} parent=0 // pred_fallthru
    _

// kernel: resnet_generator_forward.22
$region0: #{resnet_generator_forward.22}
  #allocation0 [shape = 'u32[]', space=smem, size = 0x4, offset = 0x4, fixed_abs, tag = 'smem constant byte address 0x4 - core index']
  #allocation1 [shape = 'u32[72,128]{1,0:T(1,128)}', space=vmem, size = 0x9000, scoped, tag = 'internal scratch']
  %s0 = inlined_call_operand.vmem [shape: bf16[128,128], index: 0, kind: input, shape index: {}]
  %s1 = inlined_call_operand.vmem [shape: f32[1,128], index: 1, kind: input, shape index: {}]
  %s2 = inlined_call_operand.vmem [shape: f32[1,128], index: 2, kind: input, shape index: {}]
  %s3 = inlined_call_operand.vmem [shape: bf16[128,128], index: 3, kind: output, shape index: {}]
  %s4 = sld [smem:[#allocation0]]
  $region22: #{resnet_generator_forward.22} parent=0
    _
  %s6 = ssub.s32 1, %s4
  %s7 = scalar_select 0, %s6, %s4
  // Predicated region
  $region2: #{resnet_generator_forward.22} parent=0 // pred_check
    _
  $region3: #{resnet_generator_forward.22} parent=0 // pred_check_branch
    %9 = sbr.rel (0) target = $region5
  $region4: #{resnet_generator_forward.22} parent=0 // pred_region
    _
  $region5: #{resnet_generator_forward.22} parent=0 // pred_fallthru
    _
  // Predicated region
  $region6: #{resnet_generator_forward.22} parent=0 // pred_check
    _
  $region7: #{resnet_generator_forward.22} parent=0 // pred_check_branch
    %11 = sbr.rel (0) target = $region9
  $region8: #{resnet_generator_forward.22} parent=0 // pred_region
    _
  $region9: #{resnet_generator_forward.22} parent=0 // pred_fallthru
    _
  // Predicated region
  $region10: #{resnet_generator_forward.22} parent=0 // pred_check
    _
  $region11: #{resnet_generator_forward.22} parent=0 // pred_check_branch
    %13 = sbr.rel (0) target = $region13
  $region12: #{resnet_generator_forward.22} parent=0 // pred_region
    _
  $region13: #{resnet_generator_forward.22} parent=0 // pred_fallthru
    _
  %v14 = vld [vmem:[%s0] sm:$0xf]
  %v15 = vld [vmem:[%s0 + $0x4] sm:$0xf]
  %v16 = vld [vmem:[%s0 + $0x8] sm:$0xf]
  %v17 = vld [vmem:[%s0 + $0xc] sm:$0xf]
  %v18 = vld [vmem:[%s0 + $0x10] sm:$0xf]
  %v19 = vld [vmem:[%s0 + $0x14] sm:$0xf]
  %v20 = vld [vmem:[%s0 + $0x18] sm:$0xf]
  %v21 = vld [vmem:[%s0 + $0x1c] sm:$0xf]
  %v22 = vld [vmem:[%s0 + $0x20] sm:$0xf]
  %v23 = vld [vmem:[%s0 + $0x24] sm:$0xf]
  %v24 = vld [vmem:[%s0 + $0x28] sm:$0xf]
  %v25 = vld [vmem:[%s0 + $0x2c] sm:$0xf]
  %v26 = vld [vmem:[%s0 + $0x30] sm:$0xf]
  %v27 = vld [vmem:[%s0 + $0x34] sm:$0xf]
  %v28 = vld [vmem:[%s0 + $0x38] sm:$0xf]
  %v29 = vld [vmem:[%s0 + $0x3c] sm:$0xf]
  %v30 = vunpack.c.l.bf16 %v14
  %v31 = vunpack.c.l.bf16 %v15
  %v32 = vunpack.c.l.bf16 %v16
  %v33 = vunpack.c.l.bf16 %v17
  %v34 = vunpack.c.l.bf16 %v18
  %v35 = vunpack.c.l.bf16 %v19
  %v36 = vunpack.c.l.bf16 %v20
  %v37 = vunpack.c.l.bf16 %v21
  %v38 = vunpack.c.l.bf16 %v22
  %v39 = vunpack.c.l.bf16 %v23
  %v40 = vunpack.c.l.bf16 %v24
  %v41 = vunpack.c.l.bf16 %v25
  %v42 = vunpack.c.l.bf16 %v26
  %v43 = vunpack.c.l.bf16 %v27
  %v44 = vunpack.c.l.bf16 %v28
  %v45 = vunpack.c.l.bf16 %v29
  %v46 = vld [vmem:[%s1] sm:$0x1]
  %v48 = vperm.slane %v46, 0
  %v50 = vmul.f32 %v30, %v48
  %v51 = vmul.f32 %v31, %v48
  %v52 = vmul.f32 %v32, %v48
  %v53 = vmul.f32 %v33, %v48
  %v54 = vmul.f32 %v34, %v48
  %v55 = vmul.f32 %v35, %v48
  %v56 = vmul.f32 %v36, %v48
  %v57 = vmul.f32 %v37, %v48
  %v58 = vmul.f32 %v38, %v48
  %v59 = vmul.f32 %v39, %v48
  %v60 = vmul.f32 %v40, %v48
  %v61 = vmul.f32 %v41, %v48
  %v62 = vmul.f32 %v42, %v48
  %v63 = vmul.f32 %v43, %v48
  %v64 = vmul.f32 %v44, %v48
  %v65 = vmul.f32 %v45, %v48
  %v66 = vld [vmem:[%s2] sm:$0x1]
  %v68 = vperm.slane %v66, 0
  %v70 = vadd.f32 %v50, %v68
  %v71 = vadd.f32 %v51, %v68
  %v72 = vadd.f32 %v52, %v68
  %v73 = vadd.f32 %v53, %v68
  %v74 = vadd.f32 %v54, %v68
  %v75 = vadd.f32 %v55, %v68
  %v76 = vadd.f32 %v56, %v68
  %v77 = vadd.f32 %v57, %v68
  %v78 = vadd.f32 %v58, %v68
  %v79 = vadd.f32 %v59, %v68
  %v80 = vadd.f32 %v60, %v68
  %v81 = vadd.f32 %v61, %v68
  %v82 = vadd.f32 %v62, %v68
  %v83 = vadd.f32 %v63, %v68
  %v84 = vadd.f32 %v64, %v68
  %v85 = vadd.f32 %v65, %v68
  %v86 = vmax.f32 %v70, 0.0
  %v87 = vmax.f32 %v71, 0.0
  %v88 = vmax.f32 %v72, 0.0
  %v89 = vmax.f32 %v73, 0.0
  %v90 = vmax.f32 %v74, 0.0
  %v91 = vmax.f32 %v75, 0.0
  %v92 = vmax.f32 %v76, 0.0
  %v93 = vmax.f32 %v77, 0.0
  %v94 = vmax.f32 %v78, 0.0
  %v95 = vmax.f32 %v79, 0.0
  %v96 = vmax.f32 %v80, 0.0
  %v97 = vmax.f32 %v81, 0.0
  %v98 = vmax.f32 %v82, 0.0
  %v99 = vmax.f32 %v83, 0.0
  %v100 = vmax.f32 %v84, 0.0
  %v101 = vmax.f32 %v85, 0.0
  %v102 = vpack.c.bf16 %v86, %v86
  %v103 = vpack.c.bf16 %v87, %v87
  %v104 = vpack.c.bf16 %v88, %v88
  %v105 = vpack.c.bf16 %v89, %v89
  %v106 = vpack.c.bf16 %v90, %v90
  %v107 = vpack.c.bf16 %v91, %v91
  %v108 = vpack.c.bf16 %v92, %v92
  %v109 = vpack.c.bf16 %v93, %v93
  %v110 = vpack.c.bf16 %v94, %v94
  %v111 = vpack.c.bf16 %v95, %v95
  %v112 = vpack.c.bf16 %v96, %v96
  %v113 = vpack.c.bf16 %v97, %v97
  %v114 = vpack.c.bf16 %v98, %v98
  %v115 = vpack.c.bf16 %v99, %v99
  %v116 = vpack.c.bf16 %v100, %v100
  %v117 = vpack.c.bf16 %v101, %v101
  %118 = vst [vmem:[%s3] sm:$0xf] %v102
  %119 = vst [vmem:[%s3 + $0x4] sm:$0xf] %v103
  %120 = vst [vmem:[%s3 + $0x8] sm:$0xf] %v104
  %121 = vst [vmem:[%s3 + $0xc] sm:$0xf] %v105
  %122 = vst [vmem:[%s3 + $0x10] sm:$0xf] %v106
  %123 = vst [vmem:[%s3 + $0x14] sm:$0xf] %v107
  %124 = vst [vmem:[%s3 + $0x18] sm:$0xf] %v108
  %125 = vst [vmem:[%s3 + $0x1c] sm:$0xf] %v109
  %126 = vst [vmem:[%s3 + $0x20] sm:$0xf] %v110
  %127 = vst [vmem:[%s3 + $0x24] sm:$0xf] %v111
  %128 = vst [vmem:[%s3 + $0x28] sm:$0xf] %v112
  %129 = vst [vmem:[%s3 + $0x2c] sm:$0xf] %v113
  %130 = vst [vmem:[%s3 + $0x30] sm:$0xf] %v114
  %131 = vst [vmem:[%s3 + $0x34] sm:$0xf] %v115
  %132 = vst [vmem:[%s3 + $0x38] sm:$0xf] %v116
  %133 = vst [vmem:[%s3 + $0x3c] sm:$0xf] %v117
  // Predicated region
  $region14: #{resnet_generator_forward.22} parent=0 // pred_check
    _
  $region15: #{resnet_generator_forward.22} parent=0 // pred_check_branch
    %135 = sbr.rel (0) target = $region17
  $region16: #{resnet_generator_forward.22} parent=0 // pred_region
    _
  $region17: #{resnet_generator_forward.22} parent=0 // pred_fallthru
    _
  // Predicated region
  $region18: #{resnet_generator_forward.22} parent=0 // pred_check
    _
  $region19: #{resnet_generator_forward.22} parent=0 // pred_check_branch
    %137 = sbr.rel (0) target = $region21
  $region20: #{resnet_generator_forward.22} parent=0 // pred_region
    _
  $region21: #{resnet_generator_forward.22} parent=0 // pred_fallthru
    _

// kernel: resnet_generator_forward.24
$region0: #{resnet_generator_forward.24}
  #allocation0 [shape = 'u32[]', space=smem, size = 0x4, offset = 0x4, fixed_abs, tag = 'smem constant byte address 0x4 - core index']
  #allocation1 [shape = 'u32[72,128]{1,0:T(1,128)}', space=vmem, size = 0x9000, scoped, tag = 'internal scratch']
  %s0 = inlined_call_operand.vmem [shape: bf16[32,128], index: 0, kind: input, shape index: {}]
  %s1 = inlined_call_operand.vmem [shape: f32[1,128], index: 1, kind: input, shape index: {}]
  %s2 = inlined_call_operand.vmem [shape: f32[1,128], index: 2, kind: input, shape index: {}]
  %s3 = inlined_call_operand.vmem [shape: bf16[32,128], index: 3, kind: output, shape index: {}]
  %s4 = sld [smem:[#allocation0]]
  $region22: #{resnet_generator_forward.24} parent=0
    _
  %s6 = ssub.s32 1, %s4
  %s7 = scalar_select 0, %s6, %s4
  // Predicated region
  $region2: #{resnet_generator_forward.24} parent=0 // pred_check
    _
  $region3: #{resnet_generator_forward.24} parent=0 // pred_check_branch
    %9 = sbr.rel (0) target = $region5
  $region4: #{resnet_generator_forward.24} parent=0 // pred_region
    _
  $region5: #{resnet_generator_forward.24} parent=0 // pred_fallthru
    _
  // Predicated region
  $region6: #{resnet_generator_forward.24} parent=0 // pred_check
    _
  $region7: #{resnet_generator_forward.24} parent=0 // pred_check_branch
    %11 = sbr.rel (0) target = $region9
  $region8: #{resnet_generator_forward.24} parent=0 // pred_region
    _
  $region9: #{resnet_generator_forward.24} parent=0 // pred_fallthru
    _
  // Predicated region
  $region10: #{resnet_generator_forward.24} parent=0 // pred_check
    _
  $region11: #{resnet_generator_forward.24} parent=0 // pred_check_branch
    %13 = sbr.rel (0) target = $region13
  $region12: #{resnet_generator_forward.24} parent=0 // pred_region
    _
  $region13: #{resnet_generator_forward.24} parent=0 // pred_fallthru
    _
  %v14 = vld [vmem:[%s0] sm:$0xf]
  %v15 = vld [vmem:[%s0 + $0x4] sm:$0xf]
  %v16 = vld [vmem:[%s0 + $0x8] sm:$0xf]
  %v17 = vld [vmem:[%s0 + $0xc] sm:$0xf]
  %v18 = vunpack.c.l.bf16 %v14
  %v19 = vunpack.c.l.bf16 %v15
  %v20 = vunpack.c.l.bf16 %v16
  %v21 = vunpack.c.l.bf16 %v17
  %v22 = vld [vmem:[%s1] sm:$0x1]
  %v24 = vperm.slane %v22, 0
  %v26 = vmul.f32 %v18, %v24
  %v27 = vmul.f32 %v19, %v24
  %v28 = vmul.f32 %v20, %v24
  %v29 = vmul.f32 %v21, %v24
  %v30 = vld [vmem:[%s2] sm:$0x1]
  %v32 = vperm.slane %v30, 0
  %v34 = vadd.f32 %v26, %v32
  %v35 = vadd.f32 %v27, %v32
  %v36 = vadd.f32 %v28, %v32
  %v37 = vadd.f32 %v29, %v32
  %v38 = vmax.f32 %v34, 0.0
  %v39 = vmax.f32 %v35, 0.0
  %v40 = vmax.f32 %v36, 0.0
  %v41 = vmax.f32 %v37, 0.0
  %v42 = vpack.c.bf16 %v38, %v38
  %v43 = vpack.c.bf16 %v39, %v39
  %v44 = vpack.c.bf16 %v40, %v40
  %v45 = vpack.c.bf16 %v41, %v41
  %46 = vst [vmem:[%s3] sm:$0xf] %v42
  %47 = vst [vmem:[%s3 + $0x4] sm:$0xf] %v43
  %48 = vst [vmem:[%s3 + $0x8] sm:$0xf] %v44
  %49 = vst [vmem:[%s3 + $0xc] sm:$0xf] %v45
  // Predicated region
  $region14: #{resnet_generator_forward.24} parent=0 // pred_check
    _
  $region15: #{resnet_generator_forward.24} parent=0 // pred_check_branch
    %51 = sbr.rel (0) target = $region17
  $region16: #{resnet_generator_forward.24} parent=0 // pred_region
    _
  $region17: #{resnet_generator_forward.24} parent=0 // pred_fallthru
    _
  // Predicated region
  $region18: #{resnet_generator_forward.24} parent=0 // pred_check
    _
  $region19: #{resnet_generator_forward.24} parent=0 // pred_check_branch
    %53 = sbr.rel (0) target = $region21
  $region20: #{resnet_generator_forward.24} parent=0 // pred_region
    _
  $region21: #{resnet_generator_forward.24} parent=0 // pred_fallthru
    _

// kernel: resnet_generator_forward.23
$region0: #{resnet_generator_forward.23}
  #allocation0 [shape = 'u32[]', space=smem, size = 0x4, offset = 0x4, fixed_abs, tag = 'smem constant byte address 0x4 - core index']
  #allocation1 [shape = 'u32[72,128]{1,0:T(1,128)}', space=vmem, size = 0x9000, scoped, tag = 'internal scratch']
  #allocation2 [shape = 'f32[32,128]{1,0:T(8,128)}', space=vmem, size = 0x4000, scoped, tag = 'scratch operand']
  %s0 = inlined_call_operand.vmem [shape: bf16[32,256], index: 0, kind: input, shape index: {}]
  %s1 = inlined_call_operand.vmem [shape: bf16[256,128], index: 1, kind: input, shape index: {}]
  %s2 = inlined_call_operand.vmem [shape: bf16[32,128], index: 2, kind: output, shape index: {0}]
  %s3 = inlined_call_operand.vmem [shape: f32[8,128], index: 3, kind: output, shape index: {1}]
  %s4 = inlined_call_operand.vmem [shape: f32[8,128], index: 4, kind: output, shape index: {2}]
  %5 = xla_tuple %s2, %s3, %s4
  %s6 = sld [smem:[#allocation0]]
  $region42: #{resnet_generator_forward.23} parent=0
    _
  %s8 = ssub.s32 1, %s6
  %s9 = scalar_select 0, %s8, %s6
  // Predicated region
  $region2: #{resnet_generator_forward.23} parent=0 // pred_check
    _
  $region3: #{resnet_generator_forward.23} parent=0 // pred_check_branch
    %11 = sbr.rel (0) target = $region5
  $region4: #{resnet_generator_forward.23} parent=0 // pred_region
    _
  $region5: #{resnet_generator_forward.23} parent=0 // pred_fallthru
    _
  // Predicated region
  $region6: #{resnet_generator_forward.23} parent=0 // pred_check
    _
  $region7: #{resnet_generator_forward.23} parent=0 // pred_check_branch
    %13 = sbr.rel (0) target = $region9
  $region8: #{resnet_generator_forward.23} parent=0 // pred_region
    _
  $region9: #{resnet_generator_forward.23} parent=0 // pred_fallthru
    _
  %p14 = scmp.eq.s32.totalorder 0, 0
  // Predicated region
  $region10: #{resnet_generator_forward.23} parent=0 // pred_check
    %p15 = pneg %p14
  $region11: #{resnet_generator_forward.23} parent=0 // pred_check_branch
    %17 = sbr.rel (%p15) target = $region13
  $region12: #{resnet_generator_forward.23} parent=0 // pred_region
    %18 = vst [vmem:[#allocation2] sm:$0xff] 0.0
    %19 = vst [vmem:[#allocation2 + $0x8] sm:$0xff] 0.0
    %20 = vst [vmem:[#allocation2 + $0x10] sm:$0xff] 0.0
    %21 = vst [vmem:[#allocation2 + $0x18] sm:$0xff] 0.0
  $region13: #{resnet_generator_forward.23} parent=0 // pred_fallthru
    _
  %v22 = vld [vmem:[#allocation2] sm:$0xff]
  %v23 = vld [vmem:[#allocation2 + $0x8] sm:$0xff]
  %v24 = vld [vmem:[#allocation2 + $0x10] sm:$0xff]
  %v25 = vld [vmem:[#allocation2 + $0x18] sm:$0xff]
  %v26 = vld [vmem:[%s0] sm:$0xff]
  %v27 = vld [vmem:[%s0 + $0x8] sm:$0xff]
  %v28 = vld [vmem:[%s0 + $0x10] sm:$0xff]
  %v29 = vld [vmem:[%s0 + $0x18] sm:$0xff]
  %v30 = vld [vmem:[%s1] sm:$0xf]
  %v31 = vld [vmem:[%s1 + $0x4] sm:$0xf]
  %v32 = vld [vmem:[%s1 + $0x8] sm:$0xf]
  %v33 = vld [vmem:[%s1 + $0xc] sm:$0xf]
  %v34 = vld [vmem:[%s1 + $0x10] sm:$0xf]
  %v35 = vld [vmem:[%s1 + $0x14] sm:$0xf]
  %v36 = vld [vmem:[%s1 + $0x18] sm:$0xf]
  %v37 = vld [vmem:[%s1 + $0x1c] sm:$0xf]
  %v38 = vld [vmem:[%s1 + $0x20] sm:$0xf]
  %v39 = vld [vmem:[%s1 + $0x24] sm:$0xf]
  %v40 = vld [vmem:[%s1 + $0x28] sm:$0xf]
  %v41 = vld [vmem:[%s1 + $0x2c] sm:$0xf]
  %v42 = vld [vmem:[%s1 + $0x30] sm:$0xf]
  %v43 = vld [vmem:[%s1 + $0x34] sm:$0xf]
  %v44 = vld [vmem:[%s1 + $0x38] sm:$0xf]
  %v45 = vld [vmem:[%s1 + $0x3c] sm:$0xf]
  %v46 = vld [vmem:[%s1 + $0x40] sm:$0xf]
  %v47 = vld [vmem:[%s1 + $0x44] sm:$0xf]
  %v48 = vld [vmem:[%s1 + $0x48] sm:$0xf]
  %v49 = vld [vmem:[%s1 + $0x4c] sm:$0xf]
  %v50 = vld [vmem:[%s1 + $0x50] sm:$0xf]
  %v51 = vld [vmem:[%s1 + $0x54] sm:$0xf]
  %v52 = vld [vmem:[%s1 + $0x58] sm:$0xf]
  %v53 = vld [vmem:[%s1 + $0x5c] sm:$0xf]
  %v54 = vld [vmem:[%s1 + $0x60] sm:$0xf]
  %v55 = vld [vmem:[%s1 + $0x64] sm:$0xf]
  %v56 = vld [vmem:[%s1 + $0x68] sm:$0xf]
  %v57 = vld [vmem:[%s1 + $0x6c] sm:$0xf]
  %v58 = vld [vmem:[%s1 + $0x70] sm:$0xf]
  %v59 = vld [vmem:[%s1 + $0x74] sm:$0xf]
  %v60 = vld [vmem:[%s1 + $0x78] sm:$0xf]
  %v61 = vld [vmem:[%s1 + $0x7c] sm:$0xf]
  %v66 = vunpack.c.l.b16 %v26
  %v67 = vunpack.c.h.b16 %v26
  %v68 = vunpack.c.l.b16 %v27
  %v69 = vunpack.c.h.b16 %v27
  %v70 = vunpack.c.l.b16 %v28
  %v71 = vunpack.c.h.b16 %v28
  %v72 = vunpack.c.l.b16 %v29
  %v73 = vunpack.c.h.b16 %v29
  %v74 = vpack.c.b16 %v68, %v66
  %v75 = vpack.c.b16 %v69, %v67
  %v76 = vpack.c.b16 %v72, %v70
  %v77 = vpack.c.b16 %v73, %v71
  %v114 = vunpack.c.l.b16 %v30
  %v115 = vunpack.c.l.b16 %v31
  %v116 = vunpack.c.l.b16 %v32
  %v117 = vunpack.c.l.b16 %v33
  %v118 = vunpack.c.l.b16 %v34
  %v119 = vunpack.c.l.b16 %v35
  %v120 = vunpack.c.l.b16 %v36
  %v121 = vunpack.c.l.b16 %v37
  %v122 = vunpack.c.l.b16 %v38
  %v123 = vunpack.c.l.b16 %v39
  %v124 = vunpack.c.l.b16 %v40
  %v125 = vunpack.c.l.b16 %v41
  %v126 = vunpack.c.l.b16 %v42
  %v127 = vunpack.c.l.b16 %v43
  %v128 = vunpack.c.l.b16 %v44
  %v129 = vunpack.c.l.b16 %v45
  %v130 = vunpack.c.l.b16 %v46
  %v131 = vunpack.c.l.b16 %v47
  %v132 = vunpack.c.l.b16 %v48
  %v133 = vunpack.c.l.b16 %v49
  %v134 = vunpack.c.l.b16 %v50
  %v135 = vunpack.c.l.b16 %v51
  %v136 = vunpack.c.l.b16 %v52
  %v137 = vunpack.c.l.b16 %v53
  %v138 = vunpack.c.l.b16 %v54
  %v139 = vunpack.c.l.b16 %v55
  %v140 = vunpack.c.l.b16 %v56
  %v141 = vunpack.c.l.b16 %v57
  %v142 = vunpack.c.l.b16 %v58
  %v143 = vunpack.c.l.b16 %v59
  %v144 = vunpack.c.l.b16 %v60
  %v145 = vunpack.c.l.b16 %v61
  %v146 = vpack.c.b16 %v115, %v114
  %v147 = vpack.c.b16 %v117, %v116
  %v148 = vpack.c.b16 %v119, %v118
  %v149 = vpack.c.b16 %v121, %v120
  %v150 = vpack.c.b16 %v123, %v122
  %v151 = vpack.c.b16 %v125, %v124
  %v152 = vpack.c.b16 %v127, %v126
  %v153 = vpack.c.b16 %v129, %v128
  %v154 = vpack.c.b16 %v131, %v130
  %v155 = vpack.c.b16 %v133, %v132
  %v156 = vpack.c.b16 %v135, %v134
  %v157 = vpack.c.b16 %v137, %v136
  %v158 = vpack.c.b16 %v139, %v138
  %v159 = vpack.c.b16 %v141, %v140
  %v160 = vpack.c.b16 %v143, %v142
  %v161 = vpack.c.b16 %v145, %v144
  %178 = vmatpush.bf16.msra.mxu0 %v153
  %179 = vmatpush.bf16.msra.mxu0 %v152
  %180 = vmatpush.bf16.msra.mxu0 %v151
  %181 = vmatpush.bf16.msra.mxu0 %v150
  %182 = vmatpush.bf16.msra.mxu0 %v149
  %183 = vmatpush.bf16.msra.mxu0 %v148
  %184 = vmatpush.bf16.msra.mxu0 %v147
  %185 = vmatpush.bf16.msra.mxu0 %v146
  %186 = vmatmul.bf16.gmra.mxu0 %v74
  %v187 = vpop.f32.mrf.mxu0
  %v188 = vadd.f32 0.0, %v187
  %v189 = vpop.f32.mrf.mxu0
  %v190 = vadd.f32 0.0, %v189
  %191 = vmatmul.bf16.gmra.mxu0 %v76
  %v192 = vpop.f32.mrf.mxu0
  %v193 = vadd.f32 0.0, %v192
  %v194 = vpop.f32.mrf.mxu0
  %v195 = vadd.f32 0.0, %v194
  %196 = vdwg.mxu0
  %197 = vmatpush.bf16.msra.mxu0 %v161
  %198 = vmatpush.bf16.msra.mxu0 %v160
  %199 = vmatpush.bf16.msra.mxu0 %v159
  %200 = vmatpush.bf16.msra.mxu0 %v158
  %201 = vmatpush.bf16.msra.mxu0 %v157
  %202 = vmatpush.bf16.msra.mxu0 %v156
  %203 = vmatpush.bf16.msra.mxu0 %v155
  %204 = vmatpush.bf16.msra.mxu0 %v154
  %205 = vmatmul.bf16.gmra.mxu0 %v75
  %v206 = vpop.f32.mrf.mxu0
  %v207 = vadd.f32 %v188, %v206
  %v208 = vpop.f32.mrf.mxu0
  %v209 = vadd.f32 %v190, %v208
  %210 = vmatmul.bf16.gmra.mxu0 %v77
  %v211 = vpop.f32.mrf.mxu0
  %v212 = vadd.f32 %v193, %v211
  %v213 = vpop.f32.mrf.mxu0
  %v214 = vadd.f32 %v195, %v213
  %215 = vdwg.mxu0
  %v216 = vadd.f32 %v22, %v207
  %v217 = vadd.f32 %v23, %v209
  %v218 = vadd.f32 %v24, %v212
  %v219 = vadd.f32 %v25, %v214
  %220 = vst [vmem:[#allocation2] sm:$0xff] %v216
  %221 = vst [vmem:[#allocation2 + $0x8] sm:$0xff] %v217
  %222 = vst [vmem:[#allocation2 + $0x10] sm:$0xff] %v218
  %223 = vst [vmem:[#allocation2 + $0x18] sm:$0xff] %v219
  // Predicated region
  $region14: #{resnet_generator_forward.23} parent=0 // pred_check
    %p224 = pneg %p14
  $region15: #{resnet_generator_forward.23} parent=0 // pred_check_branch
    %226 = sbr.rel (%p224) target = $region17
  $region16: #{resnet_generator_forward.23} parent=0 // pred_region
    %v227 = vld [vmem:[#allocation2] sm:$0xff]
    %v228 = vld [vmem:[#allocation2 + $0x8] sm:$0xff]
    %v229 = vld [vmem:[#allocation2 + $0x10] sm:$0xff]
    %v230 = vld [vmem:[#allocation2 + $0x18] sm:$0xff]
    %v231 = vpack.c.bf16 %v227, %v227
    %v232 = vpack.c.bf16 %v228, %v228
    %v233 = vpack.c.bf16 %v229, %v229
    %v234 = vpack.c.bf16 %v230, %v230
    %235 = vst [vmem:[%s2] sm:$0xf] %v231
    %236 = vst [vmem:[%s2 + $0x4] sm:$0xf] %v232
    %237 = vst [vmem:[%s2 + $0x8] sm:$0xf] %v233
    %238 = vst [vmem:[%s2 + $0xc] sm:$0xf] %v234
    %v239 = vadd.f32 %v227, %v228
    %v240 = vadd.f32 %v239, %v229
    %v241 = vadd.f32 %v240, %v230
    %v242 = vrot.slane %v241, 4
    %v243 = vadd.f32 %v241, %v242
    %v244 = vrot.slane %v243, 2
    %v245 = vadd.f32 %v243, %v244
    %v246 = vrot.slane %v245, 1
    %v247 = vadd.f32 %v245, %v246
    %v248 = vmul.f32 %v227, %v227
    %v249 = vmul.f32 %v228, %v228
    %v250 = vmul.f32 %v229, %v229
    %v251 = vmul.f32 %v230, %v230
    %v252 = vadd.f32 %v248, %v249
    %v253 = vadd.f32 %v252, %v250
    %v254 = vadd.f32 %v253, %v251
    %v255 = vrot.slane %v254, 4
    %v256 = vadd.f32 %v254, %v255
    %v257 = vrot.slane %v256, 2
    %v258 = vadd.f32 %v256, %v257
    %v259 = vrot.slane %v258, 1
    %v260 = vadd.f32 %v258, %v259
    %261 = vst [vmem:[%s3] sm:$0xff] %v247
    %262 = vst [vmem:[%s4] sm:$0xff] %v260
  $region17: #{resnet_generator_forward.23} parent=0 // pred_fallthru
    _
  // Predicated region
  $region18: #{resnet_generator_forward.23} parent=0 // pred_check
    _
  $region19: #{resnet_generator_forward.23} parent=0 // pred_check_branch
    %264 = sbr.rel (0) target = $region21
  $region20: #{resnet_generator_forward.23} parent=0 // pred_region
    _
  $region21: #{resnet_generator_forward.23} parent=0 // pred_fallthru
    _
  // Predicated region
  $region22: #{resnet_generator_forward.23} parent=0 // pred_check
    _
  $region23: #{resnet_generator_forward.23} parent=0 // pred_check_branch
    %266 = sbr.rel (0) target = $region25
  $region24: #{resnet_generator_forward.23} parent=0 // pred_region
    _
  $region25: #{resnet_generator_forward.23} parent=0 // pred_fallthru
    _
  // Predicated region
  $region26: #{resnet_generator_forward.23} parent=0 // pred_check
    _
  $region27: #{resnet_generator_forward.23} parent=0 // pred_check_branch
    %268 = sbr.rel (0) target = $region29
  $region28: #{resnet_generator_forward.23} parent=0 // pred_region
    _
  $region29: #{resnet_generator_forward.23} parent=0 // pred_fallthru
    _
  // Predicated region
  $region30: #{resnet_generator_forward.23} parent=0 // pred_check
    _
  $region31: #{resnet_generator_forward.23} parent=0 // pred_check_branch
    %270 = sbr.rel (0) target = $region33
  $region32: #{resnet_generator_forward.23} parent=0 // pred_region
    _
  $region33: #{resnet_generator_forward.23} parent=0 // pred_fallthru
    _
  // Predicated region
  $region34: #{resnet_generator_forward.23} parent=0 // pred_check
    _
  $region35: #{resnet_generator_forward.23} parent=0 // pred_check_branch
    %272 = sbr.rel (0) target = $region37
  $region36: #{resnet_generator_forward.23} parent=0 // pred_region
    _
  $region37: #{resnet_generator_forward.23} parent=0 // pred_fallthru
    _
  // Predicated region
  $region38: #{resnet_generator_forward.23} parent=0 // pred_check
    _
  $region39: #{resnet_generator_forward.23} parent=0 // pred_check_branch
    %274 = sbr.rel (0) target = $region41
  $region40: #{resnet_generator_forward.23} parent=0 // pred_region
    _
  $region41: #{resnet_generator_forward.23} parent=0 // pred_fallthru
    _

// kernel: resnet_generator_forward.28
$region0: #{resnet_generator_forward.28}
  #allocation0 [shape = 'u32[]', space=smem, size = 0x4, offset = 0x4, fixed_abs, tag = 'smem constant byte address 0x4 - core index']
  #allocation1 [shape = 'u32[72,128]{1,0:T(1,128)}', space=vmem, size = 0x9000, scoped, tag = 'internal scratch']
  %s0 = inlined_call_operand.vmem [shape: bf16[32,128], index: 0, kind: input, shape index: {}]
  %s1 = inlined_call_operand.vmem [shape: f32[1,128], index: 1, kind: input, shape index: {}]
  %s2 = inlined_call_operand.vmem [shape: f32[1,128], index: 2, kind: input, shape index: {}]
  %s3 = inlined_call_operand.vmem [shape: bf16[32,128], index: 3, kind: input, shape index: {}]
  %s4 = inlined_call_operand.vmem [shape: bf16[32,128], index: 4, kind: output, shape index: {}]
  %s5 = sld [smem:[#allocation0]]
  $region26: #{resnet_generator_forward.28} parent=0
    _
  %s7 = ssub.s32 1, %s5
  %s8 = scalar_select 0, %s7, %s5
  // Predicated region
  $region2: #{resnet_generator_forward.28} parent=0 // pred_check
    _
  $region3: #{resnet_generator_forward.28} parent=0 // pred_check_branch
    %10 = sbr.rel (0) target = $region5
  $region4: #{resnet_generator_forward.28} parent=0 // pred_region
    _
  $region5: #{resnet_generator_forward.28} parent=0 // pred_fallthru
    _
  // Predicated region
  $region6: #{resnet_generator_forward.28} parent=0 // pred_check
    _
  $region7: #{resnet_generator_forward.28} parent=0 // pred_check_branch
    %12 = sbr.rel (0) target = $region9
  $region8: #{resnet_generator_forward.28} parent=0 // pred_region
    _
  $region9: #{resnet_generator_forward.28} parent=0 // pred_fallthru
    _
  // Predicated region
  $region10: #{resnet_generator_forward.28} parent=0 // pred_check
    _
  $region11: #{resnet_generator_forward.28} parent=0 // pred_check_branch
    %14 = sbr.rel (0) target = $region13
  $region12: #{resnet_generator_forward.28} parent=0 // pred_region
    _
  $region13: #{resnet_generator_forward.28} parent=0 // pred_fallthru
    _
  // Predicated region
  $region14: #{resnet_generator_forward.28} parent=0 // pred_check
    _
  $region15: #{resnet_generator_forward.28} parent=0 // pred_check_branch
    %16 = sbr.rel (0) target = $region17
  $region16: #{resnet_generator_forward.28} parent=0 // pred_region
    _
  $region17: #{resnet_generator_forward.28} parent=0 // pred_fallthru
    _
  %v17 = vld [vmem:[%s0] sm:$0xf]
  %v18 = vld [vmem:[%s0 + $0x4] sm:$0xf]
  %v19 = vld [vmem:[%s0 + $0x8] sm:$0xf]
  %v20 = vld [vmem:[%s0 + $0xc] sm:$0xf]
  %v21 = vunpack.c.l.bf16 %v17
  %v22 = vunpack.c.l.bf16 %v18
  %v23 = vunpack.c.l.bf16 %v19
  %v24 = vunpack.c.l.bf16 %v20
  %v25 = vld [vmem:[%s1] sm:$0x1]
  %v27 = vperm.slane %v25, 0
  %v29 = vmul.f32 %v21, %v27
  %v30 = vmul.f32 %v22, %v27
  %v31 = vmul.f32 %v23, %v27
  %v32 = vmul.f32 %v24, %v27
  %v33 = vld [vmem:[%s2] sm:$0x1]
  %v35 = vperm.slane %v33, 0
  %v37 = vadd.f32 %v29, %v35
  %v38 = vadd.f32 %v30, %v35
  %v39 = vadd.f32 %v31, %v35
  %v40 = vadd.f32 %v32, %v35
  %v41 = vld [vmem:[%s3] sm:$0xf]
  %v42 = vld [vmem:[%s3 + $0x4] sm:$0xf]
  %v43 = vld [vmem:[%s3 + $0x8] sm:$0xf]
  %v44 = vld [vmem:[%s3 + $0xc] sm:$0xf]
  %v45 = vunpack.c.l.bf16 %v41
  %v46 = vunpack.c.l.bf16 %v42
  %v47 = vunpack.c.l.bf16 %v43
  %v48 = vunpack.c.l.bf16 %v44
  %v49 = vadd.f32 %v37, %v45
  %v50 = vadd.f32 %v38, %v46
  %v51 = vadd.f32 %v39, %v47
  %v52 = vadd.f32 %v40, %v48
  %v53 = vpack.c.bf16 %v49, %v49
  %v54 = vpack.c.bf16 %v50, %v50
  %v55 = vpack.c.bf16 %v51, %v51
  %v56 = vpack.c.bf16 %v52, %v52
  %57 = vst [vmem:[%s4] sm:$0xf] %v53
  %58 = vst [vmem:[%s4 + $0x4] sm:$0xf] %v54
  %59 = vst [vmem:[%s4 + $0x8] sm:$0xf] %v55
  %60 = vst [vmem:[%s4 + $0xc] sm:$0xf] %v56
  // Predicated region
  $region18: #{resnet_generator_forward.28} parent=0 // pred_check
    _
  $region19: #{resnet_generator_forward.28} parent=0 // pred_check_branch
    %62 = sbr.rel (0) target = $region21
  $region20: #{resnet_generator_forward.28} parent=0 // pred_region
    _
  $region21: #{resnet_generator_forward.28} parent=0 // pred_fallthru
    _
  // Predicated region
  $region22: #{resnet_generator_forward.28} parent=0 // pred_check
    _
  $region23: #{resnet_generator_forward.28} parent=0 // pred_check_branch
    %64 = sbr.rel (0) target = $region25
  $region24: #{resnet_generator_forward.28} parent=0 // pred_region
    _
  $region25: #{resnet_generator_forward.28} parent=0 // pred_fallthru
    _

// kernel: resnet_generator_forward.25
$region0: #{resnet_generator_forward.25}
  #allocation0 [shape = 'u32[]', space=smem, size = 0x4, offset = 0x4, fixed_abs, tag = 'smem constant byte address 0x4 - core index']
  #allocation1 [shape = 'u32[72,128]{1,0:T(1,128)}', space=vmem, size = 0x9000, scoped, tag = 'internal scratch']
  #allocation2 [shape = 'f32[32,128]{1,0:T(8,128)}', space=vmem, size = 0x4000, scoped, tag = 'scratch operand']
  %s0 = inlined_call_operand.vmem [shape: bf16[32,384], index: 0, kind: input, shape index: {}]
  %s1 = inlined_call_operand.vmem [shape: bf16[384,128], index: 1, kind: input, shape index: {}]
  %s2 = inlined_call_operand.vmem [shape: bf16[32,128], index: 2, kind: output, shape index: {0}]
  %s3 = inlined_call_operand.vmem [shape: f32[8,128], index: 3, kind: output, shape index: {1}]
  %s4 = inlined_call_operand.vmem [shape: f32[8,128], index: 4, kind: output, shape index: {2}]
  %5 = xla_tuple %s2, %s3, %s4
  %s6 = sld [smem:[#allocation0]]
  $region42: #{resnet_generator_forward.25} parent=0
    _
  %s8 = ssub.s32 1, %s6
  %s9 = scalar_select 0, %s8, %s6
  // Predicated region
  $region2: #{resnet_generator_forward.25} parent=0 // pred_check
    _
  $region3: #{resnet_generator_forward.25} parent=0 // pred_check_branch
    %11 = sbr.rel (0) target = $region5
  $region4: #{resnet_generator_forward.25} parent=0 // pred_region
    _
  $region5: #{resnet_generator_forward.25} parent=0 // pred_fallthru
    _
  // Predicated region
  $region6: #{resnet_generator_forward.25} parent=0 // pred_check
    _
  $region7: #{resnet_generator_forward.25} parent=0 // pred_check_branch
    %13 = sbr.rel (0) target = $region9
  $region8: #{resnet_generator_forward.25} parent=0 // pred_region
    _
  $region9: #{resnet_generator_forward.25} parent=0 // pred_fallthru
    _
  %p14 = scmp.eq.s32.totalorder 0, 0
  // Predicated region
  $region10: #{resnet_generator_forward.25} parent=0 // pred_check
    %p15 = pneg %p14
  $region11: #{resnet_generator_forward.25} parent=0 // pred_check_branch
    %17 = sbr.rel (%p15) target = $region13
  $region12: #{resnet_generator_forward.25} parent=0 // pred_region
    %18 = vst [vmem:[#allocation2] sm:$0xff] 0.0
    %19 = vst [vmem:[#allocation2 + $0x8] sm:$0xff] 0.0
    %20 = vst [vmem:[#allocation2 + $0x10] sm:$0xff] 0.0
    %21 = vst [vmem:[#allocation2 + $0x18] sm:$0xff] 0.0
  $region13: #{resnet_generator_forward.25} parent=0 // pred_fallthru
    _
  %v22 = vld [vmem:[#allocation2] sm:$0xff]
  %v23 = vld [vmem:[#allocation2 + $0x8] sm:$0xff]
  %v24 = vld [vmem:[#allocation2 + $0x10] sm:$0xff]
  %v25 = vld [vmem:[#allocation2 + $0x18] sm:$0xff]
  %v26 = vld [vmem:[%s0] sm:$0xff]
  %v27 = vld [vmem:[%s0 + $0x8] sm:$0xf]
  %v28 = vld [vmem:[%s0 + $0xc] sm:$0xff]
  %v29 = vld [vmem:[%s0 + $0x14] sm:$0xf]
  %v30 = vld [vmem:[%s0 + $0x18] sm:$0xff]
  %v31 = vld [vmem:[%s0 + $0x20] sm:$0xf]
  %v32 = vld [vmem:[%s0 + $0x24] sm:$0xff]
  %v33 = vld [vmem:[%s0 + $0x2c] sm:$0xf]
  %v34 = vld [vmem:[%s1] sm:$0xf]
  %v35 = vld [vmem:[%s1 + $0x4] sm:$0xf]
  %v36 = vld [vmem:[%s1 + $0x8] sm:$0xf]
  %v37 = vld [vmem:[%s1 + $0xc] sm:$0xf]
  %v38 = vld [vmem:[%s1 + $0x10] sm:$0xf]
  %v39 = vld [vmem:[%s1 + $0x14] sm:$0xf]
  %v40 = vld [vmem:[%s1 + $0x18] sm:$0xf]
  %v41 = vld [vmem:[%s1 + $0x1c] sm:$0xf]
  %v42 = vld [vmem:[%s1 + $0x20] sm:$0xf]
  %v43 = vld [vmem:[%s1 + $0x24] sm:$0xf]
  %v44 = vld [vmem:[%s1 + $0x28] sm:$0xf]
  %v45 = vld [vmem:[%s1 + $0x2c] sm:$0xf]
  %v46 = vld [vmem:[%s1 + $0x30] sm:$0xf]
  %v47 = vld [vmem:[%s1 + $0x34] sm:$0xf]
  %v48 = vld [vmem:[%s1 + $0x38] sm:$0xf]
  %v49 = vld [vmem:[%s1 + $0x3c] sm:$0xf]
  %v50 = vld [vmem:[%s1 + $0x40] sm:$0xf]
  %v51 = vld [vmem:[%s1 + $0x44] sm:$0xf]
  %v52 = vld [vmem:[%s1 + $0x48] sm:$0xf]
  %v53 = vld [vmem:[%s1 + $0x4c] sm:$0xf]
  %v54 = vld [vmem:[%s1 + $0x50] sm:$0xf]
  %v55 = vld [vmem:[%s1 + $0x54] sm:$0xf]
  %v56 = vld [vmem:[%s1 + $0x58] sm:$0xf]
  %v57 = vld [vmem:[%s1 + $0x5c] sm:$0xf]
  %v58 = vld [vmem:[%s1 + $0x60] sm:$0xf]
  %v59 = vld [vmem:[%s1 + $0x64] sm:$0xf]
  %v60 = vld [vmem:[%s1 + $0x68] sm:$0xf]
  %v61 = vld [vmem:[%s1 + $0x6c] sm:$0xf]
  %v62 = vld [vmem:[%s1 + $0x70] sm:$0xf]
  %v63 = vld [vmem:[%s1 + $0x74] sm:$0xf]
  %v64 = vld [vmem:[%s1 + $0x78] sm:$0xf]
  %v65 = vld [vmem:[%s1 + $0x7c] sm:$0xf]
  %v66 = vld [vmem:[%s1 + $0x80] sm:$0xf]
  %v67 = vld [vmem:[%s1 + $0x84] sm:$0xf]
  %v68 = vld [vmem:[%s1 + $0x88] sm:$0xf]
  %v69 = vld [vmem:[%s1 + $0x8c] sm:$0xf]
  %v70 = vld [vmem:[%s1 + $0x90] sm:$0xf]
  %v71 = vld [vmem:[%s1 + $0x94] sm:$0xf]
  %v72 = vld [vmem:[%s1 + $0x98] sm:$0xf]
  %v73 = vld [vmem:[%s1 + $0x9c] sm:$0xf]
  %v74 = vld [vmem:[%s1 + $0xa0] sm:$0xf]
  %v75 = vld [vmem:[%s1 + $0xa4] sm:$0xf]
  %v76 = vld [vmem:[%s1 + $0xa8] sm:$0xf]
  %v77 = vld [vmem:[%s1 + $0xac] sm:$0xf]
  %v78 = vld [vmem:[%s1 + $0xb0] sm:$0xf]
  %v79 = vld [vmem:[%s1 + $0xb4] sm:$0xf]
  %v80 = vld [vmem:[%s1 + $0xb8] sm:$0xf]
  %v81 = vld [vmem:[%s1 + $0xbc] sm:$0xf]
  %v90 = vunpack.c.l.b16 %v26
  %v91 = vunpack.c.h.b16 %v26
  %v92 = vunpack.c.l.b16 %v27
  %v93 = vunpack.c.l.b16 %v28
  %v94 = vunpack.c.h.b16 %v28
  %v95 = vunpack.c.l.b16 %v29
  %v96 = vunpack.c.l.b16 %v30
  %v97 = vunpack.c.h.b16 %v30
  %v98 = vunpack.c.l.b16 %v31
  %v99 = vunpack.c.l.b16 %v32
  %v100 = vunpack.c.h.b16 %v32
  %v101 = vunpack.c.l.b16 %v33
  %v102 = vpack.c.b16 %v93, %v90
  %v103 = vpack.c.b16 %v94, %v91
  %v104 = vpack.c.b16 %v95, %v92
  %v105 = vpack.c.b16 %v99, %v96
  %v106 = vpack.c.b16 %v100, %v97
  %v107 = vpack.c.b16 %v101, %v98
  %v162 = vunpack.c.l.b16 %v34
  %v163 = vunpack.c.l.b16 %v35
  %v164 = vunpack.c.l.b16 %v36
  %v165 = vunpack.c.l.b16 %v37
  %v166 = vunpack.c.l.b16 %v38
  %v167 = vunpack.c.l.b16 %v39
  %v168 = vunpack.c.l.b16 %v40
  %v169 = vunpack.c.l.b16 %v41
  %v170 = vunpack.c.l.b16 %v42
  %v171 = vunpack.c.l.b16 %v43
  %v172 = vunpack.c.l.b16 %v44
  %v173 = vunpack.c.l.b16 %v45
  %v174 = vunpack.c.l.b16 %v46
  %v175 = vunpack.c.l.b16 %v47
  %v176 = vunpack.c.l.b16 %v48
  %v177 = vunpack.c.l.b16 %v49
  %v178 = vunpack.c.l.b16 %v50
  %v179 = vunpack.c.l.b16 %v51
  %v180 = vunpack.c.l.b16 %v52
  %v181 = vunpack.c.l.b16 %v53
  %v182 = vunpack.c.l.b16 %v54
  %v183 = vunpack.c.l.b16 %v55
  %v184 = vunpack.c.l.b16 %v56
  %v185 = vunpack.c.l.b16 %v57
  %v186 = vunpack.c.l.b16 %v58
  %v187 = vunpack.c.l.b16 %v59
  %v188 = vunpack.c.l.b16 %v60
  %v189 = vunpack.c.l.b16 %v61
  %v190 = vunpack.c.l.b16 %v62
  %v191 = vunpack.c.l.b16 %v63
  %v192 = vunpack.c.l.b16 %v64
  %v193 = vunpack.c.l.b16 %v65
  %v194 = vunpack.c.l.b16 %v66
  %v195 = vunpack.c.l.b16 %v67
  %v196 = vunpack.c.l.b16 %v68
  %v197 = vunpack.c.l.b16 %v69
  %v198 = vunpack.c.l.b16 %v70
  %v199 = vunpack.c.l.b16 %v71
  %v200 = vunpack.c.l.b16 %v72
  %v201 = vunpack.c.l.b16 %v73
  %v202 = vunpack.c.l.b16 %v74
  %v203 = vunpack.c.l.b16 %v75
  %v204 = vunpack.c.l.b16 %v76
  %v205 = vunpack.c.l.b16 %v77
  %v206 = vunpack.c.l.b16 %v78
  %v207 = vunpack.c.l.b16 %v79
  %v208 = vunpack.c.l.b16 %v80
  %v209 = vunpack.c.l.b16 %v81
  %v210 = vpack.c.b16 %v163, %v162
  %v211 = vpack.c.b16 %v165, %v164
  %v212 = vpack.c.b16 %v167, %v166
  %v213 = vpack.c.b16 %v169, %v168
  %v214 = vpack.c.b16 %v171, %v170
  %v215 = vpack.c.b16 %v173, %v172
  %v216 = vpack.c.b16 %v175, %v174
  %v217 = vpack.c.b16 %v177, %v176
  %v218 = vpack.c.b16 %v179, %v178
  %v219 = vpack.c.b16 %v181, %v180
  %v220 = vpack.c.b16 %v183, %v182
  %v221 = vpack.c.b16 %v185, %v184
  %v222 = vpack.c.b16 %v187, %v186
  %v223 = vpack.c.b16 %v189, %v188
  %v224 = vpack.c.b16 %v191, %v190
  %v225 = vpack.c.b16 %v193, %v192
  %v226 = vpack.c.b16 %v195, %v194
  %v227 = vpack.c.b16 %v197, %v196
  %v228 = vpack.c.b16 %v199, %v198
  %v229 = vpack.c.b16 %v201, %v200
  %v230 = vpack.c.b16 %v203, %v202
  %v231 = vpack.c.b16 %v205, %v204
  %v232 = vpack.c.b16 %v207, %v206
  %v233 = vpack.c.b16 %v209, %v208
  %258 = vmatpush.bf16.msra.mxu0 %v217
  %259 = vmatpush.bf16.msra.mxu0 %v216
  %260 = vmatpush.bf16.msra.mxu0 %v215
  %261 = vmatpush.bf16.msra.mxu0 %v214
  %262 = vmatpush.bf16.msra.mxu0 %v213
  %263 = vmatpush.bf16.msra.mxu0 %v212
  %264 = vmatpush.bf16.msra.mxu0 %v211
  %265 = vmatpush.bf16.msra.mxu0 %v210
  %266 = vmatmul.bf16.gmra.mxu0 %v102
  %v267 = vpop.f32.mrf.mxu0
  %v268 = vadd.f32 0.0, %v267
  %v269 = vpop.f32.mrf.mxu0
  %v270 = vadd.f32 0.0, %v269
  %271 = vmatmul.bf16.gmra.mxu0 %v105
  %v272 = vpop.f32.mrf.mxu0
  %v273 = vadd.f32 0.0, %v272
  %v274 = vpop.f32.mrf.mxu0
  %v275 = vadd.f32 0.0, %v274
  %276 = vdwg.mxu0
  %277 = vmatpush.bf16.msra.mxu0 %v225
  %278 = vmatpush.bf16.msra.mxu0 %v224
  %279 = vmatpush.bf16.msra.mxu0 %v223
  %280 = vmatpush.bf16.msra.mxu0 %v222
  %281 = vmatpush.bf16.msra.mxu0 %v221
  %282 = vmatpush.bf16.msra.mxu0 %v220
  %283 = vmatpush.bf16.msra.mxu0 %v219
  %284 = vmatpush.bf16.msra.mxu0 %v218
  %285 = vmatmul.bf16.gmra.mxu0 %v103
  %v286 = vpop.f32.mrf.mxu0
  %v287 = vadd.f32 %v268, %v286
  %v288 = vpop.f32.mrf.mxu0
  %v289 = vadd.f32 %v270, %v288
  %290 = vmatmul.bf16.gmra.mxu0 %v106
  %v291 = vpop.f32.mrf.mxu0
  %v292 = vadd.f32 %v273, %v291
  %v293 = vpop.f32.mrf.mxu0
  %v294 = vadd.f32 %v275, %v293
  %295 = vdwg.mxu0
  %296 = vmatpush.bf16.msra.mxu0 %v233
  %297 = vmatpush.bf16.msra.mxu0 %v232
  %298 = vmatpush.bf16.msra.mxu0 %v231
  %299 = vmatpush.bf16.msra.mxu0 %v230
  %300 = vmatpush.bf16.msra.mxu0 %v229
  %301 = vmatpush.bf16.msra.mxu0 %v228
  %302 = vmatpush.bf16.msra.mxu0 %v227
  %303 = vmatpush.bf16.msra.mxu0 %v226
  %304 = vmatmul.bf16.gmra.mxu0 %v104
  %v305 = vpop.f32.mrf.mxu0
  %v306 = vadd.f32 %v287, %v305
  %v307 = vpop.f32.mrf.mxu0
  %v308 = vadd.f32 %v289, %v307
  %309 = vmatmul.bf16.gmra.mxu0 %v107
  %v310 = vpop.f32.mrf.mxu0
  %v311 = vadd.f32 %v292, %v310
  %v312 = vpop.f32.mrf.mxu0
  %v313 = vadd.f32 %v294, %v312
  %314 = vdwg.mxu0
  %v315 = vadd.f32 %v22, %v306
  %v316 = vadd.f32 %v23, %v308
  %v317 = vadd.f32 %v24, %v311
  %v318 = vadd.f32 %v25, %v313
  %319 = vst [vmem:[#allocation2] sm:$0xff] %v315
  %320 = vst [vmem:[#allocation2 + $0x8] sm:$0xff] %v316
  %321 = vst [vmem:[#allocation2 + $0x10] sm:$0xff] %v317
  %322 = vst [vmem:[#allocation2 + $0x18] sm:$0xff] %v318
  // Predicated region
  $region14: #{resnet_generator_forward.25} parent=0 // pred_check
    %p323 = pneg %p14
  $region15: #{resnet_generator_forward.25} parent=0 // pred_check_branch
    %325 = sbr.rel (%p323) target = $region17
  $region16: #{resnet_generator_forward.25} parent=0 // pred_region
    %v326 = vld [vmem:[#allocation2] sm:$0xff]
    %v327 = vld [vmem:[#allocation2 + $0x8] sm:$0xff]
    %v328 = vld [vmem:[#allocation2 + $0x10] sm:$0xff]
    %v329 = vld [vmem:[#allocation2 + $0x18] sm:$0xff]
    %v330 = vpack.c.bf16 %v326, %v326
    %v331 = vpack.c.bf16 %v327, %v327
    %v332 = vpack.c.bf16 %v328, %v328
    %v333 = vpack.c.bf16 %v329, %v329
    %334 = vst [vmem:[%s2] sm:$0xf] %v330
    %335 = vst [vmem:[%s2 + $0x4] sm:$0xf] %v331
    %336 = vst [vmem:[%s2 + $0x8] sm:$0xf] %v332
    %337 = vst [vmem:[%s2 + $0xc] sm:$0xf] %v333
    %v338 = vadd.f32 %v326, %v327
    %v339 = vadd.f32 %v338, %v328
    %v340 = vadd.f32 %v339, %v329
    %v341 = vrot.slane %v340, 4
    %v342 = vadd.f32 %v340, %v341
    %v343 = vrot.slane %v342, 2
    %v344 = vadd.f32 %v342, %v343
    %v345 = vrot.slane %v344, 1
    %v346 = vadd.f32 %v344, %v345
    %v347 = vmul.f32 %v326, %v326
    %v348 = vmul.f32 %v327, %v327
    %v349 = vmul.f32 %v328, %v328
    %v350 = vmul.f32 %v329, %v329
    %v351 = vadd.f32 %v347, %v348
    %v352 = vadd.f32 %v351, %v349
    %v353 = vadd.f32 %v352, %v350
    %v354 = vrot.slane %v353, 4
    %v355 = vadd.f32 %v353, %v354
    %v356 = vrot.slane %v355, 2
    %v357 = vadd.f32 %v355, %v356
    %v358 = vrot.slane %v357, 1
    %v359 = vadd.f32 %v357, %v358
    %360 = vst [vmem:[%s3] sm:$0xff] %v346
    %361 = vst [vmem:[%s4] sm:$0xff] %v359
  $region17: #{resnet_generator_forward.25} parent=0 // pred_fallthru
    _
  // Predicated region
  $region18: #{resnet_generator_forward.25} parent=0 // pred_check
    _
  $region19: #{resnet_generator_forward.25} parent=0 // pred_check_branch
    %363 = sbr.rel (0) target = $region21
  $region20: #{resnet_generator_forward.25} parent=0 // pred_region
    _
  $region21: #{resnet_generator_forward.25} parent=0 // pred_fallthru
    _
  // Predicated region
  $region22: #{resnet_generator_forward.25} parent=0 // pred_check
    _
  $region23: #{resnet_generator_forward.25} parent=0 // pred_check_branch
    %365 = sbr.rel (0) target = $region25
  $region24: #{resnet_generator_forward.25} parent=0 // pred_region
    _
  $region25: #{resnet_generator_forward.25} parent=0 // pred_fallthru
    _
  // Predicated region
  $region26: #{resnet_generator_forward.25} parent=0 // pred_check
    _
  $region27: #{resnet_generator_forward.25} parent=0 // pred_check_branch
    %367 = sbr.rel (0) target = $region29
  $region28: #{resnet_generator_forward.25} parent=0 // pred_region
    _
  $region29: #{resnet_generator_forward.25} parent=0 // pred_fallthru
    _
  // Predicated region
  $region30: #{resnet_generator_forward.25} parent=0 // pred_check
    _
  $region31: #{resnet_generator_forward.25} parent=0 // pred_check_branch
    %369 = sbr.rel (0) target = $region33
  $region32: #{resnet_generator_forward.25} parent=0 // pred_region
    _
  $region33: #{resnet_generator_forward.25} parent=0 // pred_fallthru
    _
  // Predicated region
  $region34: #{resnet_generator_forward.25} parent=0 // pred_check
    _
  $region35: #{resnet_generator_forward.25} parent=0 // pred_check_branch
    %371 = sbr.rel (0) target = $region37
  $region36: #{resnet_generator_forward.25} parent=0 // pred_region
    _
  $region37: #{resnet_generator_forward.25} parent=0 // pred_fallthru
    _
  // Predicated region
  $region38: #{resnet_generator_forward.25} parent=0 // pred_check
    _
  $region39: #{resnet_generator_forward.25} parent=0 // pred_check_branch
    %373 = sbr.rel (0) target = $region41
  $region40: #{resnet_generator_forward.25} parent=0 // pred_region
    _
  $region41: #{resnet_generator_forward.25} parent=0 // pred_fallthru
    _

// kernel: tile.23
$region0: #{tile.23}
  #allocation0 [shape = 's32[1]{0}', space=sflag, size = 0x4, scoped, tag = 'scoped memory for tile.23']
  %s0 = inlined_call_operand.vmem [shape: f32[16], index: 0, kind: input, shape index: {}]
  %s1 = inlined_call_operand.vmem [shape: f32[4,16], index: 1, kind: output, shape index: {}]
  // Predicated region
  $region2: #{tile.23} parent=0 // pred_check
    _
  $region3: #{tile.23} parent=0 // pred_check_branch
    %3 = sbr.rel (0) target = $region5
  $region4: #{tile.23} parent=0 // pred_region
    _
  $region5: #{tile.23} parent=0 // pred_fallthru
    _
  %v4 = vld [vmem:[%s0] ss:$0 sm:$0xff]
  %5 = vst [vmem:[%s1] sm:$0xf] %v4

// kernel: tile.28
$region0: #{tile.28}
  %s0 = inlined_call_operand.vmem [shape: f32[4,16], index: 0, kind: input, shape index: {}]
  %s1 = inlined_call_operand.vmem [shape: f32[1,64], index: 1, kind: output, shape index: {}]
  $region1: #{tile.28} parent=0
    #allocation0 [shape = 'u8[4096]{0}', space=vmem, size = 0x1000, scoped, tag = 'scoped mem for output reshape']
    #allocation1 [shape = 'u8[4096]{0}', space=vmem, size = 0x1000, scoped, tag = 'scoped mem for input reshape']
    %s3 = ssub.s32 16, 1
    %v4 = vld [vmem:[%s0] sm:%s3]
    %5 = vst [vmem:[#allocation1] sm:%s3] %v4
    %v6 = vld [vmem:[#allocation1] sm:$0x1]
    %vm7 = vcmask 130048
    %8 = vst.msk [vmem:[#allocation0] sm:$0x1] %vm7, %v6
    %s9 = scalar_lea.vmem [#allocation1], 3
    %v10 = vld [vmem:[%s9] sm:$0x1]
    %11 = vrot.lane.b32.xlu0 %v10, 48
    %v12 = vpop.permute.xlu0 %11
    %vm13 = vcmask 523648
    %14 = vst.msk [vmem:[#allocation0] sm:$0x1] %vm13, %v12
    %s15 = scalar_lea.vmem [#allocation1], 2
    %v16 = vld [vmem:[%s15] sm:$0x1]
    %17 = vrot.lane.b32.xlu0 %v16, 32
    %v18 = vpop.permute.xlu0 %17
    %vm19 = vcmask 392448
    %20 = vst.msk [vmem:[#allocation0] sm:$0x1] %vm19, %v18
    %s21 = scalar_lea.vmem [#allocation1], 1
    %v22 = vld [vmem:[%s21] sm:$0x1]
    %23 = vrot.lane.b32.xlu0 %v22, 16
    %v24 = vpop.permute.xlu0 %23
    %vm25 = vcmask 261248
    %26 = vst.msk [vmem:[#allocation0] sm:$0x1] %vm25, %v24
    %s28 = ssub.s32 2, 1
    %v29 = vld [vmem:[#allocation0] sm:%s28]
    %s31 = ssub.s32 2, 1
    %32 = vst [vmem:[%s1] sm:%s31] %v29

// kernel: resnet_generator_forward.33
$region0: #{resnet_generator_forward.33}
  #allocation0 [shape = 'u32[]', space=smem, size = 0x4, offset = 0x4, fixed_abs, tag = 'smem constant byte address 0x4 - core index']
  #allocation1 [shape = 'u32[72,128]{1,0:T(1,128)}', space=vmem, size = 0x9000, scoped, tag = 'internal scratch']
  #allocation2 [shape = 'f32[32,128]{1,0:T(8,128)}', space=vmem, size = 0x4000, scoped, tag = 'scratch operand']
  %s0 = inlined_call_operand.vmem [shape: bf16[32,128], index: 0, kind: input, shape index: {}]
  %s1 = inlined_call_operand.vmem [shape: bf16[128,128], index: 1, kind: input, shape index: {}]
  %s2 = inlined_call_operand.vmem [shape: bf16[32,128], index: 2, kind: output, shape index: {0}]
  %s3 = inlined_call_operand.vmem [shape: f32[8,128], index: 3, kind: output, shape index: {1}]
  %s4 = inlined_call_operand.vmem [shape: f32[8,128], index: 4, kind: output, shape index: {2}]
  %5 = xla_tuple %s2, %s3, %s4
  %s6 = sld [smem:[#allocation0]]
  $region42: #{resnet_generator_forward.33} parent=0
    _
  %s8 = ssub.s32 1, %s6
  %s9 = scalar_select 0, %s8, %s6
  // Predicated region
  $region2: #{resnet_generator_forward.33} parent=0 // pred_check
    _
  $region3: #{resnet_generator_forward.33} parent=0 // pred_check_branch
    %11 = sbr.rel (0) target = $region5
  $region4: #{resnet_generator_forward.33} parent=0 // pred_region
    _
  $region5: #{resnet_generator_forward.33} parent=0 // pred_fallthru
    _
  // Predicated region
  $region6: #{resnet_generator_forward.33} parent=0 // pred_check
    _
  $region7: #{resnet_generator_forward.33} parent=0 // pred_check_branch
    %13 = sbr.rel (0) target = $region9
  $region8: #{resnet_generator_forward.33} parent=0 // pred_region
    _
  $region9: #{resnet_generator_forward.33} parent=0 // pred_fallthru
    _
  %p14 = scmp.eq.s32.totalorder 0, 0
  // Predicated region
  $region10: #{resnet_generator_forward.33} parent=0 // pred_check
    %p15 = pneg %p14
  $region11: #{resnet_generator_forward.33} parent=0 // pred_check_branch
    %17 = sbr.rel (%p15) target = $region13
  $region12: #{resnet_generator_forward.33} parent=0 // pred_region
    %18 = vst [vmem:[#allocation2] sm:$0xff] 0.0
    %19 = vst [vmem:[#allocation2 + $0x8] sm:$0xff] 0.0
    %20 = vst [vmem:[#allocation2 + $0x10] sm:$0xff] 0.0
    %21 = vst [vmem:[#allocation2 + $0x18] sm:$0xff] 0.0
  $region13: #{resnet_generator_forward.33} parent=0 // pred_fallthru
    _
  %v22 = vld [vmem:[#allocation2] sm:$0xff]
  %v23 = vld [vmem:[#allocation2 + $0x8] sm:$0xff]
  %v24 = vld [vmem:[#allocation2 + $0x10] sm:$0xff]
  %v25 = vld [vmem:[#allocation2 + $0x18] sm:$0xff]
  %v26 = vld [vmem:[%s0] sm:$0xf]
  %v27 = vld [vmem:[%s0 + $0x4] sm:$0xf]
  %v28 = vld [vmem:[%s0 + $0x8] sm:$0xf]
  %v29 = vld [vmem:[%s0 + $0xc] sm:$0xf]
  %v30 = vld [vmem:[%s1] sm:$0xf]
  %v31 = vld [vmem:[%s1 + $0x4] sm:$0xf]
  %v32 = vld [vmem:[%s1 + $0x8] sm:$0xf]
  %v33 = vld [vmem:[%s1 + $0xc] sm:$0xf]
  %v34 = vld [vmem:[%s1 + $0x10] sm:$0xf]
  %v35 = vld [vmem:[%s1 + $0x14] sm:$0xf]
  %v36 = vld [vmem:[%s1 + $0x18] sm:$0xf]
  %v37 = vld [vmem:[%s1 + $0x1c] sm:$0xf]
  %v38 = vld [vmem:[%s1 + $0x20] sm:$0xf]
  %v39 = vld [vmem:[%s1 + $0x24] sm:$0xf]
  %v40 = vld [vmem:[%s1 + $0x28] sm:$0xf]
  %v41 = vld [vmem:[%s1 + $0x2c] sm:$0xf]
  %v42 = vld [vmem:[%s1 + $0x30] sm:$0xf]
  %v43 = vld [vmem:[%s1 + $0x34] sm:$0xf]
  %v44 = vld [vmem:[%s1 + $0x38] sm:$0xf]
  %v45 = vld [vmem:[%s1 + $0x3c] sm:$0xf]
  %v50 = vunpack.c.l.b16 %v26
  %v51 = vunpack.c.l.b16 %v27
  %v52 = vunpack.c.l.b16 %v28
  %v53 = vunpack.c.l.b16 %v29
  %v54 = vpack.c.b16 %v51, %v50
  %v55 = vpack.c.b16 %v53, %v52
  %v74 = vunpack.c.l.b16 %v30
  %v75 = vunpack.c.l.b16 %v31
  %v76 = vunpack.c.l.b16 %v32
  %v77 = vunpack.c.l.b16 %v33
  %v78 = vunpack.c.l.b16 %v34
  %v79 = vunpack.c.l.b16 %v35
  %v80 = vunpack.c.l.b16 %v36
  %v81 = vunpack.c.l.b16 %v37
  %v82 = vunpack.c.l.b16 %v38
  %v83 = vunpack.c.l.b16 %v39
  %v84 = vunpack.c.l.b16 %v40
  %v85 = vunpack.c.l.b16 %v41
  %v86 = vunpack.c.l.b16 %v42
  %v87 = vunpack.c.l.b16 %v43
  %v88 = vunpack.c.l.b16 %v44
  %v89 = vunpack.c.l.b16 %v45
  %v90 = vpack.c.b16 %v75, %v74
  %v91 = vpack.c.b16 %v77, %v76
  %v92 = vpack.c.b16 %v79, %v78
  %v93 = vpack.c.b16 %v81, %v80
  %v94 = vpack.c.b16 %v83, %v82
  %v95 = vpack.c.b16 %v85, %v84
  %v96 = vpack.c.b16 %v87, %v86
  %v97 = vpack.c.b16 %v89, %v88
  %106 = vmatpush.bf16.msra.mxu0 %v97
  %107 = vmatpush.bf16.msra.mxu0 %v96
  %108 = vmatpush.bf16.msra.mxu0 %v95
  %109 = vmatpush.bf16.msra.mxu0 %v94
  %110 = vmatpush.bf16.msra.mxu0 %v93
  %111 = vmatpush.bf16.msra.mxu0 %v92
  %112 = vmatpush.bf16.msra.mxu0 %v91
  %113 = vmatpush.bf16.msra.mxu0 %v90
  %114 = vmatmul.bf16.gmra.mxu0 %v54
  %v115 = vpop.f32.mrf.mxu0
  %v116 = vadd.f32 0.0, %v115
  %v117 = vpop.f32.mrf.mxu0
  %v118 = vadd.f32 0.0, %v117
  %119 = vmatmul.bf16.gmra.mxu0 %v55
  %v120 = vpop.f32.mrf.mxu0
  %v121 = vadd.f32 0.0, %v120
  %v122 = vpop.f32.mrf.mxu0
  %v123 = vadd.f32 0.0, %v122
  %124 = vdwg.mxu0
  %v125 = vadd.f32 %v22, %v116
  %v126 = vadd.f32 %v23, %v118
  %v127 = vadd.f32 %v24, %v121
  %v128 = vadd.f32 %v25, %v123
  %129 = vst [vmem:[#allocation2] sm:$0xff] %v125
  %130 = vst [vmem:[#allocation2 + $0x8] sm:$0xff] %v126
  %131 = vst [vmem:[#allocation2 + $0x10] sm:$0xff] %v127
  %132 = vst [vmem:[#allocation2 + $0x18] sm:$0xff] %v128
  // Predicated region
  $region14: #{resnet_generator_forward.33} parent=0 // pred_check
    %p133 = pneg %p14
  $region15: #{resnet_generator_forward.33} parent=0 // pred_check_branch
    %135 = sbr.rel (%p133) target = $region17
  $region16: #{resnet_generator_forward.33} parent=0 // pred_region
    %v136 = vld [vmem:[#allocation2] sm:$0xff]
    %v137 = vld [vmem:[#allocation2 + $0x8] sm:$0xff]
    %v138 = vld [vmem:[#allocation2 + $0x10] sm:$0xff]
    %v139 = vld [vmem:[#allocation2 + $0x18] sm:$0xff]
    %v140 = vpack.c.bf16 %v136, %v136
    %v141 = vpack.c.bf16 %v137, %v137
    %v142 = vpack.c.bf16 %v138, %v138
    %v143 = vpack.c.bf16 %v139, %v139
    %144 = vst [vmem:[%s2] sm:$0xf] %v140
    %145 = vst [vmem:[%s2 + $0x4] sm:$0xf] %v141
    %146 = vst [vmem:[%s2 + $0x8] sm:$0xf] %v142
    %147 = vst [vmem:[%s2 + $0xc] sm:$0xf] %v143
    %v148 = vadd.f32 %v136, %v137
    %v149 = vadd.f32 %v148, %v138
    %v150 = vadd.f32 %v149, %v139
    %v151 = vrot.slane %v150, 4
    %v152 = vadd.f32 %v150, %v151
    %v153 = vrot.slane %v152, 2
    %v154 = vadd.f32 %v152, %v153
    %v155 = vrot.slane %v154, 1
    %v156 = vadd.f32 %v154, %v155
    %v157 = vmul.f32 %v136, %v136
    %v158 = vmul.f32 %v137, %v137
    %v159 = vmul.f32 %v138, %v138
    %v160 = vmul.f32 %v139, %v139
    %v161 = vadd.f32 %v157, %v158
    %v162 = vadd.f32 %v161, %v159
    %v163 = vadd.f32 %v162, %v160
    %v164 = vrot.slane %v163, 4
    %v165 = vadd.f32 %v163, %v164
    %v166 = vrot.slane %v165, 2
    %v167 = vadd.f32 %v165, %v166
    %v168 = vrot.slane %v167, 1
    %v169 = vadd.f32 %v167, %v168
    %170 = vst [vmem:[%s3] sm:$0xff] %v156
    %171 = vst [vmem:[%s4] sm:$0xff] %v169
  $region17: #{resnet_generator_forward.33} parent=0 // pred_fallthru
    _
  // Predicated region
  $region18: #{resnet_generator_forward.33} parent=0 // pred_check
    _
  $region19: #{resnet_generator_forward.33} parent=0 // pred_check_branch
    %173 = sbr.rel (0) target = $region21
  $region20: #{resnet_generator_forward.33} parent=0 // pred_region
    _
  $region21: #{resnet_generator_forward.33} parent=0 // pred_fallthru
    _
  // Predicated region
  $region22: #{resnet_generator_forward.33} parent=0 // pred_check
    _
  $region23: #{resnet_generator_forward.33} parent=0 // pred_check_branch
    %175 = sbr.rel (0) target = $region25
  $region24: #{resnet_generator_forward.33} parent=0 // pred_region
    _
  $region25: #{resnet_generator_forward.33} parent=0 // pred_fallthru
    _
  // Predicated region
  $region26: #{resnet_generator_forward.33} parent=0 // pred_check
    _
  $region27: #{resnet_generator_forward.33} parent=0 // pred_check_branch
    %177 = sbr.rel (0) target = $region29
  $region28: #{resnet_generator_forward.33} parent=0 // pred_region
    _
  $region29: #{resnet_generator_forward.33} parent=0 // pred_fallthru
    _
  // Predicated region
  $region30: #{resnet_generator_forward.33} parent=0 // pred_check
    _
  $region31: #{resnet_generator_forward.33} parent=0 // pred_check_branch
    %179 = sbr.rel (0) target = $region33
  $region32: #{resnet_generator_forward.33} parent=0 // pred_region
    _
  $region33: #{resnet_generator_forward.33} parent=0 // pred_fallthru
    _
  // Predicated region
  $region34: #{resnet_generator_forward.33} parent=0 // pred_check
    _
  $region35: #{resnet_generator_forward.33} parent=0 // pred_check_branch
    %181 = sbr.rel (0) target = $region37
  $region36: #{resnet_generator_forward.33} parent=0 // pred_region
    _
  $region37: #{resnet_generator_forward.33} parent=0 // pred_fallthru
    _
  // Predicated region
  $region38: #{resnet_generator_forward.33} parent=0 // pred_check
    _
  $region39: #{resnet_generator_forward.33} parent=0 // pred_check_branch
    %183 = sbr.rel (0) target = $region41
  $region40: #{resnet_generator_forward.33} parent=0 // pred_region
    _
  $region41: #{resnet_generator_forward.33} parent=0 // pred_fallthru
    _

// kernel: tile.33
$region0: #{tile.33}
  #allocation0 [shape = 's32[1]{0}', space=sflag, size = 0x4, scoped, tag = 'scoped memory for tile.33']
  %s0 = inlined_call_operand.vmem [shape: f32[8], index: 0, kind: input, shape index: {}]
  %s1 = inlined_call_operand.vmem [shape: f32[4,8], index: 1, kind: output, shape index: {}]
  // Predicated region
  $region2: #{tile.33} parent=0 // pred_check
    _
  $region3: #{tile.33} parent=0 // pred_check_branch
    %3 = sbr.rel (0) target = $region5
  $region4: #{tile.33} parent=0 // pred_region
    _
  $region5: #{tile.33} parent=0 // pred_fallthru
    _
  %v4 = vld [vmem:[%s0] ss:$0 sm:$0xff]
  %5 = vst [vmem:[%s1] sm:$0xf] %v4

// kernel: tile.38
$region0: #{tile.38}
  %s0 = inlined_call_operand.vmem [shape: f32[4,8], index: 0, kind: input, shape index: {}]
  %s1 = inlined_call_operand.vmem [shape: f32[1,32], index: 1, kind: output, shape index: {}]
  $region1: #{tile.38} parent=0
    #allocation0 [shape = 'u8[4096]{0}', space=vmem, size = 0x1000, scoped, tag = 'scoped mem for output reshape']
    #allocation1 [shape = 'u8[4096]{0}', space=vmem, size = 0x1000, scoped, tag = 'scoped mem for input reshape']
    %s3 = ssub.s32 16, 1
    %v4 = vld [vmem:[%s0] sm:%s3]
    %5 = vst [vmem:[#allocation1] sm:%s3] %v4
    %v6 = vld [vmem:[#allocation1] sm:$0x1]
    %vm7 = vcmask 64512
    %8 = vst.msk [vmem:[#allocation0] sm:$0x1] %vm7, %v6
    %s9 = scalar_lea.vmem [#allocation1], 3
    %v10 = vld [vmem:[%s9] sm:$0x1]
    %11 = vrot.lane.b32.xlu0 %v10, 24
    %v12 = vpop.permute.xlu0 %11
    %vm13 = vcmask 261312
    %14 = vst.msk [vmem:[#allocation0] sm:$0x1] %vm13, %v12
    %s15 = scalar_lea.vmem [#allocation1], 2
    %v16 = vld [vmem:[%s15] sm:$0x1]
    %17 = vrot.lane.b32.xlu0 %v16, 16
    %v18 = vpop.permute.xlu0 %17
    %vm19 = vcmask 195712
    %20 = vst.msk [vmem:[#allocation0] sm:$0x1] %vm19, %v18
    %s21 = scalar_lea.vmem [#allocation1], 1
    %v22 = vld [vmem:[%s21] sm:$0x1]
    %23 = vrot.lane.b32.xlu0 %v22, 8
    %v24 = vpop.permute.xlu0 %23
    %vm25 = vcmask 130112
    %26 = vst.msk [vmem:[#allocation0] sm:$0x1] %vm25, %v24
    %s28 = ssub.s32 2, 1
    %v29 = vld [vmem:[#allocation0] sm:%s28]
    %s31 = ssub.s32 2, 1
    %32 = vst [vmem:[%s1] sm:%s31] %v29

// kernel: resnet_generator_forward.37
$region0: #{resnet_generator_forward.37}
  #allocation0 [shape = 'u32[]', space=smem, size = 0x4, offset = 0x4, fixed_abs, tag = 'smem constant byte address 0x4 - core index']
  #allocation1 [shape = 'u32[72,128]{1,0:T(1,128)}', space=vmem, size = 0x9000, scoped, tag = 'internal scratch']
  #allocation2 [shape = 'f32[512,128]{1,0:T(8,128)}', space=vmem, size = 0x40000, scoped, tag = 'scratch operand']
  %s0 = inlined_call_operand.vmem [shape: bf16[512,512], index: 0, kind: input, shape index: {}]
  %s1 = inlined_call_operand.vmem [shape: bf16[512,128], index: 1, kind: input, shape index: {}]
  %s2 = inlined_call_operand.vmem [shape: f32[1,128], index: 2, kind: input, shape index: {}]
  %s3 = inlined_call_operand.vmem [shape: f32[512,128], index: 3, kind: output, shape index: {}]
  %s4 = sld [smem:[#allocation0]]
  $region30: #{resnet_generator_forward.37} parent=0
    _
  %s6 = ssub.s32 1, %s4
  %s7 = scalar_select 0, %s6, %s4
  // Predicated region
  $region2: #{resnet_generator_forward.37} parent=0 // pred_check
    _
  $region3: #{resnet_generator_forward.37} parent=0 // pred_check_branch
    %9 = sbr.rel (0) target = $region5
  $region4: #{resnet_generator_forward.37} parent=0 // pred_region
    _
  $region5: #{resnet_generator_forward.37} parent=0 // pred_fallthru
    _
  // Predicated region
  $region6: #{resnet_generator_forward.37} parent=0 // pred_check
    _
  $region7: #{resnet_generator_forward.37} parent=0 // pred_check_branch
    %11 = sbr.rel (0) target = $region9
  $region8: #{resnet_generator_forward.37} parent=0 // pred_region
    _
  $region9: #{resnet_generator_forward.37} parent=0 // pred_fallthru
    _
  // Predicated region
  $region10: #{resnet_generator_forward.37} parent=0 // pred_check
    _
  $region11: #{resnet_generator_forward.37} parent=0 // pred_check_branch
    %13 = sbr.rel (0) target = $region13
  $region12: #{resnet_generator_forward.37} parent=0 // pred_region
    _
  $region13: #{resnet_generator_forward.37} parent=0 // pred_fallthru
    _
  %p14 = scmp.eq.s32.totalorder 0, 0
  // Predicated region
  $region14: #{resnet_generator_forward.37} parent=0 // pred_check
    %p15 = pneg %p14
  $region15: #{resnet_generator_forward.37} parent=0 // pred_check_branch
    %17 = sbr.rel (%p15) target = $region17
  $region16: #{resnet_generator_forward.37} parent=0 // pred_region
    %18 = vst [vmem:[#allocation2] sm:$0xff] 0.0
    %19 = vst [vmem:[#allocation2 + $0x8] sm:$0xff] 0.0
    %20 = vst [vmem:[#allocation2 + $0x10] sm:$0xff] 0.0
    %21 = vst [vmem:[#allocation2 + $0x18] sm:$0xff] 0.0
    %22 = vst [vmem:[#allocation2 + $0x20] sm:$0xff] 0.0
    %23 = vst [vmem:[#allocation2 + $0x28] sm:$0xff] 0.0
    %24 = vst [vmem:[#allocation2 + $0x30] sm:$0xff] 0.0
    %25 = vst [vmem:[#allocation2 + $0x38] sm:$0xff] 0.0
    %26 = vst [vmem:[#allocation2 + $0x40] sm:$0xff] 0.0
    %27 = vst [vmem:[#allocation2 + $0x48] sm:$0xff] 0.0
    %28 = vst [vmem:[#allocation2 + $0x50] sm:$0xff] 0.0
    %29 = vst [vmem:[#allocation2 + $0x58] sm:$0xff] 0.0
    %30 = vst [vmem:[#allocation2 + $0x60] sm:$0xff] 0.0
    %31 = vst [vmem:[#allocation2 + $0x68] sm:$0xff] 0.0
    %32 = vst [vmem:[#allocation2 + $0x70] sm:$0xff] 0.0
    %33 = vst [vmem:[#allocation2 + $0x78] sm:$0xff] 0.0
    %34 = vst [vmem:[#allocation2 + $0x80] sm:$0xff] 0.0
    %35 = vst [vmem:[#allocation2 + $0x88] sm:$0xff] 0.0
    %36 = vst [vmem:[#allocation2 + $0x90] sm:$0xff] 0.0
    %37 = vst [vmem:[#allocation2 + $0x98] sm:$0xff] 0.0
    %38 = vst [vmem:[#allocation2 + $0xa0] sm:$0xff] 0.0
    %39 = vst [vmem:[#allocation2 + $0xa8] sm:$0xff] 0.0
    %40 = vst [vmem:[#allocation2 + $0xb0] sm:$0xff] 0.0
    %41 = vst [vmem:[#allocation2 + $0xb8] sm:$0xff] 0.0
    %42 = vst [vmem:[#allocation2 + $0xc0] sm:$0xff] 0.0
    %43 = vst [vmem:[#allocation2 + $0xc8] sm:$0xff] 0.0
    %44 = vst [vmem:[#allocation2 + $0xd0] sm:$0xff] 0.0
    %45 = vst [vmem:[#allocation2 + $0xd8] sm:$0xff] 0.0
    %46 = vst [vmem:[#allocation2 + $0xe0] sm:$0xff] 0.0
    %47 = vst [vmem:[#allocation2 + $0xe8] sm:$0xff] 0.0
    %48 = vst [vmem:[#allocation2 + $0xf0] sm:$0xff] 0.0
    %49 = vst [vmem:[#allocation2 + $0xf8] sm:$0xff] 0.0
    %50 = vst [vmem:[#allocation2 + $0x100] sm:$0xff] 0.0
    %51 = vst [vmem:[#allocation2 + $0x108] sm:$0xff] 0.0
    %52 = vst [vmem:[#allocation2 + $0x110] sm:$0xff] 0.0
    %53 = vst [vmem:[#allocation2 + $0x118] sm:$0xff] 0.0
    %54 = vst [vmem:[#allocation2 + $0x120] sm:$0xff] 0.0
    %55 = vst [vmem:[#allocation2 + $0x128] sm:$0xff] 0.0
    %56 = vst [vmem:[#allocation2 + $0x130] sm:$0xff] 0.0
    %57 = vst [vmem:[#allocation2 + $0x138] sm:$0xff] 0.0
    %58 = vst [vmem:[#allocation2 + $0x140] sm:$0xff] 0.0
    %59 = vst [vmem:[#allocation2 + $0x148] sm:$0xff] 0.0
    %60 = vst [vmem:[#allocation2 + $0x150] sm:$0xff] 0.0
    %61 = vst [vmem:[#allocation2 + $0x158] sm:$0xff] 0.0
    %62 = vst [vmem:[#allocation2 + $0x160] sm:$0xff] 0.0
    %63 = vst [vmem:[#allocation2 + $0x168] sm:$0xff] 0.0
    %64 = vst [vmem:[#allocation2 + $0x170] sm:$0xff] 0.0
    %65 = vst [vmem:[#allocation2 + $0x178] sm:$0xff] 0.0
    %66 = vst [vmem:[#allocation2 + $0x180] sm:$0xff] 0.0
    %67 = vst [vmem:[#allocation2 + $0x188] sm:$0xff] 0.0
    %68 = vst [vmem:[#allocation2 + $0x190] sm:$0xff] 0.0
    %69 = vst [vmem:[#allocation2 + $0x198] sm:$0xff] 0.0
    %70 = vst [vmem:[#allocation2 + $0x1a0] sm:$0xff] 0.0
    %71 = vst [vmem:[#allocation2 + $0x1a8] sm:$0xff] 0.0
    %72 = vst [vmem:[#allocation2 + $0x1b0] sm:$0xff] 0.0
    %73 = vst [vmem:[#allocation2 + $0x1b8] sm:$0xff] 0.0
    %74 = vst [vmem:[#allocation2 + $0x1c0] sm:$0xff] 0.0
    %75 = vst [vmem:[#allocation2 + $0x1c8] sm:$0xff] 0.0
    %76 = vst [vmem:[#allocation2 + $0x1d0] sm:$0xff] 0.0
    %77 = vst [vmem:[#allocation2 + $0x1d8] sm:$0xff] 0.0
    %78 = vst [vmem:[#allocation2 + $0x1e0] sm:$0xff] 0.0
    %79 = vst [vmem:[#allocation2 + $0x1e8] sm:$0xff] 0.0
    %80 = vst [vmem:[#allocation2 + $0x1f0] sm:$0xff] 0.0
    %81 = vst [vmem:[#allocation2 + $0x1f8] sm:$0xff] 0.0
  $region17: #{resnet_generator_forward.37} parent=0 // pred_fallthru
    _
  %v82 = vld [vmem:[#allocation2] sm:$0xff]
  %v83 = vld [vmem:[#allocation2 + $0x8] sm:$0xff]
  %v84 = vld [vmem:[#allocation2 + $0x10] sm:$0xff]
  %v85 = vld [vmem:[#allocation2 + $0x18] sm:$0xff]
  %v86 = vld [vmem:[#allocation2 + $0x20] sm:$0xff]
  %v87 = vld [vmem:[#allocation2 + $0x28] sm:$0xff]
  %v88 = vld [vmem:[#allocation2 + $0x30] sm:$0xff]
  %v89 = vld [vmem:[#allocation2 + $0x38] sm:$0xff]
  %v90 = vld [vmem:[#allocation2 + $0x40] sm:$0xff]
  %v91 = vld [vmem:[#allocation2 + $0x48] sm:$0xff]
  %v92 = vld [vmem:[#allocation2 + $0x50] sm:$0xff]
  %v93 = vld [vmem:[#allocation2 + $0x58] sm:$0xff]
  %v94 = vld [vmem:[#allocation2 + $0x60] sm:$0xff]
  %v95 = vld [vmem:[#allocation2 + $0x68] sm:$0xff]
  %v96 = vld [vmem:[#allocation2 + $0x70] sm:$0xff]
  %v97 = vld [vmem:[#allocation2 + $0x78] sm:$0xff]
  %v98 = vld [vmem:[#allocation2 + $0x80] sm:$0xff]
  %v99 = vld [vmem:[#allocation2 + $0x88] sm:$0xff]
  %v100 = vld [vmem:[#allocation2 + $0x90] sm:$0xff]
  %v101 = vld [vmem:[#allocation2 + $0x98] sm:$0xff]
  %v102 = vld [vmem:[#allocation2 + $0xa0] sm:$0xff]
  %v103 = vld [vmem:[#allocation2 + $0xa8] sm:$0xff]
  %v104 = vld [vmem:[#allocation2 + $0xb0] sm:$0xff]
  %v105 = vld [vmem:[#allocation2 + $0xb8] sm:$0xff]
  %v106 = vld [vmem:[#allocation2 + $0xc0] sm:$0xff]
  %v107 = vld [vmem:[#allocation2 + $0xc8] sm:$0xff]
  %v108 = vld [vmem:[#allocation2 + $0xd0] sm:$0xff]
  %v109 = vld [vmem:[#allocation2 + $0xd8] sm:$0xff]
  %v110 = vld [vmem:[#allocation2 + $0xe0] sm:$0xff]
  %v111 = vld [vmem:[#allocation2 + $0xe8] sm:$0xff]
  %v112 = vld [vmem:[#allocation2 + $0xf0] sm:$0xff]
  %v113 = vld [vmem:[#allocation2 + $0xf8] sm:$0xff]
  %v114 = vld [vmem:[#allocation2 + $0x100] sm:$0xff]
  %v115 = vld [vmem:[#allocation2 + $0x108] sm:$0xff]
  %v116 = vld [vmem:[#allocation2 + $0x110] sm:$0xff]
  %v117 = vld [vmem:[#allocation2 + $0x118] sm:$0xff]
  %v118 = vld [vmem:[#allocation2 + $0x120] sm:$0xff]
  %v119 = vld [vmem:[#allocation2 + $0x128] sm:$0xff]
  %v120 = vld [vmem:[#allocation2 + $0x130] sm:$0xff]
  %v121 = vld [vmem:[#allocation2 + $0x138] sm:$0xff]
  %v122 = vld [vmem:[#allocation2 + $0x140] sm:$0xff]
  %v123 = vld [vmem:[#allocation2 + $0x148] sm:$0xff]
  %v124 = vld [vmem:[#allocation2 + $0x150] sm:$0xff]
  %v125 = vld [vmem:[#allocation2 + $0x158] sm:$0xff]
  %v126 = vld [vmem:[#allocation2 + $0x160] sm:$0xff]
  %v127 = vld [vmem:[#allocation2 + $0x168] sm:$0xff]
  %v128 = vld [vmem:[#allocation2 + $0x170] sm:$0xff]
  %v129 = vld [vmem:[#allocation2 + $0x178] sm:$0xff]
  %v130 = vld [vmem:[#allocation2 + $0x180] sm:$0xff]
  %v131 = vld [vmem:[#allocation2 + $0x188] sm:$0xff]
  %v132 = vld [vmem:[#allocation2 + $0x190] sm:$0xff]
  %v133 = vld [vmem:[#allocation2 + $0x198] sm:$0xff]
  %v134 = vld [vmem:[#allocation2 + $0x1a0] sm:$0xff]
  %v135 = vld [vmem:[#allocation2 + $0x1a8] sm:$0xff]
  %v136 = vld [vmem:[#allocation2 + $0x1b0] sm:$0xff]
  %v137 = vld [vmem:[#allocation2 + $0x1b8] sm:$0xff]
  %v138 = vld [vmem:[#allocation2 + $0x1c0] sm:$0xff]
  %v139 = vld [vmem:[#allocation2 + $0x1c8] sm:$0xff]
  %v140 = vld [vmem:[#allocation2 + $0x1d0] sm:$0xff]
  %v141 = vld [vmem:[#allocation2 + $0x1d8] sm:$0xff]
  %v142 = vld [vmem:[#allocation2 + $0x1e0] sm:$0xff]
  %v143 = vld [vmem:[#allocation2 + $0x1e8] sm:$0xff]
  %v144 = vld [vmem:[#allocation2 + $0x1f0] sm:$0xff]
  %v145 = vld [vmem:[#allocation2 + $0x1f8] sm:$0xff]
  %v146 = vld [vmem:[%s0] sm:$0xff]
  %v147 = vld [vmem:[%s0 + $0x8] sm:$0xff]
  %v148 = vld [vmem:[%s0 + $0x10] sm:$0xff]
  %v149 = vld [vmem:[%s0 + $0x18] sm:$0xff]
  %v150 = vld [vmem:[%s0 + $0x20] sm:$0xff]
  %v151 = vld [vmem:[%s0 + $0x28] sm:$0xff]
  %v152 = vld [vmem:[%s0 + $0x30] sm:$0xff]
  %v153 = vld [vmem:[%s0 + $0x38] sm:$0xff]
  %v154 = vld [vmem:[%s0 + $0x40] sm:$0xff]
  %v155 = vld [vmem:[%s0 + $0x48] sm:$0xff]
  %v156 = vld [vmem:[%s0 + $0x50] sm:$0xff]
  %v157 = vld [vmem:[%s0 + $0x58] sm:$0xff]
  %v158 = vld [vmem:[%s0 + $0x60] sm:$0xff]
  %v159 = vld [vmem:[%s0 + $0x68] sm:$0xff]
  %v160 = vld [vmem:[%s0 + $0x70] sm:$0xff]
  %v161 = vld [vmem:[%s0 + $0x78] sm:$0xff]
  %v162 = vld [vmem:[%s0 + $0x80] sm:$0xff]
  %v163 = vld [vmem:[%s0 + $0x88] sm:$0xff]
  %v164 = vld [vmem:[%s0 + $0x90] sm:$0xff]
  %v165 = vld [vmem:[%s0 + $0x98] sm:$0xff]
  %v166 = vld [vmem:[%s0 + $0xa0] sm:$0xff]
  %v167 = vld [vmem:[%s0 + $0xa8] sm:$0xff]
  %v168 = vld [vmem:[%s0 + $0xb0] sm:$0xff]
  %v169 = vld [vmem:[%s0 + $0xb8] sm:$0xff]
  %v170 = vld [vmem:[%s0 + $0xc0] sm:$0xff]
  %v171 = vld [vmem:[%s0 + $0xc8] sm:$0xff]
  %v172 = vld [vmem:[%s0 + $0xd0] sm:$0xff]
  %v173 = vld [vmem:[%s0 + $0xd8] sm:$0xff]
  %v174 = vld [vmem:[%s0 + $0xe0] sm:$0xff]
  %v175 = vld [vmem:[%s0 + $0xe8] sm:$0xff]
  %v176 = vld [vmem:[%s0 + $0xf0] sm:$0xff]
  %v177 = vld [vmem:[%s0 + $0xf8] sm:$0xff]
  %v178 = vld [vmem:[%s0 + $0x100] sm:$0xff]
  %v179 = vld [vmem:[%s0 + $0x108] sm:$0xff]
  %v180 = vld [vmem:[%s0 + $0x110] sm:$0xff]
  %v181 = vld [vmem:[%s0 + $0x118] sm:$0xff]
  %v182 = vld [vmem:[%s0 + $0x120] sm:$0xff]
  %v183 = vld [vmem:[%s0 + $0x128] sm:$0xff]
  %v184 = vld [vmem:[%s0 + $0x130] sm:$0xff]
  %v185 = vld [vmem:[%s0 + $0x138] sm:$0xff]
  %v186 = vld [vmem:[%s0 + $0x140] sm:$0xff]
  %v187 = vld [vmem:[%s0 + $0x148] sm:$0xff]
  %v188 = vld [vmem:[%s0 + $0x150] sm:$0xff]
  %v189 = vld [vmem:[%s0 + $0x158] sm:$0xff]
  %v190 = vld [vmem:[%s0 + $0x160] sm:$0xff]
  %v191 = vld [vmem:[%s0 + $0x168] sm:$0xff]
  %v192 = vld [vmem:[%s0 + $0x170] sm:$0xff]
  %v193 = vld [vmem:[%s0 + $0x178] sm:$0xff]
  %v194 = vld [vmem:[%s0 + $0x180] sm:$0xff]
  %v195 = vld [vmem:[%s0 + $0x188] sm:$0xff]
  %v196 = vld [vmem:[%s0 + $0x190] sm:$0xff]
  %v197 = vld [vmem:[%s0 + $0x198] sm:$0xff]
  %v198 = vld [vmem:[%s0 + $0x1a0] sm:$0xff]
  %v199 = vld [vmem:[%s0 + $0x1a8] sm:$0xff]
  %v200 = vld [vmem:[%s0 + $0x1b0] sm:$0xff]
  %v201 = vld [vmem:[%s0 + $0x1b8] sm:$0xff]
  %v202 = vld [vmem:[%s0 + $0x1c0] sm:$0xff]
  %v203 = vld [vmem:[%s0 + $0x1c8] sm:$0xff]
  %v204 = vld [vmem:[%s0 + $0x1d0] sm:$0xff]
  %v205 = vld [vmem:[%s0 + $0x1d8] sm:$0xff]
  %v206 = vld [vmem:[%s0 + $0x1e0] sm:$0xff]
  %v207 = vld [vmem:[%s0 + $0x1e8] sm:$0xff]
  %v208 = vld [vmem:[%s0 + $0x1f0] sm:$0xff]
  %v209 = vld [vmem:[%s0 + $0x1f8] sm:$0xff]
  %v210 = vld [vmem:[%s0 + $0x200] sm:$0xff]
  %v211 = vld [vmem:[%s0 + $0x208] sm:$0xff]
  %v212 = vld [vmem:[%s0 + $0x210] sm:$0xff]
  %v213 = vld [vmem:[%s0 + $0x218] sm:$0xff]
  %v214 = vld [vmem:[%s0 + $0x220] sm:$0xff]
  %v215 = vld [vmem:[%s0 + $0x228] sm:$0xff]
  %v216 = vld [vmem:[%s0 + $0x230] sm:$0xff]
  %v217 = vld [vmem:[%s0 + $0x238] sm:$0xff]
  %v218 = vld [vmem:[%s0 + $0x240] sm:$0xff]
  %v219 = vld [vmem:[%s0 + $0x248] sm:$0xff]
  %v220 = vld [vmem:[%s0 + $0x250] sm:$0xff]
  %v221 = vld [vmem:[%s0 + $0x258] sm:$0xff]
  %v222 = vld [vmem:[%s0 + $0x260] sm:$0xff]
  %v223 = vld [vmem:[%s0 + $0x268] sm:$0xff]
  %v224 = vld [vmem:[%s0 + $0x270] sm:$0xff]
  %v225 = vld [vmem:[%s0 + $0x278] sm:$0xff]
  %v226 = vld [vmem:[%s0 + $0x280] sm:$0xff]
  %v227 = vld [vmem:[%s0 + $0x288] sm:$0xff]
  %v228 = vld [vmem:[%s0 + $0x290] sm:$0xff]
  %v229 = vld [vmem:[%s0 + $0x298] sm:$0xff]
  %v230 = vld [vmem:[%s0 + $0x2a0] sm:$0xff]
  %v231 = vld [vmem:[%s0 + $0x2a8] sm:$0xff]
  %v232 = vld [vmem:[%s0 + $0x2b0] sm:$0xff]
  %v233 = vld [vmem:[%s0 + $0x2b8] sm:$0xff]
  %v234 = vld [vmem:[%s0 + $0x2c0] sm:$0xff]
  %v235 = vld [vmem:[%s0 + $0x2c8] sm:$0xff]
  %v236 = vld [vmem:[%s0 + $0x2d0] sm:$0xff]
  %v237 = vld [vmem:[%s0 + $0x2d8] sm:$0xff]
  %v238 = vld [vmem:[%s0 + $0x2e0] sm:$0xff]
  %v239 = vld [vmem:[%s0 + $0x2e8] sm:$0xff]
  %v240 = vld [vmem:[%s0 + $0x2f0] sm:$0xff]
  %v241 = vld [vmem:[%s0 + $0x2f8] sm:$0xff]
  %v242 = vld [vmem:[%s0 + $0x300] sm:$0xff]
  %v243 = vld [vmem:[%s0 + $0x308] sm:$0xff]
  %v244 = vld [vmem:[%s0 + $0x310] sm:$0xff]
  %v245 = vld [vmem:[%s0 + $0x318] sm:$0xff]
  %v246 = vld [vmem:[%s0 + $0x320] sm:$0xff]
  %v247 = vld [vmem:[%s0 + $0x328] sm:$0xff]
  %v248 = vld [vmem:[%s0 + $0x330] sm:$0xff]
  %v249 = vld [vmem:[%s0 + $0x338] sm:$0xff]
  %v250 = vld [vmem:[%s0 + $0x340] sm:$0xff]
  %v251 = vld [vmem:[%s0 + $0x348] sm:$0xff]
  %v252 = vld [vmem:[%s0 + $0x350] sm:$0xff]
  %v253 = vld [vmem:[%s0 + $0x358] sm:$0xff]
  %v254 = vld [vmem:[%s0 + $0x360] sm:$0xff]
  %v255 = vld [vmem:[%s0 + $0x368] sm:$0xff]
  %v256 = vld [vmem:[%s0 + $0x370] sm:$0xff]
  %v257 = vld [vmem:[%s0 + $0x378] sm:$0xff]
  %v258 = vld [vmem:[%s0 + $0x380] sm:$0xff]
  %v259 = vld [vmem:[%s0 + $0x388] sm:$0xff]
  %v260 = vld [vmem:[%s0 + $0x390] sm:$0xff]
  %v261 = vld [vmem:[%s0 + $0x398] sm:$0xff]
  %v262 = vld [vmem:[%s0 + $0x3a0] sm:$0xff]
  %v263 = vld [vmem:[%s0 + $0x3a8] sm:$0xff]
  %v264 = vld [vmem:[%s0 + $0x3b0] sm:$0xff]
  %v265 = vld [vmem:[%s0 + $0x3b8] sm:$0xff]
  %v266 = vld [vmem:[%s0 + $0x3c0] sm:$0xff]
  %v267 = vld [vmem:[%s0 + $0x3c8] sm:$0xff]
  %v268 = vld [vmem:[%s0 + $0x3d0] sm:$0xff]
  %v269 = vld [vmem:[%s0 + $0x3d8] sm:$0xff]
  %v270 = vld [vmem:[%s0 + $0x3e0] sm:$0xff]
  %v271 = vld [vmem:[%s0 + $0x3e8] sm:$0xff]
  %v272 = vld [vmem:[%s0 + $0x3f0] sm:$0xff]
  %v273 = vld [vmem:[%s0 + $0x3f8] sm:$0xff]
  %v274 = vld [vmem:[%s1] sm:$0xf]
  %v275 = vld [vmem:[%s1 + $0x4] sm:$0xf]
  %v276 = vld [vmem:[%s1 + $0x8] sm:$0xf]
  %v277 = vld [vmem:[%s1 + $0xc] sm:$0xf]
  %v278 = vld [vmem:[%s1 + $0x10] sm:$0xf]
  %v279 = vld [vmem:[%s1 + $0x14] sm:$0xf]
  %v280 = vld [vmem:[%s1 + $0x18] sm:$0xf]
  %v281 = vld [vmem:[%s1 + $0x1c] sm:$0xf]
  %v282 = vld [vmem:[%s1 + $0x20] sm:$0xf]
  %v283 = vld [vmem:[%s1 + $0x24] sm:$0xf]
  %v284 = vld [vmem:[%s1 + $0x28] sm:$0xf]
  %v285 = vld [vmem:[%s1 + $0x2c] sm:$0xf]
  %v286 = vld [vmem:[%s1 + $0x30] sm:$0xf]
  %v287 = vld [vmem:[%s1 + $0x34] sm:$0xf]
  %v288 = vld [vmem:[%s1 + $0x38] sm:$0xf]
  %v289 = vld [vmem:[%s1 + $0x3c] sm:$0xf]
  %v290 = vld [vmem:[%s1 + $0x40] sm:$0xf]
  %v291 = vld [vmem:[%s1 + $0x44] sm:$0xf]
  %v292 = vld [vmem:[%s1 + $0x48] sm:$0xf]
  %v293 = vld [vmem:[%s1 + $0x4c] sm:$0xf]
  %v294 = vld [vmem:[%s1 + $0x50] sm:$0xf]
  %v295 = vld [vmem:[%s1 + $0x54] sm:$0xf]
  %v296 = vld [vmem:[%s1 + $0x58] sm:$0xf]
  %v297 = vld [vmem:[%s1 + $0x5c] sm:$0xf]
  %v298 = vld [vmem:[%s1 + $0x60] sm:$0xf]
  %v299 = vld [vmem:[%s1 + $0x64] sm:$0xf]
  %v300 = vld [vmem:[%s1 + $0x68] sm:$0xf]
  %v301 = vld [vmem:[%s1 + $0x6c] sm:$0xf]
  %v302 = vld [vmem:[%s1 + $0x70] sm:$0xf]
  %v303 = vld [vmem:[%s1 + $0x74] sm:$0xf]
  %v304 = vld [vmem:[%s1 + $0x78] sm:$0xf]
  %v305 = vld [vmem:[%s1 + $0x7c] sm:$0xf]
  %v306 = vld [vmem:[%s1 + $0x80] sm:$0xf]
  %v307 = vld [vmem:[%s1 + $0x84] sm:$0xf]
  %v308 = vld [vmem:[%s1 + $0x88] sm:$0xf]
  %v309 = vld [vmem:[%s1 + $0x8c] sm:$0xf]
  %v310 = vld [vmem:[%s1 + $0x90] sm:$0xf]
  %v311 = vld [vmem:[%s1 + $0x94] sm:$0xf]
  %v312 = vld [vmem:[%s1 + $0x98] sm:$0xf]
  %v313 = vld [vmem:[%s1 + $0x9c] sm:$0xf]
  %v314 = vld [vmem:[%s1 + $0xa0] sm:$0xf]
  %v315 = vld [vmem:[%s1 + $0xa4] sm:$0xf]
  %v316 = vld [vmem:[%s1 + $0xa8] sm:$0xf]
  %v317 = vld [vmem:[%s1 + $0xac] sm:$0xf]
  %v318 = vld [vmem:[%s1 + $0xb0] sm:$0xf]
  %v319 = vld [vmem:[%s1 + $0xb4] sm:$0xf]
  %v320 = vld [vmem:[%s1 + $0xb8] sm:$0xf]
  %v321 = vld [vmem:[%s1 + $0xbc] sm:$0xf]
  %v322 = vld [vmem:[%s1 + $0xc0] sm:$0xf]
  %v323 = vld [vmem:[%s1 + $0xc4] sm:$0xf]
  %v324 = vld [vmem:[%s1 + $0xc8] sm:$0xf]
  %v325 = vld [vmem:[%s1 + $0xcc] sm:$0xf]
  %v326 = vld [vmem:[%s1 + $0xd0] sm:$0xf]
  %v327 = vld [vmem:[%s1 + $0xd4] sm:$0xf]
  %v328 = vld [vmem:[%s1 + $0xd8] sm:$0xf]
  %v329 = vld [vmem:[%s1 + $0xdc] sm:$0xf]
  %v330 = vld [vmem:[%s1 + $0xe0] sm:$0xf]
  %v331 = vld [vmem:[%s1 + $0xe4] sm:$0xf]
  %v332 = vld [vmem:[%s1 + $0xe8] sm:$0xf]
  %v333 = vld [vmem:[%s1 + $0xec] sm:$0xf]
  %v334 = vld [vmem:[%s1 + $0xf0] sm:$0xf]
  %v335 = vld [vmem:[%s1 + $0xf4] sm:$0xf]
  %v336 = vld [vmem:[%s1 + $0xf8] sm:$0xf]
  %v337 = vld [vmem:[%s1 + $0xfc] sm:$0xf]
  %v466 = vunpack.c.l.b16 %v146
  %v467 = vunpack.c.h.b16 %v146
  %v468 = vunpack.c.l.b16 %v147
  %v469 = vunpack.c.h.b16 %v147
  %v470 = vunpack.c.l.b16 %v148
  %v471 = vunpack.c.h.b16 %v148
  %v472 = vunpack.c.l.b16 %v149
  %v473 = vunpack.c.h.b16 %v149
  %v474 = vunpack.c.l.b16 %v150
  %v475 = vunpack.c.h.b16 %v150
  %v476 = vunpack.c.l.b16 %v151
  %v477 = vunpack.c.h.b16 %v151
  %v478 = vunpack.c.l.b16 %v152
  %v479 = vunpack.c.h.b16 %v152
  %v480 = vunpack.c.l.b16 %v153
  %v481 = vunpack.c.h.b16 %v153
  %v482 = vunpack.c.l.b16 %v154
  %v483 = vunpack.c.h.b16 %v154
  %v484 = vunpack.c.l.b16 %v155
  %v485 = vunpack.c.h.b16 %v155
  %v486 = vunpack.c.l.b16 %v156
  %v487 = vunpack.c.h.b16 %v156
  %v488 = vunpack.c.l.b16 %v157
  %v489 = vunpack.c.h.b16 %v157
  %v490 = vunpack.c.l.b16 %v158
  %v491 = vunpack.c.h.b16 %v158
  %v492 = vunpack.c.l.b16 %v159
  %v493 = vunpack.c.h.b16 %v159
  %v494 = vunpack.c.l.b16 %v160
  %v495 = vunpack.c.h.b16 %v160
  %v496 = vunpack.c.l.b16 %v161
  %v497 = vunpack.c.h.b16 %v161
  %v498 = vunpack.c.l.b16 %v162
  %v499 = vunpack.c.h.b16 %v162
  %v500 = vunpack.c.l.b16 %v163
  %v501 = vunpack.c.h.b16 %v163
  %v502 = vunpack.c.l.b16 %v164
  %v503 = vunpack.c.h.b16 %v164
  %v504 = vunpack.c.l.b16 %v165
  %v505 = vunpack.c.h.b16 %v165
  %v506 = vunpack.c.l.b16 %v166
  %v507 = vunpack.c.h.b16 %v166
  %v508 = vunpack.c.l.b16 %v167
  %v509 = vunpack.c.h.b16 %v167
  %v510 = vunpack.c.l.b16 %v168
  %v511 = vunpack.c.h.b16 %v168
  %v512 = vunpack.c.l.b16 %v169
  %v513 = vunpack.c.h.b16 %v169
  %v514 = vunpack.c.l.b16 %v170
  %v515 = vunpack.c.h.b16 %v170
  %v516 = vunpack.c.l.b16 %v171
  %v517 = vunpack.c.h.b16 %v171
  %v518 = vunpack.c.l.b16 %v172
  %v519 = vunpack.c.h.b16 %v172
  %v520 = vunpack.c.l.b16 %v173
  %v521 = vunpack.c.h.b16 %v173
  %v522 = vunpack.c.l.b16 %v174
  %v523 = vunpack.c.h.b16 %v174
  %v524 = vunpack.c.l.b16 %v175
  %v525 = vunpack.c.h.b16 %v175
  %v526 = vunpack.c.l.b16 %v176
  %v527 = vunpack.c.h.b16 %v176
  %v528 = vunpack.c.l.b16 %v177
  %v529 = vunpack.c.h.b16 %v177
  %v530 = vunpack.c.l.b16 %v178
  %v531 = vunpack.c.h.b16 %v178
  %v532 = vunpack.c.l.b16 %v179
  %v533 = vunpack.c.h.b16 %v179
  %v534 = vunpack.c.l.b16 %v180
  %v535 = vunpack.c.h.b16 %v180
  %v536 = vunpack.c.l.b16 %v181
  %v537 = vunpack.c.h.b16 %v181
  %v538 = vunpack.c.l.b16 %v182
  %v539 = vunpack.c.h.b16 %v182
  %v540 = vunpack.c.l.b16 %v183
  %v541 = vunpack.c.h.b16 %v183
  %v542 = vunpack.c.l.b16 %v184
  %v543 = vunpack.c.h.b16 %v184
  %v544 = vunpack.c.l.b16 %v185
  %v545 = vunpack.c.h.b16 %v185
  %v546 = vunpack.c.l.b16 %v186
  %v547 = vunpack.c.h.b16 %v186
  %v548 = vunpack.c.l.b16 %v187
  %v549 = vunpack.c.h.b16 %v187
  %v550 = vunpack.c.l.b16 %v188
  %v551 = vunpack.c.h.b16 %v188
  %v552 = vunpack.c.l.b16 %v189
  %v553 = vunpack.c.h.b16 %v189
  %v554 = vunpack.c.l.b16 %v190
  %v555 = vunpack.c.h.b16 %v190
  %v556 = vunpack.c.l.b16 %v191
  %v557 = vunpack.c.h.b16 %v191
  %v558 = vunpack.c.l.b16 %v192
  %v559 = vunpack.c.h.b16 %v192
  %v560 = vunpack.c.l.b16 %v193
  %v561 = vunpack.c.h.b16 %v193
  %v562 = vunpack.c.l.b16 %v194
  %v563 = vunpack.c.h.b16 %v194
  %v564 = vunpack.c.l.b16 %v195
  %v565 = vunpack.c.h.b16 %v195
  %v566 = vunpack.c.l.b16 %v196
  %v567 = vunpack.c.h.b16 %v196
  %v568 = vunpack.c.l.b16 %v197
  %v569 = vunpack.c.h.b16 %v197
  %v570 = vunpack.c.l.b16 %v198
  %v571 = vunpack.c.h.b16 %v198
  %v572 = vunpack.c.l.b16 %v199
  %v573 = vunpack.c.h.b16 %v199
  %v574 = vunpack.c.l.b16 %v200
  %v575 = vunpack.c.h.b16 %v200
  %v576 = vunpack.c.l.b16 %v201
  %v577 = vunpack.c.h.b16 %v201
  %v578 = vunpack.c.l.b16 %v202
  %v579 = vunpack.c.h.b16 %v202
  %v580 = vunpack.c.l.b16 %v203
  %v581 = vunpack.c.h.b16 %v203
  %v582 = vunpack.c.l.b16 %v204
  %v583 = vunpack.c.h.b16 %v204
  %v584 = vunpack.c.l.b16 %v205
  %v585 = vunpack.c.h.b16 %v205
  %v586 = vunpack.c.l.b16 %v206
  %v587 = vunpack.c.h.b16 %v206
  %v588 = vunpack.c.l.b16 %v207
  %v589 = vunpack.c.h.b16 %v207
  %v590 = vunpack.c.l.b16 %v208
  %v591 = vunpack.c.h.b16 %v208
  %v592 = vunpack.c.l.b16 %v209
  %v593 = vunpack.c.h.b16 %v209
  %v594 = vunpack.c.l.b16 %v210
  %v595 = vunpack.c.h.b16 %v210
  %v596 = vunpack.c.l.b16 %v211
  %v597 = vunpack.c.h.b16 %v211
  %v598 = vunpack.c.l.b16 %v212
  %v599 = vunpack.c.h.b16 %v212
  %v600 = vunpack.c.l.b16 %v213
  %v601 = vunpack.c.h.b16 %v213
  %v602 = vunpack.c.l.b16 %v214
  %v603 = vunpack.c.h.b16 %v214
  %v604 = vunpack.c.l.b16 %v215
  %v605 = vunpack.c.h.b16 %v215
  %v606 = vunpack.c.l.b16 %v216
  %v607 = vunpack.c.h.b16 %v216
  %v608 = vunpack.c.l.b16 %v217
  %v609 = vunpack.c.h.b16 %v217
  %v610 = vunpack.c.l.b16 %v218
  %v611 = vunpack.c.h.b16 %v218
  %v612 = vunpack.c.l.b16 %v219
  %v613 = vunpack.c.h.b16 %v219
  %v614 = vunpack.c.l.b16 %v220
  %v615 = vunpack.c.h.b16 %v220
  %v616 = vunpack.c.l.b16 %v221
  %v617 = vunpack.c.h.b16 %v221
  %v618 = vunpack.c.l.b16 %v222
  %v619 = vunpack.c.h.b16 %v222
  %v620 = vunpack.c.l.b16 %v223
  %v621 = vunpack.c.h.b16 %v223
  %v622 = vunpack.c.l.b16 %v224
  %v623 = vunpack.c.h.b16 %v224
  %v624 = vunpack.c.l.b16 %v225
  %v625 = vunpack.c.h.b16 %v225
  %v626 = vunpack.c.l.b16 %v226
  %v627 = vunpack.c.h.b16 %v226
  %v628 = vunpack.c.l.b16 %v227
  %v629 = vunpack.c.h.b16 %v227
  %v630 = vunpack.c.l.b16 %v228
  %v631 = vunpack.c.h.b16 %v228
  %v632 = vunpack.c.l.b16 %v229
  %v633 = vunpack.c.h.b16 %v229
  %v634 = vunpack.c.l.b16 %v230
  %v635 = vunpack.c.h.b16 %v230
  %v636 = vunpack.c.l.b16 %v231
  %v637 = vunpack.c.h.b16 %v231
  %v638 = vunpack.c.l.b16 %v232
  %v639 = vunpack.c.h.b16 %v232
  %v640 = vunpack.c.l.b16 %v233
  %v641 = vunpack.c.h.b16 %v233
  %v642 = vunpack.c.l.b16 %v234
  %v643 = vunpack.c.h.b16 %v234
  %v644 = vunpack.c.l.b16 %v235
  %v645 = vunpack.c.h.b16 %v235
  %v646 = vunpack.c.l.b16 %v236
  %v647 = vunpack.c.h.b16 %v236
  %v648 = vunpack.c.l.b16 %v237
  %v649 = vunpack.c.h.b16 %v237
  %v650 = vunpack.c.l.b16 %v238
  %v651 = vunpack.c.h.b16 %v238
  %v652 = vunpack.c.l.b16 %v239
  %v653 = vunpack.c.h.b16 %v239
  %v654 = vunpack.c.l.b16 %v240
  %v655 = vunpack.c.h.b16 %v240
  %v656 = vunpack.c.l.b16 %v241
  %v657 = vunpack.c.h.b16 %v241
  %v658 = vunpack.c.l.b16 %v242
  %v659 = vunpack.c.h.b16 %v242
  %v660 = vunpack.c.l.b16 %v243
  %v661 = vunpack.c.h.b16 %v243
  %v662 = vunpack.c.l.b16 %v244
  %v663 = vunpack.c.h.b16 %v244
  %v664 = vunpack.c.l.b16 %v245
  %v665 = vunpack.c.h.b16 %v245
  %v666 = vunpack.c.l.b16 %v246
  %v667 = vunpack.c.h.b16 %v246
  %v668 = vunpack.c.l.b16 %v247
  %v669 = vunpack.c.h.b16 %v247
  %v670 = vunpack.c.l.b16 %v248
  %v671 = vunpack.c.h.b16 %v248
  %v672 = vunpack.c.l.b16 %v249
  %v673 = vunpack.c.h.b16 %v249
  %v674 = vunpack.c.l.b16 %v250
  %v675 = vunpack.c.h.b16 %v250
  %v676 = vunpack.c.l.b16 %v251
  %v677 = vunpack.c.h.b16 %v251
  %v678 = vunpack.c.l.b16 %v252
  %v679 = vunpack.c.h.b16 %v252
  %v680 = vunpack.c.l.b16 %v253
  %v681 = vunpack.c.h.b16 %v253
  %v682 = vunpack.c.l.b16 %v254
  %v683 = vunpack.c.h.b16 %v254
  %v684 = vunpack.c.l.b16 %v255
  %v685 = vunpack.c.h.b16 %v255
  %v686 = vunpack.c.l.b16 %v256
  %v687 = vunpack.c.h.b16 %v256
  %v688 = vunpack.c.l.b16 %v257
  %v689 = vunpack.c.h.b16 %v257
  %v690 = vunpack.c.l.b16 %v258
  %v691 = vunpack.c.h.b16 %v258
  %v692 = vunpack.c.l.b16 %v259
  %v693 = vunpack.c.h.b16 %v259
  %v694 = vunpack.c.l.b16 %v260
  %v695 = vunpack.c.h.b16 %v260
  %v696 = vunpack.c.l.b16 %v261
  %v697 = vunpack.c.h.b16 %v261
  %v698 = vunpack.c.l.b16 %v262
  %v699 = vunpack.c.h.b16 %v262
  %v700 = vunpack.c.l.b16 %v263
  %v701 = vunpack.c.h.b16 %v263
  %v702 = vunpack.c.l.b16 %v264
  %v703 = vunpack.c.h.b16 %v264
  %v704 = vunpack.c.l.b16 %v265
  %v705 = vunpack.c.h.b16 %v265
  %v706 = vunpack.c.l.b16 %v266
  %v707 = vunpack.c.h.b16 %v266
  %v708 = vunpack.c.l.b16 %v267
  %v709 = vunpack.c.h.b16 %v267
  %v710 = vunpack.c.l.b16 %v268
  %v711 = vunpack.c.h.b16 %v268
  %v712 = vunpack.c.l.b16 %v269
  %v713 = vunpack.c.h.b16 %v269
  %v714 = vunpack.c.l.b16 %v270
  %v715 = vunpack.c.h.b16 %v270
  %v716 = vunpack.c.l.b16 %v271
  %v717 = vunpack.c.h.b16 %v271
  %v718 = vunpack.c.l.b16 %v272
  %v719 = vunpack.c.h.b16 %v272
  %v720 = vunpack.c.l.b16 %v273
  %v721 = vunpack.c.h.b16 %v273
  %v722 = vpack.c.b16 %v470, %v466
  %v723 = vpack.c.b16 %v471, %v467
  %v724 = vpack.c.b16 %v472, %v468
  %v725 = vpack.c.b16 %v473, %v469
  %v726 = vpack.c.b16 %v478, %v474
  %v727 = vpack.c.b16 %v479, %v475
  %v728 = vpack.c.b16 %v480, %v476
  %v729 = vpack.c.b16 %v481, %v477
  %v730 = vpack.c.b16 %v486, %v482
  %v731 = vpack.c.b16 %v487, %v483
  %v732 = vpack.c.b16 %v488, %v484
  %v733 = vpack.c.b16 %v489, %v485
  %v734 = vpack.c.b16 %v494, %v490
  %v735 = vpack.c.b16 %v495, %v491
  %v736 = vpack.c.b16 %v496, %v492
  %v737 = vpack.c.b16 %v497, %v493
  %v738 = vpack.c.b16 %v502, %v498
  %v739 = vpack.c.b16 %v503, %v499
  %v740 = vpack.c.b16 %v504, %v500
  %v741 = vpack.c.b16 %v505, %v501
  %v742 = vpack.c.b16 %v510, %v506
  %v743 = vpack.c.b16 %v511, %v507
  %v744 = vpack.c.b16 %v512, %v508
  %v745 = vpack.c.b16 %v513, %v509
  %v746 = vpack.c.b16 %v518, %v514
  %v747 = vpack.c.b16 %v519, %v515
  %v748 = vpack.c.b16 %v520, %v516
  %v749 = vpack.c.b16 %v521, %v517
  %v750 = vpack.c.b16 %v526, %v522
  %v751 = vpack.c.b16 %v527, %v523
  %v752 = vpack.c.b16 %v528, %v524
  %v753 = vpack.c.b16 %v529, %v525
  %v754 = vpack.c.b16 %v534, %v530
  %v755 = vpack.c.b16 %v535, %v531
  %v756 = vpack.c.b16 %v536, %v532
  %v757 = vpack.c.b16 %v537, %v533
  %v758 = vpack.c.b16 %v542, %v538
  %v759 = vpack.c.b16 %v543, %v539
  %v760 = vpack.c.b16 %v544, %v540
  %v761 = vpack.c.b16 %v545, %v541
  %v762 = vpack.c.b16 %v550, %v546
  %v763 = vpack.c.b16 %v551, %v547
  %v764 = vpack.c.b16 %v552, %v548
  %v765 = vpack.c.b16 %v553, %v549
  %v766 = vpack.c.b16 %v558, %v554
  %v767 = vpack.c.b16 %v559, %v555
  %v768 = vpack.c.b16 %v560, %v556
  %v769 = vpack.c.b16 %v561, %v557
  %v770 = vpack.c.b16 %v566, %v562
  %v771 = vpack.c.b16 %v567, %v563
  %v772 = vpack.c.b16 %v568, %v564
  %v773 = vpack.c.b16 %v569, %v565
  %v774 = vpack.c.b16 %v574, %v570
  %v775 = vpack.c.b16 %v575, %v571
  %v776 = vpack.c.b16 %v576, %v572
  %v777 = vpack.c.b16 %v577, %v573
  %v778 = vpack.c.b16 %v582, %v578
  %v779 = vpack.c.b16 %v583, %v579
  %v780 = vpack.c.b16 %v584, %v580
  %v781 = vpack.c.b16 %v585, %v581
  %v782 = vpack.c.b16 %v590, %v586
  %v783 = vpack.c.b16 %v591, %v587
  %v784 = vpack.c.b16 %v592, %v588
  %v785 = vpack.c.b16 %v593, %v589
  %v786 = vpack.c.b16 %v598, %v594
  %v787 = vpack.c.b16 %v599, %v595
  %v788 = vpack.c.b16 %v600, %v596
  %v789 = vpack.c.b16 %v601, %v597
  %v790 = vpack.c.b16 %v606, %v602
  %v791 = vpack.c.b16 %v607, %v603
  %v792 = vpack.c.b16 %v608, %v604
  %v793 = vpack.c.b16 %v609, %v605
  %v794 = vpack.c.b16 %v614, %v610
  %v795 = vpack.c.b16 %v615, %v611
  %v796 = vpack.c.b16 %v616, %v612
  %v797 = vpack.c.b16 %v617, %v613
  %v798 = vpack.c.b16 %v622, %v618
  %v799 = vpack.c.b16 %v623, %v619
  %v800 = vpack.c.b16 %v624, %v620
  %v801 = vpack.c.b16 %v625, %v621
  %v802 = vpack.c.b16 %v630, %v626
  %v803 = vpack.c.b16 %v631, %v627
  %v804 = vpack.c.b16 %v632, %v628
  %v805 = vpack.c.b16 %v633, %v629
  %v806 = vpack.c.b16 %v638, %v634
  %v807 = vpack.c.b16 %v639, %v635
  %v808 = vpack.c.b16 %v640, %v636
  %v809 = vpack.c.b16 %v641, %v637
  %v810 = vpack.c.b16 %v646, %v642
  %v811 = vpack.c.b16 %v647, %v643
  %v812 = vpack.c.b16 %v648, %v644
  %v813 = vpack.c.b16 %v649, %v645
  %v814 = vpack.c.b16 %v654, %v650
  %v815 = vpack.c.b16 %v655, %v651
  %v816 = vpack.c.b16 %v656, %v652
  %v817 = vpack.c.b16 %v657, %v653
  %v818 = vpack.c.b16 %v662, %v658
  %v819 = vpack.c.b16 %v663, %v659
  %v820 = vpack.c.b16 %v664, %v660
  %v821 = vpack.c.b16 %v665, %v661
  %v822 = vpack.c.b16 %v670, %v666
  %v823 = vpack.c.b16 %v671, %v667
  %v824 = vpack.c.b16 %v672, %v668
  %v825 = vpack.c.b16 %v673, %v669
  %v826 = vpack.c.b16 %v678, %v674
  %v827 = vpack.c.b16 %v679, %v675
  %v828 = vpack.c.b16 %v680, %v676
  %v829 = vpack.c.b16 %v681, %v677
  %v830 = vpack.c.b16 %v686, %v682
  %v831 = vpack.c.b16 %v687, %v683
  %v832 = vpack.c.b16 %v688, %v684
  %v833 = vpack.c.b16 %v689, %v685
  %v834 = vpack.c.b16 %v694, %v690
  %v835 = vpack.c.b16 %v695, %v691
  %v836 = vpack.c.b16 %v696, %v692
  %v837 = vpack.c.b16 %v697, %v693
  %v838 = vpack.c.b16 %v702, %v698
  %v839 = vpack.c.b16 %v703, %v699
  %v840 = vpack.c.b16 %v704, %v700
  %v841 = vpack.c.b16 %v705, %v701
  %v842 = vpack.c.b16 %v710, %v706
  %v843 = vpack.c.b16 %v711, %v707
  %v844 = vpack.c.b16 %v712, %v708
  %v845 = vpack.c.b16 %v713, %v709
  %v846 = vpack.c.b16 %v718, %v714
  %v847 = vpack.c.b16 %v719, %v715
  %v848 = vpack.c.b16 %v720, %v716
  %v849 = vpack.c.b16 %v721, %v717
  %v1042 = vunpack.c.l.b16 %v274
  %v1043 = vunpack.c.l.b16 %v275
  %v1044 = vunpack.c.l.b16 %v276
  %v1045 = vunpack.c.l.b16 %v277
  %v1046 = vunpack.c.l.b16 %v278
  %v1047 = vunpack.c.l.b16 %v279
  %v1048 = vunpack.c.l.b16 %v280
  %v1049 = vunpack.c.l.b16 %v281
  %v1050 = vunpack.c.l.b16 %v282
  %v1051 = vunpack.c.l.b16 %v283
  %v1052 = vunpack.c.l.b16 %v284
  %v1053 = vunpack.c.l.b16 %v285
  %v1054 = vunpack.c.l.b16 %v286
  %v1055 = vunpack.c.l.b16 %v287
  %v1056 = vunpack.c.l.b16 %v288
  %v1057 = vunpack.c.l.b16 %v289
  %v1058 = vunpack.c.l.b16 %v290
  %v1059 = vunpack.c.l.b16 %v291
  %v1060 = vunpack.c.l.b16 %v292
  %v1061 = vunpack.c.l.b16 %v293
  %v1062 = vunpack.c.l.b16 %v294
  %v1063 = vunpack.c.l.b16 %v295
  %v1064 = vunpack.c.l.b16 %v296
  %v1065 = vunpack.c.l.b16 %v297
  %v1066 = vunpack.c.l.b16 %v298
  %v1067 = vunpack.c.l.b16 %v299
  %v1068 = vunpack.c.l.b16 %v300
  %v1069 = vunpack.c.l.b16 %v301
  %v1070 = vunpack.c.l.b16 %v302
  %v1071 = vunpack.c.l.b16 %v303
  %v1072 = vunpack.c.l.b16 %v304
  %v1073 = vunpack.c.l.b16 %v305
  %v1074 = vunpack.c.l.b16 %v306
  %v1075 = vunpack.c.l.b16 %v307
  %v1076 = vunpack.c.l.b16 %v308
  %v1077 = vunpack.c.l.b16 %v309
  %v1078 = vunpack.c.l.b16 %v310
  %v1079 = vunpack.c.l.b16 %v311
  %v1080 = vunpack.c.l.b16 %v312
  %v1081 = vunpack.c.l.b16 %v313
  %v1082 = vunpack.c.l.b16 %v314
  %v1083 = vunpack.c.l.b16 %v315
  %v1084 = vunpack.c.l.b16 %v316
  %v1085 = vunpack.c.l.b16 %v317
  %v1086 = vunpack.c.l.b16 %v318
  %v1087 = vunpack.c.l.b16 %v319
  %v1088 = vunpack.c.l.b16 %v320
  %v1089 = vunpack.c.l.b16 %v321
  %v1090 = vunpack.c.l.b16 %v322
  %v1091 = vunpack.c.l.b16 %v323
  %v1092 = vunpack.c.l.b16 %v324
  %v1093 = vunpack.c.l.b16 %v325
  %v1094 = vunpack.c.l.b16 %v326
  %v1095 = vunpack.c.l.b16 %v327
  %v1096 = vunpack.c.l.b16 %v328
  %v1097 = vunpack.c.l.b16 %v329
  %v1098 = vunpack.c.l.b16 %v330
  %v1099 = vunpack.c.l.b16 %v331
  %v1100 = vunpack.c.l.b16 %v332
  %v1101 = vunpack.c.l.b16 %v333
  %v1102 = vunpack.c.l.b16 %v334
  %v1103 = vunpack.c.l.b16 %v335
  %v1104 = vunpack.c.l.b16 %v336
  %v1105 = vunpack.c.l.b16 %v337
  %v1106 = vpack.c.b16 %v1043, %v1042
  %v1107 = vpack.c.b16 %v1045, %v1044
  %v1108 = vpack.c.b16 %v1047, %v1046
  %v1109 = vpack.c.b16 %v1049, %v1048
  %v1110 = vpack.c.b16 %v1051, %v1050
  %v1111 = vpack.c.b16 %v1053, %v1052
  %v1112 = vpack.c.b16 %v1055, %v1054
  %v1113 = vpack.c.b16 %v1057, %v1056
  %v1114 = vpack.c.b16 %v1059, %v1058
  %v1115 = vpack.c.b16 %v1061, %v1060
  %v1116 = vpack.c.b16 %v1063, %v1062
  %v1117 = vpack.c.b16 %v1065, %v1064
  %v1118 = vpack.c.b16 %v1067, %v1066
  %v1119 = vpack.c.b16 %v1069, %v1068
  %v1120 = vpack.c.b16 %v1071, %v1070
  %v1121 = vpack.c.b16 %v1073, %v1072
  %v1122 = vpack.c.b16 %v1075, %v1074
  %v1123 = vpack.c.b16 %v1077, %v1076
  %v1124 = vpack.c.b16 %v1079, %v1078
  %v1125 = vpack.c.b16 %v1081, %v1080
  %v1126 = vpack.c.b16 %v1083, %v1082
  %v1127 = vpack.c.b16 %v1085, %v1084
  %v1128 = vpack.c.b16 %v1087, %v1086
  %v1129 = vpack.c.b16 %v1089, %v1088
  %v1130 = vpack.c.b16 %v1091, %v1090
  %v1131 = vpack.c.b16 %v1093, %v1092
  %v1132 = vpack.c.b16 %v1095, %v1094
  %v1133 = vpack.c.b16 %v1097, %v1096
  %v1134 = vpack.c.b16 %v1099, %v1098
  %v1135 = vpack.c.b16 %v1101, %v1100
  %v1136 = vpack.c.b16 %v1103, %v1102
  %v1137 = vpack.c.b16 %v1105, %v1104
  %1170 = vmatpush.bf16.msra.mxu0 %v1113
  %1171 = vmatpush.bf16.msra.mxu0 %v1112
  %1172 = vmatpush.bf16.msra.mxu0 %v1111
  %1173 = vmatpush.bf16.msra.mxu0 %v1110
  %1174 = vmatpush.bf16.msra.mxu0 %v1109
  %1175 = vmatpush.bf16.msra.mxu0 %v1108
  %1176 = vmatpush.bf16.msra.mxu0 %v1107
  %1177 = vmatpush.bf16.msra.mxu0 %v1106
  %1178 = vmatmul.bf16.gmra.mxu0 %v722
  %v1179 = vpop.f32.mrf.mxu0
  %v1180 = vadd.f32 0.0, %v1179
  %v1181 = vpop.f32.mrf.mxu0
  %v1182 = vadd.f32 0.0, %v1181
  %1183 = vmatmul.bf16.gmra.mxu0 %v726
  %v1184 = vpop.f32.mrf.mxu0
  %v1185 = vadd.f32 0.0, %v1184
  %v1186 = vpop.f32.mrf.mxu0
  %v1187 = vadd.f32 0.0, %v1186
  %1188 = vmatmul.bf16.gmra.mxu0 %v730
  %v1189 = vpop.f32.mrf.mxu0
  %v1190 = vadd.f32 0.0, %v1189
  %v1191 = vpop.f32.mrf.mxu0
  %v1192 = vadd.f32 0.0, %v1191
  %1193 = vmatmul.bf16.gmra.mxu0 %v734
  %v1194 = vpop.f32.mrf.mxu0
  %v1195 = vadd.f32 0.0, %v1194
  %v1196 = vpop.f32.mrf.mxu0
  %v1197 = vadd.f32 0.0, %v1196
  %1198 = vmatmul.bf16.gmra.mxu0 %v738
  %v1199 = vpop.f32.mrf.mxu0
  %v1200 = vadd.f32 0.0, %v1199
  %v1201 = vpop.f32.mrf.mxu0
  %v1202 = vadd.f32 0.0, %v1201
  %1203 = vmatmul.bf16.gmra.mxu0 %v742
  %v1204 = vpop.f32.mrf.mxu0
  %v1205 = vadd.f32 0.0, %v1204
  %v1206 = vpop.f32.mrf.mxu0
  %v1207 = vadd.f32 0.0, %v1206
  %1208 = vmatmul.bf16.gmra.mxu0 %v746
  %v1209 = vpop.f32.mrf.mxu0
  %v1210 = vadd.f32 0.0, %v1209
  %v1211 = vpop.f32.mrf.mxu0
  %v1212 = vadd.f32 0.0, %v1211
  %1213 = vmatmul.bf16.gmra.mxu0 %v750
  %v1214 = vpop.f32.mrf.mxu0
  %v1215 = vadd.f32 0.0, %v1214
  %v1216 = vpop.f32.mrf.mxu0
  %v1217 = vadd.f32 0.0, %v1216
  %1218 = vmatmul.bf16.gmra.mxu0 %v754
  %v1219 = vpop.f32.mrf.mxu0
  %v1220 = vadd.f32 0.0, %v1219
  %v1221 = vpop.f32.mrf.mxu0
  %v1222 = vadd.f32 0.0, %v1221
  %1223 = vmatmul.bf16.gmra.mxu0 %v758
  %v1224 = vpop.f32.mrf.mxu0
  %v1225 = vadd.f32 0.0, %v1224
  %v1226 = vpop.f32.mrf.mxu0
  %v1227 = vadd.f32 0.0, %v1226
  %1228 = vmatmul.bf16.gmra.mxu0 %v762
  %v1229 = vpop.f32.mrf.mxu0
  %v1230 = vadd.f32 0.0, %v1229
  %v1231 = vpop.f32.mrf.mxu0
  %v1232 = vadd.f32 0.0, %v1231
  %1233 = vmatmul.bf16.gmra.mxu0 %v766
  %v1234 = vpop.f32.mrf.mxu0
  %v1235 = vadd.f32 0.0, %v1234
  %v1236 = vpop.f32.mrf.mxu0
  %v1237 = vadd.f32 0.0, %v1236
  %1238 = vmatmul.bf16.gmra.mxu0 %v770
  %v1239 = vpop.f32.mrf.mxu0
  %v1240 = vadd.f32 0.0, %v1239
  %v1241 = vpop.f32.mrf.mxu0
  %v1242 = vadd.f32 0.0, %v1241
  %1243 = vmatmul.bf16.gmra.mxu0 %v774
  %v1244 = vpop.f32.mrf.mxu0
  %v1245 = vadd.f32 0.0, %v1244
  %v1246 = vpop.f32.mrf.mxu0
  %v1247 = vadd.f32 0.0, %v1246
  %1248 = vmatmul.bf16.gmra.mxu0 %v778
  %v1249 = vpop.f32.mrf.mxu0
  %v1250 = vadd.f32 0.0, %v1249
  %v1251 = vpop.f32.mrf.mxu0
  %v1252 = vadd.f32 0.0, %v1251
  %1253 = vmatmul.bf16.gmra.mxu0 %v782
  %v1254 = vpop.f32.mrf.mxu0
  %v1255 = vadd.f32 0.0, %v1254
  %v1256 = vpop.f32.mrf.mxu0
  %v1257 = vadd.f32 0.0, %v1256
  %1258 = vmatmul.bf16.gmra.mxu0 %v786
  %v1259 = vpop.f32.mrf.mxu0
  %v1260 = vadd.f32 0.0, %v1259
  %v1261 = vpop.f32.mrf.mxu0
  %v1262 = vadd.f32 0.0, %v1261
  %1263 = vmatmul.bf16.gmra.mxu0 %v790
  %v1264 = vpop.f32.mrf.mxu0
  %v1265 = vadd.f32 0.0, %v1264
  %v1266 = vpop.f32.mrf.mxu0
  %v1267 = vadd.f32 0.0, %v1266
  %1268 = vmatmul.bf16.gmra.mxu0 %v794
  %v1269 = vpop.f32.mrf.mxu0
  %v1270 = vadd.f32 0.0, %v1269
  %v1271 = vpop.f32.mrf.mxu0
  %v1272 = vadd.f32 0.0, %v1271
  %1273 = vmatmul.bf16.gmra.mxu0 %v798
  %v1274 = vpop.f32.mrf.mxu0
  %v1275 = vadd.f32 0.0, %v1274
  %v1276 = vpop.f32.mrf.mxu0
  %v1277 = vadd.f32 0.0, %v1276
  %1278 = vmatmul.bf16.gmra.mxu0 %v802
  %v1279 = vpop.f32.mrf.mxu0
  %v1280 = vadd.f32 0.0, %v1279
  %v1281 = vpop.f32.mrf.mxu0
  %v1282 = vadd.f32 0.0, %v1281
  %1283 = vmatmul.bf16.gmra.mxu0 %v806
  %v1284 = vpop.f32.mrf.mxu0
  %v1285 = vadd.f32 0.0, %v1284
  %v1286 = vpop.f32.mrf.mxu0
  %v1287 = vadd.f32 0.0, %v1286
  %1288 = vmatmul.bf16.gmra.mxu0 %v810
  %v1289 = vpop.f32.mrf.mxu0
  %v1290 = vadd.f32 0.0, %v1289
  %v1291 = vpop.f32.mrf.mxu0
  %v1292 = vadd.f32 0.0, %v1291
  %1293 = vmatmul.bf16.gmra.mxu0 %v814
  %v1294 = vpop.f32.mrf.mxu0
  %v1295 = vadd.f32 0.0, %v1294
  %v1296 = vpop.f32.mrf.mxu0
  %v1297 = vadd.f32 0.0, %v1296
  %1298 = vmatmul.bf16.gmra.mxu0 %v818
  %v1299 = vpop.f32.mrf.mxu0
  %v1300 = vadd.f32 0.0, %v1299
  %v1301 = vpop.f32.mrf.mxu0
  %v1302 = vadd.f32 0.0, %v1301
  %1303 = vmatmul.bf16.gmra.mxu0 %v822
  %v1304 = vpop.f32.mrf.mxu0
  %v1305 = vadd.f32 0.0, %v1304
  %v1306 = vpop.f32.mrf.mxu0
  %v1307 = vadd.f32 0.0, %v1306
  %1308 = vmatmul.bf16.gmra.mxu0 %v826
  %v1309 = vpop.f32.mrf.mxu0
  %v1310 = vadd.f32 0.0, %v1309
  %v1311 = vpop.f32.mrf.mxu0
  %v1312 = vadd.f32 0.0, %v1311
  %1313 = vmatmul.bf16.gmra.mxu0 %v830
  %v1314 = vpop.f32.mrf.mxu0
  %v1315 = vadd.f32 0.0, %v1314
  %v1316 = vpop.f32.mrf.mxu0
  %v1317 = vadd.f32 0.0, %v1316
  %1318 = vmatmul.bf16.gmra.mxu0 %v834
  %v1319 = vpop.f32.mrf.mxu0
  %v1320 = vadd.f32 0.0, %v1319
  %v1321 = vpop.f32.mrf.mxu0
  %v1322 = vadd.f32 0.0, %v1321
  %1323 = vmatmul.bf16.gmra.mxu0 %v838
  %v1324 = vpop.f32.mrf.mxu0
  %v1325 = vadd.f32 0.0, %v1324
  %v1326 = vpop.f32.mrf.mxu0
  %v1327 = vadd.f32 0.0, %v1326
  %1328 = vmatmul.bf16.gmra.mxu0 %v842
  %v1329 = vpop.f32.mrf.mxu0
  %v1330 = vadd.f32 0.0, %v1329
  %v1331 = vpop.f32.mrf.mxu0
  %v1332 = vadd.f32 0.0, %v1331
  %1333 = vmatmul.bf16.gmra.mxu0 %v846
  %v1334 = vpop.f32.mrf.mxu0
  %v1335 = vadd.f32 0.0, %v1334
  %v1336 = vpop.f32.mrf.mxu0
  %v1337 = vadd.f32 0.0, %v1336
  %1338 = vdwg.mxu0
  %1339 = vmatpush.bf16.msra.mxu0 %v1121
  %1340 = vmatpush.bf16.msra.mxu0 %v1120
  %1341 = vmatpush.bf16.msra.mxu0 %v1119
  %1342 = vmatpush.bf16.msra.mxu0 %v1118
  %1343 = vmatpush.bf16.msra.mxu0 %v1117
  %1344 = vmatpush.bf16.msra.mxu0 %v1116
  %1345 = vmatpush.bf16.msra.mxu0 %v1115
  %1346 = vmatpush.bf16.msra.mxu0 %v1114
  %1347 = vmatmul.bf16.gmra.mxu0 %v723
  %v1348 = vpop.f32.mrf.mxu0
  %v1349 = vadd.f32 %v1180, %v1348
  %v1350 = vpop.f32.mrf.mxu0
  %v1351 = vadd.f32 %v1182, %v1350
  %1352 = vmatmul.bf16.gmra.mxu0 %v727
  %v1353 = vpop.f32.mrf.mxu0
  %v1354 = vadd.f32 %v1185, %v1353
  %v1355 = vpop.f32.mrf.mxu0
  %v1356 = vadd.f32 %v1187, %v1355
  %1357 = vmatmul.bf16.gmra.mxu0 %v731
  %v1358 = vpop.f32.mrf.mxu0
  %v1359 = vadd.f32 %v1190, %v1358
  %v1360 = vpop.f32.mrf.mxu0
  %v1361 = vadd.f32 %v1192, %v1360
  %1362 = vmatmul.bf16.gmra.mxu0 %v735
  %v1363 = vpop.f32.mrf.mxu0
  %v1364 = vadd.f32 %v1195, %v1363
  %v1365 = vpop.f32.mrf.mxu0
  %v1366 = vadd.f32 %v1197, %v1365
  %1367 = vmatmul.bf16.gmra.mxu0 %v739
  %v1368 = vpop.f32.mrf.mxu0
  %v1369 = vadd.f32 %v1200, %v1368
  %v1370 = vpop.f32.mrf.mxu0
  %v1371 = vadd.f32 %v1202, %v1370
  %1372 = vmatmul.bf16.gmra.mxu0 %v743
  %v1373 = vpop.f32.mrf.mxu0
  %v1374 = vadd.f32 %v1205, %v1373
  %v1375 = vpop.f32.mrf.mxu0
  %v1376 = vadd.f32 %v1207, %v1375
  %1377 = vmatmul.bf16.gmra.mxu0 %v747
  %v1378 = vpop.f32.mrf.mxu0
  %v1379 = vadd.f32 %v1210, %v1378
  %v1380 = vpop.f32.mrf.mxu0
  %v1381 = vadd.f32 %v1212, %v1380
  %1382 = vmatmul.bf16.gmra.mxu0 %v751
  %v1383 = vpop.f32.mrf.mxu0
  %v1384 = vadd.f32 %v1215, %v1383
  %v1385 = vpop.f32.mrf.mxu0
  %v1386 = vadd.f32 %v1217, %v1385
  %1387 = vmatmul.bf16.gmra.mxu0 %v755
  %v1388 = vpop.f32.mrf.mxu0
  %v1389 = vadd.f32 %v1220, %v1388
  %v1390 = vpop.f32.mrf.mxu0
  %v1391 = vadd.f32 %v1222, %v1390
  %1392 = vmatmul.bf16.gmra.mxu0 %v759
  %v1393 = vpop.f32.mrf.mxu0
  %v1394 = vadd.f32 %v1225, %v1393
  %v1395 = vpop.f32.mrf.mxu0
  %v1396 = vadd.f32 %v1227, %v1395
  %1397 = vmatmul.bf16.gmra.mxu0 %v763
  %v1398 = vpop.f32.mrf.mxu0
  %v1399 = vadd.f32 %v1230, %v1398
  %v1400 = vpop.f32.mrf.mxu0
  %v1401 = vadd.f32 %v1232, %v1400
  %1402 = vmatmul.bf16.gmra.mxu0 %v767
  %v1403 = vpop.f32.mrf.mxu0
  %v1404 = vadd.f32 %v1235, %v1403
  %v1405 = vpop.f32.mrf.mxu0
  %v1406 = vadd.f32 %v1237, %v1405
  %1407 = vmatmul.bf16.gmra.mxu0 %v771
  %v1408 = vpop.f32.mrf.mxu0
  %v1409 = vadd.f32 %v1240, %v1408
  %v1410 = vpop.f32.mrf.mxu0
  %v1411 = vadd.f32 %v1242, %v1410
  %1412 = vmatmul.bf16.gmra.mxu0 %v775
  %v1413 = vpop.f32.mrf.mxu0
  %v1414 = vadd.f32 %v1245, %v1413
  %v1415 = vpop.f32.mrf.mxu0
  %v1416 = vadd.f32 %v1247, %v1415
  %1417 = vmatmul.bf16.gmra.mxu0 %v779
  %v1418 = vpop.f32.mrf.mxu0
  %v1419 = vadd.f32 %v1250, %v1418
  %v1420 = vpop.f32.mrf.mxu0
  %v1421 = vadd.f32 %v1252, %v1420
  %1422 = vmatmul.bf16.gmra.mxu0 %v783
  %v1423 = vpop.f32.mrf.mxu0
  %v1424 = vadd.f32 %v1255, %v1423
  %v1425 = vpop.f32.mrf.mxu0
  %v1426 = vadd.f32 %v1257, %v1425
  %1427 = vmatmul.bf16.gmra.mxu0 %v787
  %v1428 = vpop.f32.mrf.mxu0
  %v1429 = vadd.f32 %v1260, %v1428
  %v1430 = vpop.f32.mrf.mxu0
  %v1431 = vadd.f32 %v1262, %v1430
  %1432 = vmatmul.bf16.gmra.mxu0 %v791
  %v1433 = vpop.f32.mrf.mxu0
  %v1434 = vadd.f32 %v1265, %v1433
  %v1435 = vpop.f32.mrf.mxu0
  %v1436 = vadd.f32 %v1267, %v1435
  %1437 = vmatmul.bf16.gmra.mxu0 %v795
  %v1438 = vpop.f32.mrf.mxu0
  %v1439 = vadd.f32 %v1270, %v1438
  %v1440 = vpop.f32.mrf.mxu0
  %v1441 = vadd.f32 %v1272, %v1440
  %1442 = vmatmul.bf16.gmra.mxu0 %v799
  %v1443 = vpop.f32.mrf.mxu0
  %v1444 = vadd.f32 %v1275, %v1443
  %v1445 = vpop.f32.mrf.mxu0
  %v1446 = vadd.f32 %v1277, %v1445
  %1447 = vmatmul.bf16.gmra.mxu0 %v803
  %v1448 = vpop.f32.mrf.mxu0
  %v1449 = vadd.f32 %v1280, %v1448
  %v1450 = vpop.f32.mrf.mxu0
  %v1451 = vadd.f32 %v1282, %v1450
  %1452 = vmatmul.bf16.gmra.mxu0 %v807
  %v1453 = vpop.f32.mrf.mxu0
  %v1454 = vadd.f32 %v1285, %v1453
  %v1455 = vpop.f32.mrf.mxu0
  %v1456 = vadd.f32 %v1287, %v1455
  %1457 = vmatmul.bf16.gmra.mxu0 %v811
  %v1458 = vpop.f32.mrf.mxu0
  %v1459 = vadd.f32 %v1290, %v1458
  %v1460 = vpop.f32.mrf.mxu0
  %v1461 = vadd.f32 %v1292, %v1460
  %1462 = vmatmul.bf16.gmra.mxu0 %v815
  %v1463 = vpop.f32.mrf.mxu0
  %v1464 = vadd.f32 %v1295, %v1463
  %v1465 = vpop.f32.mrf.mxu0
  %v1466 = vadd.f32 %v1297, %v1465
  %1467 = vmatmul.bf16.gmra.mxu0 %v819
  %v1468 = vpop.f32.mrf.mxu0
  %v1469 = vadd.f32 %v1300, %v1468
  %v1470 = vpop.f32.mrf.mxu0
  %v1471 = vadd.f32 %v1302, %v1470
  %1472 = vmatmul.bf16.gmra.mxu0 %v823
  %v1473 = vpop.f32.mrf.mxu0
  %v1474 = vadd.f32 %v1305, %v1473
  %v1475 = vpop.f32.mrf.mxu0
  %v1476 = vadd.f32 %v1307, %v1475
  %1477 = vmatmul.bf16.gmra.mxu0 %v827
  %v1478 = vpop.f32.mrf.mxu0
  %v1479 = vadd.f32 %v1310, %v1478
  %v1480 = vpop.f32.mrf.mxu0
  %v1481 = vadd.f32 %v1312, %v1480
  %1482 = vmatmul.bf16.gmra.mxu0 %v831
  %v1483 = vpop.f32.mrf.mxu0
  %v1484 = vadd.f32 %v1315, %v1483
  %v1485 = vpop.f32.mrf.mxu0
  %v1486 = vadd.f32 %v1317, %v1485
  %1487 = vmatmul.bf16.gmra.mxu0 %v835
  %v1488 = vpop.f32.mrf.mxu0
  %v1489 = vadd.f32 %v1320, %v1488
  %v1490 = vpop.f32.mrf.mxu0
  %v1491 = vadd.f32 %v1322, %v1490
  %1492 = vmatmul.bf16.gmra.mxu0 %v839
  %v1493 = vpop.f32.mrf.mxu0
  %v1494 = vadd.f32 %v1325, %v1493
  %v1495 = vpop.f32.mrf.mxu0
  %v1496 = vadd.f32 %v1327, %v1495
  %1497 = vmatmul.bf16.gmra.mxu0 %v843
  %v1498 = vpop.f32.mrf.mxu0
  %v1499 = vadd.f32 %v1330, %v1498
  %v1500 = vpop.f32.mrf.mxu0
  %v1501 = vadd.f32 %v1332, %v1500
  %1502 = vmatmul.bf16.gmra.mxu0 %v847
  %v1503 = vpop.f32.mrf.mxu0
  %v1504 = vadd.f32 %v1335, %v1503
  %v1505 = vpop.f32.mrf.mxu0
  %v1506 = vadd.f32 %v1337, %v1505
  %1507 = vdwg.mxu0
  %1508 = vmatpush.bf16.msra.mxu0 %v1129
  %1509 = vmatpush.bf16.msra.mxu0 %v1128
  %1510 = vmatpush.bf16.msra.mxu0 %v1127
  %1511 = vmatpush.bf16.msra.mxu0 %v1126
  %1512 = vmatpush.bf16.msra.mxu0 %v1125
  %1513 = vmatpush.bf16.msra.mxu0 %v1124
  %1514 = vmatpush.bf16.msra.mxu0 %v1123
  %1515 = vmatpush.bf16.msra.mxu0 %v1122
  %1516 = vmatmul.bf16.gmra.mxu0 %v724
  %v1517 = vpop.f32.mrf.mxu0
  %v1518 = vadd.f32 %v1349, %v1517
  %v1519 = vpop.f32.mrf.mxu0
  %v1520 = vadd.f32 %v1351, %v1519
  %1521 = vmatmul.bf16.gmra.mxu0 %v728
  %v1522 = vpop.f32.mrf.mxu0
  %v1523 = vadd.f32 %v1354, %v1522
  %v1524 = vpop.f32.mrf.mxu0
  %v1525 = vadd.f32 %v1356, %v1524
  %1526 = vmatmul.bf16.gmra.mxu0 %v732
  %v1527 = vpop.f32.mrf.mxu0
  %v1528 = vadd.f32 %v1359, %v1527
  %v1529 = vpop.f32.mrf.mxu0
  %v1530 = vadd.f32 %v1361, %v1529
  %1531 = vmatmul.bf16.gmra.mxu0 %v736
  %v1532 = vpop.f32.mrf.mxu0
  %v1533 = vadd.f32 %v1364, %v1532
  %v1534 = vpop.f32.mrf.mxu0
  %v1535 = vadd.f32 %v1366, %v1534
  %1536 = vmatmul.bf16.gmra.mxu0 %v740
  %v1537 = vpop.f32.mrf.mxu0
  %v1538 = vadd.f32 %v1369, %v1537
  %v1539 = vpop.f32.mrf.mxu0
  %v1540 = vadd.f32 %v1371, %v1539
  %1541 = vmatmul.bf16.gmra.mxu0 %v744
  %v1542 = vpop.f32.mrf.mxu0
  %v1543 = vadd.f32 %v1374, %v1542
  %v1544 = vpop.f32.mrf.mxu0
  %v1545 = vadd.f32 %v1376, %v1544
  %1546 = vmatmul.bf16.gmra.mxu0 %v748
  %v1547 = vpop.f32.mrf.mxu0
  %v1548 = vadd.f32 %v1379, %v1547
  %v1549 = vpop.f32.mrf.mxu0
  %v1550 = vadd.f32 %v1381, %v1549
  %1551 = vmatmul.bf16.gmra.mxu0 %v752
  %v1552 = vpop.f32.mrf.mxu0
  %v1553 = vadd.f32 %v1384, %v1552
  %v1554 = vpop.f32.mrf.mxu0
  %v1555 = vadd.f32 %v1386, %v1554
  %1556 = vmatmul.bf16.gmra.mxu0 %v756
  %v1557 = vpop.f32.mrf.mxu0
  %v1558 = vadd.f32 %v1389, %v1557
  %v1559 = vpop.f32.mrf.mxu0
  %v1560 = vadd.f32 %v1391, %v1559
  %1561 = vmatmul.bf16.gmra.mxu0 %v760
  %v1562 = vpop.f32.mrf.mxu0
  %v1563 = vadd.f32 %v1394, %v1562
  %v1564 = vpop.f32.mrf.mxu0
  %v1565 = vadd.f32 %v1396, %v1564
  %1566 = vmatmul.bf16.gmra.mxu0 %v764
  %v1567 = vpop.f32.mrf.mxu0
  %v1568 = vadd.f32 %v1399, %v1567
  %v1569 = vpop.f32.mrf.mxu0
  %v1570 = vadd.f32 %v1401, %v1569
  %1571 = vmatmul.bf16.gmra.mxu0 %v768
  %v1572 = vpop.f32.mrf.mxu0
  %v1573 = vadd.f32 %v1404, %v1572
  %v1574 = vpop.f32.mrf.mxu0
  %v1575 = vadd.f32 %v1406, %v1574
  %1576 = vmatmul.bf16.gmra.mxu0 %v772
  %v1577 = vpop.f32.mrf.mxu0
  %v1578 = vadd.f32 %v1409, %v1577
  %v1579 = vpop.f32.mrf.mxu0
  %v1580 = vadd.f32 %v1411, %v1579
  %1581 = vmatmul.bf16.gmra.mxu0 %v776
  %v1582 = vpop.f32.mrf.mxu0
  %v1583 = vadd.f32 %v1414, %v1582
  %v1584 = vpop.f32.mrf.mxu0
  %v1585 = vadd.f32 %v1416, %v1584
  %1586 = vmatmul.bf16.gmra.mxu0 %v780
  %v1587 = vpop.f32.mrf.mxu0
  %v1588 = vadd.f32 %v1419, %v1587
  %v1589 = vpop.f32.mrf.mxu0
  %v1590 = vadd.f32 %v1421, %v1589
  %1591 = vmatmul.bf16.gmra.mxu0 %v784
  %v1592 = vpop.f32.mrf.mxu0
  %v1593 = vadd.f32 %v1424, %v1592
  %v1594 = vpop.f32.mrf.mxu0
  %v1595 = vadd.f32 %v1426, %v1594
  %1596 = vmatmul.bf16.gmra.mxu0 %v788
  %v1597 = vpop.f32.mrf.mxu0
  %v1598 = vadd.f32 %v1429, %v1597
  %v1599 = vpop.f32.mrf.mxu0
  %v1600 = vadd.f32 %v1431, %v1599
  %1601 = vmatmul.bf16.gmra.mxu0 %v792
  %v1602 = vpop.f32.mrf.mxu0
  %v1603 = vadd.f32 %v1434, %v1602
  %v1604 = vpop.f32.mrf.mxu0
  %v1605 = vadd.f32 %v1436, %v1604
  %1606 = vmatmul.bf16.gmra.mxu0 %v796
  %v1607 = vpop.f32.mrf.mxu0
  %v1608 = vadd.f32 %v1439, %v1607
  %v1609 = vpop.f32.mrf.mxu0
  %v1610 = vadd.f32 %v1441, %v1609
  %1611 = vmatmul.bf16.gmra.mxu0 %v800
  %v1612 = vpop.f32.mrf.mxu0
  %v1613 = vadd.f32 %v1444, %v1612
  %v1614 = vpop.f32.mrf.mxu0
  %v1615 = vadd.f32 %v1446, %v1614
  %1616 = vmatmul.bf16.gmra.mxu0 %v804
  %v1617 = vpop.f32.mrf.mxu0
  %v1618 = vadd.f32 %v1449, %v1617
  %v1619 = vpop.f32.mrf.mxu0
  %v1620 = vadd.f32 %v1451, %v1619
  %1621 = vmatmul.bf16.gmra.mxu0 %v808
  %v1622 = vpop.f32.mrf.mxu0
  %v1623 = vadd.f32 %v1454, %v1622
  %v1624 = vpop.f32.mrf.mxu0
  %v1625 = vadd.f32 %v1456, %v1624
  %1626 = vmatmul.bf16.gmra.mxu0 %v812
  %v1627 = vpop.f32.mrf.mxu0
  %v1628 = vadd.f32 %v1459, %v1627
  %v1629 = vpop.f32.mrf.mxu0
  %v1630 = vadd.f32 %v1461, %v1629
  %1631 = vmatmul.bf16.gmra.mxu0 %v816
  %v1632 = vpop.f32.mrf.mxu0
  %v1633 = vadd.f32 %v1464, %v1632
  %v1634 = vpop.f32.mrf.mxu0
  %v1635 = vadd.f32 %v1466, %v1634
  %1636 = vmatmul.bf16.gmra.mxu0 %v820
  %v1637 = vpop.f32.mrf.mxu0
  %v1638 = vadd.f32 %v1469, %v1637
  %v1639 = vpop.f32.mrf.mxu0
  %v1640 = vadd.f32 %v1471, %v1639
  %1641 = vmatmul.bf16.gmra.mxu0 %v824
  %v1642 = vpop.f32.mrf.mxu0
  %v1643 = vadd.f32 %v1474, %v1642
  %v1644 = vpop.f32.mrf.mxu0
  %v1645 = vadd.f32 %v1476, %v1644
  %1646 = vmatmul.bf16.gmra.mxu0 %v828
  %v1647 = vpop.f32.mrf.mxu0
  %v1648 = vadd.f32 %v1479, %v1647
  %v1649 = vpop.f32.mrf.mxu0
  %v1650 = vadd.f32 %v1481, %v1649
  %1651 = vmatmul.bf16.gmra.mxu0 %v832
  %v1652 = vpop.f32.mrf.mxu0
  %v1653 = vadd.f32 %v1484, %v1652
  %v1654 = vpop.f32.mrf.mxu0
  %v1655 = vadd.f32 %v1486, %v1654
  %1656 = vmatmul.bf16.gmra.mxu0 %v836
  %v1657 = vpop.f32.mrf.mxu0
  %v1658 = vadd.f32 %v1489, %v1657
  %v1659 = vpop.f32.mrf.mxu0
  %v1660 = vadd.f32 %v1491, %v1659
  %1661 = vmatmul.bf16.gmra.mxu0 %v840
  %v1662 = vpop.f32.mrf.mxu0
  %v1663 = vadd.f32 %v1494, %v1662
  %v1664 = vpop.f32.mrf.mxu0
  %v1665 = vadd.f32 %v1496, %v1664
  %1666 = vmatmul.bf16.gmra.mxu0 %v844
  %v1667 = vpop.f32.mrf.mxu0
  %v1668 = vadd.f32 %v1499, %v1667
  %v1669 = vpop.f32.mrf.mxu0
  %v1670 = vadd.f32 %v1501, %v1669
  %1671 = vmatmul.bf16.gmra.mxu0 %v848
  %v1672 = vpop.f32.mrf.mxu0
  %v1673 = vadd.f32 %v1504, %v1672
  %v1674 = vpop.f32.mrf.mxu0
  %v1675 = vadd.f32 %v1506, %v1674
  %1676 = vdwg.mxu0
  %1677 = vmatpush.bf16.msra.mxu0 %v1137
  %1678 = vmatpush.bf16.msra.mxu0 %v1136
  %1679 = vmatpush.bf16.msra.mxu0 %v1135
  %1680 = vmatpush.bf16.msra.mxu0 %v1134
  %1681 = vmatpush.bf16.msra.mxu0 %v1133
  %1682 = vmatpush.bf16.msra.mxu0 %v1132
  %1683 = vmatpush.bf16.msra.mxu0 %v1131
  %1684 = vmatpush.bf16.msra.mxu0 %v1130
  %1685 = vmatmul.bf16.gmra.mxu0 %v725
  %v1686 = vpop.f32.mrf.mxu0
  %v1687 = vadd.f32 %v1518, %v1686
  %v1688 = vpop.f32.mrf.mxu0
  %v1689 = vadd.f32 %v1520, %v1688
  %1690 = vmatmul.bf16.gmra.mxu0 %v729
  %v1691 = vpop.f32.mrf.mxu0
  %v1692 = vadd.f32 %v1523, %v1691
  %v1693 = vpop.f32.mrf.mxu0
  %v1694 = vadd.f32 %v1525, %v1693
  %1695 = vmatmul.bf16.gmra.mxu0 %v733
  %v1696 = vpop.f32.mrf.mxu0
  %v1697 = vadd.f32 %v1528, %v1696
  %v1698 = vpop.f32.mrf.mxu0
  %v1699 = vadd.f32 %v1530, %v1698
  %1700 = vmatmul.bf16.gmra.mxu0 %v737
  %v1701 = vpop.f32.mrf.mxu0
  %v1702 = vadd.f32 %v1533, %v1701
  %v1703 = vpop.f32.mrf.mxu0
  %v1704 = vadd.f32 %v1535, %v1703
  %1705 = vmatmul.bf16.gmra.mxu0 %v741
  %v1706 = vpop.f32.mrf.mxu0
  %v1707 = vadd.f32 %v1538, %v1706
  %v1708 = vpop.f32.mrf.mxu0
  %v1709 = vadd.f32 %v1540, %v1708
  %1710 = vmatmul.bf16.gmra.mxu0 %v745
  %v1711 = vpop.f32.mrf.mxu0
  %v1712 = vadd.f32 %v1543, %v1711
  %v1713 = vpop.f32.mrf.mxu0
  %v1714 = vadd.f32 %v1545, %v1713
  %1715 = vmatmul.bf16.gmra.mxu0 %v749
  %v1716 = vpop.f32.mrf.mxu0
  %v1717 = vadd.f32 %v1548, %v1716
  %v1718 = vpop.f32.mrf.mxu0
  %v1719 = vadd.f32 %v1550, %v1718
  %1720 = vmatmul.bf16.gmra.mxu0 %v753
  %v1721 = vpop.f32.mrf.mxu0
  %v1722 = vadd.f32 %v1553, %v1721
  %v1723 = vpop.f32.mrf.mxu0
  %v1724 = vadd.f32 %v1555, %v1723
  %1725 = vmatmul.bf16.gmra.mxu0 %v757
  %v1726 = vpop.f32.mrf.mxu0
  %v1727 = vadd.f32 %v1558, %v1726
  %v1728 = vpop.f32.mrf.mxu0
  %v1729 = vadd.f32 %v1560, %v1728
  %1730 = vmatmul.bf16.gmra.mxu0 %v761
  %v1731 = vpop.f32.mrf.mxu0
  %v1732 = vadd.f32 %v1563, %v1731
  %v1733 = vpop.f32.mrf.mxu0
  %v1734 = vadd.f32 %v1565, %v1733
  %1735 = vmatmul.bf16.gmra.mxu0 %v765
  %v1736 = vpop.f32.mrf.mxu0
  %v1737 = vadd.f32 %v1568, %v1736
  %v1738 = vpop.f32.mrf.mxu0
  %v1739 = vadd.f32 %v1570, %v1738
  %1740 = vmatmul.bf16.gmra.mxu0 %v769
  %v1741 = vpop.f32.mrf.mxu0
  %v1742 = vadd.f32 %v1573, %v1741
  %v1743 = vpop.f32.mrf.mxu0
  %v1744 = vadd.f32 %v1575, %v1743
  %1745 = vmatmul.bf16.gmra.mxu0 %v773
  %v1746 = vpop.f32.mrf.mxu0
  %v1747 = vadd.f32 %v1578, %v1746
  %v1748 = vpop.f32.mrf.mxu0
  %v1749 = vadd.f32 %v1580, %v1748
  %1750 = vmatmul.bf16.gmra.mxu0 %v777
  %v1751 = vpop.f32.mrf.mxu0
  %v1752 = vadd.f32 %v1583, %v1751
  %v1753 = vpop.f32.mrf.mxu0
  %v1754 = vadd.f32 %v1585, %v1753
  %1755 = vmatmul.bf16.gmra.mxu0 %v781
  %v1756 = vpop.f32.mrf.mxu0
  %v1757 = vadd.f32 %v1588, %v1756
  %v1758 = vpop.f32.mrf.mxu0
  %v1759 = vadd.f32 %v1590, %v1758
  %1760 = vmatmul.bf16.gmra.mxu0 %v785
  %v1761 = vpop.f32.mrf.mxu0
  %v1762 = vadd.f32 %v1593, %v1761
  %v1763 = vpop.f32.mrf.mxu0
  %v1764 = vadd.f32 %v1595, %v1763
  %1765 = vmatmul.bf16.gmra.mxu0 %v789
  %v1766 = vpop.f32.mrf.mxu0
  %v1767 = vadd.f32 %v1598, %v1766
  %v1768 = vpop.f32.mrf.mxu0
  %v1769 = vadd.f32 %v1600, %v1768
  %1770 = vmatmul.bf16.gmra.mxu0 %v793
  %v1771 = vpop.f32.mrf.mxu0
  %v1772 = vadd.f32 %v1603, %v1771
  %v1773 = vpop.f32.mrf.mxu0
  %v1774 = vadd.f32 %v1605, %v1773
  %1775 = vmatmul.bf16.gmra.mxu0 %v797
  %v1776 = vpop.f32.mrf.mxu0
  %v1777 = vadd.f32 %v1608, %v1776
  %v1778 = vpop.f32.mrf.mxu0
  %v1779 = vadd.f32 %v1610, %v1778
  %1780 = vmatmul.bf16.gmra.mxu0 %v801
  %v1781 = vpop.f32.mrf.mxu0
  %v1782 = vadd.f32 %v1613, %v1781
  %v1783 = vpop.f32.mrf.mxu0
  %v1784 = vadd.f32 %v1615, %v1783
  %1785 = vmatmul.bf16.gmra.mxu0 %v805
  %v1786 = vpop.f32.mrf.mxu0
  %v1787 = vadd.f32 %v1618, %v1786
  %v1788 = vpop.f32.mrf.mxu0
  %v1789 = vadd.f32 %v1620, %v1788
  %1790 = vmatmul.bf16.gmra.mxu0 %v809
  %v1791 = vpop.f32.mrf.mxu0
  %v1792 = vadd.f32 %v1623, %v1791
  %v1793 = vpop.f32.mrf.mxu0
  %v1794 = vadd.f32 %v1625, %v1793
  %1795 = vmatmul.bf16.gmra.mxu0 %v813
  %v1796 = vpop.f32.mrf.mxu0
  %v1797 = vadd.f32 %v1628, %v1796
  %v1798 = vpop.f32.mrf.mxu0
  %v1799 = vadd.f32 %v1630, %v1798
  %1800 = vmatmul.bf16.gmra.mxu0 %v817
  %v1801 = vpop.f32.mrf.mxu0
  %v1802 = vadd.f32 %v1633, %v1801
  %v1803 = vpop.f32.mrf.mxu0
  %v1804 = vadd.f32 %v1635, %v1803
  %1805 = vmatmul.bf16.gmra.mxu0 %v821
  %v1806 = vpop.f32.mrf.mxu0
  %v1807 = vadd.f32 %v1638, %v1806
  %v1808 = vpop.f32.mrf.mxu0
  %v1809 = vadd.f32 %v1640, %v1808
  %1810 = vmatmul.bf16.gmra.mxu0 %v825
  %v1811 = vpop.f32.mrf.mxu0
  %v1812 = vadd.f32 %v1643, %v1811
  %v1813 = vpop.f32.mrf.mxu0
  %v1814 = vadd.f32 %v1645, %v1813
  %1815 = vmatmul.bf16.gmra.mxu0 %v829
  %v1816 = vpop.f32.mrf.mxu0
  %v1817 = vadd.f32 %v1648, %v1816
  %v1818 = vpop.f32.mrf.mxu0
  %v1819 = vadd.f32 %v1650, %v1818
  %1820 = vmatmul.bf16.gmra.mxu0 %v833
  %v1821 = vpop.f32.mrf.mxu0
  %v1822 = vadd.f32 %v1653, %v1821
  %v1823 = vpop.f32.mrf.mxu0
  %v1824 = vadd.f32 %v1655, %v1823
  %1825 = vmatmul.bf16.gmra.mxu0 %v837
  %v1826 = vpop.f32.mrf.mxu0
  %v1827 = vadd.f32 %v1658, %v1826
  %v1828 = vpop.f32.mrf.mxu0
  %v1829 = vadd.f32 %v1660, %v1828
  %1830 = vmatmul.bf16.gmra.mxu0 %v841
  %v1831 = vpop.f32.mrf.mxu0
  %v1832 = vadd.f32 %v1663, %v1831
  %v1833 = vpop.f32.mrf.mxu0
  %v1834 = vadd.f32 %v1665, %v1833
  %1835 = vmatmul.bf16.gmra.mxu0 %v845
  %v1836 = vpop.f32.mrf.mxu0
  %v1837 = vadd.f32 %v1668, %v1836
  %v1838 = vpop.f32.mrf.mxu0
  %v1839 = vadd.f32 %v1670, %v1838
  %1840 = vmatmul.bf16.gmra.mxu0 %v849
  %v1841 = vpop.f32.mrf.mxu0
  %v1842 = vadd.f32 %v1673, %v1841
  %v1843 = vpop.f32.mrf.mxu0
  %v1844 = vadd.f32 %v1675, %v1843
  %1845 = vdwg.mxu0
  %v1846 = vadd.f32 %v82, %v1687
  %v1847 = vadd.f32 %v83, %v1689
  %v1848 = vadd.f32 %v84, %v1692
  %v1849 = vadd.f32 %v85, %v1694
  %v1850 = vadd.f32 %v86, %v1697
  %v1851 = vadd.f32 %v87, %v1699
  %v1852 = vadd.f32 %v88, %v1702
  %v1853 = vadd.f32 %v89, %v1704
  %v1854 = vadd.f32 %v90, %v1707
  %v1855 = vadd.f32 %v91, %v1709
  %v1856 = vadd.f32 %v92, %v1712
  %v1857 = vadd.f32 %v93, %v1714
  %v1858 = vadd.f32 %v94, %v1717
  %v1859 = vadd.f32 %v95, %v1719
  %v1860 = vadd.f32 %v96, %v1722
  %v1861 = vadd.f32 %v97, %v1724
  %v1862 = vadd.f32 %v98, %v1727
  %v1863 = vadd.f32 %v99, %v1729
  %v1864 = vadd.f32 %v100, %v1732
  %v1865 = vadd.f32 %v101, %v1734
  %v1866 = vadd.f32 %v102, %v1737
  %v1867 = vadd.f32 %v103, %v1739
  %v1868 = vadd.f32 %v104, %v1742
  %v1869 = vadd.f32 %v105, %v1744
  %v1870 = vadd.f32 %v106, %v1747
  %v1871 = vadd.f32 %v107, %v1749
  %v1872 = vadd.f32 %v108, %v1752
  %v1873 = vadd.f32 %v109, %v1754
  %v1874 = vadd.f32 %v110, %v1757
  %v1875 = vadd.f32 %v111, %v1759
  %v1876 = vadd.f32 %v112, %v1762
  %v1877 = vadd.f32 %v113, %v1764
  %v1878 = vadd.f32 %v114, %v1767
  %v1879 = vadd.f32 %v115, %v1769
  %v1880 = vadd.f32 %v116, %v1772
  %v1881 = vadd.f32 %v117, %v1774
  %v1882 = vadd.f32 %v118, %v1777
  %v1883 = vadd.f32 %v119, %v1779
  %v1884 = vadd.f32 %v120, %v1782
  %v1885 = vadd.f32 %v121, %v1784
  %v1886 = vadd.f32 %v122, %v1787
  %v1887 = vadd.f32 %v123, %v1789
  %v1888 = vadd.f32 %v124, %v1792
  %v1889 = vadd.f32 %v125, %v1794
  %v1890 = vadd.f32 %v126, %v1797
  %v1891 = vadd.f32 %v127, %v1799
  %v1892 = vadd.f32 %v128, %v1802
  %v1893 = vadd.f32 %v129, %v1804
  %v1894 = vadd.f32 %v130, %v1807
  %v1895 = vadd.f32 %v131, %v1809
  %v1896 = vadd.f32 %v132, %v1812
  %v1897 = vadd.f32 %v133, %v1814
  %v1898 = vadd.f32 %v134, %v1817
  %v1899 = vadd.f32 %v135, %v1819
  %v1900 = vadd.f32 %v136, %v1822
  %v1901 = vadd.f32 %v137, %v1824
  %v1902 = vadd.f32 %v138, %v1827
  %v1903 = vadd.f32 %v139, %v1829
  %v1904 = vadd.f32 %v140, %v1832
  %v1905 = vadd.f32 %v141, %v1834
  %v1906 = vadd.f32 %v142, %v1837
  %v1907 = vadd.f32 %v143, %v1839
  %v1908 = vadd.f32 %v144, %v1842
  %v1909 = vadd.f32 %v145, %v1844
  %1910 = vst [vmem:[#allocation2] sm:$0xff] %v1846
  %1911 = vst [vmem:[#allocation2 + $0x8] sm:$0xff] %v1847
  %1912 = vst [vmem:[#allocation2 + $0x10] sm:$0xff] %v1848
  %1913 = vst [vmem:[#allocation2 + $0x18] sm:$0xff] %v1849
  %1914 = vst [vmem:[#allocation2 + $0x20] sm:$0xff] %v1850
  %1915 = vst [vmem:[#allocation2 + $0x28] sm:$0xff] %v1851
  %1916 = vst [vmem:[#allocation2 + $0x30] sm:$0xff] %v1852
  %1917 = vst [vmem:[#allocation2 + $0x38] sm:$0xff] %v1853
  %1918 = vst [vmem:[#allocation2 + $0x40] sm:$0xff] %v1854
  %1919 = vst [vmem:[#allocation2 + $0x48] sm:$0xff] %v1855
  %1920 = vst [vmem:[#allocation2 + $0x50] sm:$0xff] %v1856
  %1921 = vst [vmem:[#allocation2 + $0x58] sm:$0xff] %v1857
  %1922 = vst [vmem:[#allocation2 + $0x60] sm:$0xff] %v1858
  %1923 = vst [vmem:[#allocation2 + $0x68] sm:$0xff] %v1859
  %1924 = vst [vmem:[#allocation2 + $0x70] sm:$0xff] %v1860
  %1925 = vst [vmem:[#allocation2 + $0x78] sm:$0xff] %v1861
  %1926 = vst [vmem:[#allocation2 + $0x80] sm:$0xff] %v1862
  %1927 = vst [vmem:[#allocation2 + $0x88] sm:$0xff] %v1863
  %1928 = vst [vmem:[#allocation2 + $0x90] sm:$0xff] %v1864
  %1929 = vst [vmem:[#allocation2 + $0x98] sm:$0xff] %v1865
  %1930 = vst [vmem:[#allocation2 + $0xa0] sm:$0xff] %v1866
  %1931 = vst [vmem:[#allocation2 + $0xa8] sm:$0xff] %v1867
  %1932 = vst [vmem:[#allocation2 + $0xb0] sm:$0xff] %v1868
  %1933 = vst [vmem:[#allocation2 + $0xb8] sm:$0xff] %v1869
  %1934 = vst [vmem:[#allocation2 + $0xc0] sm:$0xff] %v1870
  %1935 = vst [vmem:[#allocation2 + $0xc8] sm:$0xff] %v1871
  %1936 = vst [vmem:[#allocation2 + $0xd0] sm:$0xff] %v1872
  %1937 = vst [vmem:[#allocation2 + $0xd8] sm:$0xff] %v1873
  %1938 = vst [vmem:[#allocation2 + $0xe0] sm:$0xff] %v1874
  %1939 = vst [vmem:[#allocation2 + $0xe8] sm:$0xff] %v1875
  %1940 = vst [vmem:[#allocation2 + $0xf0] sm:$0xff] %v1876
  %1941 = vst [vmem:[#allocation2 + $0xf8] sm:$0xff] %v1877
  %1942 = vst [vmem:[#allocation2 + $0x100] sm:$0xff] %v1878
  %1943 = vst [vmem:[#allocation2 + $0x108] sm:$0xff] %v1879
  %1944 = vst [vmem:[#allocation2 + $0x110] sm:$0xff] %v1880
  %1945 = vst [vmem:[#allocation2 + $0x118] sm:$0xff] %v1881
  %1946 = vst [vmem:[#allocation2 + $0x120] sm:$0xff] %v1882
  %1947 = vst [vmem:[#allocation2 + $0x128] sm:$0xff] %v1883
  %1948 = vst [vmem:[#allocation2 + $0x130] sm:$0xff] %v1884
  %1949 = vst [vmem:[#allocation2 + $0x138] sm:$0xff] %v1885
  %1950 = vst [vmem:[#allocation2 + $0x140] sm:$0xff] %v1886
  %1951 = vst [vmem:[#allocation2 + $0x148] sm:$0xff] %v1887
  %1952 = vst [vmem:[#allocation2 + $0x150] sm:$0xff] %v1888
  %1953 = vst [vmem:[#allocation2 + $0x158] sm:$0xff] %v1889
  %1954 = vst [vmem:[#allocation2 + $0x160] sm:$0xff] %v1890
  %1955 = vst [vmem:[#allocation2 + $0x168] sm:$0xff] %v1891
  %1956 = vst [vmem:[#allocation2 + $0x170] sm:$0xff] %v1892
  %1957 = vst [vmem:[#allocation2 + $0x178] sm:$0xff] %v1893
  %1958 = vst [vmem:[#allocation2 + $0x180] sm:$0xff] %v1894
  %1959 = vst [vmem:[#allocation2 + $0x188] sm:$0xff] %v1895
  %1960 = vst [vmem:[#allocation2 + $0x190] sm:$0xff] %v1896
  %1961 = vst [vmem:[#allocation2 + $0x198] sm:$0xff] %v1897
  %1962 = vst [vmem:[#allocation2 + $0x1a0] sm:$0xff] %v1898
  %1963 = vst [vmem:[#allocation2 + $0x1a8] sm:$0xff] %v1899
  %1964 = vst [vmem:[#allocation2 + $0x1b0] sm:$0xff] %v1900
  %1965 = vst [vmem:[#allocation2 + $0x1b8] sm:$0xff] %v1901
  %1966 = vst [vmem:[#allocation2 + $0x1c0] sm:$0xff] %v1902
  %1967 = vst [vmem:[#allocation2 + $0x1c8] sm:$0xff] %v1903
  %1968 = vst [vmem:[#allocation2 + $0x1d0] sm:$0xff] %v1904
  %1969 = vst [vmem:[#allocation2 + $0x1d8] sm:$0xff] %v1905
  %1970 = vst [vmem:[#allocation2 + $0x1e0] sm:$0xff] %v1906
  %1971 = vst [vmem:[#allocation2 + $0x1e8] sm:$0xff] %v1907
  %1972 = vst [vmem:[#allocation2 + $0x1f0] sm:$0xff] %v1908
  %1973 = vst [vmem:[#allocation2 + $0x1f8] sm:$0xff] %v1909
  // Predicated region
  $region18: #{resnet_generator_forward.37} parent=0 // pred_check
    %p1974 = pneg %p14
  $region19: #{resnet_generator_forward.37} parent=0 // pred_check_branch
    %1976 = sbr.rel (%p1974) target = $region21
  $region20: #{resnet_generator_forward.37} parent=0 // pred_region
    %v1977 = vld [vmem:[#allocation2] sm:$0xff]
    %v1978 = vld [vmem:[#allocation2 + $0x8] sm:$0xff]
    %v1979 = vld [vmem:[#allocation2 + $0x10] sm:$0xff]
    %v1980 = vld [vmem:[#allocation2 + $0x18] sm:$0xff]
    %v1981 = vld [vmem:[#allocation2 + $0x20] sm:$0xff]
    %v1982 = vld [vmem:[#allocation2 + $0x28] sm:$0xff]
    %v1983 = vld [vmem:[#allocation2 + $0x30] sm:$0xff]
    %v1984 = vld [vmem:[#allocation2 + $0x38] sm:$0xff]
    %v1985 = vld [vmem:[#allocation2 + $0x40] sm:$0xff]
    %v1986 = vld [vmem:[#allocation2 + $0x48] sm:$0xff]
    %v1987 = vld [vmem:[#allocation2 + $0x50] sm:$0xff]
    %v1988 = vld [vmem:[#allocation2 + $0x58] sm:$0xff]
    %v1989 = vld [vmem:[#allocation2 + $0x60] sm:$0xff]
    %v1990 = vld [vmem:[#allocation2 + $0x68] sm:$0xff]
    %v1991 = vld [vmem:[#allocation2 + $0x70] sm:$0xff]
    %v1992 = vld [vmem:[#allocation2 + $0x78] sm:$0xff]
    %v1993 = vld [vmem:[#allocation2 + $0x80] sm:$0xff]
    %v1994 = vld [vmem:[#allocation2 + $0x88] sm:$0xff]
    %v1995 = vld [vmem:[#allocation2 + $0x90] sm:$0xff]
    %v1996 = vld [vmem:[#allocation2 + $0x98] sm:$0xff]
    %v1997 = vld [vmem:[#allocation2 + $0xa0] sm:$0xff]
    %v1998 = vld [vmem:[#allocation2 + $0xa8] sm:$0xff]
    %v1999 = vld [vmem:[#allocation2 + $0xb0] sm:$0xff]
    %v2000 = vld [vmem:[#allocation2 + $0xb8] sm:$0xff]
    %v2001 = vld [vmem:[#allocation2 + $0xc0] sm:$0xff]
    %v2002 = vld [vmem:[#allocation2 + $0xc8] sm:$0xff]
    %v2003 = vld [vmem:[#allocation2 + $0xd0] sm:$0xff]
    %v2004 = vld [vmem:[#allocation2 + $0xd8] sm:$0xff]
    %v2005 = vld [vmem:[#allocation2 + $0xe0] sm:$0xff]
    %v2006 = vld [vmem:[#allocation2 + $0xe8] sm:$0xff]
    %v2007 = vld [vmem:[#allocation2 + $0xf0] sm:$0xff]
    %v2008 = vld [vmem:[#allocation2 + $0xf8] sm:$0xff]
    %v2009 = vld [vmem:[#allocation2 + $0x100] sm:$0xff]
    %v2010 = vld [vmem:[#allocation2 + $0x108] sm:$0xff]
    %v2011 = vld [vmem:[#allocation2 + $0x110] sm:$0xff]
    %v2012 = vld [vmem:[#allocation2 + $0x118] sm:$0xff]
    %v2013 = vld [vmem:[#allocation2 + $0x120] sm:$0xff]
    %v2014 = vld [vmem:[#allocation2 + $0x128] sm:$0xff]
    %v2015 = vld [vmem:[#allocation2 + $0x130] sm:$0xff]
    %v2016 = vld [vmem:[#allocation2 + $0x138] sm:$0xff]
    %v2017 = vld [vmem:[#allocation2 + $0x140] sm:$0xff]
    %v2018 = vld [vmem:[#allocation2 + $0x148] sm:$0xff]
    %v2019 = vld [vmem:[#allocation2 + $0x150] sm:$0xff]
    %v2020 = vld [vmem:[#allocation2 + $0x158] sm:$0xff]
    %v2021 = vld [vmem:[#allocation2 + $0x160] sm:$0xff]
    %v2022 = vld [vmem:[#allocation2 + $0x168] sm:$0xff]
    %v2023 = vld [vmem:[#allocation2 + $0x170] sm:$0xff]
    %v2024 = vld [vmem:[#allocation2 + $0x178] sm:$0xff]
    %v2025 = vld [vmem:[#allocation2 + $0x180] sm:$0xff]
    %v2026 = vld [vmem:[#allocation2 + $0x188] sm:$0xff]
    %v2027 = vld [vmem:[#allocation2 + $0x190] sm:$0xff]
    %v2028 = vld [vmem:[#allocation2 + $0x198] sm:$0xff]
    %v2029 = vld [vmem:[#allocation2 + $0x1a0] sm:$0xff]
    %v2030 = vld [vmem:[#allocation2 + $0x1a8] sm:$0xff]
    %v2031 = vld [vmem:[#allocation2 + $0x1b0] sm:$0xff]
    %v2032 = vld [vmem:[#allocation2 + $0x1b8] sm:$0xff]
    %v2033 = vld [vmem:[#allocation2 + $0x1c0] sm:$0xff]
    %v2034 = vld [vmem:[#allocation2 + $0x1c8] sm:$0xff]
    %v2035 = vld [vmem:[#allocation2 + $0x1d0] sm:$0xff]
    %v2036 = vld [vmem:[#allocation2 + $0x1d8] sm:$0xff]
    %v2037 = vld [vmem:[#allocation2 + $0x1e0] sm:$0xff]
    %v2038 = vld [vmem:[#allocation2 + $0x1e8] sm:$0xff]
    %v2039 = vld [vmem:[#allocation2 + $0x1f0] sm:$0xff]
    %v2040 = vld [vmem:[#allocation2 + $0x1f8] sm:$0xff]
    %v2041 = vld [vmem:[%s2] sm:$0x1]
    %v2043 = vperm.slane %v2041, 0
    %v2045 = vadd.f32 %v1977, %v2043
    %v2046 = vadd.f32 %v1978, %v2043
    %v2047 = vadd.f32 %v1979, %v2043
    %v2048 = vadd.f32 %v1980, %v2043
    %v2049 = vadd.f32 %v1981, %v2043
    %v2050 = vadd.f32 %v1982, %v2043
    %v2051 = vadd.f32 %v1983, %v2043
    %v2052 = vadd.f32 %v1984, %v2043
    %v2053 = vadd.f32 %v1985, %v2043
    %v2054 = vadd.f32 %v1986, %v2043
    %v2055 = vadd.f32 %v1987, %v2043
    %v2056 = vadd.f32 %v1988, %v2043
    %v2057 = vadd.f32 %v1989, %v2043
    %v2058 = vadd.f32 %v1990, %v2043
    %v2059 = vadd.f32 %v1991, %v2043
    %v2060 = vadd.f32 %v1992, %v2043
    %v2061 = vadd.f32 %v1993, %v2043
    %v2062 = vadd.f32 %v1994, %v2043
    %v2063 = vadd.f32 %v1995, %v2043
    %v2064 = vadd.f32 %v1996, %v2043
    %v2065 = vadd.f32 %v1997, %v2043
    %v2066 = vadd.f32 %v1998, %v2043
    %v2067 = vadd.f32 %v1999, %v2043
    %v2068 = vadd.f32 %v2000, %v2043
    %v2069 = vadd.f32 %v2001, %v2043
    %v2070 = vadd.f32 %v2002, %v2043
    %v2071 = vadd.f32 %v2003, %v2043
    %v2072 = vadd.f32 %v2004, %v2043
    %v2073 = vadd.f32 %v2005, %v2043
    %v2074 = vadd.f32 %v2006, %v2043
    %v2075 = vadd.f32 %v2007, %v2043
    %v2076 = vadd.f32 %v2008, %v2043
    %v2077 = vadd.f32 %v2009, %v2043
    %v2078 = vadd.f32 %v2010, %v2043
    %v2079 = vadd.f32 %v2011, %v2043
    %v2080 = vadd.f32 %v2012, %v2043
    %v2081 = vadd.f32 %v2013, %v2043
    %v2082 = vadd.f32 %v2014, %v2043
    %v2083 = vadd.f32 %v2015, %v2043
    %v2084 = vadd.f32 %v2016, %v2043
    %v2085 = vadd.f32 %v2017, %v2043
    %v2086 = vadd.f32 %v2018, %v2043
    %v2087 = vadd.f32 %v2019, %v2043
    %v2088 = vadd.f32 %v2020, %v2043
    %v2089 = vadd.f32 %v2021, %v2043
    %v2090 = vadd.f32 %v2022, %v2043
    %v2091 = vadd.f32 %v2023, %v2043
    %v2092 = vadd.f32 %v2024, %v2043
    %v2093 = vadd.f32 %v2025, %v2043
    %v2094 = vadd.f32 %v2026, %v2043
    %v2095 = vadd.f32 %v2027, %v2043
    %v2096 = vadd.f32 %v2028, %v2043
    %v2097 = vadd.f32 %v2029, %v2043
    %v2098 = vadd.f32 %v2030, %v2043
    %v2099 = vadd.f32 %v2031, %v2043
    %v2100 = vadd.f32 %v2032, %v2043
    %v2101 = vadd.f32 %v2033, %v2043
    %v2102 = vadd.f32 %v2034, %v2043
    %v2103 = vadd.f32 %v2035, %v2043
    %v2104 = vadd.f32 %v2036, %v2043
    %v2105 = vadd.f32 %v2037, %v2043
    %v2106 = vadd.f32 %v2038, %v2043
    %v2107 = vadd.f32 %v2039, %v2043
    %v2108 = vadd.f32 %v2040, %v2043
    %2109 = vst [vmem:[%s3] sm:$0xff] %v2045
    %2110 = vst [vmem:[%s3 + $0x8] sm:$0xff] %v2046
    %2111 = vst [vmem:[%s3 + $0x10] sm:$0xff] %v2047
    %2112 = vst [vmem:[%s3 + $0x18] sm:$0xff] %v2048
    %2113 = vst [vmem:[%s3 + $0x20] sm:$0xff] %v2049
    %2114 = vst [vmem:[%s3 + $0x28] sm:$0xff] %v2050
    %2115 = vst [vmem:[%s3 + $0x30] sm:$0xff] %v2051
    %2116 = vst [vmem:[%s3 + $0x38] sm:$0xff] %v2052
    %2117 = vst [vmem:[%s3 + $0x40] sm:$0xff] %v2053
    %2118 = vst [vmem:[%s3 + $0x48] sm:$0xff] %v2054
    %2119 = vst [vmem:[%s3 + $0x50] sm:$0xff] %v2055
    %2120 = vst [vmem:[%s3 + $0x58] sm:$0xff] %v2056
    %2121 = vst [vmem:[%s3 + $0x60] sm:$0xff] %v2057
    %2122 = vst [vmem:[%s3 + $0x68] sm:$0xff] %v2058
    %2123 = vst [vmem:[%s3 + $0x70] sm:$0xff] %v2059
    %2124 = vst [vmem:[%s3 + $0x78] sm:$0xff] %v2060
    %2125 = vst [vmem:[%s3 + $0x80] sm:$0xff] %v2061
    %2126 = vst [vmem:[%s3 + $0x88] sm:$0xff] %v2062
    %2127 = vst [vmem:[%s3 + $0x90] sm:$0xff] %v2063
    %2128 = vst [vmem:[%s3 + $0x98] sm:$0xff] %v2064
    %2129 = vst [vmem:[%s3 + $0xa0] sm:$0xff] %v2065
    %2130 = vst [vmem:[%s3 + $0xa8] sm:$0xff] %v2066
    %2131 = vst [vmem:[%s3 + $0xb0] sm:$0xff] %v2067
    %2132 = vst [vmem:[%s3 + $0xb8] sm:$0xff] %v2068
    %2133 = vst [vmem:[%s3 + $0xc0] sm:$0xff] %v2069
    %2134 = vst [vmem:[%s3 + $0xc8] sm:$0xff] %v2070
    %2135 = vst [vmem:[%s3 + $0xd0] sm:$0xff] %v2071
    %2136 = vst [vmem:[%s3 + $0xd8] sm:$0xff] %v2072
    %2137 = vst [vmem:[%s3 + $0xe0] sm:$0xff] %v2073
    %2138 = vst [vmem:[%s3 + $0xe8] sm:$0xff] %v2074
    %2139 = vst [vmem:[%s3 + $0xf0] sm:$0xff] %v2075
    %2140 = vst [vmem:[%s3 + $0xf8] sm:$0xff] %v2076
    %2141 = vst [vmem:[%s3 + $0x100] sm:$0xff] %v2077
    %2142 = vst [vmem:[%s3 + $0x108] sm:$0xff] %v2078
    %2143 = vst [vmem:[%s3 + $0x110] sm:$0xff] %v2079
    %2144 = vst [vmem:[%s3 + $0x118] sm:$0xff] %v2080
    %2145 = vst [vmem:[%s3 + $0x120] sm:$0xff] %v2081
    %2146 = vst [vmem:[%s3 + $0x128] sm:$0xff] %v2082
    %2147 = vst [vmem:[%s3 + $0x130] sm:$0xff] %v2083
    %2148 = vst [vmem:[%s3 + $0x138] sm:$0xff] %v2084
    %2149 = vst [vmem:[%s3 + $0x140] sm:$0xff] %v2085
    %2150 = vst [vmem:[%s3 + $0x148] sm:$0xff] %v2086
    %2151 = vst [vmem:[%s3 + $0x150] sm:$0xff] %v2087
    %2152 = vst [vmem:[%s3 + $0x158] sm:$0xff] %v2088
    %2153 = vst [vmem:[%s3 + $0x160] sm:$0xff] %v2089
    %2154 = vst [vmem:[%s3 + $0x168] sm:$0xff] %v2090
    %2155 = vst [vmem:[%s3 + $0x170] sm:$0xff] %v2091
    %2156 = vst [vmem:[%s3 + $0x178] sm:$0xff] %v2092
    %2157 = vst [vmem:[%s3 + $0x180] sm:$0xff] %v2093
    %2158 = vst [vmem:[%s3 + $0x188] sm:$0xff] %v2094
    %2159 = vst [vmem:[%s3 + $0x190] sm:$0xff] %v2095
    %2160 = vst [vmem:[%s3 + $0x198] sm:$0xff] %v2096
    %2161 = vst [vmem:[%s3 + $0x1a0] sm:$0xff] %v2097
    %2162 = vst [vmem:[%s3 + $0x1a8] sm:$0xff] %v2098
    %2163 = vst [vmem:[%s3 + $0x1b0] sm:$0xff] %v2099
    %2164 = vst [vmem:[%s3 + $0x1b8] sm:$0xff] %v2100
    %2165 = vst [vmem:[%s3 + $0x1c0] sm:$0xff] %v2101
    %2166 = vst [vmem:[%s3 + $0x1c8] sm:$0xff] %v2102
    %2167 = vst [vmem:[%s3 + $0x1d0] sm:$0xff] %v2103
    %2168 = vst [vmem:[%s3 + $0x1d8] sm:$0xff] %v2104
    %2169 = vst [vmem:[%s3 + $0x1e0] sm:$0xff] %v2105
    %2170 = vst [vmem:[%s3 + $0x1e8] sm:$0xff] %v2106
    %2171 = vst [vmem:[%s3 + $0x1f0] sm:$0xff] %v2107
    %2172 = vst [vmem:[%s3 + $0x1f8] sm:$0xff] %v2108
  $region21: #{resnet_generator_forward.37} parent=0 // pred_fallthru
    _
  // Predicated region
  $region22: #{resnet_generator_forward.37} parent=0 // pred_check
    _
  $region23: #{resnet_generator_forward.37} parent=0 // pred_check_branch
    %2174 = sbr.rel (0) target = $region25
  $region24: #{resnet_generator_forward.37} parent=0 // pred_region
    _
  $region25: #{resnet_generator_forward.37} parent=0 // pred_fallthru
    _
  // Predicated region
  $region26: #{resnet_generator_forward.37} parent=0 // pred_check
    _
  $region27: #{resnet_generator_forward.37} parent=0 // pred_check_branch
    %2176 = sbr.rel (0) target = $region29
  $region28: #{resnet_generator_forward.37} parent=0 // pred_region
    _
  $region29: #{resnet_generator_forward.37} parent=0 // pred_fallthru
    _

</llo_original>
